<compile_context>
chip_gen: v6e
topology: v6e:2x2x1
jax: 0.10.0
libtpu: 0.0.40
codegen_flags: <defaults>
</compile_context>

<pallas_src>
import jax
import jax.numpy as jnp
from jax.experimental import pallas as pl
from jax.experimental.pallas import tpu as pltpu


L_IN = 84      # input length (84 -> 42 -> 21 after the two maxpools)
L_FC = 21      # sequence length entering fc1
C_FC = 128     # conv3 output channels
N_FC1 = 256    # fc1 output features


# ----------------------------------------------------------------------------
# Kernel: whole forward pass in one grid-less pallas_call (channels-last)
# ----------------------------------------------------------------------------
def net_kernel(x_ref, w1_ref, b1_ref, w2_ref, b2_ref, w3_ref, b3_ref,
               fc1w_hbm, fc1b_ref, fc2w_ref, fc2b_ref, out_ref,
               fc1w_vmem, fc1_sem):
    # Start streaming the big fc1 weight from HBM now so the DMA overlaps the
    # conv stages below; we only wait right before the fc1 matmuls.
    fc1_cp = pltpu.make_async_copy(fc1w_hbm, fc1w_vmem, fc1_sem)
    fc1_cp.start()

    x = x_ref[...].astype(jnp.float32)                       # (B, 84, 1)
    B, L1, _ = x.shape

    def pad_l(h):
        b, l, c = h.shape
        z = jnp.zeros((b, 1, c), h.dtype)
        return jnp.concatenate([z, h, z], axis=1)            # "same" padding=1

    def maxpool2(h):
        # MaxPool1d(kernel_size=2, stride=2) along L (L even at both uses).
        b, l, c = h.shape
        return jnp.max(h.reshape(b, l // 2, 2, c), axis=2)

    def conv_relu(h, w_ref, b_ref):
        # Three accumulating per-tap matmuls (K = Cin, f32 accumulation);
        # avoids the lane-axis im2col concatenate to 96/192-wide tensors.
        b, l, cin = h.shape
        hp = pad_l(h)                                         # (B, L+2, Cin)
        dn = (((2,), (0,)), ((), ()))
        acc = jax.lax.dot_general(hp[:, 0:l, :], w_ref[0], dn,
                                  preferred_element_type=jnp.float32)
        acc = acc + jax.lax.dot_general(hp[:, 1:l + 1, :], w_ref[1], dn,
                                        preferred_element_type=jnp.float32)
        acc = acc + jax.lax.dot_general(hp[:, 2:l + 2, :], w_ref[2], dn,
                                        preferred_element_type=jnp.float32)
        return jnp.maximum(acc + b_ref[...][None, :, :], 0.0)

    # ---- conv1 (Cin=1): pure VPU broadcast multiply-accumulate -------------
    w1 = w1_ref[...]                                          # (3, 32) f32
    xp = pad_l(x)                                             # (B, 86, 1)
    h = (xp[:, 0:L1, :] * w1[0][None, None, :]
         + xp[:, 1:L1 + 1, :] * w1[1][None, None, :]
         + xp[:, 2:L1 + 2, :] * w1[2][None, None, :])         # (B, 84, 32)
    h = jnp.maximum(h + b1_ref[...][None, :, :], 0.0)
    h = maxpool2(h)                                           # (B, 42, 32)

    # ---- conv2 / pool / dropout / conv3 -------------------------------------
    h = conv_relu(h, w2_ref, b2_ref)                          # (B, 42, 64)
    h = maxpool2(h)                                           # (B, 21, 64)
    # dropout1(p=0.2): identity in eval/inference mode.
    # TODO(synk): training-mode dropout (pltpu.prng_seed + mask + 1/(1-p)) not emitted.
    h = conv_relu(h, w3_ref, b3_ref)                          # (B, 21, 128)

    # ---- fc1: contract over (l, c) without the 21x128 -> 2688 lane flatten --
    fc1_cp.wait()                                             # fc1_w now in VMEM
    hb = h.astype(jnp.bfloat16)                               # (B, 21, 128)
    z1 = jnp.zeros((B, N_FC1), jnp.float32)
    for l in range(L_FC):                                     # 21 accumulating dots
        z1 = z1 + jnp.dot(hb[:, l, :], fc1w_vmem[l],
                          preferred_element_type=jnp.float32)
    z1 = jnp.maximum(z1 + fc1b_ref[...], 0.0)                 # (B, 256)

    # ---- fc2 (256 -> 1): VPU multiply + lane reduction ----------------------
    z2 = jnp.sum(z1 * fc2w_ref[...], axis=-1, keepdims=True)  # (B, 1)
    z2 = jnp.maximum(z2 + fc2b_ref[...], 0.0)                 # ReLU after fc2 (per spec)
    out_ref[...] = z2.astype(out_ref.dtype)


# ----------------------------------------------------------------------------
# One-time parameter preparation (hoisted out of the per-call forward path)
# ----------------------------------------------------------------------------
def prepare_params(params):
    """Convert PyTorch-layout params to kernel layout once, at init."""
    def conv_taps(w_pt):
        # (Cout, Cin, K=3) -> (K, Cin, Cout); conv weights are tiny -> keep f32.
        return jnp.transpose(w_pt, (2, 1, 0)).astype(jnp.float32)

    # PyTorch fc1.weight: (256, 2688) with input feature f = c*21 + l (NCL
    # flatten). Kernel contracts h[b,l,c] with W[l,c,n]  ->  (21, 128, 256).
    fc1_w = jnp.transpose(params["fc1_w"], (1, 0)).reshape(C_FC, L_FC, N_FC1)
    fc1_w = jnp.transpose(fc1_w, (1, 0, 2)).astype(jnp.bfloat16)   # (21,128,256)

    return {
        "w1": jnp.transpose(params["conv1_w"], (2, 1, 0)).reshape(3, 32).astype(jnp.float32),
        "b1": params["conv1_b"].reshape(1, -1).astype(jnp.float32),
        "w2": conv_taps(params["conv2_w"]),                        # (3, 32, 64) f32
        "b2": params["conv2_b"].reshape(1, -1).astype(jnp.float32),
        "w3": conv_taps(params["conv3_w"]),                        # (3, 64, 128) f32
        "b3": params["conv3_b"].reshape(1, -1).astype(jnp.float32),
        "fc1_w": fc1_w,                                            # bf16, streamed from HBM
        "fc1_b": params["fc1_b"].reshape(1, -1).astype(jnp.float32),
        "fc2_w": params["fc2_w"].reshape(1, -1).astype(jnp.float32),
        "fc2_b": params["fc2_b"].reshape(1, -1).astype(jnp.float32),
    }


# ----------------------------------------------------------------------------
# Forward wrapper (jitted: reshape + pallas_call dispatch compiled once)
# ----------------------------------------------------------------------------
@jax.jit
def net_forward(x_ncl, prep):
    """x_ncl: (B, 1, 84) float32, PyTorch NCL layout. Returns (B, 1) float32."""
    B, Cin, L = x_ncl.shape
    assert Cin == 1 and L == L_IN, "Net expects input of shape (B, 1, 84)"

    # (B, 1, 84) -> (B, 84, 1): pure reshape (size-1 dim moves), no transpose.
    x = x_ncl.reshape(B, L, 1).astype(jnp.float32)

    args = (x, prep["w1"], prep["b1"], prep["w2"], prep["b2"],
            prep["w3"], prep["b3"], prep["fc1_w"], prep["fc1_b"],
            prep["fc2_w"], prep["fc2_b"])

    vmem = pl.BlockSpec(memory_space=pltpu.MemorySpace.VMEM)
    in_specs = [vmem] * len(args)
    in_specs[7] = pl.BlockSpec(memory_space=pl.ANY)   # fc1_w stays in HBM; DMA'd manually

    flops = 2 * B * (84 * 3 * 32 + 42 * 3 * 32 * 64 + 21 * 3 * 64 * 128
                     + 21 * 128 * 256 + 256)
    bytes_accessed = int(sum(a.size * a.dtype.itemsize for a in args) + B * 4)

    return pl.pallas_call(
        net_kernel,
        out_shape=jax.ShapeDtypeStruct((B, 1), jnp.float32),
        in_specs=in_specs,
        out_specs=vmem,
        scratch_shapes=[pltpu.VMEM((L_FC, C_FC, N_FC1), jnp.bfloat16),
                        pltpu.SemaphoreType.DMA(())],
        cost_estimate=pl.CostEstimate(flops=flops, transcendentals=0,
                                      bytes_accessed=bytes_accessed),
    )(*args)


# ----------------------------------------------------------------------------
# Pure-JAX reference (original PyTorch layout) for correctness verification
# ----------------------------------------------------------------------------
def net_reference(x_ncl, params):
    x = x_ncl.astype(jnp.float32)                           # (B, 1, L)

    def conv1d_same(h, w, b):                               # h (B,Cin,L), w (Cout,Cin,3)
        Bb, Cc, Ll = h.shape
        hp = jnp.pad(h, ((0, 0), (0, 0), (1, 1)))
        out = sum(jnp.einsum("bcl,oc->bol", hp[:, :, k:k + Ll], w[:, :, k])
                  for k in range(3))
        return out + b[None, :, None]

    def pool(h):                                            # (B,C,L) -> (B,C,L//2)
        Bb, Cc, Ll = h.shape
        return jnp.max(h.reshape(Bb, Cc, Ll // 2, 2), axis=3)

    h = jax.nn.relu(conv1d_same(x, params["conv1_w"], params["conv1_b"]))
    h = pool(h)
    h = jax.nn.relu(conv1d_same(h, params["conv2_w"], params["conv2_b"]))
    h = pool(h)
    h = jax.nn.relu(conv1d_same(h, params["conv3_w"], params["conv3_b"]))
    flat = h.reshape(h.shape[0], -1)                        # C-major flatten (torch .view)
    z1 = jax.nn.relu(flat @ params["fc1_w"].T + params["fc1_b"])
    z2 = jax.nn.relu(z1 @ params["fc2_w"].T + params["fc2_b"])
    return z2


# ----------------------------------------------------------------------------
# Deterministic synthetic parameters (PyTorch-shaped)
# ----------------------------------------------------------------------------
def init_params(key):
    ks = jax.random.split(key, 10)

    def u(k, shape, fan_in):
        bound = 1.0 / jnp.sqrt(jnp.float32(fan_in))
        return jax.random.uniform(k, shape, jnp.float32, -bound, bound)

    return {
        "conv1_w": u(ks[0], (32, 1, 3), 1 * 3),
        "conv1_b": u(ks[1], (32,), 1 * 3),
        "conv2_w": u(ks[2], (64, 32, 3), 32 * 3),
        "conv2_b": u(ks[3], (64,), 32 * 3),
        "conv3_w": u(ks[4], (128, 64, 3), 64 * 3),
        "conv3_b": u(ks[5], (128,), 64 * 3),
        "fc1_w": u(ks[6], (256, 128 * 21), 128 * 21),
        "fc1_b": u(ks[7], (256,), 128 * 21),
        "fc2_w": u(ks[8], (1, 256), 256),
        "fc2_b": u(ks[9], (1,), 256),
    }


if __name__ == "__main__":
    key = jax.random.PRNGKey(0)
    pkey, xkey = jax.random.split(key)
    params = init_params(pkey)

    # One-time layout conversion (NOT on the per-call path).
    prep = prepare_params(params)
    prep = jax.tree_util.tree_map(jax.block_until_ready, prep)

    # Input (PyTorch NCL): batch=2, 1 channel, length 84 (84 -> 42 -> 21 = 128*21 flat)
    x = jax.random.normal(xkey, (2, 1, 84), jnp.float32)

    y = net_forward(x, prep)
    y = jax.block_until_ready(y)
    assert y.shape == (2, 1) and y.dtype == jnp.float32

    # Correctness vs. f32 reference (fc1 path uses bf16 -> loose tolerance).
    y_ref = net_reference(x, params)
    assert jnp.allclose(y, y_ref, rtol=5e-2, atol=1e-2), (y, y_ref)

    print("KERNEL_OK")
</pallas_src>

<mosaic_0001>
module attributes {stable_mosaic.version = 11 : i64} {
  func.func @net_kernel(%arg0: memref<2x84x1xf32, #tpu.memory_space<vmem>>, %arg1: memref<3x32xf32, #tpu.memory_space<vmem>>, %arg2: memref<1x32xf32, #tpu.memory_space<vmem>>, %arg3: memref<3x32x64xf32, #tpu.memory_space<vmem>>, %arg4: memref<1x64xf32, #tpu.memory_space<vmem>>, %arg5: memref<3x64x128xf32, #tpu.memory_space<vmem>>, %arg6: memref<1x128xf32, #tpu.memory_space<vmem>>, %arg7: memref<21x128x256xbf16, #tpu.memory_space<any>>, %arg8: memref<1x256xf32, #tpu.memory_space<vmem>>, %arg9: memref<1x256xf32, #tpu.memory_space<vmem>>, %arg10: memref<1x1xf32, #tpu.memory_space<vmem>>, %arg11: memref<2x1xf32, #tpu.memory_space<vmem>>, %arg12: memref<21x128x256xbf16, #tpu.memory_space<vmem>>, %arg13: memref<!tpu.dma_semaphore, #tpu.memory_space<semaphore_mem>>) attributes {dimension_semantics = [], scalar_prefetch = 0 : i64, scratch_operands = 2 : i64, tpu.core_type = #tpu.core_type<tc>} {
    tpu.enqueue_dma source(%arg7 : memref<21x128x256xbf16, #tpu.memory_space<any>>) target(%arg12 : memref<21x128x256xbf16, #tpu.memory_space<vmem>>) target_semaphore(%arg13 : memref<!tpu.dma_semaphore, #tpu.memory_space<semaphore_mem>>)
    %c0 = arith.constant 0 : index
    %c0_0 = arith.constant 0 : index
    %c0_1 = arith.constant 0 : index
    %0 = vector.load %arg0[%c0, %c0_0, %c0_1] : memref<2x84x1xf32, #tpu.memory_space<vmem>>, vector<2x84x1xf32>
    %c0_2 = arith.constant 0 : index
    %c0_3 = arith.constant 0 : index
    %1 = vector.load %arg1[%c0_2, %c0_3] : memref<3x32xf32, #tpu.memory_space<vmem>>, vector<3x32xf32>
    %cst = arith.constant 0.000000e+00 : f32
    %2 = vector.broadcast %cst : f32 to vector<2x1x1xf32>
    %3 = tpu.concatenate %2, %0, %2 in 1 : vector<2x1x1xf32>, vector<2x84x1xf32>, vector<2x1x1xf32> -> vector<2x86x1xf32>
    %4 = vector.extract_strided_slice %3 {offsets = [0, 0, 0], sizes = [2, 84, 1], strides = [1, 1, 1]} : vector<2x86x1xf32> to vector<2x84x1xf32>
    %5 = vector.extract_strided_slice %1 {offsets = [0, 0], sizes = [1, 32], strides = [1, 1]} : vector<3x32xf32> to vector<1x32xf32>
    %6 = vector.shape_cast %5 : vector<1x32xf32> to vector<32xf32>
    %7 = vector.shape_cast %6 : vector<32xf32> to vector<1x1x32xf32>
    %8 = vector.broadcast %4 : vector<2x84x1xf32> to vector<2x84x32xf32>
    %9 = vector.broadcast %7 : vector<1x1x32xf32> to vector<2x84x32xf32>
    %10 = arith.mulf %8, %9 : vector<2x84x32xf32>
    %11 = vector.extract_strided_slice %3 {offsets = [0, 1, 0], sizes = [2, 84, 1], strides = [1, 1, 1]} : vector<2x86x1xf32> to vector<2x84x1xf32>
    %12 = vector.extract_strided_slice %1 {offsets = [1, 0], sizes = [1, 32], strides = [1, 1]} : vector<3x32xf32> to vector<1x32xf32>
    %13 = vector.shape_cast %12 : vector<1x32xf32> to vector<32xf32>
    %14 = vector.shape_cast %13 : vector<32xf32> to vector<1x1x32xf32>
    %15 = vector.broadcast %11 : vector<2x84x1xf32> to vector<2x84x32xf32>
    %16 = vector.broadcast %14 : vector<1x1x32xf32> to vector<2x84x32xf32>
    %17 = arith.mulf %15, %16 : vector<2x84x32xf32>
    %18 = arith.addf %10, %17 : vector<2x84x32xf32>
    %19 = vector.extract_strided_slice %3 {offsets = [0, 2, 0], sizes = [2, 84, 1], strides = [1, 1, 1]} : vector<2x86x1xf32> to vector<2x84x1xf32>
    %20 = vector.extract_strided_slice %1 {offsets = [2, 0], sizes = [1, 32], strides = [1, 1]} : vector<3x32xf32> to vector<1x32xf32>
    %21 = vector.shape_cast %20 : vector<1x32xf32> to vector<32xf32>
    %22 = vector.shape_cast %21 : vector<32xf32> to vector<1x1x32xf32>
    %23 = vector.broadcast %19 : vector<2x84x1xf32> to vector<2x84x32xf32>
    %24 = vector.broadcast %22 : vector<1x1x32xf32> to vector<2x84x32xf32>
    %25 = arith.mulf %23, %24 : vector<2x84x32xf32>
    %26 = arith.addf %18, %25 : vector<2x84x32xf32>
    %c0_4 = arith.constant 0 : index
    %c0_5 = arith.constant 0 : index
    %27 = vector.load %arg2[%c0_4, %c0_5] : memref<1x32xf32, #tpu.memory_space<vmem>>, vector<1x32xf32>
    %28 = vector.shape_cast %27 : vector<1x32xf32> to vector<1x1x32xf32>
    %29 = vector.broadcast %28 : vector<1x1x32xf32> to vector<2x84x32xf32>
    %30 = arith.addf %26, %29 : vector<2x84x32xf32>
    %cst_6 = arith.constant 0.000000e+00 : f32
    %31 = vector.broadcast %cst_6 : f32 to vector<2x84x32xf32>
    %32 = arith.maximumf %30, %31 : vector<2x84x32xf32>
    %33 = vector.shape_cast %32 : vector<2x84x32xf32> to vector<2x42x2x32xf32>
    %cst_7 = arith.constant dense<0xFF800000> : vector<2x42x32xf32>
    %34 = vector.multi_reduction <maximumf>, %33, %cst_7 [2] : vector<2x42x2x32xf32> to vector<2x42x32xf32>
    %cst_8 = arith.constant 0.000000e+00 : f32
    %35 = vector.broadcast %cst_8 : f32 to vector<2x1x32xf32>
    %36 = tpu.concatenate %35, %34, %35 in 1 : vector<2x1x32xf32>, vector<2x42x32xf32>, vector<2x1x32xf32> -> vector<2x44x32xf32>
    %37 = vector.extract_strided_slice %36 {offsets = [0, 0, 0], sizes = [2, 42, 32], strides = [1, 1, 1]} : vector<2x44x32xf32> to vector<2x42x32xf32>
    %c0_9 = arith.constant 0 : index
    %c0_10 = arith.constant 0 : index
    %c0_11 = arith.constant 0 : index
    %38 = vector.load %arg3[%c0_9, %c0_10, %c0_11] : memref<3x32x64xf32, #tpu.memory_space<vmem>>, vector<1x32x64xf32>
    %39 = vector.shape_cast %38 : vector<1x32x64xf32> to vector<32x64xf32>
    %cst_12 = arith.constant dense<0.000000e+00> : vector<2x42x64xf32>
    %40 = tpu.matmul %37, %39, %cst_12 {dimension_numbers = #tpu.dot_dimension_numbers<[2], [0], [0, 1], [1], [0, 0, 0, 1, 1, 1], [], []>} : vector<2x42x32xf32>, vector<32x64xf32>, vector<2x42x64xf32> -> vector<2x42x64xf32>
    %41 = vector.extract_strided_slice %36 {offsets = [0, 1, 0], sizes = [2, 42, 32], strides = [1, 1, 1]} : vector<2x44x32xf32> to vector<2x42x32xf32>
    %c1 = arith.constant 1 : index
    %c0_13 = arith.constant 0 : index
    %c0_14 = arith.constant 0 : index
    %42 = vector.load %arg3[%c1, %c0_13, %c0_14] : memref<3x32x64xf32, #tpu.memory_space<vmem>>, vector<1x32x64xf32>
    %43 = vector.shape_cast %42 : vector<1x32x64xf32> to vector<32x64xf32>
    %cst_15 = arith.constant dense<0.000000e+00> : vector<2x42x64xf32>
    %44 = tpu.matmul %41, %43, %cst_15 {dimension_numbers = #tpu.dot_dimension_numbers<[2], [0], [0, 1], [1], [0, 0, 0, 1, 1, 1], [], []>} : vector<2x42x32xf32>, vector<32x64xf32>, vector<2x42x64xf32> -> vector<2x42x64xf32>
    %45 = arith.addf %40, %44 : vector<2x42x64xf32>
    %46 = vector.extract_strided_slice %36 {offsets = [0, 2, 0], sizes = [2, 42, 32], strides = [1, 1, 1]} : vector<2x44x32xf32> to vector<2x42x32xf32>
    %c2 = arith.constant 2 : index
    %c0_16 = arith.constant 0 : index
    %c0_17 = arith.constant 0 : index
    %47 = vector.load %arg3[%c2, %c0_16, %c0_17] : memref<3x32x64xf32, #tpu.memory_space<vmem>>, vector<1x32x64xf32>
    %48 = vector.shape_cast %47 : vector<1x32x64xf32> to vector<32x64xf32>
    %cst_18 = arith.constant dense<0.000000e+00> : vector<2x42x64xf32>
    %49 = tpu.matmul %46, %48, %cst_18 {dimension_numbers = #tpu.dot_dimension_numbers<[2], [0], [0, 1], [1], [0, 0, 0, 1, 1, 1], [], []>} : vector<2x42x32xf32>, vector<32x64xf32>, vector<2x42x64xf32> -> vector<2x42x64xf32>
    %50 = arith.addf %45, %49 : vector<2x42x64xf32>
    %c0_19 = arith.constant 0 : index
    %c0_20 = arith.constant 0 : index
    %51 = vector.load %arg4[%c0_19, %c0_20] : memref<1x64xf32, #tpu.memory_space<vmem>>, vector<1x64xf32>
    %52 = vector.shape_cast %51 : vector<1x64xf32> to vector<1x1x64xf32>
    %53 = vector.broadcast %52 : vector<1x1x64xf32> to vector<2x42x64xf32>
    %54 = arith.addf %50, %53 : vector<2x42x64xf32>
    %cst_21 = arith.constant 0.000000e+00 : f32
    %55 = vector.broadcast %cst_21 : f32 to vector<2x42x64xf32>
    %56 = arith.maximumf %54, %55 : vector<2x42x64xf32>
    %57 = vector.shape_cast %56 : vector<2x42x64xf32> to vector<2x21x2x64xf32>
    %cst_22 = arith.constant dense<0xFF800000> : vector<2x21x64xf32>
    %58 = vector.multi_reduction <maximumf>, %57, %cst_22 [2] : vector<2x21x2x64xf32> to vector<2x21x64xf32>
    %cst_23 = arith.constant 0.000000e+00 : f32
    %59 = vector.broadcast %cst_23 : f32 to vector<2x1x64xf32>
    %60 = tpu.concatenate %59, %58, %59 in 1 : vector<2x1x64xf32>, vector<2x21x64xf32>, vector<2x1x64xf32> -> vector<2x23x64xf32>
    %61 = vector.extract_strided_slice %60 {offsets = [0, 0, 0], sizes = [2, 21, 64], strides = [1, 1, 1]} : vector<2x23x64xf32> to vector<2x21x64xf32>
    %c0_24 = arith.constant 0 : index
    %c0_25 = arith.constant 0 : index
    %c0_26 = arith.constant 0 : index
    %62 = vector.load %arg5[%c0_24, %c0_25, %c0_26] : memref<3x64x128xf32, #tpu.memory_space<vmem>>, vector<1x64x128xf32>
    %63 = vector.shape_cast %62 : vector<1x64x128xf32> to vector<64x128xf32>
    %cst_27 = arith.constant dense<0.000000e+00> : vector<2x21x128xf32>
    %64 = tpu.matmul %61, %63, %cst_27 {dimension_numbers = #tpu.dot_dimension_numbers<[2], [0], [0, 1], [1], [0, 0, 0, 1, 1, 1], [], []>} : vector<2x21x64xf32>, vector<64x128xf32>, vector<2x21x128xf32> -> vector<2x21x128xf32>
    %65 = vector.extract_strided_slice %60 {offsets = [0, 1, 0], sizes = [2, 21, 64], strides = [1, 1, 1]} : vector<2x23x64xf32> to vector<2x21x64xf32>
    %c1_28 = arith.constant 1 : index
    %c0_29 = arith.constant 0 : index
    %c0_30 = arith.constant 0 : index
    %66 = vector.load %arg5[%c1_28, %c0_29, %c0_30] : memref<3x64x128xf32, #tpu.memory_space<vmem>>, vector<1x64x128xf32>
    %67 = vector.shape_cast %66 : vector<1x64x128xf32> to vector<64x128xf32>
    %cst_31 = arith.constant dense<0.000000e+00> : vector<2x21x128xf32>
    %68 = tpu.matmul %65, %67, %cst_31 {dimension_numbers = #tpu.dot_dimension_numbers<[2], [0], [0, 1], [1], [0, 0, 0, 1, 1, 1], [], []>} : vector<2x21x64xf32>, vector<64x128xf32>, vector<2x21x128xf32> -> vector<2x21x128xf32>
    %69 = arith.addf %64, %68 : vector<2x21x128xf32>
    %70 = vector.extract_strided_slice %60 {offsets = [0, 2, 0], sizes = [2, 21, 64], strides = [1, 1, 1]} : vector<2x23x64xf32> to vector<2x21x64xf32>
    %c2_32 = arith.constant 2 : index
    %c0_33 = arith.constant 0 : index
    %c0_34 = arith.constant 0 : index
    %71 = vector.load %arg5[%c2_32, %c0_33, %c0_34] : memref<3x64x128xf32, #tpu.memory_space<vmem>>, vector<1x64x128xf32>
    %72 = vector.shape_cast %71 : vector<1x64x128xf32> to vector<64x128xf32>
    %cst_35 = arith.constant dense<0.000000e+00> : vector<2x21x128xf32>
    %73 = tpu.matmul %70, %72, %cst_35 {dimension_numbers = #tpu.dot_dimension_numbers<[2], [0], [0, 1], [1], [0, 0, 0, 1, 1, 1], [], []>} : vector<2x21x64xf32>, vector<64x128xf32>, vector<2x21x128xf32> -> vector<2x21x128xf32>
    %74 = arith.addf %69, %73 : vector<2x21x128xf32>
    %c0_36 = arith.constant 0 : index
    %c0_37 = arith.constant 0 : index
    %75 = vector.load %arg6[%c0_36, %c0_37] : memref<1x128xf32, #tpu.memory_space<vmem>>, vector<1x128xf32>
    %76 = vector.shape_cast %75 : vector<1x128xf32> to vector<1x1x128xf32>
    %77 = vector.broadcast %76 : vector<1x1x128xf32> to vector<2x21x128xf32>
    %78 = arith.addf %74, %77 : vector<2x21x128xf32>
    %cst_38 = arith.constant 0.000000e+00 : f32
    %79 = vector.broadcast %cst_38 : f32 to vector<2x21x128xf32>
    %80 = arith.maximumf %78, %79 : vector<2x21x128xf32>
    tpu.wait_dma2 semaphore(%arg13 : memref<!tpu.dma_semaphore, #tpu.memory_space<semaphore_mem>>) src(%arg7 : memref<21x128x256xbf16, #tpu.memory_space<any>>) dst(%arg12 : memref<21x128x256xbf16, #tpu.memory_space<vmem>>)
    %81 = arith.truncf %80 : vector<2x21x128xf32> to vector<2x21x128xbf16>
    %cst_39 = arith.constant 0.000000e+00 : f32
    %82 = vector.broadcast %cst_39 : f32 to vector<2x256xf32>
    %83 = vector.extract_strided_slice %81 {offsets = [0, 0, 0], sizes = [2, 1, 128], strides = [1, 1, 1]} : vector<2x21x128xbf16> to vector<2x1x128xbf16>
    %84 = vector.shape_cast %83 : vector<2x1x128xbf16> to vector<2x128xbf16>
    %c0_40 = arith.constant 0 : index
    %c0_41 = arith.constant 0 : index
    %c0_42 = arith.constant 0 : index
    %85 = vector.load %arg12[%c0_40, %c0_41, %c0_42] : memref<21x128x256xbf16, #tpu.memory_space<vmem>>, vector<1x128x256xbf16>
    %86 = vector.shape_cast %85 : vector<1x128x256xbf16> to vector<128x256xbf16>
    %cst_43 = arith.constant dense<0.000000e+00> : vector<2x256xf32>
    %87 = tpu.matmul %84, %86, %cst_43 {dimension_numbers = #tpu.dot_dimension_numbers<[1], [0], [0], [1], [0, 0, 1, 1], [], []>} : vector<2x128xbf16>, vector<128x256xbf16>, vector<2x256xf32> -> vector<2x256xf32>
    %88 = arith.addf %82, %87 : vector<2x256xf32>
    %89 = vector.extract_strided_slice %81 {offsets = [0, 1, 0], sizes = [2, 1, 128], strides = [1, 1, 1]} : vector<2x21x128xbf16> to vector<2x1x128xbf16>
    %90 = vector.shape_cast %89 : vector<2x1x128xbf16> to vector<2x128xbf16>
    %c1_44 = arith.constant 1 : index
    %c0_45 = arith.constant 0 : index
    %c0_46 = arith.constant 0 : index
    %91 = vector.load %arg12[%c1_44, %c0_45, %c0_46] : memref<21x128x256xbf16, #tpu.memory_space<vmem>>, vector<1x128x256xbf16>
    %92 = vector.shape_cast %91 : vector<1x128x256xbf16> to vector<128x256xbf16>
    %cst_47 = arith.constant dense<0.000000e+00> : vector<2x256xf32>
    %93 = tpu.matmul %90, %92, %cst_47 {dimension_numbers = #tpu.dot_dimension_numbers<[1], [0], [0], [1], [0, 0, 1, 1], [], []>} : vector<2x128xbf16>, vector<128x256xbf16>, vector<2x256xf32> -> vector<2x256xf32>
    %94 = arith.addf %88, %93 : vector<2x256xf32>
    %95 = vector.extract_strided_slice %81 {offsets = [0, 2, 0], sizes = [2, 1, 128], strides = [1, 1, 1]} : vector<2x21x128xbf16> to vector<2x1x128xbf16>
    %96 = vector.shape_cast %95 : vector<2x1x128xbf16> to vector<2x128xbf16>
    %c2_48 = arith.constant 2 : index
    %c0_49 = arith.constant 0 : index
    %c0_50 = arith.constant 0 : index
    %97 = vector.load %arg12[%c2_48, %c0_49, %c0_50] : memref<21x128x256xbf16, #tpu.memory_space<vmem>>, vector<1x128x256xbf16>
    %98 = vector.shape_cast %97 : vector<1x128x256xbf16> to vector<128x256xbf16>
    %cst_51 = arith.constant dense<0.000000e+00> : vector<2x256xf32>
    %99 = tpu.matmul %96, %98, %cst_51 {dimension_numbers = #tpu.dot_dimension_numbers<[1], [0], [0], [1], [0, 0, 1, 1], [], []>} : vector<2x128xbf16>, vector<128x256xbf16>, vector<2x256xf32> -> vector<2x256xf32>
    %100 = arith.addf %94, %99 : vector<2x256xf32>
    %101 = vector.extract_strided_slice %81 {offsets = [0, 3, 0], sizes = [2, 1, 128], strides = [1, 1, 1]} : vector<2x21x128xbf16> to vector<2x1x128xbf16>
    %102 = vector.shape_cast %101 : vector<2x1x128xbf16> to vector<2x128xbf16>
    %c3 = arith.constant 3 : index
    %c0_52 = arith.constant 0 : index
    %c0_53 = arith.constant 0 : index
    %103 = vector.load %arg12[%c3, %c0_52, %c0_53] : memref<21x128x256xbf16, #tpu.memory_space<vmem>>, vector<1x128x256xbf16>
    %104 = vector.shape_cast %103 : vector<1x128x256xbf16> to vector<128x256xbf16>
    %cst_54 = arith.constant dense<0.000000e+00> : vector<2x256xf32>
    %105 = tpu.matmul %102, %104, %cst_54 {dimension_numbers = #tpu.dot_dimension_numbers<[1], [0], [0], [1], [0, 0, 1, 1], [], []>} : vector<2x128xbf16>, vector<128x256xbf16>, vector<2x256xf32> -> vector<2x256xf32>
    %106 = arith.addf %100, %105 : vector<2x256xf32>
    %107 = vector.extract_strided_slice %81 {offsets = [0, 4, 0], sizes = [2, 1, 128], strides = [1, 1, 1]} : vector<2x21x128xbf16> to vector<2x1x128xbf16>
    %108 = vector.shape_cast %107 : vector<2x1x128xbf16> to vector<2x128xbf16>
    %c4 = arith.constant 4 : index
    %c0_55 = arith.constant 0 : index
    %c0_56 = arith.constant 0 : index
    %109 = vector.load %arg12[%c4, %c0_55, %c0_56] : memref<21x128x256xbf16, #tpu.memory_space<vmem>>, vector<1x128x256xbf16>
    %110 = vector.shape_cast %109 : vector<1x128x256xbf16> to vector<128x256xbf16>
    %cst_57 = arith.constant dense<0.000000e+00> : vector<2x256xf32>
    %111 = tpu.matmul %108, %110, %cst_57 {dimension_numbers = #tpu.dot_dimension_numbers<[1], [0], [0], [1], [0, 0, 1, 1], [], []>} : vector<2x128xbf16>, vector<128x256xbf16>, vector<2x256xf32> -> vector<2x256xf32>
    %112 = arith.addf %106, %111 : vector<2x256xf32>
    %113 = vector.extract_strided_slice %81 {offsets = [0, 5, 0], sizes = [2, 1, 128], strides = [1, 1, 1]} : vector<2x21x128xbf16> to vector<2x1x128xbf16>
    %114 = vector.shape_cast %113 : vector<2x1x128xbf16> to vector<2x128xbf16>
    %c5 = arith.constant 5 : index
    %c0_58 = arith.constant 0 : index
    %c0_59 = arith.constant 0 : index
    %115 = vector.load %arg12[%c5, %c0_58, %c0_59] : memref<21x128x256xbf16, #tpu.memory_space<vmem>>, vector<1x128x256xbf16>
    %116 = vector.shape_cast %115 : vector<1x128x256xbf16> to vector<128x256xbf16>
    %cst_60 = arith.constant dense<0.000000e+00> : vector<2x256xf32>
    %117 = tpu.matmul %114, %116, %cst_60 {dimension_numbers = #tpu.dot_dimension_numbers<[1], [0], [0], [1], [0, 0, 1, 1], [], []>} : vector<2x128xbf16>, vector<128x256xbf16>, vector<2x256xf32> -> vector<2x256xf32>
    %118 = arith.addf %112, %117 : vector<2x256xf32>
    %119 = vector.extract_strided_slice %81 {offsets = [0, 6, 0], sizes = [2, 1, 128], strides = [1, 1, 1]} : vector<2x21x128xbf16> to vector<2x1x128xbf16>
    %120 = vector.shape_cast %119 : vector<2x1x128xbf16> to vector<2x128xbf16>
    %c6 = arith.constant 6 : index
    %c0_61 = arith.constant 0 : index
    %c0_62 = arith.constant 0 : index
    %121 = vector.load %arg12[%c6, %c0_61, %c0_62] : memref<21x128x256xbf16, #tpu.memory_space<vmem>>, vector<1x128x256xbf16>
    %122 = vector.shape_cast %121 : vector<1x128x256xbf16> to vector<128x256xbf16>
    %cst_63 = arith.constant dense<0.000000e+00> : vector<2x256xf32>
    %123 = tpu.matmul %120, %122, %cst_63 {dimension_numbers = #tpu.dot_dimension_numbers<[1], [0], [0], [1], [0, 0, 1, 1], [], []>} : vector<2x128xbf16>, vector<128x256xbf16>, vector<2x256xf32> -> vector<2x256xf32>
    %124 = arith.addf %118, %123 : vector<2x256xf32>
    %125 = vector.extract_strided_slice %81 {offsets = [0, 7, 0], sizes = [2, 1, 128], strides = [1, 1, 1]} : vector<2x21x128xbf16> to vector<2x1x128xbf16>
    %126 = vector.shape_cast %125 : vector<2x1x128xbf16> to vector<2x128xbf16>
    %c7 = arith.constant 7 : index
    %c0_64 = arith.constant 0 : index
    %c0_65 = arith.constant 0 : index
    %127 = vector.load %arg12[%c7, %c0_64, %c0_65] : memref<21x128x256xbf16, #tpu.memory_space<vmem>>, vector<1x128x256xbf16>
    %128 = vector.shape_cast %127 : vector<1x128x256xbf16> to vector<128x256xbf16>
    %cst_66 = arith.constant dense<0.000000e+00> : vector<2x256xf32>
    %129 = tpu.matmul %126, %128, %cst_66 {dimension_numbers = #tpu.dot_dimension_numbers<[1], [0], [0], [1], [0, 0, 1, 1], [], []>} : vector<2x128xbf16>, vector<128x256xbf16>, vector<2x256xf32> -> vector<2x256xf32>
    %130 = arith.addf %124, %129 : vector<2x256xf32>
    %131 = vector.extract_strided_slice %81 {offsets = [0, 8, 0], sizes = [2, 1, 128], strides = [1, 1, 1]} : vector<2x21x128xbf16> to vector<2x1x128xbf16>
    %132 = vector.shape_cast %131 : vector<2x1x128xbf16> to vector<2x128xbf16>
    %c8 = arith.constant 8 : index
    %c0_67 = arith.constant 0 : index
    %c0_68 = arith.constant 0 : index
    %133 = vector.load %arg12[%c8, %c0_67, %c0_68] : memref<21x128x256xbf16, #tpu.memory_space<vmem>>, vector<1x128x256xbf16>
    %134 = vector.shape_cast %133 : vector<1x128x256xbf16> to vector<128x256xbf16>
    %cst_69 = arith.constant dense<0.000000e+00> : vector<2x256xf32>
    %135 = tpu.matmul %132, %134, %cst_69 {dimension_numbers = #tpu.dot_dimension_numbers<[1], [0], [0], [1], [0, 0, 1, 1], [], []>} : vector<2x128xbf16>, vector<128x256xbf16>, vector<2x256xf32> -> vector<2x256xf32>
    %136 = arith.addf %130, %135 : vector<2x256xf32>
    %137 = vector.extract_strided_slice %81 {offsets = [0, 9, 0], sizes = [2, 1, 128], strides = [1, 1, 1]} : vector<2x21x128xbf16> to vector<2x1x128xbf16>
    %138 = vector.shape_cast %137 : vector<2x1x128xbf16> to vector<2x128xbf16>
    %c9 = arith.constant 9 : index
    %c0_70 = arith.constant 0 : index
    %c0_71 = arith.constant 0 : index
    %139 = vector.load %arg12[%c9, %c0_70, %c0_71] : memref<21x128x256xbf16, #tpu.memory_space<vmem>>, vector<1x128x256xbf16>
    %140 = vector.shape_cast %139 : vector<1x128x256xbf16> to vector<128x256xbf16>
    %cst_72 = arith.constant dense<0.000000e+00> : vector<2x256xf32>
    %141 = tpu.matmul %138, %140, %cst_72 {dimension_numbers = #tpu.dot_dimension_numbers<[1], [0], [0], [1], [0, 0, 1, 1], [], []>} : vector<2x128xbf16>, vector<128x256xbf16>, vector<2x256xf32> -> vector<2x256xf32>
    %142 = arith.addf %136, %141 : vector<2x256xf32>
    %143 = vector.extract_strided_slice %81 {offsets = [0, 10, 0], sizes = [2, 1, 128], strides = [1, 1, 1]} : vector<2x21x128xbf16> to vector<2x1x128xbf16>
    %144 = vector.shape_cast %143 : vector<2x1x128xbf16> to vector<2x128xbf16>
    %c10 = arith.constant 10 : index
    %c0_73 = arith.constant 0 : index
    %c0_74 = arith.constant 0 : index
    %145 = vector.load %arg12[%c10, %c0_73, %c0_74] : memref<21x128x256xbf16, #tpu.memory_space<vmem>>, vector<1x128x256xbf16>
    %146 = vector.shape_cast %145 : vector<1x128x256xbf16> to vector<128x256xbf16>
    %cst_75 = arith.constant dense<0.000000e+00> : vector<2x256xf32>
    %147 = tpu.matmul %144, %146, %cst_75 {dimension_numbers = #tpu.dot_dimension_numbers<[1], [0], [0], [1], [0, 0, 1, 1], [], []>} : vector<2x128xbf16>, vector<128x256xbf16>, vector<2x256xf32> -> vector<2x256xf32>
    %148 = arith.addf %142, %147 : vector<2x256xf32>
    %149 = vector.extract_strided_slice %81 {offsets = [0, 11, 0], sizes = [2, 1, 128], strides = [1, 1, 1]} : vector<2x21x128xbf16> to vector<2x1x128xbf16>
    %150 = vector.shape_cast %149 : vector<2x1x128xbf16> to vector<2x128xbf16>
    %c11 = arith.constant 11 : index
    %c0_76 = arith.constant 0 : index
    %c0_77 = arith.constant 0 : index
    %151 = vector.load %arg12[%c11, %c0_76, %c0_77] : memref<21x128x256xbf16, #tpu.memory_space<vmem>>, vector<1x128x256xbf16>
    %152 = vector.shape_cast %151 : vector<1x128x256xbf16> to vector<128x256xbf16>
    %cst_78 = arith.constant dense<0.000000e+00> : vector<2x256xf32>
    %153 = tpu.matmul %150, %152, %cst_78 {dimension_numbers = #tpu.dot_dimension_numbers<[1], [0], [0], [1], [0, 0, 1, 1], [], []>} : vector<2x128xbf16>, vector<128x256xbf16>, vector<2x256xf32> -> vector<2x256xf32>
    %154 = arith.addf %148, %153 : vector<2x256xf32>
    %155 = vector.extract_strided_slice %81 {offsets = [0, 12, 0], sizes = [2, 1, 128], strides = [1, 1, 1]} : vector<2x21x128xbf16> to vector<2x1x128xbf16>
    %156 = vector.shape_cast %155 : vector<2x1x128xbf16> to vector<2x128xbf16>
    %c12 = arith.constant 12 : index
    %c0_79 = arith.constant 0 : index
    %c0_80 = arith.constant 0 : index
    %157 = vector.load %arg12[%c12, %c0_79, %c0_80] : memref<21x128x256xbf16, #tpu.memory_space<vmem>>, vector<1x128x256xbf16>
    %158 = vector.shape_cast %157 : vector<1x128x256xbf16> to vector<128x256xbf16>
    %cst_81 = arith.constant dense<0.000000e+00> : vector<2x256xf32>
    %159 = tpu.matmul %156, %158, %cst_81 {dimension_numbers = #tpu.dot_dimension_numbers<[1], [0], [0], [1], [0, 0, 1, 1], [], []>} : vector<2x128xbf16>, vector<128x256xbf16>, vector<2x256xf32> -> vector<2x256xf32>
    %160 = arith.addf %154, %159 : vector<2x256xf32>
    %161 = vector.extract_strided_slice %81 {offsets = [0, 13, 0], sizes = [2, 1, 128], strides = [1, 1, 1]} : vector<2x21x128xbf16> to vector<2x1x128xbf16>
    %162 = vector.shape_cast %161 : vector<2x1x128xbf16> to vector<2x128xbf16>
    %c13 = arith.constant 13 : index
    %c0_82 = arith.constant 0 : index
    %c0_83 = arith.constant 0 : index
    %163 = vector.load %arg12[%c13, %c0_82, %c0_83] : memref<21x128x256xbf16, #tpu.memory_space<vmem>>, vector<1x128x256xbf16>
    %164 = vector.shape_cast %163 : vector<1x128x256xbf16> to vector<128x256xbf16>
    %cst_84 = arith.constant dense<0.000000e+00> : vector<2x256xf32>
    %165 = tpu.matmul %162, %164, %cst_84 {dimension_numbers = #tpu.dot_dimension_numbers<[1], [0], [0], [1], [0, 0, 1, 1], [], []>} : vector<2x128xbf16>, vector<128x256xbf16>, vector<2x256xf32> -> vector<2x256xf32>
    %166 = arith.addf %160, %165 : vector<2x256xf32>
    %167 = vector.extract_strided_slice %81 {offsets = [0, 14, 0], sizes = [2, 1, 128], strides = [1, 1, 1]} : vector<2x21x128xbf16> to vector<2x1x128xbf16>
    %168 = vector.shape_cast %167 : vector<2x1x128xbf16> to vector<2x128xbf16>
    %c14 = arith.constant 14 : index
    %c0_85 = arith.constant 0 : index
    %c0_86 = arith.constant 0 : index
    %169 = vector.load %arg12[%c14, %c0_85, %c0_86] : memref<21x128x256xbf16, #tpu.memory_space<vmem>>, vector<1x128x256xbf16>
    %170 = vector.shape_cast %169 : vector<1x128x256xbf16> to vector<128x256xbf16>
    %cst_87 = arith.constant dense<0.000000e+00> : vector<2x256xf32>
    %171 = tpu.matmul %168, %170, %cst_87 {dimension_numbers = #tpu.dot_dimension_numbers<[1], [0], [0], [1], [0, 0, 1, 1], [], []>} : vector<2x128xbf16>, vector<128x256xbf16>, vector<2x256xf32> -> vector<2x256xf32>
    %172 = arith.addf %166, %171 : vector<2x256xf32>
    %173 = vector.extract_strided_slice %81 {offsets = [0, 15, 0], sizes = [2, 1, 128], strides = [1, 1, 1]} : vector<2x21x128xbf16> to vector<2x1x128xbf16>
    %174 = vector.shape_cast %173 : vector<2x1x128xbf16> to vector<2x128xbf16>
    %c15 = arith.constant 15 : index
    %c0_88 = arith.constant 0 : index
    %c0_89 = arith.constant 0 : index
    %175 = vector.load %arg12[%c15, %c0_88, %c0_89] : memref<21x128x256xbf16, #tpu.memory_space<vmem>>, vector<1x128x256xbf16>
    %176 = vector.shape_cast %175 : vector<1x128x256xbf16> to vector<128x256xbf16>
    %cst_90 = arith.constant dense<0.000000e+00> : vector<2x256xf32>
    %177 = tpu.matmul %174, %176, %cst_90 {dimension_numbers = #tpu.dot_dimension_numbers<[1], [0], [0], [1], [0, 0, 1, 1], [], []>} : vector<2x128xbf16>, vector<128x256xbf16>, vector<2x256xf32> -> vector<2x256xf32>
    %178 = arith.addf %172, %177 : vector<2x256xf32>
    %179 = vector.extract_strided_slice %81 {offsets = [0, 16, 0], sizes = [2, 1, 128], strides = [1, 1, 1]} : vector<2x21x128xbf16> to vector<2x1x128xbf16>
    %180 = vector.shape_cast %179 : vector<2x1x128xbf16> to vector<2x128xbf16>
    %c16 = arith.constant 16 : index
    %c0_91 = arith.constant 0 : index
    %c0_92 = arith.constant 0 : index
    %181 = vector.load %arg12[%c16, %c0_91, %c0_92] : memref<21x128x256xbf16, #tpu.memory_space<vmem>>, vector<1x128x256xbf16>
    %182 = vector.shape_cast %181 : vector<1x128x256xbf16> to vector<128x256xbf16>
    %cst_93 = arith.constant dense<0.000000e+00> : vector<2x256xf32>
    %183 = tpu.matmul %180, %182, %cst_93 {dimension_numbers = #tpu.dot_dimension_numbers<[1], [0], [0], [1], [0, 0, 1, 1], [], []>} : vector<2x128xbf16>, vector<128x256xbf16>, vector<2x256xf32> -> vector<2x256xf32>
    %184 = arith.addf %178, %183 : vector<2x256xf32>
    %185 = vector.extract_strided_slice %81 {offsets = [0, 17, 0], sizes = [2, 1, 128], strides = [1, 1, 1]} : vector<2x21x128xbf16> to vector<2x1x128xbf16>
    %186 = vector.shape_cast %185 : vector<2x1x128xbf16> to vector<2x128xbf16>
    %c17 = arith.constant 17 : index
    %c0_94 = arith.constant 0 : index
    %c0_95 = arith.constant 0 : index
    %187 = vector.load %arg12[%c17, %c0_94, %c0_95] : memref<21x128x256xbf16, #tpu.memory_space<vmem>>, vector<1x128x256xbf16>
    %188 = vector.shape_cast %187 : vector<1x128x256xbf16> to vector<128x256xbf16>
    %cst_96 = arith.constant dense<0.000000e+00> : vector<2x256xf32>
    %189 = tpu.matmul %186, %188, %cst_96 {dimension_numbers = #tpu.dot_dimension_numbers<[1], [0], [0], [1], [0, 0, 1, 1], [], []>} : vector<2x128xbf16>, vector<128x256xbf16>, vector<2x256xf32> -> vector<2x256xf32>
    %190 = arith.addf %184, %189 : vector<2x256xf32>
    %191 = vector.extract_strided_slice %81 {offsets = [0, 18, 0], sizes = [2, 1, 128], strides = [1, 1, 1]} : vector<2x21x128xbf16> to vector<2x1x128xbf16>
    %192 = vector.shape_cast %191 : vector<2x1x128xbf16> to vector<2x128xbf16>
    %c18 = arith.constant 18 : index
    %c0_97 = arith.constant 0 : index
    %c0_98 = arith.constant 0 : index
    %193 = vector.load %arg12[%c18, %c0_97, %c0_98] : memref<21x128x256xbf16, #tpu.memory_space<vmem>>, vector<1x128x256xbf16>
    %194 = vector.shape_cast %193 : vector<1x128x256xbf16> to vector<128x256xbf16>
    %cst_99 = arith.constant dense<0.000000e+00> : vector<2x256xf32>
    %195 = tpu.matmul %192, %194, %cst_99 {dimension_numbers = #tpu.dot_dimension_numbers<[1], [0], [0], [1], [0, 0, 1, 1], [], []>} : vector<2x128xbf16>, vector<128x256xbf16>, vector<2x256xf32> -> vector<2x256xf32>
    %196 = arith.addf %190, %195 : vector<2x256xf32>
    %197 = vector.extract_strided_slice %81 {offsets = [0, 19, 0], sizes = [2, 1, 128], strides = [1, 1, 1]} : vector<2x21x128xbf16> to vector<2x1x128xbf16>
    %198 = vector.shape_cast %197 : vector<2x1x128xbf16> to vector<2x128xbf16>
    %c19 = arith.constant 19 : index
    %c0_100 = arith.constant 0 : index
    %c0_101 = arith.constant 0 : index
    %199 = vector.load %arg12[%c19, %c0_100, %c0_101] : memref<21x128x256xbf16, #tpu.memory_space<vmem>>, vector<1x128x256xbf16>
    %200 = vector.shape_cast %199 : vector<1x128x256xbf16> to vector<128x256xbf16>
    %cst_102 = arith.constant dense<0.000000e+00> : vector<2x256xf32>
    %201 = tpu.matmul %198, %200, %cst_102 {dimension_numbers = #tpu.dot_dimension_numbers<[1], [0], [0], [1], [0, 0, 1, 1], [], []>} : vector<2x128xbf16>, vector<128x256xbf16>, vector<2x256xf32> -> vector<2x256xf32>
    %202 = arith.addf %196, %201 : vector<2x256xf32>
    %203 = vector.extract_strided_slice %81 {offsets = [0, 20, 0], sizes = [2, 1, 128], strides = [1, 1, 1]} : vector<2x21x128xbf16> to vector<2x1x128xbf16>
    %204 = vector.shape_cast %203 : vector<2x1x128xbf16> to vector<2x128xbf16>
    %c20 = arith.constant 20 : index
    %c0_103 = arith.constant 0 : index
    %c0_104 = arith.constant 0 : index
    %205 = vector.load %arg12[%c20, %c0_103, %c0_104] : memref<21x128x256xbf16, #tpu.memory_space<vmem>>, vector<1x128x256xbf16>
    %206 = vector.shape_cast %205 : vector<1x128x256xbf16> to vector<128x256xbf16>
    %cst_105 = arith.constant dense<0.000000e+00> : vector<2x256xf32>
    %207 = tpu.matmul %204, %206, %cst_105 {dimension_numbers = #tpu.dot_dimension_numbers<[1], [0], [0], [1], [0, 0, 1, 1], [], []>} : vector<2x128xbf16>, vector<128x256xbf16>, vector<2x256xf32> -> vector<2x256xf32>
    %208 = arith.addf %202, %207 : vector<2x256xf32>
    %c0_106 = arith.constant 0 : index
    %c0_107 = arith.constant 0 : index
    %209 = vector.load %arg8[%c0_106, %c0_107] : memref<1x256xf32, #tpu.memory_space<vmem>>, vector<1x256xf32>
    %210 = vector.broadcast %209 : vector<1x256xf32> to vector<2x256xf32>
    %211 = arith.addf %208, %210 : vector<2x256xf32>
    %cst_108 = arith.constant 0.000000e+00 : f32
    %212 = vector.broadcast %cst_108 : f32 to vector<2x256xf32>
    %213 = arith.maximumf %211, %212 : vector<2x256xf32>
    %c0_109 = arith.constant 0 : index
    %c0_110 = arith.constant 0 : index
    %214 = vector.load %arg9[%c0_109, %c0_110] : memref<1x256xf32, #tpu.memory_space<vmem>>, vector<1x256xf32>
    %215 = vector.broadcast %214 : vector<1x256xf32> to vector<2x256xf32>
    %216 = arith.mulf %213, %215 : vector<2x256xf32>
    %cst_111 = arith.constant dense<0.000000e+00> : vector<2xf32>
    %217 = vector.multi_reduction <add>, %216, %cst_111 [1] : vector<2x256xf32> to vector<2xf32>
    %218 = vector.shape_cast %217 : vector<2xf32> to vector<2x1xf32>
    %c0_112 = arith.constant 0 : index
    %c0_113 = arith.constant 0 : index
    %219 = vector.load %arg10[%c0_112, %c0_113] : memref<1x1xf32, #tpu.memory_space<vmem>>, vector<1x1xf32>
    %220 = vector.broadcast %219 : vector<1x1xf32> to vector<2x1xf32>
    %221 = arith.addf %218, %220 : vector<2x1xf32>
    %cst_114 = arith.constant 0.000000e+00 : f32
    %222 = vector.broadcast %cst_114 : f32 to vector<2x1xf32>
    %223 = arith.maximumf %221, %222 : vector<2x1xf32>
    %c0_115 = arith.constant 0 : index
    %c0_116 = arith.constant 0 : index
    %224 = vector.load %arg11[%c0_115, %c0_116] : memref<2x1xf32, #tpu.memory_space<vmem>>, vector<2x1xf32>
    tpu.vector_store %arg11[%c0_115, %c0_116], %223 {strides = array<i32>} : memref<2x1xf32, #tpu.memory_space<vmem>>, vector<2x1xf32>,
    return
  }
}

</mosaic_0001>

<llo_original>
// kernel: net_forward.1
$region0: #{net_forward.1}
  #allocation0 [shape = 'u32[]', space=smem, size = 0x4, offset = 0x4, fixed_abs, tag = 'smem constant byte address 0x4 - core index']
  #allocation1 [shape = 'u32[144,128]{1,0:T(1,128)}', space=vmem, size = 0x12000, scoped, tag = 'internal scratch']
  #allocation2 [shape = 'bf16[21,128,256]{2,1,0:T(8,128)(2,1)}', space=vmem, size = 0x150000, scoped, tag = 'scratch operand']
  #allocation3 [shape = 's32[1]{0}', space=sflag, size = 0x4, scoped, tag = 'scratch operand']
  #allocation4 [shape = 'f32[1,1]{1,0:T(1,128)S(1)}', space=vmem, size = 0x200, scoped, tag = 'scoped memory for net_forward.1']
  #allocation18 [shape = 's32[]', space=sflag, size = 0x4, offset = 0, fixed_abs, tag = 'sflag constant byte address 0x0 - dummy sync flag']
  #allocation19 [shape = 's32[]', space=sflag, size = 0x4, offset = 0, fixed_abs, tag = 'sflag constant byte address 0x0 - dummy sync flag']
  #allocation20 [shape = 'u32[]', space=smem, size = 0x4, offset = 0x44, fixed_abs, tag = 'smem constant byte address 0x44 - assertion arg 0']
  #allocation21 [shape = 'u32[]', space=smem, size = 0x4, offset = 0x48, fixed_abs, tag = 'smem constant byte address 0x48 - assertion arg 1']
  %s0 = inlined_call_operand.vmem [shape: f32[2,84,1], index: 0, kind: input, shape index: {}]
  %s1 = inlined_call_operand.hbm [shape: f32[3,32], index: 1, kind: input, shape index: {}]
  %s2 = inlined_call_operand.hbm [shape: f32[1,32], index: 2, kind: input, shape index: {}]
  %s3 = inlined_call_operand.hbm [shape: f32[3,32,64], index: 3, kind: input, shape index: {}]
  %s4 = inlined_call_operand.hbm [shape: f32[1,64], index: 4, kind: input, shape index: {}]
  %s5 = inlined_call_operand.hbm [shape: f32[3,64,128], index: 5, kind: input, shape index: {}]
  %s6 = inlined_call_operand.hbm [shape: f32[1,128], index: 6, kind: input, shape index: {}]
  %s7 = inlined_call_operand.hbm [shape: bf16[21,128,256], index: 7, kind: input, shape index: {}]
  %s8 = inlined_call_operand.hbm [shape: f32[1,256], index: 8, kind: input, shape index: {}]
  %s9 = inlined_call_operand.hbm [shape: f32[1,256], index: 9, kind: input, shape index: {}]
  %s10 = inlined_call_operand.<no memory space> [shape: f32[1,1], index: 10, kind: input, shape index: {}]
  %s11 = inlined_call_operand.vmem [shape: f32[2,1], index: 11, kind: output, shape index: {}]
  %s12 = sld [smem:[#allocation0]]
  $region86: #{net_forward.1} parent=0
    _
  %s14 = ssub.s32 1, %s12
  %s15 = scalar_select 0, %s14, %s12
  %v16 = vstv %s10
  %17 = vst [vmem:[#allocation4] sm:$0x1] %v16
  $region1: #{net_forward.1} parent=0
    #allocation5 [shape = 'u8[2048]{0}', space=vmem, size = 0x800, scoped, tag = 'input window, operand 1, single buffered']
    #allocation6 [shape = 's32[1]{0}', space=sflag, size = 0x4, scoped, tag = 'scoped memory for net_forward.1']
    #allocation7 [shape = 'u8[512]{0}', space=vmem, size = 0x400, scoped, tag = 'input window, operand 2, single buffered']
    #allocation8 [shape = 's32[1]{0}', space=sflag, size = 0x4, scoped, tag = 'scoped memory for net_forward.1']
    #allocation9 [shape = 'u8[49152]{0}', space=vmem, size = 0xc000, scoped, tag = 'input window, operand 3, single buffered']
    #allocation10 [shape = 'u8[512]{0}', space=vmem, size = 0x400, scoped, tag = 'input window, operand 4, single buffered']
    #allocation11 [shape = 's32[1]{0}', space=sflag, size = 0x4, scoped, tag = 'scoped memory for net_forward.1']
    #allocation12 [shape = 'u8[98304]{0}', space=vmem, size = 0x18000, scoped, tag = 'input window, operand 5, single buffered']
    #allocation13 [shape = 'u8[512]{0}', space=vmem, size = 0x400, scoped, tag = 'input window, operand 6, single buffered']
    #allocation14 [shape = 's32[1]{0}', space=sflag, size = 0x4, scoped, tag = 'scoped memory for net_forward.1']
    #allocation15 [shape = 'u8[1024]{0}', space=vmem, size = 0x400, scoped, tag = 'input window, operand 8, single buffered']
    #allocation16 [shape = 'u8[1024]{0}', space=vmem, size = 0x400, scoped, tag = 'input window, operand 9, single buffered']
    #allocation17 [shape = 's32[1]{0}', space=sflag, size = 0x4, scoped, tag = 'scoped memory for net_forward.1']
    %18 = vsyncpa [#allocation6], 0
    %19 = vsyncpa [#allocation8], 0
    %20 = vsyncpa [#allocation11], 0
    %21 = vsyncpa [#allocation14], 0
    %22 = vsyncpa [#allocation17], 0
    // Predicated region
    $region2: #{net_forward.1} parent=1 // pred_check
      _
    $region3: #{net_forward.1} parent=1 // pred_check_branch
      %24 = sbr.rel (0) target = $region5
    $region4: #{net_forward.1} parent=1 // pred_region
      _
    $region5: #{net_forward.1} parent=1 // pred_fallthru
      _
    // Predicated region
    $region6: #{net_forward.1} parent=1 // pred_check
      _
    $region7: #{net_forward.1} parent=1 // pred_check_branch
      %26 = sbr.rel (0) target = $region9
    $region8: #{net_forward.1} parent=1 // pred_region
      %s28 = ssub.s32 64, 64
      %29 = vsyncadd [#allocation6], %s28
      %s31 = sshll.u32 [#allocation5], 4
      %s32 = int_to_ptr.vmem [resolvable:$true] %s31
      %34 = dma.hbm_to_vmem [thread:$0]  %s1, 64, %s32, [#allocation6]
    $region9: #{net_forward.1} parent=1 // pred_fallthru
      _
    // Predicated region
    $region10: #{net_forward.1} parent=1 // pred_check
      _
    $region11: #{net_forward.1} parent=1 // pred_check_branch
      %36 = sbr.rel (0) target = $region13
    $region12: #{net_forward.1} parent=1 // pred_region
      %s38 = ssub.s32 16, 16
      %39 = vsyncadd [#allocation8], %s38
      %s41 = sshll.u32 [#allocation7], 4
      %s42 = int_to_ptr.vmem [resolvable:$true] %s41
      %44 = dma.hbm_to_vmem [thread:$0]  %s2, 16, %s42, [#allocation8]
    $region13: #{net_forward.1} parent=1 // pred_fallthru
      _
    // Predicated region
    $region14: #{net_forward.1} parent=1 // pred_check
      _
    $region15: #{net_forward.1} parent=1 // pred_check_branch
      %46 = sbr.rel (0) target = $region17
    $region16: #{net_forward.1} parent=1 // pred_region
      %s48 = ssub.s32 1536, 1536
      %49 = vsyncadd [#allocation8], %s48
      %s50 = sshll.u32 [#allocation9], 4
      %s51 = int_to_ptr.vmem [resolvable:$true] %s50
      %56 = dma.hbm_to_vmem [thread:$0]  %s3, 1536, %s51, [#allocation8], 128, 128, 8
    $region17: #{net_forward.1} parent=1 // pred_fallthru
      _
    // Predicated region
    $region18: #{net_forward.1} parent=1 // pred_check
      _
    $region19: #{net_forward.1} parent=1 // pred_check_branch
      %58 = sbr.rel (0) target = $region21
    $region20: #{net_forward.1} parent=1 // pred_region
      %s60 = ssub.s32 16, 16
      %61 = vsyncadd [#allocation11], %s60
      %s63 = sshll.u32 [#allocation10], 4
      %s64 = int_to_ptr.vmem [resolvable:$true] %s63
      %66 = dma.hbm_to_vmem [thread:$0]  %s4, 16, %s64, [#allocation11]
    $region21: #{net_forward.1} parent=1 // pred_fallthru
      _
    // Predicated region
    $region22: #{net_forward.1} parent=1 // pred_check
      _
    $region23: #{net_forward.1} parent=1 // pred_check_branch
      %68 = sbr.rel (0) target = $region25
    $region24: #{net_forward.1} parent=1 // pred_region
      %s70 = ssub.s32 3072, 3072
      %71 = vsyncadd [#allocation11], %s70
      %s72 = sshll.u32 [#allocation12], 4
      %s73 = int_to_ptr.vmem [resolvable:$true] %s72
      %78 = dma.hbm_to_vmem [thread:$0]  %s5, 3072, %s73, [#allocation11], 128, 128, 8
    $region25: #{net_forward.1} parent=1 // pred_fallthru
      _
    // Predicated region
    $region26: #{net_forward.1} parent=1 // pred_check
      _
    $region27: #{net_forward.1} parent=1 // pred_check_branch
      %80 = sbr.rel (0) target = $region29
    $region28: #{net_forward.1} parent=1 // pred_region
      %s82 = ssub.s32 16, 16
      %83 = vsyncadd [#allocation14], %s82
      %s85 = sshll.u32 [#allocation13], 4
      %s86 = int_to_ptr.vmem [resolvable:$true] %s85
      %88 = dma.hbm_to_vmem [thread:$0]  %s6, 16, %s86, [#allocation14]
    $region29: #{net_forward.1} parent=1 // pred_fallthru
      _
    // Predicated region
    $region30: #{net_forward.1} parent=1 // pred_check
      _
    $region31: #{net_forward.1} parent=1 // pred_check_branch
      %90 = sbr.rel (0) target = $region33
    $region32: #{net_forward.1} parent=1 // pred_region
      %s92 = ssub.s32 32, 32
      %93 = vsyncadd [#allocation14], %s92
      %s95 = sshll.u32 [#allocation15], 4
      %s96 = int_to_ptr.vmem [resolvable:$true] %s95
      %98 = dma.hbm_to_vmem [thread:$0]  %s8, 32, %s96, [#allocation14]
    $region33: #{net_forward.1} parent=1 // pred_fallthru
      _
    // Predicated region
    $region34: #{net_forward.1} parent=1 // pred_check
      _
    $region35: #{net_forward.1} parent=1 // pred_check_branch
      %100 = sbr.rel (0) target = $region37
    $region36: #{net_forward.1} parent=1 // pred_region
      %s102 = ssub.s32 32, 32
      %103 = vsyncadd [#allocation17], %s102
      %s105 = sshll.u32 [#allocation16], 4
      %s106 = int_to_ptr.vmem [resolvable:$true] %s105
      %108 = dma.hbm_to_vmem [thread:$0]  %s9, 32, %s106, [#allocation17]
    $region37: #{net_forward.1} parent=1 // pred_fallthru
      _
    // Predicated region
    $region38: #{net_forward.1} parent=1 // pred_check
      _
    $region39: #{net_forward.1} parent=1 // pred_check_branch
      %110 = sbr.rel (0) target = $region41
    $region40: #{net_forward.1} parent=1 // pred_region
      _
    $region41: #{net_forward.1} parent=1 // pred_fallthru
      _
    // Predicated region
    $region42: #{net_forward.1} parent=1 // pred_check
      _
    $region43: #{net_forward.1} parent=1 // pred_check_branch
      %112 = sbr.rel (0) target = $region45
    $region44: #{net_forward.1} parent=1 // pred_region
      %113 = dma.done [#allocation6], 64
    $region45: #{net_forward.1} parent=1 // pred_fallthru
      _
    // Predicated region
    $region46: #{net_forward.1} parent=1 // pred_check
      _
    $region47: #{net_forward.1} parent=1 // pred_check_branch
      %115 = sbr.rel (0) target = $region49
    $region48: #{net_forward.1} parent=1 // pred_region
      %116 = dma.done [#allocation8], 16
    $region49: #{net_forward.1} parent=1 // pred_fallthru
      _
    // Predicated region
    $region50: #{net_forward.1} parent=1 // pred_check
      _
    $region51: #{net_forward.1} parent=1 // pred_check_branch
      %118 = sbr.rel (0) target = $region53
    $region52: #{net_forward.1} parent=1 // pred_region
      %119 = dma.done [#allocation8], 1536
    $region53: #{net_forward.1} parent=1 // pred_fallthru
      _
    // Predicated region
    $region54: #{net_forward.1} parent=1 // pred_check
      _
    $region55: #{net_forward.1} parent=1 // pred_check_branch
      %121 = sbr.rel (0) target = $region57
    $region56: #{net_forward.1} parent=1 // pred_region
      %122 = dma.done [#allocation11], 16
    $region57: #{net_forward.1} parent=1 // pred_fallthru
      _
    // Predicated region
    $region58: #{net_forward.1} parent=1 // pred_check
      _
    $region59: #{net_forward.1} parent=1 // pred_check_branch
      %124 = sbr.rel (0) target = $region61
    $region60: #{net_forward.1} parent=1 // pred_region
      %125 = dma.done [#allocation11], 3072
    $region61: #{net_forward.1} parent=1 // pred_fallthru
      _
    // Predicated region
    $region62: #{net_forward.1} parent=1 // pred_check
      _
    $region63: #{net_forward.1} parent=1 // pred_check_branch
      %127 = sbr.rel (0) target = $region65
    $region64: #{net_forward.1} parent=1 // pred_region
      %128 = dma.done [#allocation14], 16
    $region65: #{net_forward.1} parent=1 // pred_fallthru
      _
    // Predicated region
    $region66: #{net_forward.1} parent=1 // pred_check
      _
    $region67: #{net_forward.1} parent=1 // pred_check_branch
      %130 = sbr.rel (0) target = $region69
    $region68: #{net_forward.1} parent=1 // pred_region
      %131 = dma.done [#allocation14], 32
    $region69: #{net_forward.1} parent=1 // pred_fallthru
      _
    // Predicated region
    $region70: #{net_forward.1} parent=1 // pred_check
      _
    $region71: #{net_forward.1} parent=1 // pred_check_branch
      %133 = sbr.rel (0) target = $region73
    $region72: #{net_forward.1} parent=1 // pred_region
      %134 = dma.done [#allocation17], 32
    $region73: #{net_forward.1} parent=1 // pred_fallthru
      _
    // Predicated region
    $region74: #{net_forward.1} parent=1 // pred_check
      _
    $region75: #{net_forward.1} parent=1 // pred_check_branch
      %137 = sbr.rel target = $region77
    $region76: #{net_forward.1} parent=1 // pred_region
      %138 = sst [smem:[#allocation20]] [#allocation19]
      %139 = sst [smem:[#allocation21]] [#allocation18]
    $region77: #{net_forward.1} parent=1 // pred_fallthru
      _
    %141 = shalt.err (0)
    %s143 = sshll.u32 [#allocation2], 4
    %s144 = int_to_ptr.vmem [resolvable:$true] %s143
    %146 = dma.hbm_to_vmem [thread:$0]  %s7, 43008, %s144, [#allocation3]
    %v147 = vld [vmem:[%s0] sm:$0xff]
    %v148 = vld [vmem:[%s0 + $0x8] sm:$0xff]
    %v149 = vld [vmem:[%s0 + $0x10] sm:$0xff]
    %v150 = vld [vmem:[%s0 + $0x18] sm:$0xff]
    %v151 = vld [vmem:[%s0 + $0x20] sm:$0xff]
    %v152 = vld [vmem:[%s0 + $0x28] sm:$0xff]
    %v153 = vld [vmem:[%s0 + $0x30] sm:$0xff]
    %v154 = vld [vmem:[%s0 + $0x38] sm:$0xff]
    %v155 = vld [vmem:[%s0 + $0x40] sm:$0xff]
    %v156 = vld [vmem:[%s0 + $0x48] sm:$0xff]
    %v157 = vld [vmem:[%s0 + $0x50] sm:$0xf]
    %v158 = vld [vmem:[%s0 + $0x58] sm:$0xff]
    %v159 = vld [vmem:[%s0 + $0x60] sm:$0xff]
    %v160 = vld [vmem:[%s0 + $0x68] sm:$0xff]
    %v161 = vld [vmem:[%s0 + $0x70] sm:$0xff]
    %v162 = vld [vmem:[%s0 + $0x78] sm:$0xff]
    %v163 = vld [vmem:[%s0 + $0x80] sm:$0xff]
    %v164 = vld [vmem:[%s0 + $0x88] sm:$0xff]
    %v165 = vld [vmem:[%s0 + $0x90] sm:$0xff]
    %v166 = vld [vmem:[%s0 + $0x98] sm:$0xff]
    %v167 = vld [vmem:[%s0 + $0xa0] sm:$0xff]
    %v168 = vld [vmem:[%s0 + $0xa8] sm:$0xf]
    %v169 = vld [vmem:[#allocation5] sm:$0x7]
    %vm192 = vcmask 1040384
    %v193 = vrot.slane %v147, 7
    %v194 = vrot.slane %v148, 7
    %v195 = vsel %vm192, %v193, %v194
    %v196 = vrot.slane %v149, 7
    %v197 = vsel %vm192, %v194, %v196
    %v198 = vrot.slane %v150, 7
    %v199 = vsel %vm192, %v196, %v198
    %v200 = vrot.slane %v151, 7
    %v201 = vsel %vm192, %v198, %v200
    %v202 = vrot.slane %v152, 7
    %v203 = vsel %vm192, %v200, %v202
    %v204 = vrot.slane %v153, 7
    %v205 = vsel %vm192, %v202, %v204
    %v206 = vrot.slane %v154, 7
    %v207 = vsel %vm192, %v204, %v206
    %v208 = vrot.slane %v155, 7
    %v209 = vsel %vm192, %v206, %v208
    %v210 = vrot.slane %v156, 7
    %v211 = vsel %vm192, %v208, %v210
    %v212 = vrot.slane %v157, 7
    %v213 = vsel %vm192, %v210, %v212
    %v214 = vrot.slane %v158, 7
    %v215 = vrot.slane %v159, 7
    %v216 = vsel %vm192, %v214, %v215
    %v217 = vrot.slane %v160, 7
    %v218 = vsel %vm192, %v215, %v217
    %v219 = vrot.slane %v161, 7
    %v220 = vsel %vm192, %v217, %v219
    %v221 = vrot.slane %v162, 7
    %v222 = vsel %vm192, %v219, %v221
    %v223 = vrot.slane %v163, 7
    %v224 = vsel %vm192, %v221, %v223
    %v225 = vrot.slane %v164, 7
    %v226 = vsel %vm192, %v223, %v225
    %v227 = vrot.slane %v165, 7
    %v228 = vsel %vm192, %v225, %v227
    %v229 = vrot.slane %v166, 7
    %v230 = vsel %vm192, %v227, %v229
    %v231 = vrot.slane %v167, 7
    %v232 = vsel %vm192, %v229, %v231
    %v233 = vrot.slane %v168, 7
    %v234 = vsel %vm192, %v231, %v233
    %v239 = vsel %vm192, 0.0, %v193
    %v240 = vsel %vm192, 0.0, %v214
    %vm241 = vcmask 1044480
    %v242 = vsel %vm241, %v213, 0.0
    %v243 = vsel %vm241, %v234, 0.0
    %245 = vset.pattern.permute.xlu0 0
    %246 = vperm.xlu0 %245, %v239
    %v247 = vpop.permute.xlu0 %246
    %249 = vset.pattern.permute.xlu0 0
    %250 = vperm.xlu0 %249, %v195
    %v251 = vpop.permute.xlu0 %250
    %253 = vset.pattern.permute.xlu0 0
    %254 = vperm.xlu0 %253, %v197
    %v255 = vpop.permute.xlu0 %254
    %257 = vset.pattern.permute.xlu0 0
    %258 = vperm.xlu0 %257, %v199
    %v259 = vpop.permute.xlu0 %258
    %261 = vset.pattern.permute.xlu0 0
    %262 = vperm.xlu0 %261, %v201
    %v263 = vpop.permute.xlu0 %262
    %265 = vset.pattern.permute.xlu0 0
    %266 = vperm.xlu0 %265, %v203
    %v267 = vpop.permute.xlu0 %266
    %269 = vset.pattern.permute.xlu0 0
    %270 = vperm.xlu0 %269, %v205
    %v271 = vpop.permute.xlu0 %270
    %273 = vset.pattern.permute.xlu0 0
    %274 = vperm.xlu0 %273, %v207
    %v275 = vpop.permute.xlu0 %274
    %277 = vset.pattern.permute.xlu0 0
    %278 = vperm.xlu0 %277, %v209
    %v279 = vpop.permute.xlu0 %278
    %281 = vset.pattern.permute.xlu0 0
    %282 = vperm.xlu0 %281, %v211
    %v283 = vpop.permute.xlu0 %282
    %286 = vset.pattern.permute.xlu0 0
    %287 = vperm.xlu0 %286, %v242
    %v288 = vpop.permute.xlu0 %287
    %291 = vset.pattern.permute.xlu0 0
    %292 = vperm.xlu0 %291, %v240
    %v293 = vpop.permute.xlu0 %292
    %295 = vset.pattern.permute.xlu0 0
    %296 = vperm.xlu0 %295, %v216
    %v297 = vpop.permute.xlu0 %296
    %299 = vset.pattern.permute.xlu0 0
    %300 = vperm.xlu0 %299, %v218
    %v301 = vpop.permute.xlu0 %300
    %303 = vset.pattern.permute.xlu0 0
    %304 = vperm.xlu0 %303, %v220
    %v305 = vpop.permute.xlu0 %304
    %307 = vset.pattern.permute.xlu0 0
    %308 = vperm.xlu0 %307, %v222
    %v309 = vpop.permute.xlu0 %308
    %311 = vset.pattern.permute.xlu0 0
    %312 = vperm.xlu0 %311, %v224
    %v313 = vpop.permute.xlu0 %312
    %315 = vset.pattern.permute.xlu0 0
    %316 = vperm.xlu0 %315, %v226
    %v317 = vpop.permute.xlu0 %316
    %319 = vset.pattern.permute.xlu0 0
    %320 = vperm.xlu0 %319, %v228
    %v321 = vpop.permute.xlu0 %320
    %323 = vset.pattern.permute.xlu0 0
    %324 = vperm.xlu0 %323, %v230
    %v325 = vpop.permute.xlu0 %324
    %327 = vset.pattern.permute.xlu0 0
    %328 = vperm.xlu0 %327, %v232
    %v329 = vpop.permute.xlu0 %328
    %332 = vset.pattern.permute.xlu0 0
    %333 = vperm.xlu0 %332, %v243
    %v334 = vpop.permute.xlu0 %333
    %v336 = vlaneseq
    %v337 = vshrl.u32 %v336, 7
    %v338 = vsub.s32 0, %v337
    %v339 = vrot.slane %v169, %v338
    %v340 = vmul.f32 %v247, %v339
    %v341 = vmul.f32 %v251, %v339
    %v342 = vmul.f32 %v255, %v339
    %v343 = vmul.f32 %v259, %v339
    %v344 = vmul.f32 %v263, %v339
    %v345 = vmul.f32 %v267, %v339
    %v346 = vmul.f32 %v271, %v339
    %v347 = vmul.f32 %v275, %v339
    %v348 = vmul.f32 %v279, %v339
    %v349 = vmul.f32 %v283, %v339
    %v350 = vmul.f32 %v288, %v339
    %v351 = vmul.f32 %v293, %v339
    %v352 = vmul.f32 %v297, %v339
    %v353 = vmul.f32 %v301, %v339
    %v354 = vmul.f32 %v305, %v339
    %v355 = vmul.f32 %v309, %v339
    %v356 = vmul.f32 %v313, %v339
    %v357 = vmul.f32 %v317, %v339
    %v358 = vmul.f32 %v321, %v339
    %v359 = vmul.f32 %v325, %v339
    %v360 = vmul.f32 %v329, %v339
    %v361 = vmul.f32 %v334, %v339
    %v362 = vlaneseq
    %v363 = vshrl.u32 %v362, 7
    %v364 = vsub.s32 1, %v363
    %v365 = vrot.slane %v169, %v364
    %v366 = vmul.f32 %v247, %v365
    %v367 = vmul.f32 %v251, %v365
    %v368 = vmul.f32 %v255, %v365
    %v369 = vmul.f32 %v259, %v365
    %v370 = vmul.f32 %v263, %v365
    %v371 = vmul.f32 %v267, %v365
    %v372 = vmul.f32 %v271, %v365
    %v373 = vmul.f32 %v275, %v365
    %v374 = vmul.f32 %v279, %v365
    %v375 = vmul.f32 %v283, %v365
    %v376 = vmul.f32 %v288, %v365
    %v377 = vmul.f32 %v293, %v365
    %v378 = vmul.f32 %v297, %v365
    %v379 = vmul.f32 %v301, %v365
    %v380 = vmul.f32 %v305, %v365
    %v381 = vmul.f32 %v309, %v365
    %v382 = vmul.f32 %v313, %v365
    %v383 = vmul.f32 %v317, %v365
    %v384 = vmul.f32 %v321, %v365
    %v385 = vmul.f32 %v325, %v365
    %v386 = vmul.f32 %v329, %v365
    %v387 = vmul.f32 %v334, %v365
    %vm410 = vcmask 1046528
    %v411 = vrot.slane %v366, 1
    %v412 = vrot.slane %v367, 1
    %v413 = vsel %vm410, %v411, %v412
    %v414 = vrot.slane %v368, 1
    %v415 = vsel %vm410, %v412, %v414
    %v416 = vrot.slane %v369, 1
    %v417 = vsel %vm410, %v414, %v416
    %v418 = vrot.slane %v370, 1
    %v419 = vsel %vm410, %v416, %v418
    %v420 = vrot.slane %v371, 1
    %v421 = vsel %vm410, %v418, %v420
    %v422 = vrot.slane %v372, 1
    %v423 = vsel %vm410, %v420, %v422
    %v424 = vrot.slane %v373, 1
    %v425 = vsel %vm410, %v422, %v424
    %v426 = vrot.slane %v374, 1
    %v427 = vsel %vm410, %v424, %v426
    %v428 = vrot.slane %v375, 1
    %v429 = vsel %vm410, %v426, %v428
    %v430 = vrot.slane %v376, 1
    %v431 = vsel %vm410, %v428, %v430
    %v432 = vrot.slane %v377, 1
    %v433 = vrot.slane %v378, 1
    %v434 = vsel %vm410, %v432, %v433
    %v435 = vrot.slane %v379, 1
    %v436 = vsel %vm410, %v433, %v435
    %v437 = vrot.slane %v380, 1
    %v438 = vsel %vm410, %v435, %v437
    %v439 = vrot.slane %v381, 1
    %v440 = vsel %vm410, %v437, %v439
    %v441 = vrot.slane %v382, 1
    %v442 = vsel %vm410, %v439, %v441
    %v443 = vrot.slane %v383, 1
    %v444 = vsel %vm410, %v441, %v443
    %v445 = vrot.slane %v384, 1
    %v446 = vsel %vm410, %v443, %v445
    %v447 = vrot.slane %v385, 1
    %v448 = vsel %vm410, %v445, %v447
    %v449 = vrot.slane %v386, 1
    %v450 = vsel %vm410, %v447, %v449
    %v451 = vrot.slane %v387, 1
    %v452 = vsel %vm410, %v449, %v451
    %v475 = vadd.f32 %v340, %v413
    %v476 = vadd.f32 %v341, %v415
    %v477 = vadd.f32 %v342, %v417
    %v478 = vadd.f32 %v343, %v419
    %v479 = vadd.f32 %v344, %v421
    %v480 = vadd.f32 %v345, %v423
    %v481 = vadd.f32 %v346, %v425
    %v482 = vadd.f32 %v347, %v427
    %v483 = vadd.f32 %v348, %v429
    %v484 = vadd.f32 %v349, %v431
    %v485 = vadd.f32 %v350, %v430
    %v486 = vadd.f32 %v351, %v434
    %v487 = vadd.f32 %v352, %v436
    %v488 = vadd.f32 %v353, %v438
    %v489 = vadd.f32 %v354, %v440
    %v490 = vadd.f32 %v355, %v442
    %v491 = vadd.f32 %v356, %v444
    %v492 = vadd.f32 %v357, %v446
    %v493 = vadd.f32 %v358, %v448
    %v494 = vadd.f32 %v359, %v450
    %v495 = vadd.f32 %v360, %v452
    %v496 = vadd.f32 %v361, %v451
    %v497 = vlaneseq
    %v498 = vshrl.u32 %v497, 7
    %v499 = vsub.s32 2, %v498
    %v500 = vrot.slane %v169, %v499
    %v501 = vmul.f32 %v247, %v500
    %v502 = vmul.f32 %v251, %v500
    %v503 = vmul.f32 %v255, %v500
    %v504 = vmul.f32 %v259, %v500
    %v505 = vmul.f32 %v263, %v500
    %v506 = vmul.f32 %v267, %v500
    %v507 = vmul.f32 %v271, %v500
    %v508 = vmul.f32 %v275, %v500
    %v509 = vmul.f32 %v279, %v500
    %v510 = vmul.f32 %v283, %v500
    %v511 = vmul.f32 %v288, %v500
    %v512 = vmul.f32 %v293, %v500
    %v513 = vmul.f32 %v297, %v500
    %v514 = vmul.f32 %v301, %v500
    %v515 = vmul.f32 %v305, %v500
    %v516 = vmul.f32 %v309, %v500
    %v517 = vmul.f32 %v313, %v500
    %v518 = vmul.f32 %v317, %v500
    %v519 = vmul.f32 %v321, %v500
    %v520 = vmul.f32 %v325, %v500
    %v521 = vmul.f32 %v329, %v500
    %v522 = vmul.f32 %v334, %v500
    %vm545 = vcmask 1045504
    %v546 = vrot.slane %v501, 2
    %v547 = vrot.slane %v502, 2
    %v548 = vsel %vm545, %v546, %v547
    %v549 = vrot.slane %v503, 2
    %v550 = vsel %vm545, %v547, %v549
    %v551 = vrot.slane %v504, 2
    %v552 = vsel %vm545, %v549, %v551
    %v553 = vrot.slane %v505, 2
    %v554 = vsel %vm545, %v551, %v553
    %v555 = vrot.slane %v506, 2
    %v556 = vsel %vm545, %v553, %v555
    %v557 = vrot.slane %v507, 2
    %v558 = vsel %vm545, %v555, %v557
    %v559 = vrot.slane %v508, 2
    %v560 = vsel %vm545, %v557, %v559
    %v561 = vrot.slane %v509, 2
    %v562 = vsel %vm545, %v559, %v561
    %v563 = vrot.slane %v510, 2
    %v564 = vsel %vm545, %v561, %v563
    %v565 = vrot.slane %v511, 2
    %v566 = vsel %vm545, %v563, %v565
    %v567 = vrot.slane %v512, 2
    %v568 = vrot.slane %v513, 2
    %v569 = vsel %vm545, %v567, %v568
    %v570 = vrot.slane %v514, 2
    %v571 = vsel %vm545, %v568, %v570
    %v572 = vrot.slane %v515, 2
    %v573 = vsel %vm545, %v570, %v572
    %v574 = vrot.slane %v516, 2
    %v575 = vsel %vm545, %v572, %v574
    %v576 = vrot.slane %v517, 2
    %v577 = vsel %vm545, %v574, %v576
    %v578 = vrot.slane %v518, 2
    %v579 = vsel %vm545, %v576, %v578
    %v580 = vrot.slane %v519, 2
    %v581 = vsel %vm545, %v578, %v580
    %v582 = vrot.slane %v520, 2
    %v583 = vsel %vm545, %v580, %v582
    %v584 = vrot.slane %v521, 2
    %v585 = vsel %vm545, %v582, %v584
    %v586 = vrot.slane %v522, 2
    %v587 = vsel %vm545, %v584, %v586
    %v610 = vadd.f32 %v475, %v548
    %v611 = vadd.f32 %v476, %v550
    %v612 = vadd.f32 %v477, %v552
    %v613 = vadd.f32 %v478, %v554
    %v614 = vadd.f32 %v479, %v556
    %v615 = vadd.f32 %v480, %v558
    %v616 = vadd.f32 %v481, %v560
    %v617 = vadd.f32 %v482, %v562
    %v618 = vadd.f32 %v483, %v564
    %v619 = vadd.f32 %v484, %v566
    %v620 = vadd.f32 %v485, %v565
    %v621 = vadd.f32 %v486, %v569
    %v622 = vadd.f32 %v487, %v571
    %v623 = vadd.f32 %v488, %v573
    %v624 = vadd.f32 %v489, %v575
    %v625 = vadd.f32 %v490, %v577
    %v626 = vadd.f32 %v491, %v579
    %v627 = vadd.f32 %v492, %v581
    %v628 = vadd.f32 %v493, %v583
    %v629 = vadd.f32 %v494, %v585
    %v630 = vadd.f32 %v495, %v587
    %v631 = vadd.f32 %v496, %v586
    %v632 = vld [vmem:[#allocation7] sm:$0x1]
    %v634 = vlaneseq
    %v635 = vshrl.u32 %v634, 7
    %v636 = vsub.s32 0, %v635
    %v637 = vrot.slane %v632, %v636
    %v639 = vadd.f32 %v610, %v637
    %v640 = vadd.f32 %v611, %v637
    %v641 = vadd.f32 %v612, %v637
    %v642 = vadd.f32 %v613, %v637
    %v643 = vadd.f32 %v614, %v637
    %v644 = vadd.f32 %v615, %v637
    %v645 = vadd.f32 %v616, %v637
    %v646 = vadd.f32 %v617, %v637
    %v647 = vadd.f32 %v618, %v637
    %v648 = vadd.f32 %v619, %v637
    %v649 = vadd.f32 %v620, %v637
    %v650 = vadd.f32 %v621, %v637
    %v651 = vadd.f32 %v622, %v637
    %v652 = vadd.f32 %v623, %v637
    %v653 = vadd.f32 %v624, %v637
    %v654 = vadd.f32 %v625, %v637
    %v655 = vadd.f32 %v626, %v637
    %v656 = vadd.f32 %v627, %v637
    %v657 = vadd.f32 %v628, %v637
    %v658 = vadd.f32 %v629, %v637
    %v659 = vadd.f32 %v630, %v637
    %v660 = vadd.f32 %v631, %v637
    %v661 = vmax.f32 %v639, 0.0
    %v662 = vmax.f32 %v640, 0.0
    %v663 = vmax.f32 %v641, 0.0
    %v664 = vmax.f32 %v642, 0.0
    %v665 = vmax.f32 %v643, 0.0
    %v666 = vmax.f32 %v644, 0.0
    %v667 = vmax.f32 %v645, 0.0
    %v668 = vmax.f32 %v646, 0.0
    %v669 = vmax.f32 %v647, 0.0
    %v670 = vmax.f32 %v648, 0.0
    %v671 = vmax.f32 %v649, 0.0
    %v672 = vmax.f32 %v650, 0.0
    %v673 = vmax.f32 %v651, 0.0
    %v674 = vmax.f32 %v652, 0.0
    %v675 = vmax.f32 %v653, 0.0
    %v676 = vmax.f32 %v654, 0.0
    %v677 = vmax.f32 %v655, 0.0
    %v678 = vmax.f32 %v656, 0.0
    %v679 = vmax.f32 %v657, 0.0
    %v680 = vmax.f32 %v658, 0.0
    %v681 = vmax.f32 %v659, 0.0
    %v682 = vmax.f32 %v660, 0.0
    %v705 = vcombine.high %v661, %v661
    %v707 = vunpack.c.l.s4 1983009808
    %v708 = vunpack.c.0.s8 %v707
    %v709 = vlaneseq
    %v710 = vshrl.u32 %v709, 7
    %v711 = vsub.s32 %v708, %v710
    %v712 = vrot.slane %v661, %v711
    %v714 = vunpack.c.l.s4 1983009808
    %v715 = vunpack.c.0.s8 %v714
    %v716 = vlaneseq
    %v717 = vshrl.u32 %v716, 7
    %v718 = vsub.s32 %v715, %v717
    %v719 = vrot.slane %v705, %v718
    %v720 = vcombine.high %v712, %v712
    %v721 = vcombine.high %v719, %v719
    %v722 = vcombine.high %v662, %v662
    %v724 = vunpack.c.l.s4 1983009808
    %v725 = vunpack.c.0.s8 %v724
    %v726 = vlaneseq
    %v727 = vshrl.u32 %v726, 7
    %v728 = vsub.s32 %v725, %v727
    %v729 = vrot.slane %v662, %v728
    %v731 = vunpack.c.l.s4 1983009808
    %v732 = vunpack.c.0.s8 %v731
    %v733 = vlaneseq
    %v734 = vshrl.u32 %v733, 7
    %v735 = vsub.s32 %v732, %v734
    %v736 = vrot.slane %v722, %v735
    %v737 = vcombine.high %v729, %v729
    %v738 = vcombine.high %v736, %v736
    %v739 = vcombine.high %v663, %v663
    %v741 = vunpack.c.l.s4 1983009808
    %v742 = vunpack.c.0.s8 %v741
    %v743 = vlaneseq
    %v744 = vshrl.u32 %v743, 7
    %v745 = vsub.s32 %v742, %v744
    %v746 = vrot.slane %v663, %v745
    %v748 = vunpack.c.l.s4 1983009808
    %v749 = vunpack.c.0.s8 %v748
    %v750 = vlaneseq
    %v751 = vshrl.u32 %v750, 7
    %v752 = vsub.s32 %v749, %v751
    %v753 = vrot.slane %v739, %v752
    %v754 = vcombine.high %v746, %v746
    %v755 = vcombine.high %v753, %v753
    %v756 = vcombine.high %v664, %v664
    %v758 = vunpack.c.l.s4 1983009808
    %v759 = vunpack.c.0.s8 %v758
    %v760 = vlaneseq
    %v761 = vshrl.u32 %v760, 7
    %v762 = vsub.s32 %v759, %v761
    %v763 = vrot.slane %v664, %v762
    %v765 = vunpack.c.l.s4 1983009808
    %v766 = vunpack.c.0.s8 %v765
    %v767 = vlaneseq
    %v768 = vshrl.u32 %v767, 7
    %v769 = vsub.s32 %v766, %v768
    %v770 = vrot.slane %v756, %v769
    %v771 = vcombine.high %v763, %v763
    %v772 = vcombine.high %v770, %v770
    %v773 = vcombine.high %v665, %v665
    %v775 = vunpack.c.l.s4 1983009808
    %v776 = vunpack.c.0.s8 %v775
    %v777 = vlaneseq
    %v778 = vshrl.u32 %v777, 7
    %v779 = vsub.s32 %v776, %v778
    %v780 = vrot.slane %v665, %v779
    %v782 = vunpack.c.l.s4 1983009808
    %v783 = vunpack.c.0.s8 %v782
    %v784 = vlaneseq
    %v785 = vshrl.u32 %v784, 7
    %v786 = vsub.s32 %v783, %v785
    %v787 = vrot.slane %v773, %v786
    %v788 = vcombine.high %v780, %v780
    %v789 = vcombine.high %v787, %v787
    %v790 = vcombine.high %v666, %v666
    %v792 = vunpack.c.l.s4 1983009808
    %v793 = vunpack.c.0.s8 %v792
    %v794 = vlaneseq
    %v795 = vshrl.u32 %v794, 7
    %v796 = vsub.s32 %v793, %v795
    %v797 = vrot.slane %v666, %v796
    %v799 = vunpack.c.l.s4 1983009808
    %v800 = vunpack.c.0.s8 %v799
    %v801 = vlaneseq
    %v802 = vshrl.u32 %v801, 7
    %v803 = vsub.s32 %v800, %v802
    %v804 = vrot.slane %v790, %v803
    %v805 = vcombine.high %v797, %v797
    %v806 = vcombine.high %v804, %v804
    %v807 = vcombine.high %v667, %v667
    %v809 = vunpack.c.l.s4 1983009808
    %v810 = vunpack.c.0.s8 %v809
    %v811 = vlaneseq
    %v812 = vshrl.u32 %v811, 7
    %v813 = vsub.s32 %v810, %v812
    %v814 = vrot.slane %v667, %v813
    %v816 = vunpack.c.l.s4 1983009808
    %v817 = vunpack.c.0.s8 %v816
    %v818 = vlaneseq
    %v819 = vshrl.u32 %v818, 7
    %v820 = vsub.s32 %v817, %v819
    %v821 = vrot.slane %v807, %v820
    %v822 = vcombine.high %v814, %v814
    %v823 = vcombine.high %v821, %v821
    %v824 = vcombine.high %v668, %v668
    %v826 = vunpack.c.l.s4 1983009808
    %v827 = vunpack.c.0.s8 %v826
    %v828 = vlaneseq
    %v829 = vshrl.u32 %v828, 7
    %v830 = vsub.s32 %v827, %v829
    %v831 = vrot.slane %v668, %v830
    %v833 = vunpack.c.l.s4 1983009808
    %v834 = vunpack.c.0.s8 %v833
    %v835 = vlaneseq
    %v836 = vshrl.u32 %v835, 7
    %v837 = vsub.s32 %v834, %v836
    %v838 = vrot.slane %v824, %v837
    %v839 = vcombine.high %v831, %v831
    %v840 = vcombine.high %v838, %v838
    %v841 = vcombine.high %v669, %v669
    %v843 = vunpack.c.l.s4 1983009808
    %v844 = vunpack.c.0.s8 %v843
    %v845 = vlaneseq
    %v846 = vshrl.u32 %v845, 7
    %v847 = vsub.s32 %v844, %v846
    %v848 = vrot.slane %v669, %v847
    %v850 = vunpack.c.l.s4 1983009808
    %v851 = vunpack.c.0.s8 %v850
    %v852 = vlaneseq
    %v853 = vshrl.u32 %v852, 7
    %v854 = vsub.s32 %v851, %v853
    %v855 = vrot.slane %v841, %v854
    %v856 = vcombine.high %v848, %v848
    %v857 = vcombine.high %v855, %v855
    %v858 = vcombine.high %v670, %v670
    %v860 = vunpack.c.l.s4 1983009808
    %v861 = vunpack.c.0.s8 %v860
    %v862 = vlaneseq
    %v863 = vshrl.u32 %v862, 7
    %v864 = vsub.s32 %v861, %v863
    %v865 = vrot.slane %v670, %v864
    %v867 = vunpack.c.l.s4 1983009808
    %v868 = vunpack.c.0.s8 %v867
    %v869 = vlaneseq
    %v870 = vshrl.u32 %v869, 7
    %v871 = vsub.s32 %v868, %v870
    %v872 = vrot.slane %v858, %v871
    %v873 = vcombine.high %v865, %v865
    %v874 = vcombine.high %v872, %v872
    %v876 = vunpack.c.l.s4 1983009808
    %v877 = vunpack.c.0.s8 %v876
    %v878 = vlaneseq
    %v879 = vshrl.u32 %v878, 7
    %v880 = vsub.s32 %v877, %v879
    %v881 = vrot.slane %v671, %v880
    %v882 = vcombine.high %v881, %v881
    %v883 = vcombine.high %v672, %v672
    %v885 = vunpack.c.l.s4 1983009808
    %v886 = vunpack.c.0.s8 %v885
    %v887 = vlaneseq
    %v888 = vshrl.u32 %v887, 7
    %v889 = vsub.s32 %v886, %v888
    %v890 = vrot.slane %v672, %v889
    %v892 = vunpack.c.l.s4 1983009808
    %v893 = vunpack.c.0.s8 %v892
    %v894 = vlaneseq
    %v895 = vshrl.u32 %v894, 7
    %v896 = vsub.s32 %v893, %v895
    %v897 = vrot.slane %v883, %v896
    %v898 = vcombine.high %v890, %v890
    %v899 = vcombine.high %v897, %v897
    %v900 = vcombine.high %v673, %v673
    %v902 = vunpack.c.l.s4 1983009808
    %v903 = vunpack.c.0.s8 %v902
    %v904 = vlaneseq
    %v905 = vshrl.u32 %v904, 7
    %v906 = vsub.s32 %v903, %v905
    %v907 = vrot.slane %v673, %v906
    %v909 = vunpack.c.l.s4 1983009808
    %v910 = vunpack.c.0.s8 %v909
    %v911 = vlaneseq
    %v912 = vshrl.u32 %v911, 7
    %v913 = vsub.s32 %v910, %v912
    %v914 = vrot.slane %v900, %v913
    %v915 = vcombine.high %v907, %v907
    %v916 = vcombine.high %v914, %v914
    %v917 = vcombine.high %v674, %v674
    %v919 = vunpack.c.l.s4 1983009808
    %v920 = vunpack.c.0.s8 %v919
    %v921 = vlaneseq
    %v922 = vshrl.u32 %v921, 7
    %v923 = vsub.s32 %v920, %v922
    %v924 = vrot.slane %v674, %v923
    %v926 = vunpack.c.l.s4 1983009808
    %v927 = vunpack.c.0.s8 %v926
    %v928 = vlaneseq
    %v929 = vshrl.u32 %v928, 7
    %v930 = vsub.s32 %v927, %v929
    %v931 = vrot.slane %v917, %v930
    %v932 = vcombine.high %v924, %v924
    %v933 = vcombine.high %v931, %v931
    %v934 = vcombine.high %v675, %v675
    %v936 = vunpack.c.l.s4 1983009808
    %v937 = vunpack.c.0.s8 %v936
    %v938 = vlaneseq
    %v939 = vshrl.u32 %v938, 7
    %v940 = vsub.s32 %v937, %v939
    %v941 = vrot.slane %v675, %v940
    %v943 = vunpack.c.l.s4 1983009808
    %v944 = vunpack.c.0.s8 %v943
    %v945 = vlaneseq
    %v946 = vshrl.u32 %v945, 7
    %v947 = vsub.s32 %v944, %v946
    %v948 = vrot.slane %v934, %v947
    %v949 = vcombine.high %v941, %v941
    %v950 = vcombine.high %v948, %v948
    %v951 = vcombine.high %v676, %v676
    %v953 = vunpack.c.l.s4 1983009808
    %v954 = vunpack.c.0.s8 %v953
    %v955 = vlaneseq
    %v956 = vshrl.u32 %v955, 7
    %v957 = vsub.s32 %v954, %v956
    %v958 = vrot.slane %v676, %v957
    %v960 = vunpack.c.l.s4 1983009808
    %v961 = vunpack.c.0.s8 %v960
    %v962 = vlaneseq
    %v963 = vshrl.u32 %v962, 7
    %v964 = vsub.s32 %v961, %v963
    %v965 = vrot.slane %v951, %v964
    %v966 = vcombine.high %v958, %v958
    %v967 = vcombine.high %v965, %v965
    %v968 = vcombine.high %v677, %v677
    %v970 = vunpack.c.l.s4 1983009808
    %v971 = vunpack.c.0.s8 %v970
    %v972 = vlaneseq
    %v973 = vshrl.u32 %v972, 7
    %v974 = vsub.s32 %v971, %v973
    %v975 = vrot.slane %v677, %v974
    %v977 = vunpack.c.l.s4 1983009808
    %v978 = vunpack.c.0.s8 %v977
    %v979 = vlaneseq
    %v980 = vshrl.u32 %v979, 7
    %v981 = vsub.s32 %v978, %v980
    %v982 = vrot.slane %v968, %v981
    %v983 = vcombine.high %v975, %v975
    %v984 = vcombine.high %v982, %v982
    %v985 = vcombine.high %v678, %v678
    %v987 = vunpack.c.l.s4 1983009808
    %v988 = vunpack.c.0.s8 %v987
    %v989 = vlaneseq
    %v990 = vshrl.u32 %v989, 7
    %v991 = vsub.s32 %v988, %v990
    %v992 = vrot.slane %v678, %v991
    %v994 = vunpack.c.l.s4 1983009808
    %v995 = vunpack.c.0.s8 %v994
    %v996 = vlaneseq
    %v997 = vshrl.u32 %v996, 7
    %v998 = vsub.s32 %v995, %v997
    %v999 = vrot.slane %v985, %v998
    %v1000 = vcombine.high %v992, %v992
    %v1001 = vcombine.high %v999, %v999
    %v1002 = vcombine.high %v679, %v679
    %v1004 = vunpack.c.l.s4 1983009808
    %v1005 = vunpack.c.0.s8 %v1004
    %v1006 = vlaneseq
    %v1007 = vshrl.u32 %v1006, 7
    %v1008 = vsub.s32 %v1005, %v1007
    %v1009 = vrot.slane %v679, %v1008
    %v1011 = vunpack.c.l.s4 1983009808
    %v1012 = vunpack.c.0.s8 %v1011
    %v1013 = vlaneseq
    %v1014 = vshrl.u32 %v1013, 7
    %v1015 = vsub.s32 %v1012, %v1014
    %v1016 = vrot.slane %v1002, %v1015
    %v1017 = vcombine.high %v1009, %v1009
    %v1018 = vcombine.high %v1016, %v1016
    %v1019 = vcombine.high %v680, %v680
    %v1021 = vunpack.c.l.s4 1983009808
    %v1022 = vunpack.c.0.s8 %v1021
    %v1023 = vlaneseq
    %v1024 = vshrl.u32 %v1023, 7
    %v1025 = vsub.s32 %v1022, %v1024
    %v1026 = vrot.slane %v680, %v1025
    %v1028 = vunpack.c.l.s4 1983009808
    %v1029 = vunpack.c.0.s8 %v1028
    %v1030 = vlaneseq
    %v1031 = vshrl.u32 %v1030, 7
    %v1032 = vsub.s32 %v1029, %v1031
    %v1033 = vrot.slane %v1019, %v1032
    %v1034 = vcombine.high %v1026, %v1026
    %v1035 = vcombine.high %v1033, %v1033
    %v1036 = vcombine.high %v681, %v681
    %v1038 = vunpack.c.l.s4 1983009808
    %v1039 = vunpack.c.0.s8 %v1038
    %v1040 = vlaneseq
    %v1041 = vshrl.u32 %v1040, 7
    %v1042 = vsub.s32 %v1039, %v1041
    %v1043 = vrot.slane %v681, %v1042
    %v1045 = vunpack.c.l.s4 1983009808
    %v1046 = vunpack.c.0.s8 %v1045
    %v1047 = vlaneseq
    %v1048 = vshrl.u32 %v1047, 7
    %v1049 = vsub.s32 %v1046, %v1048
    %v1050 = vrot.slane %v1036, %v1049
    %v1051 = vcombine.high %v1043, %v1043
    %v1052 = vcombine.high %v1050, %v1050
    %v1054 = vunpack.c.l.s4 1983009808
    %v1055 = vunpack.c.0.s8 %v1054
    %v1056 = vlaneseq
    %v1057 = vshrl.u32 %v1056, 7
    %v1058 = vsub.s32 %v1055, %v1057
    %v1059 = vrot.slane %v682, %v1058
    %v1060 = vcombine.high %v1059, %v1059
    %vm1145 = vcmask 254976
    %v1146 = vsel %vm1145, %v712, -inf
    %v1147 = vrot.slane %v1146, 4
    %v1148 = vmax.f32 %v1146, %v1147
    %v1149 = vrot.slane %v1148, 2
    %v1150 = vmax.f32 %v1148, %v1149
    %v1151 = vrot.slane %v1150, 1
    %v1152 = vmax.f32 %v1150, %v1151
    %v1153 = vsel %vm1145, %v720, -inf
    %v1154 = vrot.slane %v1153, 4
    %v1155 = vmax.f32 %v1153, %v1154
    %v1156 = vrot.slane %v1155, 2
    %v1157 = vmax.f32 %v1155, %v1156
    %v1158 = vrot.slane %v1157, 1
    %v1159 = vmax.f32 %v1157, %v1158
    %v1160 = vsel %vm1145, %v719, -inf
    %v1161 = vrot.slane %v1160, 4
    %v1162 = vmax.f32 %v1160, %v1161
    %v1163 = vrot.slane %v1162, 2
    %v1164 = vmax.f32 %v1162, %v1163
    %v1165 = vrot.slane %v1164, 1
    %v1166 = vmax.f32 %v1164, %v1165
    %v1167 = vsel %vm1145, %v721, -inf
    %v1168 = vrot.slane %v1167, 4
    %v1169 = vmax.f32 %v1167, %v1168
    %v1170 = vrot.slane %v1169, 2
    %v1171 = vmax.f32 %v1169, %v1170
    %v1172 = vrot.slane %v1171, 1
    %v1173 = vmax.f32 %v1171, %v1172
    %v1174 = vsel %vm1145, %v729, -inf
    %v1175 = vrot.slane %v1174, 4
    %v1176 = vmax.f32 %v1174, %v1175
    %v1177 = vrot.slane %v1176, 2
    %v1178 = vmax.f32 %v1176, %v1177
    %v1179 = vrot.slane %v1178, 1
    %v1180 = vmax.f32 %v1178, %v1179
    %v1181 = vsel %vm1145, %v737, -inf
    %v1182 = vrot.slane %v1181, 4
    %v1183 = vmax.f32 %v1181, %v1182
    %v1184 = vrot.slane %v1183, 2
    %v1185 = vmax.f32 %v1183, %v1184
    %v1186 = vrot.slane %v1185, 1
    %v1187 = vmax.f32 %v1185, %v1186
    %v1188 = vsel %vm1145, %v736, -inf
    %v1189 = vrot.slane %v1188, 4
    %v1190 = vmax.f32 %v1188, %v1189
    %v1191 = vrot.slane %v1190, 2
    %v1192 = vmax.f32 %v1190, %v1191
    %v1193 = vrot.slane %v1192, 1
    %v1194 = vmax.f32 %v1192, %v1193
    %v1195 = vsel %vm1145, %v738, -inf
    %v1196 = vrot.slane %v1195, 4
    %v1197 = vmax.f32 %v1195, %v1196
    %v1198 = vrot.slane %v1197, 2
    %v1199 = vmax.f32 %v1197, %v1198
    %v1200 = vrot.slane %v1199, 1
    %v1201 = vmax.f32 %v1199, %v1200
    %v1202 = vsel %vm1145, %v746, -inf
    %v1203 = vrot.slane %v1202, 4
    %v1204 = vmax.f32 %v1202, %v1203
    %v1205 = vrot.slane %v1204, 2
    %v1206 = vmax.f32 %v1204, %v1205
    %v1207 = vrot.slane %v1206, 1
    %v1208 = vmax.f32 %v1206, %v1207
    %v1209 = vsel %vm1145, %v754, -inf
    %v1210 = vrot.slane %v1209, 4
    %v1211 = vmax.f32 %v1209, %v1210
    %v1212 = vrot.slane %v1211, 2
    %v1213 = vmax.f32 %v1211, %v1212
    %v1214 = vrot.slane %v1213, 1
    %v1215 = vmax.f32 %v1213, %v1214
    %v1216 = vsel %vm1145, %v753, -inf
    %v1217 = vrot.slane %v1216, 4
    %v1218 = vmax.f32 %v1216, %v1217
    %v1219 = vrot.slane %v1218, 2
    %v1220 = vmax.f32 %v1218, %v1219
    %v1221 = vrot.slane %v1220, 1
    %v1222 = vmax.f32 %v1220, %v1221
    %v1223 = vsel %vm1145, %v755, -inf
    %v1224 = vrot.slane %v1223, 4
    %v1225 = vmax.f32 %v1223, %v1224
    %v1226 = vrot.slane %v1225, 2
    %v1227 = vmax.f32 %v1225, %v1226
    %v1228 = vrot.slane %v1227, 1
    %v1229 = vmax.f32 %v1227, %v1228
    %v1230 = vsel %vm1145, %v763, -inf
    %v1231 = vrot.slane %v1230, 4
    %v1232 = vmax.f32 %v1230, %v1231
    %v1233 = vrot.slane %v1232, 2
    %v1234 = vmax.f32 %v1232, %v1233
    %v1235 = vrot.slane %v1234, 1
    %v1236 = vmax.f32 %v1234, %v1235
    %v1237 = vsel %vm1145, %v771, -inf
    %v1238 = vrot.slane %v1237, 4
    %v1239 = vmax.f32 %v1237, %v1238
    %v1240 = vrot.slane %v1239, 2
    %v1241 = vmax.f32 %v1239, %v1240
    %v1242 = vrot.slane %v1241, 1
    %v1243 = vmax.f32 %v1241, %v1242
    %v1244 = vsel %vm1145, %v770, -inf
    %v1245 = vrot.slane %v1244, 4
    %v1246 = vmax.f32 %v1244, %v1245
    %v1247 = vrot.slane %v1246, 2
    %v1248 = vmax.f32 %v1246, %v1247
    %v1249 = vrot.slane %v1248, 1
    %v1250 = vmax.f32 %v1248, %v1249
    %v1251 = vsel %vm1145, %v772, -inf
    %v1252 = vrot.slane %v1251, 4
    %v1253 = vmax.f32 %v1251, %v1252
    %v1254 = vrot.slane %v1253, 2
    %v1255 = vmax.f32 %v1253, %v1254
    %v1256 = vrot.slane %v1255, 1
    %v1257 = vmax.f32 %v1255, %v1256
    %v1258 = vsel %vm1145, %v780, -inf
    %v1259 = vrot.slane %v1258, 4
    %v1260 = vmax.f32 %v1258, %v1259
    %v1261 = vrot.slane %v1260, 2
    %v1262 = vmax.f32 %v1260, %v1261
    %v1263 = vrot.slane %v1262, 1
    %v1264 = vmax.f32 %v1262, %v1263
    %v1265 = vsel %vm1145, %v788, -inf
    %v1266 = vrot.slane %v1265, 4
    %v1267 = vmax.f32 %v1265, %v1266
    %v1268 = vrot.slane %v1267, 2
    %v1269 = vmax.f32 %v1267, %v1268
    %v1270 = vrot.slane %v1269, 1
    %v1271 = vmax.f32 %v1269, %v1270
    %v1272 = vsel %vm1145, %v787, -inf
    %v1273 = vrot.slane %v1272, 4
    %v1274 = vmax.f32 %v1272, %v1273
    %v1275 = vrot.slane %v1274, 2
    %v1276 = vmax.f32 %v1274, %v1275
    %v1277 = vrot.slane %v1276, 1
    %v1278 = vmax.f32 %v1276, %v1277
    %v1279 = vsel %vm1145, %v789, -inf
    %v1280 = vrot.slane %v1279, 4
    %v1281 = vmax.f32 %v1279, %v1280
    %v1282 = vrot.slane %v1281, 2
    %v1283 = vmax.f32 %v1281, %v1282
    %v1284 = vrot.slane %v1283, 1
    %v1285 = vmax.f32 %v1283, %v1284
    %v1286 = vsel %vm1145, %v797, -inf
    %v1287 = vrot.slane %v1286, 4
    %v1288 = vmax.f32 %v1286, %v1287
    %v1289 = vrot.slane %v1288, 2
    %v1290 = vmax.f32 %v1288, %v1289
    %v1291 = vrot.slane %v1290, 1
    %v1292 = vmax.f32 %v1290, %v1291
    %v1293 = vsel %vm1145, %v805, -inf
    %v1294 = vrot.slane %v1293, 4
    %v1295 = vmax.f32 %v1293, %v1294
    %v1296 = vrot.slane %v1295, 2
    %v1297 = vmax.f32 %v1295, %v1296
    %v1298 = vrot.slane %v1297, 1
    %v1299 = vmax.f32 %v1297, %v1298
    %v1300 = vsel %vm1145, %v804, -inf
    %v1301 = vrot.slane %v1300, 4
    %v1302 = vmax.f32 %v1300, %v1301
    %v1303 = vrot.slane %v1302, 2
    %v1304 = vmax.f32 %v1302, %v1303
    %v1305 = vrot.slane %v1304, 1
    %v1306 = vmax.f32 %v1304, %v1305
    %v1307 = vsel %vm1145, %v806, -inf
    %v1308 = vrot.slane %v1307, 4
    %v1309 = vmax.f32 %v1307, %v1308
    %v1310 = vrot.slane %v1309, 2
    %v1311 = vmax.f32 %v1309, %v1310
    %v1312 = vrot.slane %v1311, 1
    %v1313 = vmax.f32 %v1311, %v1312
    %v1314 = vsel %vm1145, %v814, -inf
    %v1315 = vrot.slane %v1314, 4
    %v1316 = vmax.f32 %v1314, %v1315
    %v1317 = vrot.slane %v1316, 2
    %v1318 = vmax.f32 %v1316, %v1317
    %v1319 = vrot.slane %v1318, 1
    %v1320 = vmax.f32 %v1318, %v1319
    %v1321 = vsel %vm1145, %v822, -inf
    %v1322 = vrot.slane %v1321, 4
    %v1323 = vmax.f32 %v1321, %v1322
    %v1324 = vrot.slane %v1323, 2
    %v1325 = vmax.f32 %v1323, %v1324
    %v1326 = vrot.slane %v1325, 1
    %v1327 = vmax.f32 %v1325, %v1326
    %v1328 = vsel %vm1145, %v821, -inf
    %v1329 = vrot.slane %v1328, 4
    %v1330 = vmax.f32 %v1328, %v1329
    %v1331 = vrot.slane %v1330, 2
    %v1332 = vmax.f32 %v1330, %v1331
    %v1333 = vrot.slane %v1332, 1
    %v1334 = vmax.f32 %v1332, %v1333
    %v1335 = vsel %vm1145, %v823, -inf
    %v1336 = vrot.slane %v1335, 4
    %v1337 = vmax.f32 %v1335, %v1336
    %v1338 = vrot.slane %v1337, 2
    %v1339 = vmax.f32 %v1337, %v1338
    %v1340 = vrot.slane %v1339, 1
    %v1341 = vmax.f32 %v1339, %v1340
    %v1342 = vsel %vm1145, %v831, -inf
    %v1343 = vrot.slane %v1342, 4
    %v1344 = vmax.f32 %v1342, %v1343
    %v1345 = vrot.slane %v1344, 2
    %v1346 = vmax.f32 %v1344, %v1345
    %v1347 = vrot.slane %v1346, 1
    %v1348 = vmax.f32 %v1346, %v1347
    %v1349 = vsel %vm1145, %v839, -inf
    %v1350 = vrot.slane %v1349, 4
    %v1351 = vmax.f32 %v1349, %v1350
    %v1352 = vrot.slane %v1351, 2
    %v1353 = vmax.f32 %v1351, %v1352
    %v1354 = vrot.slane %v1353, 1
    %v1355 = vmax.f32 %v1353, %v1354
    %v1356 = vsel %vm1145, %v838, -inf
    %v1357 = vrot.slane %v1356, 4
    %v1358 = vmax.f32 %v1356, %v1357
    %v1359 = vrot.slane %v1358, 2
    %v1360 = vmax.f32 %v1358, %v1359
    %v1361 = vrot.slane %v1360, 1
    %v1362 = vmax.f32 %v1360, %v1361
    %v1363 = vsel %vm1145, %v840, -inf
    %v1364 = vrot.slane %v1363, 4
    %v1365 = vmax.f32 %v1363, %v1364
    %v1366 = vrot.slane %v1365, 2
    %v1367 = vmax.f32 %v1365, %v1366
    %v1368 = vrot.slane %v1367, 1
    %v1369 = vmax.f32 %v1367, %v1368
    %v1370 = vsel %vm1145, %v848, -inf
    %v1371 = vrot.slane %v1370, 4
    %v1372 = vmax.f32 %v1370, %v1371
    %v1373 = vrot.slane %v1372, 2
    %v1374 = vmax.f32 %v1372, %v1373
    %v1375 = vrot.slane %v1374, 1
    %v1376 = vmax.f32 %v1374, %v1375
    %v1377 = vsel %vm1145, %v856, -inf
    %v1378 = vrot.slane %v1377, 4
    %v1379 = vmax.f32 %v1377, %v1378
    %v1380 = vrot.slane %v1379, 2
    %v1381 = vmax.f32 %v1379, %v1380
    %v1382 = vrot.slane %v1381, 1
    %v1383 = vmax.f32 %v1381, %v1382
    %v1384 = vsel %vm1145, %v855, -inf
    %v1385 = vrot.slane %v1384, 4
    %v1386 = vmax.f32 %v1384, %v1385
    %v1387 = vrot.slane %v1386, 2
    %v1388 = vmax.f32 %v1386, %v1387
    %v1389 = vrot.slane %v1388, 1
    %v1390 = vmax.f32 %v1388, %v1389
    %v1391 = vsel %vm1145, %v857, -inf
    %v1392 = vrot.slane %v1391, 4
    %v1393 = vmax.f32 %v1391, %v1392
    %v1394 = vrot.slane %v1393, 2
    %v1395 = vmax.f32 %v1393, %v1394
    %v1396 = vrot.slane %v1395, 1
    %v1397 = vmax.f32 %v1395, %v1396
    %v1398 = vsel %vm1145, %v865, -inf
    %v1399 = vrot.slane %v1398, 4
    %v1400 = vmax.f32 %v1398, %v1399
    %v1401 = vrot.slane %v1400, 2
    %v1402 = vmax.f32 %v1400, %v1401
    %v1403 = vrot.slane %v1402, 1
    %v1404 = vmax.f32 %v1402, %v1403
    %v1405 = vsel %vm1145, %v873, -inf
    %v1406 = vrot.slane %v1405, 4
    %v1407 = vmax.f32 %v1405, %v1406
    %v1408 = vrot.slane %v1407, 2
    %v1409 = vmax.f32 %v1407, %v1408
    %v1410 = vrot.slane %v1409, 1
    %v1411 = vmax.f32 %v1409, %v1410
    %v1412 = vsel %vm1145, %v872, -inf
    %v1413 = vrot.slane %v1412, 4
    %v1414 = vmax.f32 %v1412, %v1413
    %v1415 = vrot.slane %v1414, 2
    %v1416 = vmax.f32 %v1414, %v1415
    %v1417 = vrot.slane %v1416, 1
    %v1418 = vmax.f32 %v1416, %v1417
    %v1419 = vsel %vm1145, %v874, -inf
    %v1420 = vrot.slane %v1419, 4
    %v1421 = vmax.f32 %v1419, %v1420
    %v1422 = vrot.slane %v1421, 2
    %v1423 = vmax.f32 %v1421, %v1422
    %v1424 = vrot.slane %v1423, 1
    %v1425 = vmax.f32 %v1423, %v1424
    %v1426 = vsel %vm1145, %v881, -inf
    %v1427 = vrot.slane %v1426, 4
    %v1428 = vmax.f32 %v1426, %v1427
    %v1429 = vrot.slane %v1428, 2
    %v1430 = vmax.f32 %v1428, %v1429
    %v1431 = vrot.slane %v1430, 1
    %v1432 = vmax.f32 %v1430, %v1431
    %v1433 = vsel %vm1145, %v882, -inf
    %v1434 = vrot.slane %v1433, 4
    %v1435 = vmax.f32 %v1433, %v1434
    %v1436 = vrot.slane %v1435, 2
    %v1437 = vmax.f32 %v1435, %v1436
    %v1438 = vrot.slane %v1437, 1
    %v1439 = vmax.f32 %v1437, %v1438
    %v1440 = vsel %vm1145, %v890, -inf
    %v1441 = vrot.slane %v1440, 4
    %v1442 = vmax.f32 %v1440, %v1441
    %v1443 = vrot.slane %v1442, 2
    %v1444 = vmax.f32 %v1442, %v1443
    %v1445 = vrot.slane %v1444, 1
    %v1446 = vmax.f32 %v1444, %v1445
    %v1447 = vsel %vm1145, %v898, -inf
    %v1448 = vrot.slane %v1447, 4
    %v1449 = vmax.f32 %v1447, %v1448
    %v1450 = vrot.slane %v1449, 2
    %v1451 = vmax.f32 %v1449, %v1450
    %v1452 = vrot.slane %v1451, 1
    %v1453 = vmax.f32 %v1451, %v1452
    %v1454 = vsel %vm1145, %v897, -inf
    %v1455 = vrot.slane %v1454, 4
    %v1456 = vmax.f32 %v1454, %v1455
    %v1457 = vrot.slane %v1456, 2
    %v1458 = vmax.f32 %v1456, %v1457
    %v1459 = vrot.slane %v1458, 1
    %v1460 = vmax.f32 %v1458, %v1459
    %v1461 = vsel %vm1145, %v899, -inf
    %v1462 = vrot.slane %v1461, 4
    %v1463 = vmax.f32 %v1461, %v1462
    %v1464 = vrot.slane %v1463, 2
    %v1465 = vmax.f32 %v1463, %v1464
    %v1466 = vrot.slane %v1465, 1
    %v1467 = vmax.f32 %v1465, %v1466
    %v1468 = vsel %vm1145, %v907, -inf
    %v1469 = vrot.slane %v1468, 4
    %v1470 = vmax.f32 %v1468, %v1469
    %v1471 = vrot.slane %v1470, 2
    %v1472 = vmax.f32 %v1470, %v1471
    %v1473 = vrot.slane %v1472, 1
    %v1474 = vmax.f32 %v1472, %v1473
    %v1475 = vsel %vm1145, %v915, -inf
    %v1476 = vrot.slane %v1475, 4
    %v1477 = vmax.f32 %v1475, %v1476
    %v1478 = vrot.slane %v1477, 2
    %v1479 = vmax.f32 %v1477, %v1478
    %v1480 = vrot.slane %v1479, 1
    %v1481 = vmax.f32 %v1479, %v1480
    %v1482 = vsel %vm1145, %v914, -inf
    %v1483 = vrot.slane %v1482, 4
    %v1484 = vmax.f32 %v1482, %v1483
    %v1485 = vrot.slane %v1484, 2
    %v1486 = vmax.f32 %v1484, %v1485
    %v1487 = vrot.slane %v1486, 1
    %v1488 = vmax.f32 %v1486, %v1487
    %v1489 = vsel %vm1145, %v916, -inf
    %v1490 = vrot.slane %v1489, 4
    %v1491 = vmax.f32 %v1489, %v1490
    %v1492 = vrot.slane %v1491, 2
    %v1493 = vmax.f32 %v1491, %v1492
    %v1494 = vrot.slane %v1493, 1
    %v1495 = vmax.f32 %v1493, %v1494
    %v1496 = vsel %vm1145, %v924, -inf
    %v1497 = vrot.slane %v1496, 4
    %v1498 = vmax.f32 %v1496, %v1497
    %v1499 = vrot.slane %v1498, 2
    %v1500 = vmax.f32 %v1498, %v1499
    %v1501 = vrot.slane %v1500, 1
    %v1502 = vmax.f32 %v1500, %v1501
    %v1503 = vsel %vm1145, %v932, -inf
    %v1504 = vrot.slane %v1503, 4
    %v1505 = vmax.f32 %v1503, %v1504
    %v1506 = vrot.slane %v1505, 2
    %v1507 = vmax.f32 %v1505, %v1506
    %v1508 = vrot.slane %v1507, 1
    %v1509 = vmax.f32 %v1507, %v1508
    %v1510 = vsel %vm1145, %v931, -inf
    %v1511 = vrot.slane %v1510, 4
    %v1512 = vmax.f32 %v1510, %v1511
    %v1513 = vrot.slane %v1512, 2
    %v1514 = vmax.f32 %v1512, %v1513
    %v1515 = vrot.slane %v1514, 1
    %v1516 = vmax.f32 %v1514, %v1515
    %v1517 = vsel %vm1145, %v933, -inf
    %v1518 = vrot.slane %v1517, 4
    %v1519 = vmax.f32 %v1517, %v1518
    %v1520 = vrot.slane %v1519, 2
    %v1521 = vmax.f32 %v1519, %v1520
    %v1522 = vrot.slane %v1521, 1
    %v1523 = vmax.f32 %v1521, %v1522
    %v1524 = vsel %vm1145, %v941, -inf
    %v1525 = vrot.slane %v1524, 4
    %v1526 = vmax.f32 %v1524, %v1525
    %v1527 = vrot.slane %v1526, 2
    %v1528 = vmax.f32 %v1526, %v1527
    %v1529 = vrot.slane %v1528, 1
    %v1530 = vmax.f32 %v1528, %v1529
    %v1531 = vsel %vm1145, %v949, -inf
    %v1532 = vrot.slane %v1531, 4
    %v1533 = vmax.f32 %v1531, %v1532
    %v1534 = vrot.slane %v1533, 2
    %v1535 = vmax.f32 %v1533, %v1534
    %v1536 = vrot.slane %v1535, 1
    %v1537 = vmax.f32 %v1535, %v1536
    %v1538 = vsel %vm1145, %v948, -inf
    %v1539 = vrot.slane %v1538, 4
    %v1540 = vmax.f32 %v1538, %v1539
    %v1541 = vrot.slane %v1540, 2
    %v1542 = vmax.f32 %v1540, %v1541
    %v1543 = vrot.slane %v1542, 1
    %v1544 = vmax.f32 %v1542, %v1543
    %v1545 = vsel %vm1145, %v950, -inf
    %v1546 = vrot.slane %v1545, 4
    %v1547 = vmax.f32 %v1545, %v1546
    %v1548 = vrot.slane %v1547, 2
    %v1549 = vmax.f32 %v1547, %v1548
    %v1550 = vrot.slane %v1549, 1
    %v1551 = vmax.f32 %v1549, %v1550
    %v1552 = vsel %vm1145, %v958, -inf
    %v1553 = vrot.slane %v1552, 4
    %v1554 = vmax.f32 %v1552, %v1553
    %v1555 = vrot.slane %v1554, 2
    %v1556 = vmax.f32 %v1554, %v1555
    %v1557 = vrot.slane %v1556, 1
    %v1558 = vmax.f32 %v1556, %v1557
    %v1559 = vsel %vm1145, %v966, -inf
    %v1560 = vrot.slane %v1559, 4
    %v1561 = vmax.f32 %v1559, %v1560
    %v1562 = vrot.slane %v1561, 2
    %v1563 = vmax.f32 %v1561, %v1562
    %v1564 = vrot.slane %v1563, 1
    %v1565 = vmax.f32 %v1563, %v1564
    %v1566 = vsel %vm1145, %v965, -inf
    %v1567 = vrot.slane %v1566, 4
    %v1568 = vmax.f32 %v1566, %v1567
    %v1569 = vrot.slane %v1568, 2
    %v1570 = vmax.f32 %v1568, %v1569
    %v1571 = vrot.slane %v1570, 1
    %v1572 = vmax.f32 %v1570, %v1571
    %v1573 = vsel %vm1145, %v967, -inf
    %v1574 = vrot.slane %v1573, 4
    %v1575 = vmax.f32 %v1573, %v1574
    %v1576 = vrot.slane %v1575, 2
    %v1577 = vmax.f32 %v1575, %v1576
    %v1578 = vrot.slane %v1577, 1
    %v1579 = vmax.f32 %v1577, %v1578
    %v1580 = vsel %vm1145, %v975, -inf
    %v1581 = vrot.slane %v1580, 4
    %v1582 = vmax.f32 %v1580, %v1581
    %v1583 = vrot.slane %v1582, 2
    %v1584 = vmax.f32 %v1582, %v1583
    %v1585 = vrot.slane %v1584, 1
    %v1586 = vmax.f32 %v1584, %v1585
    %v1587 = vsel %vm1145, %v983, -inf
    %v1588 = vrot.slane %v1587, 4
    %v1589 = vmax.f32 %v1587, %v1588
    %v1590 = vrot.slane %v1589, 2
    %v1591 = vmax.f32 %v1589, %v1590
    %v1592 = vrot.slane %v1591, 1
    %v1593 = vmax.f32 %v1591, %v1592
    %v1594 = vsel %vm1145, %v982, -inf
    %v1595 = vrot.slane %v1594, 4
    %v1596 = vmax.f32 %v1594, %v1595
    %v1597 = vrot.slane %v1596, 2
    %v1598 = vmax.f32 %v1596, %v1597
    %v1599 = vrot.slane %v1598, 1
    %v1600 = vmax.f32 %v1598, %v1599
    %v1601 = vsel %vm1145, %v984, -inf
    %v1602 = vrot.slane %v1601, 4
    %v1603 = vmax.f32 %v1601, %v1602
    %v1604 = vrot.slane %v1603, 2
    %v1605 = vmax.f32 %v1603, %v1604
    %v1606 = vrot.slane %v1605, 1
    %v1607 = vmax.f32 %v1605, %v1606
    %v1608 = vsel %vm1145, %v992, -inf
    %v1609 = vrot.slane %v1608, 4
    %v1610 = vmax.f32 %v1608, %v1609
    %v1611 = vrot.slane %v1610, 2
    %v1612 = vmax.f32 %v1610, %v1611
    %v1613 = vrot.slane %v1612, 1
    %v1614 = vmax.f32 %v1612, %v1613
    %v1615 = vsel %vm1145, %v1000, -inf
    %v1616 = vrot.slane %v1615, 4
    %v1617 = vmax.f32 %v1615, %v1616
    %v1618 = vrot.slane %v1617, 2
    %v1619 = vmax.f32 %v1617, %v1618
    %v1620 = vrot.slane %v1619, 1
    %v1621 = vmax.f32 %v1619, %v1620
    %v1622 = vsel %vm1145, %v999, -inf
    %v1623 = vrot.slane %v1622, 4
    %v1624 = vmax.f32 %v1622, %v1623
    %v1625 = vrot.slane %v1624, 2
    %v1626 = vmax.f32 %v1624, %v1625
    %v1627 = vrot.slane %v1626, 1
    %v1628 = vmax.f32 %v1626, %v1627
    %v1629 = vsel %vm1145, %v1001, -inf
    %v1630 = vrot.slane %v1629, 4
    %v1631 = vmax.f32 %v1629, %v1630
    %v1632 = vrot.slane %v1631, 2
    %v1633 = vmax.f32 %v1631, %v1632
    %v1634 = vrot.slane %v1633, 1
    %v1635 = vmax.f32 %v1633, %v1634
    %v1636 = vsel %vm1145, %v1009, -inf
    %v1637 = vrot.slane %v1636, 4
    %v1638 = vmax.f32 %v1636, %v1637
    %v1639 = vrot.slane %v1638, 2
    %v1640 = vmax.f32 %v1638, %v1639
    %v1641 = vrot.slane %v1640, 1
    %v1642 = vmax.f32 %v1640, %v1641
    %v1643 = vsel %vm1145, %v1017, -inf
    %v1644 = vrot.slane %v1643, 4
    %v1645 = vmax.f32 %v1643, %v1644
    %v1646 = vrot.slane %v1645, 2
    %v1647 = vmax.f32 %v1645, %v1646
    %v1648 = vrot.slane %v1647, 1
    %v1649 = vmax.f32 %v1647, %v1648
    %v1650 = vsel %vm1145, %v1016, -inf
    %v1651 = vrot.slane %v1650, 4
    %v1652 = vmax.f32 %v1650, %v1651
    %v1653 = vrot.slane %v1652, 2
    %v1654 = vmax.f32 %v1652, %v1653
    %v1655 = vrot.slane %v1654, 1
    %v1656 = vmax.f32 %v1654, %v1655
    %v1657 = vsel %vm1145, %v1018, -inf
    %v1658 = vrot.slane %v1657, 4
    %v1659 = vmax.f32 %v1657, %v1658
    %v1660 = vrot.slane %v1659, 2
    %v1661 = vmax.f32 %v1659, %v1660
    %v1662 = vrot.slane %v1661, 1
    %v1663 = vmax.f32 %v1661, %v1662
    %v1664 = vsel %vm1145, %v1026, -inf
    %v1665 = vrot.slane %v1664, 4
    %v1666 = vmax.f32 %v1664, %v1665
    %v1667 = vrot.slane %v1666, 2
    %v1668 = vmax.f32 %v1666, %v1667
    %v1669 = vrot.slane %v1668, 1
    %v1670 = vmax.f32 %v1668, %v1669
    %v1671 = vsel %vm1145, %v1034, -inf
    %v1672 = vrot.slane %v1671, 4
    %v1673 = vmax.f32 %v1671, %v1672
    %v1674 = vrot.slane %v1673, 2
    %v1675 = vmax.f32 %v1673, %v1674
    %v1676 = vrot.slane %v1675, 1
    %v1677 = vmax.f32 %v1675, %v1676
    %v1678 = vsel %vm1145, %v1033, -inf
    %v1679 = vrot.slane %v1678, 4
    %v1680 = vmax.f32 %v1678, %v1679
    %v1681 = vrot.slane %v1680, 2
    %v1682 = vmax.f32 %v1680, %v1681
    %v1683 = vrot.slane %v1682, 1
    %v1684 = vmax.f32 %v1682, %v1683
    %v1685 = vsel %vm1145, %v1035, -inf
    %v1686 = vrot.slane %v1685, 4
    %v1687 = vmax.f32 %v1685, %v1686
    %v1688 = vrot.slane %v1687, 2
    %v1689 = vmax.f32 %v1687, %v1688
    %v1690 = vrot.slane %v1689, 1
    %v1691 = vmax.f32 %v1689, %v1690
    %v1692 = vsel %vm1145, %v1043, -inf
    %v1693 = vrot.slane %v1692, 4
    %v1694 = vmax.f32 %v1692, %v1693
    %v1695 = vrot.slane %v1694, 2
    %v1696 = vmax.f32 %v1694, %v1695
    %v1697 = vrot.slane %v1696, 1
    %v1698 = vmax.f32 %v1696, %v1697
    %v1699 = vsel %vm1145, %v1051, -inf
    %v1700 = vrot.slane %v1699, 4
    %v1701 = vmax.f32 %v1699, %v1700
    %v1702 = vrot.slane %v1701, 2
    %v1703 = vmax.f32 %v1701, %v1702
    %v1704 = vrot.slane %v1703, 1
    %v1705 = vmax.f32 %v1703, %v1704
    %v1706 = vsel %vm1145, %v1050, -inf
    %v1707 = vrot.slane %v1706, 4
    %v1708 = vmax.f32 %v1706, %v1707
    %v1709 = vrot.slane %v1708, 2
    %v1710 = vmax.f32 %v1708, %v1709
    %v1711 = vrot.slane %v1710, 1
    %v1712 = vmax.f32 %v1710, %v1711
    %v1713 = vsel %vm1145, %v1052, -inf
    %v1714 = vrot.slane %v1713, 4
    %v1715 = vmax.f32 %v1713, %v1714
    %v1716 = vrot.slane %v1715, 2
    %v1717 = vmax.f32 %v1715, %v1716
    %v1718 = vrot.slane %v1717, 1
    %v1719 = vmax.f32 %v1717, %v1718
    %v1720 = vsel %vm1145, %v1059, -inf
    %v1721 = vrot.slane %v1720, 4
    %v1722 = vmax.f32 %v1720, %v1721
    %v1723 = vrot.slane %v1722, 2
    %v1724 = vmax.f32 %v1722, %v1723
    %v1725 = vrot.slane %v1724, 1
    %v1726 = vmax.f32 %v1724, %v1725
    %v1727 = vsel %vm1145, %v1060, -inf
    %v1728 = vrot.slane %v1727, 4
    %v1729 = vmax.f32 %v1727, %v1728
    %v1730 = vrot.slane %v1729, 2
    %v1731 = vmax.f32 %v1729, %v1730
    %v1732 = vrot.slane %v1731, 1
    %v1733 = vmax.f32 %v1731, %v1732
    %vm1818 = vcmask 1042434
    %v1819 = vsel %vm1818, %v1159, %v1152
    %vm1820 = vcmask 1043459
    %v1821 = vsel %vm1820, %v1166, %v1819
    %vm1822 = vcmask 1044484
    %v1823 = vsel %vm1822, %v1173, %v1821
    %vm1824 = vcmask 1045509
    %v1825 = vsel %vm1824, %v1180, %v1823
    %vm1826 = vcmask 1046534
    %v1827 = vsel %vm1826, %v1187, %v1825
    %vm1828 = vcmask 1047559
    %v1829 = vsel %vm1828, %v1194, %v1827
    %vm1830 = vcmask 1041409
    %v1831 = vsel %vm1830, %v1208, %v1201
    %v1832 = vsel %vm1818, %v1215, %v1831
    %v1833 = vsel %vm1820, %v1222, %v1832
    %v1834 = vsel %vm1822, %v1229, %v1833
    %v1835 = vsel %vm1824, %v1236, %v1834
    %v1836 = vsel %vm1826, %v1243, %v1835
    %v1837 = vsel %vm1828, %v1250, %v1836
    %v1838 = vsel %vm1830, %v1264, %v1257
    %v1839 = vsel %vm1818, %v1271, %v1838
    %v1840 = vsel %vm1820, %v1278, %v1839
    %v1841 = vsel %vm1822, %v1285, %v1840
    %v1842 = vsel %vm1824, %v1292, %v1841
    %v1843 = vsel %vm1826, %v1299, %v1842
    %v1844 = vsel %vm1828, %v1306, %v1843
    %v1845 = vsel %vm1830, %v1320, %v1313
    %v1846 = vsel %vm1818, %v1327, %v1845
    %v1847 = vsel %vm1820, %v1334, %v1846
    %v1848 = vsel %vm1822, %v1341, %v1847
    %v1849 = vsel %vm1824, %v1348, %v1848
    %v1850 = vsel %vm1826, %v1355, %v1849
    %v1851 = vsel %vm1828, %v1362, %v1850
    %v1852 = vsel %vm1830, %v1376, %v1369
    %v1853 = vsel %vm1818, %v1383, %v1852
    %v1854 = vsel %vm1820, %v1390, %v1853
    %v1855 = vsel %vm1822, %v1397, %v1854
    %v1856 = vsel %vm1824, %v1404, %v1855
    %v1857 = vsel %vm1826, %v1411, %v1856
    %v1858 = vsel %vm1828, %v1418, %v1857
    %v1859 = vsel %vm1830, %v1432, %v1425
    %v1860 = vsel %vm1818, %v1439, %v1859
    %v1861 = vsel %vm1818, %v1453, %v1446
    %v1862 = vsel %vm1820, %v1460, %v1861
    %v1863 = vsel %vm1822, %v1467, %v1862
    %v1864 = vsel %vm1824, %v1474, %v1863
    %v1865 = vsel %vm1826, %v1481, %v1864
    %v1866 = vsel %vm1828, %v1488, %v1865
    %v1867 = vsel %vm1830, %v1502, %v1495
    %v1868 = vsel %vm1818, %v1509, %v1867
    %v1869 = vsel %vm1820, %v1516, %v1868
    %v1870 = vsel %vm1822, %v1523, %v1869
    %v1871 = vsel %vm1824, %v1530, %v1870
    %v1872 = vsel %vm1826, %v1537, %v1871
    %v1873 = vsel %vm1828, %v1544, %v1872
    %v1874 = vsel %vm1830, %v1558, %v1551
    %v1875 = vsel %vm1818, %v1565, %v1874
    %v1876 = vsel %vm1820, %v1572, %v1875
    %v1877 = vsel %vm1822, %v1579, %v1876
    %v1878 = vsel %vm1824, %v1586, %v1877
    %v1879 = vsel %vm1826, %v1593, %v1878
    %v1880 = vsel %vm1828, %v1600, %v1879
    %v1881 = vsel %vm1830, %v1614, %v1607
    %v1882 = vsel %vm1818, %v1621, %v1881
    %v1883 = vsel %vm1820, %v1628, %v1882
    %v1884 = vsel %vm1822, %v1635, %v1883
    %v1885 = vsel %vm1824, %v1642, %v1884
    %v1886 = vsel %vm1826, %v1649, %v1885
    %v1887 = vsel %vm1828, %v1656, %v1886
    %v1888 = vsel %vm1830, %v1670, %v1663
    %v1889 = vsel %vm1818, %v1677, %v1888
    %v1890 = vsel %vm1820, %v1684, %v1889
    %v1891 = vsel %vm1822, %v1691, %v1890
    %v1892 = vsel %vm1824, %v1698, %v1891
    %v1893 = vsel %vm1826, %v1705, %v1892
    %v1894 = vsel %vm1828, %v1712, %v1893
    %v1895 = vsel %vm1830, %v1726, %v1719
    %v1896 = vsel %vm1818, %v1733, %v1895
    %v1901 = vsel %vm192, 0.0, %v1829
    %v1902 = vsel %vm192, 0.0, %v1866
    %vm1903 = vcmask 1042432
    %v1904 = vsel %vm1903, %v1860, 0.0
    %v1905 = vsel %vm1903, %v1896, 0.0
    %v1906 = vld [vmem:[#allocation9] sm:$0xff]
    %v1907 = vld [vmem:[#allocation9 + $0x8] sm:$0xff]
    %v1908 = vld [vmem:[#allocation9 + $0x10] sm:$0xff]
    %v1909 = vld [vmem:[#allocation9 + $0x18] sm:$0xff]
    %s1910 = scalar_lea.vmem [#allocation9], 32
    %v1911 = vld [vmem:[%s1910] sm:$0xff]
    %v1912 = vld [vmem:[%s1910 + $0x8] sm:$0xff]
    %v1913 = vld [vmem:[%s1910 + $0x10] sm:$0xff]
    %v1914 = vld [vmem:[%s1910 + $0x18] sm:$0xff]
    %v1919 = vcombine.high %v1901, %v1901
    %v1921 = vunpack.c.l.s4 1983009808
    %v1922 = vunpack.c.0.s8 %v1921
    %v1923 = vlaneseq
    %v1924 = vshrl.u32 %v1923, 7
    %v1925 = vsub.s32 %v1922, %v1924
    %v1926 = vrot.slane %v1901, %v1925
    %v1928 = vunpack.c.l.s4 1983009808
    %v1929 = vunpack.c.0.s8 %v1928
    %v1930 = vlaneseq
    %v1931 = vshrl.u32 %v1930, 7
    %v1932 = vsub.s32 %v1929, %v1931
    %v1933 = vrot.slane %v1919, %v1932
    %v1934 = vcombine.high %v1926, %v1926
    %v1935 = vcombine.high %v1933, %v1933
    %v1936 = vcombine.high %v1837, %v1837
    %v1938 = vunpack.c.l.s4 1983009808
    %v1939 = vunpack.c.0.s8 %v1938
    %v1940 = vlaneseq
    %v1941 = vshrl.u32 %v1940, 7
    %v1942 = vsub.s32 %v1939, %v1941
    %v1943 = vrot.slane %v1837, %v1942
    %v1945 = vunpack.c.l.s4 1983009808
    %v1946 = vunpack.c.0.s8 %v1945
    %v1947 = vlaneseq
    %v1948 = vshrl.u32 %v1947, 7
    %v1949 = vsub.s32 %v1946, %v1948
    %v1950 = vrot.slane %v1936, %v1949
    %v1951 = vcombine.high %v1943, %v1943
    %v1952 = vcombine.high %v1950, %v1950
    %v1953 = vcombine.high %v1844, %v1844
    %v1955 = vunpack.c.l.s4 1983009808
    %v1956 = vunpack.c.0.s8 %v1955
    %v1957 = vlaneseq
    %v1958 = vshrl.u32 %v1957, 7
    %v1959 = vsub.s32 %v1956, %v1958
    %v1960 = vrot.slane %v1844, %v1959
    %v1962 = vunpack.c.l.s4 1983009808
    %v1963 = vunpack.c.0.s8 %v1962
    %v1964 = vlaneseq
    %v1965 = vshrl.u32 %v1964, 7
    %v1966 = vsub.s32 %v1963, %v1965
    %v1967 = vrot.slane %v1953, %v1966
    %v1968 = vcombine.high %v1960, %v1960
    %v1969 = vcombine.high %v1967, %v1967
    %v1970 = vcombine.high %v1851, %v1851
    %v1972 = vunpack.c.l.s4 1983009808
    %v1973 = vunpack.c.0.s8 %v1972
    %v1974 = vlaneseq
    %v1975 = vshrl.u32 %v1974, 7
    %v1976 = vsub.s32 %v1973, %v1975
    %v1977 = vrot.slane %v1851, %v1976
    %v1979 = vunpack.c.l.s4 1983009808
    %v1980 = vunpack.c.0.s8 %v1979
    %v1981 = vlaneseq
    %v1982 = vshrl.u32 %v1981, 7
    %v1983 = vsub.s32 %v1980, %v1982
    %v1984 = vrot.slane %v1970, %v1983
    %v1985 = vcombine.high %v1977, %v1977
    %v1986 = vcombine.high %v1984, %v1984
    %v1987 = vcombine.high %v1858, %v1858
    %v1989 = vunpack.c.l.s4 1983009808
    %v1990 = vunpack.c.0.s8 %v1989
    %v1991 = vlaneseq
    %v1992 = vshrl.u32 %v1991, 7
    %v1993 = vsub.s32 %v1990, %v1992
    %v1994 = vrot.slane %v1858, %v1993
    %v1996 = vunpack.c.l.s4 1983009808
    %v1997 = vunpack.c.0.s8 %v1996
    %v1998 = vlaneseq
    %v1999 = vshrl.u32 %v1998, 7
    %v2000 = vsub.s32 %v1997, %v1999
    %v2001 = vrot.slane %v1987, %v2000
    %v2002 = vcombine.high %v1994, %v1994
    %v2003 = vcombine.high %v2001, %v2001
    %v2005 = vunpack.c.l.s4 1983009808
    %v2006 = vunpack.c.0.s8 %v2005
    %v2007 = vlaneseq
    %v2008 = vshrl.u32 %v2007, 7
    %v2009 = vsub.s32 %v2006, %v2008
    %v2010 = vrot.slane %v1904, %v2009
    %v2011 = vcombine.high %v2010, %v2010
    %v2012 = vcombine.high %v1902, %v1902
    %v2014 = vunpack.c.l.s4 1983009808
    %v2015 = vunpack.c.0.s8 %v2014
    %v2016 = vlaneseq
    %v2017 = vshrl.u32 %v2016, 7
    %v2018 = vsub.s32 %v2015, %v2017
    %v2019 = vrot.slane %v1902, %v2018
    %v2021 = vunpack.c.l.s4 1983009808
    %v2022 = vunpack.c.0.s8 %v2021
    %v2023 = vlaneseq
    %v2024 = vshrl.u32 %v2023, 7
    %v2025 = vsub.s32 %v2022, %v2024
    %v2026 = vrot.slane %v2012, %v2025
    %v2027 = vcombine.high %v2019, %v2019
    %v2028 = vcombine.high %v2026, %v2026
    %v2029 = vcombine.high %v1873, %v1873
    %v2031 = vunpack.c.l.s4 1983009808
    %v2032 = vunpack.c.0.s8 %v2031
    %v2033 = vlaneseq
    %v2034 = vshrl.u32 %v2033, 7
    %v2035 = vsub.s32 %v2032, %v2034
    %v2036 = vrot.slane %v1873, %v2035
    %v2038 = vunpack.c.l.s4 1983009808
    %v2039 = vunpack.c.0.s8 %v2038
    %v2040 = vlaneseq
    %v2041 = vshrl.u32 %v2040, 7
    %v2042 = vsub.s32 %v2039, %v2041
    %v2043 = vrot.slane %v2029, %v2042
    %v2044 = vcombine.high %v2036, %v2036
    %v2045 = vcombine.high %v2043, %v2043
    %v2046 = vcombine.high %v1880, %v1880
    %v2048 = vunpack.c.l.s4 1983009808
    %v2049 = vunpack.c.0.s8 %v2048
    %v2050 = vlaneseq
    %v2051 = vshrl.u32 %v2050, 7
    %v2052 = vsub.s32 %v2049, %v2051
    %v2053 = vrot.slane %v1880, %v2052
    %v2055 = vunpack.c.l.s4 1983009808
    %v2056 = vunpack.c.0.s8 %v2055
    %v2057 = vlaneseq
    %v2058 = vshrl.u32 %v2057, 7
    %v2059 = vsub.s32 %v2056, %v2058
    %v2060 = vrot.slane %v2046, %v2059
    %v2061 = vcombine.high %v2053, %v2053
    %v2062 = vcombine.high %v2060, %v2060
    %v2063 = vcombine.high %v1887, %v1887
    %v2065 = vunpack.c.l.s4 1983009808
    %v2066 = vunpack.c.0.s8 %v2065
    %v2067 = vlaneseq
    %v2068 = vshrl.u32 %v2067, 7
    %v2069 = vsub.s32 %v2066, %v2068
    %v2070 = vrot.slane %v1887, %v2069
    %v2072 = vunpack.c.l.s4 1983009808
    %v2073 = vunpack.c.0.s8 %v2072
    %v2074 = vlaneseq
    %v2075 = vshrl.u32 %v2074, 7
    %v2076 = vsub.s32 %v2073, %v2075
    %v2077 = vrot.slane %v2063, %v2076
    %v2078 = vcombine.high %v2070, %v2070
    %v2079 = vcombine.high %v2077, %v2077
    %v2080 = vcombine.high %v1894, %v1894
    %v2082 = vunpack.c.l.s4 1983009808
    %v2083 = vunpack.c.0.s8 %v2082
    %v2084 = vlaneseq
    %v2085 = vshrl.u32 %v2084, 7
    %v2086 = vsub.s32 %v2083, %v2085
    %v2087 = vrot.slane %v1894, %v2086
    %v2089 = vunpack.c.l.s4 1983009808
    %v2090 = vunpack.c.0.s8 %v2089
    %v2091 = vlaneseq
    %v2092 = vshrl.u32 %v2091, 7
    %v2093 = vsub.s32 %v2090, %v2092
    %v2094 = vrot.slane %v2080, %v2093
    %v2095 = vcombine.high %v2087, %v2087
    %v2096 = vcombine.high %v2094, %v2094
    %v2098 = vunpack.c.l.s4 1983009808
    %v2099 = vunpack.c.0.s8 %v2098
    %v2100 = vlaneseq
    %v2101 = vshrl.u32 %v2100, 7
    %v2102 = vsub.s32 %v2099, %v2101
    %v2103 = vrot.slane %v1905, %v2102
    %v2104 = vcombine.high %v2103, %v2103
    %vm2105 = vmor %vm192, %vm1818
    %vm2106 = vmor %vm2105, %vm1822
    %vm2107 = vmor %vm2106, %vm1826
    %v2108 = vrot.slane %v1926, 7
    %v2109 = vrot.slane %v2108, 2
    %v2110 = vrot.slane %v1934, 7
    %v2111 = vsel %vm2107, %v2109, %v2110
    %v2112 = vrot.slane %v2110, 2
    %v2113 = vrot.slane %v1933, 7
    %v2114 = vsel %vm2107, %v2112, %v2113
    %v2115 = vrot.slane %v2113, 2
    %v2116 = vrot.slane %v1935, 7
    %v2117 = vsel %vm2107, %v2115, %v2116
    %v2118 = vrot.slane %v2116, 2
    %v2119 = vrot.slane %v1943, 7
    %v2120 = vsel %vm2107, %v2118, %v2119
    %v2121 = vrot.slane %v2119, 2
    %v2122 = vrot.slane %v1951, 7
    %v2123 = vsel %vm2107, %v2121, %v2122
    %v2124 = vrot.slane %v2122, 2
    %v2125 = vrot.slane %v1950, 7
    %v2126 = vsel %vm2107, %v2124, %v2125
    %v2127 = vrot.slane %v2125, 2
    %v2128 = vrot.slane %v1952, 7
    %v2129 = vsel %vm2107, %v2127, %v2128
    %v2130 = vrot.slane %v2128, 2
    %v2131 = vrot.slane %v1960, 7
    %v2132 = vsel %vm2107, %v2130, %v2131
    %v2133 = vrot.slane %v2131, 2
    %v2134 = vrot.slane %v1968, 7
    %v2135 = vsel %vm2107, %v2133, %v2134
    %v2136 = vrot.slane %v2134, 2
    %v2137 = vrot.slane %v1967, 7
    %v2138 = vsel %vm2107, %v2136, %v2137
    %v2139 = vrot.slane %v2137, 2
    %v2140 = vrot.slane %v1969, 7
    %v2141 = vsel %vm2107, %v2139, %v2140
    %v2142 = vrot.slane %v2140, 2
    %v2143 = vrot.slane %v1977, 7
    %v2144 = vsel %vm2107, %v2142, %v2143
    %v2145 = vrot.slane %v2143, 2
    %v2146 = vrot.slane %v1985, 7
    %v2147 = vsel %vm2107, %v2145, %v2146
    %v2148 = vrot.slane %v2146, 2
    %v2149 = vrot.slane %v1984, 7
    %v2150 = vsel %vm2107, %v2148, %v2149
    %v2151 = vrot.slane %v2149, 2
    %v2152 = vrot.slane %v1986, 7
    %v2153 = vsel %vm2107, %v2151, %v2152
    %v2154 = vrot.slane %v2152, 2
    %v2155 = vrot.slane %v1994, 7
    %v2156 = vsel %vm2107, %v2154, %v2155
    %v2157 = vrot.slane %v2155, 2
    %v2158 = vrot.slane %v2002, 7
    %v2159 = vsel %vm2107, %v2157, %v2158
    %v2160 = vrot.slane %v2158, 2
    %v2161 = vrot.slane %v2001, 7
    %v2162 = vsel %vm2107, %v2160, %v2161
    %v2163 = vrot.slane %v2161, 2
    %v2164 = vrot.slane %v2003, 7
    %v2165 = vsel %vm2107, %v2163, %v2164
    %v2166 = vrot.slane %v2164, 2
    %v2167 = vrot.slane %v2010, 7
    %v2168 = vsel %vm2107, %v2166, %v2167
    %v2169 = vrot.slane %v2167, 2
    %v2170 = vrot.slane %v2011, 7
    %v2171 = vsel %vm2107, %v2169, %v2170
    %v2172 = vrot.slane %v2019, 7
    %v2173 = vrot.slane %v2172, 2
    %v2174 = vrot.slane %v2027, 7
    %v2175 = vsel %vm2107, %v2173, %v2174
    %v2176 = vrot.slane %v2174, 2
    %v2177 = vrot.slane %v2026, 7
    %v2178 = vsel %vm2107, %v2176, %v2177
    %v2179 = vrot.slane %v2177, 2
    %v2180 = vrot.slane %v2028, 7
    %v2181 = vsel %vm2107, %v2179, %v2180
    %v2182 = vrot.slane %v2180, 2
    %v2183 = vrot.slane %v2036, 7
    %v2184 = vsel %vm2107, %v2182, %v2183
    %v2185 = vrot.slane %v2183, 2
    %v2186 = vrot.slane %v2044, 7
    %v2187 = vsel %vm2107, %v2185, %v2186
    %v2188 = vrot.slane %v2186, 2
    %v2189 = vrot.slane %v2043, 7
    %v2190 = vsel %vm2107, %v2188, %v2189
    %v2191 = vrot.slane %v2189, 2
    %v2192 = vrot.slane %v2045, 7
    %v2193 = vsel %vm2107, %v2191, %v2192
    %v2194 = vrot.slane %v2192, 2
    %v2195 = vrot.slane %v2053, 7
    %v2196 = vsel %vm2107, %v2194, %v2195
    %v2197 = vrot.slane %v2195, 2
    %v2198 = vrot.slane %v2061, 7
    %v2199 = vsel %vm2107, %v2197, %v2198
    %v2200 = vrot.slane %v2198, 2
    %v2201 = vrot.slane %v2060, 7
    %v2202 = vsel %vm2107, %v2200, %v2201
    %v2203 = vrot.slane %v2201, 2
    %v2204 = vrot.slane %v2062, 7
    %v2205 = vsel %vm2107, %v2203, %v2204
    %v2206 = vrot.slane %v2204, 2
    %v2207 = vrot.slane %v2070, 7
    %v2208 = vsel %vm2107, %v2206, %v2207
    %v2209 = vrot.slane %v2207, 2
    %v2210 = vrot.slane %v2078, 7
    %v2211 = vsel %vm2107, %v2209, %v2210
    %v2212 = vrot.slane %v2210, 2
    %v2213 = vrot.slane %v2077, 7
    %v2214 = vsel %vm2107, %v2212, %v2213
    %v2215 = vrot.slane %v2213, 2
    %v2216 = vrot.slane %v2079, 7
    %v2217 = vsel %vm2107, %v2215, %v2216
    %v2218 = vrot.slane %v2216, 2
    %v2219 = vrot.slane %v2087, 7
    %v2220 = vsel %vm2107, %v2218, %v2219
    %v2221 = vrot.slane %v2219, 2
    %v2222 = vrot.slane %v2095, 7
    %v2223 = vsel %vm2107, %v2221, %v2222
    %v2224 = vrot.slane %v2222, 2
    %v2225 = vrot.slane %v2094, 7
    %v2226 = vsel %vm2107, %v2224, %v2225
    %v2227 = vrot.slane %v2225, 2
    %v2228 = vrot.slane %v2096, 7
    %v2229 = vsel %vm2107, %v2227, %v2228
    %v2230 = vrot.slane %v2228, 2
    %v2231 = vrot.slane %v2103, 7
    %v2232 = vsel %vm2107, %v2230, %v2231
    %v2233 = vrot.slane %v2231, 2
    %v2234 = vrot.slane %v2104, 7
    %v2235 = vsel %vm2107, %v2233, %v2234
    %v2236 = vcombine.low %v2111, %v2114
    %v2237 = vcombine.low %v2117, %v2120
    %v2239 = vunpack.c.l.s4 1983009808
    %v2240 = vunpack.c.0.s8 %v2239
    %v2241 = vlaneseq
    %v2242 = vshrl.u32 %v2241, 7
    %v2243 = vsub.s32 %v2240, %v2242
    %v2244 = vrot.slane %v2236, %v2243
    %v2246 = vunpack.c.l.s4 1983009808
    %v2247 = vunpack.c.0.s8 %v2246
    %v2248 = vlaneseq
    %v2249 = vshrl.u32 %v2248, 7
    %v2250 = vsub.s32 %v2247, %v2249
    %v2251 = vrot.slane %v2237, %v2250
    %v2252 = vcombine.low %v2244, %v2251
    %v2253 = vcombine.low %v2123, %v2126
    %v2254 = vcombine.low %v2129, %v2132
    %v2256 = vunpack.c.l.s4 1983009808
    %v2257 = vunpack.c.0.s8 %v2256
    %v2258 = vlaneseq
    %v2259 = vshrl.u32 %v2258, 7
    %v2260 = vsub.s32 %v2257, %v2259
    %v2261 = vrot.slane %v2253, %v2260
    %v2263 = vunpack.c.l.s4 1983009808
    %v2264 = vunpack.c.0.s8 %v2263
    %v2265 = vlaneseq
    %v2266 = vshrl.u32 %v2265, 7
    %v2267 = vsub.s32 %v2264, %v2266
    %v2268 = vrot.slane %v2254, %v2267
    %v2269 = vcombine.low %v2261, %v2268
    %v2270 = vcombine.low %v2135, %v2138
    %v2271 = vcombine.low %v2141, %v2144
    %v2273 = vunpack.c.l.s4 1983009808
    %v2274 = vunpack.c.0.s8 %v2273
    %v2275 = vlaneseq
    %v2276 = vshrl.u32 %v2275, 7
    %v2277 = vsub.s32 %v2274, %v2276
    %v2278 = vrot.slane %v2270, %v2277
    %v2280 = vunpack.c.l.s4 1983009808
    %v2281 = vunpack.c.0.s8 %v2280
    %v2282 = vlaneseq
    %v2283 = vshrl.u32 %v2282, 7
    %v2284 = vsub.s32 %v2281, %v2283
    %v2285 = vrot.slane %v2271, %v2284
    %v2286 = vcombine.low %v2278, %v2285
    %v2287 = vcombine.low %v2147, %v2150
    %v2288 = vcombine.low %v2153, %v2156
    %v2290 = vunpack.c.l.s4 1983009808
    %v2291 = vunpack.c.0.s8 %v2290
    %v2292 = vlaneseq
    %v2293 = vshrl.u32 %v2292, 7
    %v2294 = vsub.s32 %v2291, %v2293
    %v2295 = vrot.slane %v2287, %v2294
    %v2297 = vunpack.c.l.s4 1983009808
    %v2298 = vunpack.c.0.s8 %v2297
    %v2299 = vlaneseq
    %v2300 = vshrl.u32 %v2299, 7
    %v2301 = vsub.s32 %v2298, %v2300
    %v2302 = vrot.slane %v2288, %v2301
    %v2303 = vcombine.low %v2295, %v2302
    %v2304 = vcombine.low %v2159, %v2162
    %v2305 = vcombine.low %v2165, %v2168
    %v2307 = vunpack.c.l.s4 1983009808
    %v2308 = vunpack.c.0.s8 %v2307
    %v2309 = vlaneseq
    %v2310 = vshrl.u32 %v2309, 7
    %v2311 = vsub.s32 %v2308, %v2310
    %v2312 = vrot.slane %v2304, %v2311
    %v2314 = vunpack.c.l.s4 1983009808
    %v2315 = vunpack.c.0.s8 %v2314
    %v2316 = vlaneseq
    %v2317 = vshrl.u32 %v2316, 7
    %v2318 = vsub.s32 %v2315, %v2317
    %v2319 = vrot.slane %v2305, %v2318
    %v2320 = vcombine.low %v2312, %v2319
    %v2321 = vcombine.low %v2171, %v2175
    %v2322 = vcombine.low %v2178, %v2181
    %v2324 = vunpack.c.l.s4 1983009808
    %v2325 = vunpack.c.0.s8 %v2324
    %v2326 = vlaneseq
    %v2327 = vshrl.u32 %v2326, 7
    %v2328 = vsub.s32 %v2325, %v2327
    %v2329 = vrot.slane %v2321, %v2328
    %v2331 = vunpack.c.l.s4 1983009808
    %v2332 = vunpack.c.0.s8 %v2331
    %v2333 = vlaneseq
    %v2334 = vshrl.u32 %v2333, 7
    %v2335 = vsub.s32 %v2332, %v2334
    %v2336 = vrot.slane %v2322, %v2335
    %v2337 = vcombine.low %v2329, %v2336
    %v2338 = vcombine.low %v2184, %v2187
    %v2339 = vcombine.low %v2190, %v2193
    %v2341 = vunpack.c.l.s4 1983009808
    %v2342 = vunpack.c.0.s8 %v2341
    %v2343 = vlaneseq
    %v2344 = vshrl.u32 %v2343, 7
    %v2345 = vsub.s32 %v2342, %v2344
    %v2346 = vrot.slane %v2338, %v2345
    %v2348 = vunpack.c.l.s4 1983009808
    %v2349 = vunpack.c.0.s8 %v2348
    %v2350 = vlaneseq
    %v2351 = vshrl.u32 %v2350, 7
    %v2352 = vsub.s32 %v2349, %v2351
    %v2353 = vrot.slane %v2339, %v2352
    %v2354 = vcombine.low %v2346, %v2353
    %v2355 = vcombine.low %v2196, %v2199
    %v2356 = vcombine.low %v2202, %v2205
    %v2358 = vunpack.c.l.s4 1983009808
    %v2359 = vunpack.c.0.s8 %v2358
    %v2360 = vlaneseq
    %v2361 = vshrl.u32 %v2360, 7
    %v2362 = vsub.s32 %v2359, %v2361
    %v2363 = vrot.slane %v2355, %v2362
    %v2365 = vunpack.c.l.s4 1983009808
    %v2366 = vunpack.c.0.s8 %v2365
    %v2367 = vlaneseq
    %v2368 = vshrl.u32 %v2367, 7
    %v2369 = vsub.s32 %v2366, %v2368
    %v2370 = vrot.slane %v2356, %v2369
    %v2371 = vcombine.low %v2363, %v2370
    %v2372 = vcombine.low %v2208, %v2211
    %v2373 = vcombine.low %v2214, %v2217
    %v2375 = vunpack.c.l.s4 1983009808
    %v2376 = vunpack.c.0.s8 %v2375
    %v2377 = vlaneseq
    %v2378 = vshrl.u32 %v2377, 7
    %v2379 = vsub.s32 %v2376, %v2378
    %v2380 = vrot.slane %v2372, %v2379
    %v2382 = vunpack.c.l.s4 1983009808
    %v2383 = vunpack.c.0.s8 %v2382
    %v2384 = vlaneseq
    %v2385 = vshrl.u32 %v2384, 7
    %v2386 = vsub.s32 %v2383, %v2385
    %v2387 = vrot.slane %v2373, %v2386
    %v2388 = vcombine.low %v2380, %v2387
    %v2389 = vcombine.low %v2220, %v2223
    %v2390 = vcombine.low %v2226, %v2229
    %v2392 = vunpack.c.l.s4 1983009808
    %v2393 = vunpack.c.0.s8 %v2392
    %v2394 = vlaneseq
    %v2395 = vshrl.u32 %v2394, 7
    %v2396 = vsub.s32 %v2393, %v2395
    %v2397 = vrot.slane %v2389, %v2396
    %v2399 = vunpack.c.l.s4 1983009808
    %v2400 = vunpack.c.0.s8 %v2399
    %v2401 = vlaneseq
    %v2402 = vshrl.u32 %v2401, 7
    %v2403 = vsub.s32 %v2400, %v2402
    %v2404 = vrot.slane %v2390, %v2403
    %v2405 = vcombine.low %v2397, %v2404
    %v2406 = vcombine.low %v2232, %v2235
    %v2408 = vunpack.c.l.s4 1983009808
    %v2409 = vunpack.c.0.s8 %v2408
    %v2410 = vlaneseq
    %v2411 = vshrl.u32 %v2410, 7
    %v2412 = vsub.s32 %v2409, %v2411
    %v2413 = vrot.slane %v2406, %v2412
    %vm2414 = vcmask 261120
    %v2415 = vsel %vm2414, %v2252, 0
    %v2417 = vsel %vm2414, %v2269, 0
    %v2419 = vsel %vm2414, %v2286, 0
    %v2421 = vsel %vm2414, %v2303, 0
    %v2423 = vsel %vm2414, %v2320, 0
    %v2425 = vsel %vm2414, %v2337, 0
    %v2427 = vsel %vm2414, %v2354, 0
    %v2429 = vsel %vm2414, %v2371, 0
    %v2431 = vsel %vm2414, %v2388, 0
    %v2433 = vsel %vm2414, %v2405, 0
    %v2435 = vsel %vm2414, %v2413, 0
    %2437 = vmatprep.subr.mxu0 0.0
    %2438 = vmatpush1.msra.mxu0 0.0
    %2439 = vmatprep.subr.mxu0 0.0
    %2440 = vmatpush1.msra.mxu0 0.0
    %2441 = vmatprep.subr.mxu0 0.0
    %2442 = vmatpush1.msra.mxu0 0.0
    %2443 = vmatprep.subr.mxu0 0.0
    %2444 = vmatpush1.msra.mxu0 0.0
    %2445 = vmatprep.subr.mxu0 0.0
    %2446 = vmatpush1.msra.mxu0 0.0
    %2447 = vmatprep.subr.mxu0 0.0
    %2448 = vmatpush1.msra.mxu0 0.0
    %2449 = vmatprep.subr.mxu0 0.0
    %2450 = vmatpush1.msra.mxu0 0.0
    %2451 = vmatprep.subr.mxu0 0.0
    %2452 = vmatpush1.msra.mxu0 0.0
    %2453 = vmatprep.subr.mxu0 0.0
    %2454 = vmatpush1.msra.mxu0 0.0
    %2455 = vmatprep.subr.mxu0 0.0
    %2456 = vmatpush1.msra.mxu0 0.0
    %2457 = vmatprep.subr.mxu0 0.0
    %2458 = vmatpush1.msra.mxu0 0.0
    %2459 = vmatprep.subr.mxu0 0.0
    %2460 = vmatpush1.msra.mxu0 0.0
    %2461 = vmatprep.subr.mxu0 0.0
    %2462 = vmatpush1.msra.mxu0 %v1914
    %2463 = vmatprep.subr.mxu0 0.0
    %2464 = vmatpush1.msra.mxu0 %v1913
    %2465 = vmatprep.subr.mxu0 0.0
    %2466 = vmatpush1.msra.mxu0 %v1912
    %2467 = vmatprep.subr.mxu0 0.0
    %2468 = vmatpush1.msra.mxu0 %v1911
    %2469 = vmatprep.subr.mxu0 0.0
    %2470 = vmatpush2.msra.mxu0 0.0
    %2471 = vmatprep.subr.mxu0 0.0
    %2472 = vmatpush2.msra.mxu0 0.0
    %2473 = vmatprep.subr.mxu0 0.0
    %2474 = vmatpush2.msra.mxu0 0.0
    %2475 = vmatprep.subr.mxu0 0.0
    %2476 = vmatpush2.msra.mxu0 0.0
    %2477 = vmatprep.subr.mxu0 0.0
    %2478 = vmatpush2.msra.mxu0 0.0
    %2479 = vmatprep.subr.mxu0 0.0
    %2480 = vmatpush2.msra.mxu0 0.0
    %2481 = vmatprep.subr.mxu0 0.0
    %2482 = vmatpush2.msra.mxu0 0.0
    %2483 = vmatprep.subr.mxu0 0.0
    %2484 = vmatpush2.msra.mxu0 0.0
    %2485 = vmatprep.subr.mxu0 0.0
    %2486 = vmatpush2.msra.mxu0 0.0
    %2487 = vmatprep.subr.mxu0 0.0
    %2488 = vmatpush2.msra.mxu0 0.0
    %2489 = vmatprep.subr.mxu0 0.0
    %2490 = vmatpush2.msra.mxu0 0.0
    %2491 = vmatprep.subr.mxu0 0.0
    %2492 = vmatpush2.msra.mxu0 0.0
    %2493 = vmatprep.subr.mxu0 0.0
    %2494 = vmatpush2.msra.mxu0 0.0
    %2495 = vmatprep.subr.mxu0 0.0
    %2496 = vmatpush2.msra.mxu0 0.0
    %2497 = vmatprep.subr.mxu0 0.0
    %2498 = vmatpush2.msra.mxu0 0.0
    %2499 = vmatprep.subr.mxu0 0.0
    %2500 = vmatpush2.msra.mxu0 0.0
    %2501 = vmatprep.mubr.f32.mxu0 0.0
    %2502 = vmatmul.mubr.f32.gmra.mxu0 %v2415
    %v2503 = vpop.f32.mrf.mxu0
    %v2504 = vadd.f32 0.0, %v2503
    %v2505 = vpop.f32.mrf.mxu0
    %2506 = vmatprep.mubr.f32.mxu0 0.0
    %2507 = vmatmul.mubr.f32.gmra.mxu0 %v2417
    %v2508 = vpop.f32.mrf.mxu0
    %v2509 = vadd.f32 0.0, %v2508
    %v2510 = vpop.f32.mrf.mxu0
    %2511 = vmatprep.mubr.f32.mxu0 0.0
    %2512 = vmatmul.mubr.f32.gmra.mxu0 %v2419
    %v2513 = vpop.f32.mrf.mxu0
    %v2514 = vadd.f32 0.0, %v2513
    %v2515 = vpop.f32.mrf.mxu0
    %2516 = vmatprep.mubr.f32.mxu0 0.0
    %2517 = vmatmul.mubr.f32.gmra.mxu0 %v2421
    %v2518 = vpop.f32.mrf.mxu0
    %v2519 = vadd.f32 0.0, %v2518
    %v2520 = vpop.f32.mrf.mxu0
    %2521 = vmatprep.mubr.f32.mxu0 0.0
    %2522 = vmatmul.mubr.f32.gmra.mxu0 %v2423
    %v2523 = vpop.f32.mrf.mxu0
    %v2524 = vadd.f32 0.0, %v2523
    %v2525 = vpop.f32.mrf.mxu0
    %2526 = vmatprep.mubr.f32.mxu0 0.0
    %2527 = vmatmul.mubr.f32.gmra.mxu0 %v2425
    %v2528 = vpop.f32.mrf.mxu0
    %v2529 = vadd.f32 0.0, %v2528
    %v2530 = vpop.f32.mrf.mxu0
    %2531 = vmatprep.mubr.f32.mxu0 0.0
    %2532 = vmatmul.mubr.f32.gmra.mxu0 %v2427
    %v2533 = vpop.f32.mrf.mxu0
    %v2534 = vadd.f32 0.0, %v2533
    %v2535 = vpop.f32.mrf.mxu0
    %2536 = vmatprep.mubr.f32.mxu0 0.0
    %2537 = vmatmul.mubr.f32.gmra.mxu0 %v2429
    %v2538 = vpop.f32.mrf.mxu0
    %v2539 = vadd.f32 0.0, %v2538
    %v2540 = vpop.f32.mrf.mxu0
    %2541 = vmatprep.mubr.f32.mxu0 0.0
    %2542 = vmatmul.mubr.f32.gmra.mxu0 %v2431
    %v2543 = vpop.f32.mrf.mxu0
    %v2544 = vadd.f32 0.0, %v2543
    %v2545 = vpop.f32.mrf.mxu0
    %2546 = vmatprep.mubr.f32.mxu0 0.0
    %2547 = vmatmul.mubr.f32.gmra.mxu0 %v2433
    %v2548 = vpop.f32.mrf.mxu0
    %v2549 = vadd.f32 0.0, %v2548
    %v2550 = vpop.f32.mrf.mxu0
    %2551 = vmatprep.mubr.f32.mxu0 0.0
    %2552 = vmatmul.mubr.f32.gmra.mxu0 %v2435
    %v2553 = vpop.f32.mrf.mxu0
    %v2554 = vadd.f32 0.0, %v2553
    %v2555 = vpop.f32.mrf.mxu0
    %2556 = vdwg.mxu0
    %v2557 = vcombine.low %v1926, %v1934
    %v2558 = vcombine.low %v1933, %v1935
    %v2560 = vunpack.c.l.s4 1983009808
    %v2561 = vunpack.c.0.s8 %v2560
    %v2562 = vlaneseq
    %v2563 = vshrl.u32 %v2562, 7
    %v2564 = vsub.s32 %v2561, %v2563
    %v2565 = vrot.slane %v2557, %v2564
    %v2567 = vunpack.c.l.s4 1983009808
    %v2568 = vunpack.c.0.s8 %v2567
    %v2569 = vlaneseq
    %v2570 = vshrl.u32 %v2569, 7
    %v2571 = vsub.s32 %v2568, %v2570
    %v2572 = vrot.slane %v2558, %v2571
    %v2573 = vcombine.low %v2565, %v2572
    %v2574 = vcombine.low %v1943, %v1951
    %v2575 = vcombine.low %v1950, %v1952
    %v2577 = vunpack.c.l.s4 1983009808
    %v2578 = vunpack.c.0.s8 %v2577
    %v2579 = vlaneseq
    %v2580 = vshrl.u32 %v2579, 7
    %v2581 = vsub.s32 %v2578, %v2580
    %v2582 = vrot.slane %v2574, %v2581
    %v2584 = vunpack.c.l.s4 1983009808
    %v2585 = vunpack.c.0.s8 %v2584
    %v2586 = vlaneseq
    %v2587 = vshrl.u32 %v2586, 7
    %v2588 = vsub.s32 %v2585, %v2587
    %v2589 = vrot.slane %v2575, %v2588
    %v2590 = vcombine.low %v2582, %v2589
    %v2591 = vcombine.low %v1960, %v1968
    %v2592 = vcombine.low %v1967, %v1969
    %v2594 = vunpack.c.l.s4 1983009808
    %v2595 = vunpack.c.0.s8 %v2594
    %v2596 = vlaneseq
    %v2597 = vshrl.u32 %v2596, 7
    %v2598 = vsub.s32 %v2595, %v2597
    %v2599 = vrot.slane %v2591, %v2598
    %v2601 = vunpack.c.l.s4 1983009808
    %v2602 = vunpack.c.0.s8 %v2601
    %v2603 = vlaneseq
    %v2604 = vshrl.u32 %v2603, 7
    %v2605 = vsub.s32 %v2602, %v2604
    %v2606 = vrot.slane %v2592, %v2605
    %v2607 = vcombine.low %v2599, %v2606
    %v2608 = vcombine.low %v1977, %v1985
    %v2609 = vcombine.low %v1984, %v1986
    %v2611 = vunpack.c.l.s4 1983009808
    %v2612 = vunpack.c.0.s8 %v2611
    %v2613 = vlaneseq
    %v2614 = vshrl.u32 %v2613, 7
    %v2615 = vsub.s32 %v2612, %v2614
    %v2616 = vrot.slane %v2608, %v2615
    %v2618 = vunpack.c.l.s4 1983009808
    %v2619 = vunpack.c.0.s8 %v2618
    %v2620 = vlaneseq
    %v2621 = vshrl.u32 %v2620, 7
    %v2622 = vsub.s32 %v2619, %v2621
    %v2623 = vrot.slane %v2609, %v2622
    %v2624 = vcombine.low %v2616, %v2623
    %v2625 = vcombine.low %v1994, %v2002
    %v2626 = vcombine.low %v2001, %v2003
    %v2628 = vunpack.c.l.s4 1983009808
    %v2629 = vunpack.c.0.s8 %v2628
    %v2630 = vlaneseq
    %v2631 = vshrl.u32 %v2630, 7
    %v2632 = vsub.s32 %v2629, %v2631
    %v2633 = vrot.slane %v2625, %v2632
    %v2635 = vunpack.c.l.s4 1983009808
    %v2636 = vunpack.c.0.s8 %v2635
    %v2637 = vlaneseq
    %v2638 = vshrl.u32 %v2637, 7
    %v2639 = vsub.s32 %v2636, %v2638
    %v2640 = vrot.slane %v2626, %v2639
    %v2641 = vcombine.low %v2633, %v2640
    %v2642 = vcombine.low %v2010, %v2019
    %v2643 = vcombine.low %v2027, %v2026
    %v2645 = vunpack.c.l.s4 1983009808
    %v2646 = vunpack.c.0.s8 %v2645
    %v2647 = vlaneseq
    %v2648 = vshrl.u32 %v2647, 7
    %v2649 = vsub.s32 %v2646, %v2648
    %v2650 = vrot.slane %v2642, %v2649
    %v2652 = vunpack.c.l.s4 1983009808
    %v2653 = vunpack.c.0.s8 %v2652
    %v2654 = vlaneseq
    %v2655 = vshrl.u32 %v2654, 7
    %v2656 = vsub.s32 %v2653, %v2655
    %v2657 = vrot.slane %v2643, %v2656
    %v2658 = vcombine.low %v2650, %v2657
    %v2659 = vcombine.low %v2028, %v2036
    %v2660 = vcombine.low %v2044, %v2043
    %v2662 = vunpack.c.l.s4 1983009808
    %v2663 = vunpack.c.0.s8 %v2662
    %v2664 = vlaneseq
    %v2665 = vshrl.u32 %v2664, 7
    %v2666 = vsub.s32 %v2663, %v2665
    %v2667 = vrot.slane %v2659, %v2666
    %v2669 = vunpack.c.l.s4 1983009808
    %v2670 = vunpack.c.0.s8 %v2669
    %v2671 = vlaneseq
    %v2672 = vshrl.u32 %v2671, 7
    %v2673 = vsub.s32 %v2670, %v2672
    %v2674 = vrot.slane %v2660, %v2673
    %v2675 = vcombine.low %v2667, %v2674
    %v2676 = vcombine.low %v2045, %v2053
    %v2677 = vcombine.low %v2061, %v2060
    %v2679 = vunpack.c.l.s4 1983009808
    %v2680 = vunpack.c.0.s8 %v2679
    %v2681 = vlaneseq
    %v2682 = vshrl.u32 %v2681, 7
    %v2683 = vsub.s32 %v2680, %v2682
    %v2684 = vrot.slane %v2676, %v2683
    %v2686 = vunpack.c.l.s4 1983009808
    %v2687 = vunpack.c.0.s8 %v2686
    %v2688 = vlaneseq
    %v2689 = vshrl.u32 %v2688, 7
    %v2690 = vsub.s32 %v2687, %v2689
    %v2691 = vrot.slane %v2677, %v2690
    %v2692 = vcombine.low %v2684, %v2691
    %v2693 = vcombine.low %v2062, %v2070
    %v2694 = vcombine.low %v2078, %v2077
    %v2696 = vunpack.c.l.s4 1983009808
    %v2697 = vunpack.c.0.s8 %v2696
    %v2698 = vlaneseq
    %v2699 = vshrl.u32 %v2698, 7
    %v2700 = vsub.s32 %v2697, %v2699
    %v2701 = vrot.slane %v2693, %v2700
    %v2703 = vunpack.c.l.s4 1983009808
    %v2704 = vunpack.c.0.s8 %v2703
    %v2705 = vlaneseq
    %v2706 = vshrl.u32 %v2705, 7
    %v2707 = vsub.s32 %v2704, %v2706
    %v2708 = vrot.slane %v2694, %v2707
    %v2709 = vcombine.low %v2701, %v2708
    %v2710 = vcombine.low %v2079, %v2087
    %v2711 = vcombine.low %v2095, %v2094
    %v2713 = vunpack.c.l.s4 1983009808
    %v2714 = vunpack.c.0.s8 %v2713
    %v2715 = vlaneseq
    %v2716 = vshrl.u32 %v2715, 7
    %v2717 = vsub.s32 %v2714, %v2716
    %v2718 = vrot.slane %v2710, %v2717
    %v2720 = vunpack.c.l.s4 1983009808
    %v2721 = vunpack.c.0.s8 %v2720
    %v2722 = vlaneseq
    %v2723 = vshrl.u32 %v2722, 7
    %v2724 = vsub.s32 %v2721, %v2723
    %v2725 = vrot.slane %v2711, %v2724
    %v2726 = vcombine.low %v2718, %v2725
    %v2727 = vcombine.low %v2096, %v2103
    %v2729 = vunpack.c.l.s4 1983009808
    %v2730 = vunpack.c.0.s8 %v2729
    %v2731 = vlaneseq
    %v2732 = vshrl.u32 %v2731, 7
    %v2733 = vsub.s32 %v2730, %v2732
    %v2734 = vrot.slane %v2727, %v2733
    %v2735 = vsel %vm2414, %v2573, 0
    %v2737 = vsel %vm2414, %v2590, 0
    %v2739 = vsel %vm2414, %v2607, 0
    %v2741 = vsel %vm2414, %v2624, 0
    %v2743 = vsel %vm2414, %v2641, 0
    %v2745 = vsel %vm2414, %v2658, 0
    %v2747 = vsel %vm2414, %v2675, 0
    %v2749 = vsel %vm2414, %v2692, 0
    %v2751 = vsel %vm2414, %v2709, 0
    %v2753 = vsel %vm2414, %v2726, 0
    %v2755 = vsel %vm2414, %v2734, 0
    %2757 = vmatprep.subr.mxu0 0.0
    %2758 = vmatpush1.msra.mxu0 0.0
    %2759 = vmatprep.subr.mxu0 0.0
    %2760 = vmatpush1.msra.mxu0 0.0
    %2761 = vmatprep.subr.mxu0 0.0
    %2762 = vmatpush1.msra.mxu0 0.0
    %2763 = vmatprep.subr.mxu0 0.0
    %2764 = vmatpush1.msra.mxu0 0.0
    %2765 = vmatprep.subr.mxu0 0.0
    %2766 = vmatpush1.msra.mxu0 0.0
    %2767 = vmatprep.subr.mxu0 0.0
    %2768 = vmatpush1.msra.mxu0 0.0
    %2769 = vmatprep.subr.mxu0 0.0
    %2770 = vmatpush1.msra.mxu0 0.0
    %2771 = vmatprep.subr.mxu0 0.0
    %2772 = vmatpush1.msra.mxu0 0.0
    %2773 = vmatprep.subr.mxu0 0.0
    %2774 = vmatpush1.msra.mxu0 0.0
    %2775 = vmatprep.subr.mxu0 0.0
    %2776 = vmatpush1.msra.mxu0 0.0
    %2777 = vmatprep.subr.mxu0 0.0
    %2778 = vmatpush1.msra.mxu0 0.0
    %2779 = vmatprep.subr.mxu0 0.0
    %2780 = vmatpush1.msra.mxu0 0.0
    %2781 = vmatprep.subr.mxu0 0.0
    %2782 = vmatpush1.msra.mxu0 %v1909
    %2783 = vmatprep.subr.mxu0 0.0
    %2784 = vmatpush1.msra.mxu0 %v1908
    %2785 = vmatprep.subr.mxu0 0.0
    %2786 = vmatpush1.msra.mxu0 %v1907
    %2787 = vmatprep.subr.mxu0 0.0
    %2788 = vmatpush1.msra.mxu0 %v1906
    %2789 = vmatprep.subr.mxu0 0.0
    %2790 = vmatpush2.msra.mxu0 0.0
    %2791 = vmatprep.subr.mxu0 0.0
    %2792 = vmatpush2.msra.mxu0 0.0
    %2793 = vmatprep.subr.mxu0 0.0
    %2794 = vmatpush2.msra.mxu0 0.0
    %2795 = vmatprep.subr.mxu0 0.0
    %2796 = vmatpush2.msra.mxu0 0.0
    %2797 = vmatprep.subr.mxu0 0.0
    %2798 = vmatpush2.msra.mxu0 0.0
    %2799 = vmatprep.subr.mxu0 0.0
    %2800 = vmatpush2.msra.mxu0 0.0
    %2801 = vmatprep.subr.mxu0 0.0
    %2802 = vmatpush2.msra.mxu0 0.0
    %2803 = vmatprep.subr.mxu0 0.0
    %2804 = vmatpush2.msra.mxu0 0.0
    %2805 = vmatprep.subr.mxu0 0.0
    %2806 = vmatpush2.msra.mxu0 0.0
    %2807 = vmatprep.subr.mxu0 0.0
    %2808 = vmatpush2.msra.mxu0 0.0
    %2809 = vmatprep.subr.mxu0 0.0
    %2810 = vmatpush2.msra.mxu0 0.0
    %2811 = vmatprep.subr.mxu0 0.0
    %2812 = vmatpush2.msra.mxu0 0.0
    %2813 = vmatprep.subr.mxu0 0.0
    %2814 = vmatpush2.msra.mxu0 0.0
    %2815 = vmatprep.subr.mxu0 0.0
    %2816 = vmatpush2.msra.mxu0 0.0
    %2817 = vmatprep.subr.mxu0 0.0
    %2818 = vmatpush2.msra.mxu0 0.0
    %2819 = vmatprep.subr.mxu0 0.0
    %2820 = vmatpush2.msra.mxu0 0.0
    %2821 = vmatprep.mubr.f32.mxu0 0.0
    %2822 = vmatmul.mubr.f32.gmra.mxu0 %v2735
    %v2823 = vpop.f32.mrf.mxu0
    %v2824 = vadd.f32 %v2504, %v2823
    %v2825 = vpop.f32.mrf.mxu0
    %2826 = vmatprep.mubr.f32.mxu0 0.0
    %2827 = vmatmul.mubr.f32.gmra.mxu0 %v2737
    %v2828 = vpop.f32.mrf.mxu0
    %v2829 = vadd.f32 %v2509, %v2828
    %v2830 = vpop.f32.mrf.mxu0
    %2831 = vmatprep.mubr.f32.mxu0 0.0
    %2832 = vmatmul.mubr.f32.gmra.mxu0 %v2739
    %v2833 = vpop.f32.mrf.mxu0
    %v2834 = vadd.f32 %v2514, %v2833
    %v2835 = vpop.f32.mrf.mxu0
    %2836 = vmatprep.mubr.f32.mxu0 0.0
    %2837 = vmatmul.mubr.f32.gmra.mxu0 %v2741
    %v2838 = vpop.f32.mrf.mxu0
    %v2839 = vadd.f32 %v2519, %v2838
    %v2840 = vpop.f32.mrf.mxu0
    %2841 = vmatprep.mubr.f32.mxu0 0.0
    %2842 = vmatmul.mubr.f32.gmra.mxu0 %v2743
    %v2843 = vpop.f32.mrf.mxu0
    %v2844 = vadd.f32 %v2524, %v2843
    %v2845 = vpop.f32.mrf.mxu0
    %2846 = vmatprep.mubr.f32.mxu0 0.0
    %2847 = vmatmul.mubr.f32.gmra.mxu0 %v2745
    %v2848 = vpop.f32.mrf.mxu0
    %v2849 = vadd.f32 %v2529, %v2848
    %v2850 = vpop.f32.mrf.mxu0
    %2851 = vmatprep.mubr.f32.mxu0 0.0
    %2852 = vmatmul.mubr.f32.gmra.mxu0 %v2747
    %v2853 = vpop.f32.mrf.mxu0
    %v2854 = vadd.f32 %v2534, %v2853
    %v2855 = vpop.f32.mrf.mxu0
    %2856 = vmatprep.mubr.f32.mxu0 0.0
    %2857 = vmatmul.mubr.f32.gmra.mxu0 %v2749
    %v2858 = vpop.f32.mrf.mxu0
    %v2859 = vadd.f32 %v2539, %v2858
    %v2860 = vpop.f32.mrf.mxu0
    %2861 = vmatprep.mubr.f32.mxu0 0.0
    %2862 = vmatmul.mubr.f32.gmra.mxu0 %v2751
    %v2863 = vpop.f32.mrf.mxu0
    %v2864 = vadd.f32 %v2544, %v2863
    %v2865 = vpop.f32.mrf.mxu0
    %2866 = vmatprep.mubr.f32.mxu0 0.0
    %2867 = vmatmul.mubr.f32.gmra.mxu0 %v2753
    %v2868 = vpop.f32.mrf.mxu0
    %v2869 = vadd.f32 %v2549, %v2868
    %v2870 = vpop.f32.mrf.mxu0
    %2871 = vmatprep.mubr.f32.mxu0 0.0
    %2872 = vmatmul.mubr.f32.gmra.mxu0 %v2755
    %v2873 = vpop.f32.mrf.mxu0
    %v2874 = vadd.f32 %v2554, %v2873
    %v2875 = vpop.f32.mrf.mxu0
    %2876 = vdwg.mxu0
    %v2888 = vcombine.high %v2824, %v2824
    %v2890 = vunpack.c.l.s4 1983009808
    %v2891 = vunpack.c.0.s8 %v2890
    %v2892 = vlaneseq
    %v2893 = vshrl.u32 %v2892, 7
    %v2894 = vsub.s32 %v2891, %v2893
    %v2895 = vrot.slane %v2824, %v2894
    %v2897 = vunpack.c.l.s4 1983009808
    %v2898 = vunpack.c.0.s8 %v2897
    %v2899 = vlaneseq
    %v2900 = vshrl.u32 %v2899, 7
    %v2901 = vsub.s32 %v2898, %v2900
    %v2902 = vrot.slane %v2888, %v2901
    %v2903 = vcombine.high %v2895, %v2895
    %v2904 = vcombine.high %v2902, %v2902
    %v2905 = vcombine.high %v2829, %v2829
    %v2907 = vunpack.c.l.s4 1983009808
    %v2908 = vunpack.c.0.s8 %v2907
    %v2909 = vlaneseq
    %v2910 = vshrl.u32 %v2909, 7
    %v2911 = vsub.s32 %v2908, %v2910
    %v2912 = vrot.slane %v2829, %v2911
    %v2914 = vunpack.c.l.s4 1983009808
    %v2915 = vunpack.c.0.s8 %v2914
    %v2916 = vlaneseq
    %v2917 = vshrl.u32 %v2916, 7
    %v2918 = vsub.s32 %v2915, %v2917
    %v2919 = vrot.slane %v2905, %v2918
    %v2920 = vcombine.high %v2912, %v2912
    %v2921 = vcombine.high %v2919, %v2919
    %v2922 = vcombine.high %v2834, %v2834
    %v2924 = vunpack.c.l.s4 1983009808
    %v2925 = vunpack.c.0.s8 %v2924
    %v2926 = vlaneseq
    %v2927 = vshrl.u32 %v2926, 7
    %v2928 = vsub.s32 %v2925, %v2927
    %v2929 = vrot.slane %v2834, %v2928
    %v2931 = vunpack.c.l.s4 1983009808
    %v2932 = vunpack.c.0.s8 %v2931
    %v2933 = vlaneseq
    %v2934 = vshrl.u32 %v2933, 7
    %v2935 = vsub.s32 %v2932, %v2934
    %v2936 = vrot.slane %v2922, %v2935
    %v2937 = vcombine.high %v2929, %v2929
    %v2938 = vcombine.high %v2936, %v2936
    %v2939 = vcombine.high %v2839, %v2839
    %v2941 = vunpack.c.l.s4 1983009808
    %v2942 = vunpack.c.0.s8 %v2941
    %v2943 = vlaneseq
    %v2944 = vshrl.u32 %v2943, 7
    %v2945 = vsub.s32 %v2942, %v2944
    %v2946 = vrot.slane %v2839, %v2945
    %v2948 = vunpack.c.l.s4 1983009808
    %v2949 = vunpack.c.0.s8 %v2948
    %v2950 = vlaneseq
    %v2951 = vshrl.u32 %v2950, 7
    %v2952 = vsub.s32 %v2949, %v2951
    %v2953 = vrot.slane %v2939, %v2952
    %v2954 = vcombine.high %v2946, %v2946
    %v2955 = vcombine.high %v2953, %v2953
    %v2956 = vcombine.high %v2844, %v2844
    %v2958 = vunpack.c.l.s4 1983009808
    %v2959 = vunpack.c.0.s8 %v2958
    %v2960 = vlaneseq
    %v2961 = vshrl.u32 %v2960, 7
    %v2962 = vsub.s32 %v2959, %v2961
    %v2963 = vrot.slane %v2844, %v2962
    %v2965 = vunpack.c.l.s4 1983009808
    %v2966 = vunpack.c.0.s8 %v2965
    %v2967 = vlaneseq
    %v2968 = vshrl.u32 %v2967, 7
    %v2969 = vsub.s32 %v2966, %v2968
    %v2970 = vrot.slane %v2956, %v2969
    %v2971 = vcombine.high %v2963, %v2963
    %v2972 = vcombine.high %v2970, %v2970
    %v2973 = vcombine.high %v2849, %v2849
    %v2975 = vunpack.c.l.s4 1983009808
    %v2976 = vunpack.c.0.s8 %v2975
    %v2977 = vlaneseq
    %v2978 = vshrl.u32 %v2977, 7
    %v2979 = vsub.s32 %v2976, %v2978
    %v2980 = vrot.slane %v2849, %v2979
    %v2982 = vunpack.c.l.s4 1983009808
    %v2983 = vunpack.c.0.s8 %v2982
    %v2984 = vlaneseq
    %v2985 = vshrl.u32 %v2984, 7
    %v2986 = vsub.s32 %v2983, %v2985
    %v2987 = vrot.slane %v2973, %v2986
    %v2988 = vcombine.high %v2980, %v2980
    %v2989 = vcombine.high %v2987, %v2987
    %v2990 = vcombine.high %v2854, %v2854
    %v2992 = vunpack.c.l.s4 1983009808
    %v2993 = vunpack.c.0.s8 %v2992
    %v2994 = vlaneseq
    %v2995 = vshrl.u32 %v2994, 7
    %v2996 = vsub.s32 %v2993, %v2995
    %v2997 = vrot.slane %v2854, %v2996
    %v2999 = vunpack.c.l.s4 1983009808
    %v3000 = vunpack.c.0.s8 %v2999
    %v3001 = vlaneseq
    %v3002 = vshrl.u32 %v3001, 7
    %v3003 = vsub.s32 %v3000, %v3002
    %v3004 = vrot.slane %v2990, %v3003
    %v3005 = vcombine.high %v2997, %v2997
    %v3006 = vcombine.high %v3004, %v3004
    %v3007 = vcombine.high %v2859, %v2859
    %v3009 = vunpack.c.l.s4 1983009808
    %v3010 = vunpack.c.0.s8 %v3009
    %v3011 = vlaneseq
    %v3012 = vshrl.u32 %v3011, 7
    %v3013 = vsub.s32 %v3010, %v3012
    %v3014 = vrot.slane %v2859, %v3013
    %v3016 = vunpack.c.l.s4 1983009808
    %v3017 = vunpack.c.0.s8 %v3016
    %v3018 = vlaneseq
    %v3019 = vshrl.u32 %v3018, 7
    %v3020 = vsub.s32 %v3017, %v3019
    %v3021 = vrot.slane %v3007, %v3020
    %v3022 = vcombine.high %v3014, %v3014
    %v3023 = vcombine.high %v3021, %v3021
    %v3024 = vcombine.high %v2864, %v2864
    %v3026 = vunpack.c.l.s4 1983009808
    %v3027 = vunpack.c.0.s8 %v3026
    %v3028 = vlaneseq
    %v3029 = vshrl.u32 %v3028, 7
    %v3030 = vsub.s32 %v3027, %v3029
    %v3031 = vrot.slane %v2864, %v3030
    %v3033 = vunpack.c.l.s4 1983009808
    %v3034 = vunpack.c.0.s8 %v3033
    %v3035 = vlaneseq
    %v3036 = vshrl.u32 %v3035, 7
    %v3037 = vsub.s32 %v3034, %v3036
    %v3038 = vrot.slane %v3024, %v3037
    %v3039 = vcombine.high %v3031, %v3031
    %v3040 = vcombine.high %v3038, %v3038
    %v3041 = vcombine.high %v2869, %v2869
    %v3043 = vunpack.c.l.s4 1983009808
    %v3044 = vunpack.c.0.s8 %v3043
    %v3045 = vlaneseq
    %v3046 = vshrl.u32 %v3045, 7
    %v3047 = vsub.s32 %v3044, %v3046
    %v3048 = vrot.slane %v2869, %v3047
    %v3050 = vunpack.c.l.s4 1983009808
    %v3051 = vunpack.c.0.s8 %v3050
    %v3052 = vlaneseq
    %v3053 = vshrl.u32 %v3052, 7
    %v3054 = vsub.s32 %v3051, %v3053
    %v3055 = vrot.slane %v3041, %v3054
    %v3056 = vcombine.high %v3048, %v3048
    %v3057 = vcombine.high %v3055, %v3055
    %v3059 = vunpack.c.l.s4 1983009808
    %v3060 = vunpack.c.0.s8 %v3059
    %v3061 = vlaneseq
    %v3062 = vshrl.u32 %v3061, 7
    %v3063 = vsub.s32 %v3060, %v3062
    %v3064 = vrot.slane %v2874, %v3063
    %v3065 = vcombine.high %v3064, %v3064
    %s3108 = scalar_lea.vmem [#allocation9], 64
    %v3109 = vld [vmem:[%s3108] sm:$0xff]
    %v3110 = vld [vmem:[%s3108 + $0x8] sm:$0xff]
    %v3111 = vld [vmem:[%s3108 + $0x10] sm:$0xff]
    %v3112 = vld [vmem:[%s3108 + $0x18] sm:$0xff]
    %v3113 = vcombine.low %v1934, %v1933
    %v3114 = vcombine.low %v1935, %v1943
    %v3116 = vunpack.c.l.s4 1983009808
    %v3117 = vunpack.c.0.s8 %v3116
    %v3118 = vlaneseq
    %v3119 = vshrl.u32 %v3118, 7
    %v3120 = vsub.s32 %v3117, %v3119
    %v3121 = vrot.slane %v3113, %v3120
    %v3123 = vunpack.c.l.s4 1983009808
    %v3124 = vunpack.c.0.s8 %v3123
    %v3125 = vlaneseq
    %v3126 = vshrl.u32 %v3125, 7
    %v3127 = vsub.s32 %v3124, %v3126
    %v3128 = vrot.slane %v3114, %v3127
    %v3129 = vcombine.low %v3121, %v3128
    %v3130 = vcombine.low %v1951, %v1950
    %v3131 = vcombine.low %v1952, %v1960
    %v3133 = vunpack.c.l.s4 1983009808
    %v3134 = vunpack.c.0.s8 %v3133
    %v3135 = vlaneseq
    %v3136 = vshrl.u32 %v3135, 7
    %v3137 = vsub.s32 %v3134, %v3136
    %v3138 = vrot.slane %v3130, %v3137
    %v3140 = vunpack.c.l.s4 1983009808
    %v3141 = vunpack.c.0.s8 %v3140
    %v3142 = vlaneseq
    %v3143 = vshrl.u32 %v3142, 7
    %v3144 = vsub.s32 %v3141, %v3143
    %v3145 = vrot.slane %v3131, %v3144
    %v3146 = vcombine.low %v3138, %v3145
    %v3147 = vcombine.low %v1968, %v1967
    %v3148 = vcombine.low %v1969, %v1977
    %v3150 = vunpack.c.l.s4 1983009808
    %v3151 = vunpack.c.0.s8 %v3150
    %v3152 = vlaneseq
    %v3153 = vshrl.u32 %v3152, 7
    %v3154 = vsub.s32 %v3151, %v3153
    %v3155 = vrot.slane %v3147, %v3154
    %v3157 = vunpack.c.l.s4 1983009808
    %v3158 = vunpack.c.0.s8 %v3157
    %v3159 = vlaneseq
    %v3160 = vshrl.u32 %v3159, 7
    %v3161 = vsub.s32 %v3158, %v3160
    %v3162 = vrot.slane %v3148, %v3161
    %v3163 = vcombine.low %v3155, %v3162
    %v3164 = vcombine.low %v1985, %v1984
    %v3165 = vcombine.low %v1986, %v1994
    %v3167 = vunpack.c.l.s4 1983009808
    %v3168 = vunpack.c.0.s8 %v3167
    %v3169 = vlaneseq
    %v3170 = vshrl.u32 %v3169, 7
    %v3171 = vsub.s32 %v3168, %v3170
    %v3172 = vrot.slane %v3164, %v3171
    %v3174 = vunpack.c.l.s4 1983009808
    %v3175 = vunpack.c.0.s8 %v3174
    %v3176 = vlaneseq
    %v3177 = vshrl.u32 %v3176, 7
    %v3178 = vsub.s32 %v3175, %v3177
    %v3179 = vrot.slane %v3165, %v3178
    %v3180 = vcombine.low %v3172, %v3179
    %v3181 = vcombine.low %v2002, %v2001
    %v3182 = vcombine.low %v2003, %v2010
    %v3184 = vunpack.c.l.s4 1983009808
    %v3185 = vunpack.c.0.s8 %v3184
    %v3186 = vlaneseq
    %v3187 = vshrl.u32 %v3186, 7
    %v3188 = vsub.s32 %v3185, %v3187
    %v3189 = vrot.slane %v3181, %v3188
    %v3191 = vunpack.c.l.s4 1983009808
    %v3192 = vunpack.c.0.s8 %v3191
    %v3193 = vlaneseq
    %v3194 = vshrl.u32 %v3193, 7
    %v3195 = vsub.s32 %v3192, %v3194
    %v3196 = vrot.slane %v3182, %v3195
    %v3197 = vcombine.low %v3189, %v3196
    %v3198 = vcombine.low %v2011, %v2027
    %v3199 = vcombine.low %v2026, %v2028
    %v3201 = vunpack.c.l.s4 1983009808
    %v3202 = vunpack.c.0.s8 %v3201
    %v3203 = vlaneseq
    %v3204 = vshrl.u32 %v3203, 7
    %v3205 = vsub.s32 %v3202, %v3204
    %v3206 = vrot.slane %v3198, %v3205
    %v3208 = vunpack.c.l.s4 1983009808
    %v3209 = vunpack.c.0.s8 %v3208
    %v3210 = vlaneseq
    %v3211 = vshrl.u32 %v3210, 7
    %v3212 = vsub.s32 %v3209, %v3211
    %v3213 = vrot.slane %v3199, %v3212
    %v3214 = vcombine.low %v3206, %v3213
    %v3215 = vcombine.low %v2036, %v2044
    %v3216 = vcombine.low %v2043, %v2045
    %v3218 = vunpack.c.l.s4 1983009808
    %v3219 = vunpack.c.0.s8 %v3218
    %v3220 = vlaneseq
    %v3221 = vshrl.u32 %v3220, 7
    %v3222 = vsub.s32 %v3219, %v3221
    %v3223 = vrot.slane %v3215, %v3222
    %v3225 = vunpack.c.l.s4 1983009808
    %v3226 = vunpack.c.0.s8 %v3225
    %v3227 = vlaneseq
    %v3228 = vshrl.u32 %v3227, 7
    %v3229 = vsub.s32 %v3226, %v3228
    %v3230 = vrot.slane %v3216, %v3229
    %v3231 = vcombine.low %v3223, %v3230
    %v3232 = vcombine.low %v2053, %v2061
    %v3233 = vcombine.low %v2060, %v2062
    %v3235 = vunpack.c.l.s4 1983009808
    %v3236 = vunpack.c.0.s8 %v3235
    %v3237 = vlaneseq
    %v3238 = vshrl.u32 %v3237, 7
    %v3239 = vsub.s32 %v3236, %v3238
    %v3240 = vrot.slane %v3232, %v3239
    %v3242 = vunpack.c.l.s4 1983009808
    %v3243 = vunpack.c.0.s8 %v3242
    %v3244 = vlaneseq
    %v3245 = vshrl.u32 %v3244, 7
    %v3246 = vsub.s32 %v3243, %v3245
    %v3247 = vrot.slane %v3233, %v3246
    %v3248 = vcombine.low %v3240, %v3247
    %v3249 = vcombine.low %v2070, %v2078
    %v3250 = vcombine.low %v2077, %v2079
    %v3252 = vunpack.c.l.s4 1983009808
    %v3253 = vunpack.c.0.s8 %v3252
    %v3254 = vlaneseq
    %v3255 = vshrl.u32 %v3254, 7
    %v3256 = vsub.s32 %v3253, %v3255
    %v3257 = vrot.slane %v3249, %v3256
    %v3259 = vunpack.c.l.s4 1983009808
    %v3260 = vunpack.c.0.s8 %v3259
    %v3261 = vlaneseq
    %v3262 = vshrl.u32 %v3261, 7
    %v3263 = vsub.s32 %v3260, %v3262
    %v3264 = vrot.slane %v3250, %v3263
    %v3265 = vcombine.low %v3257, %v3264
    %v3266 = vcombine.low %v2087, %v2095
    %v3267 = vcombine.low %v2094, %v2096
    %v3269 = vunpack.c.l.s4 1983009808
    %v3270 = vunpack.c.0.s8 %v3269
    %v3271 = vlaneseq
    %v3272 = vshrl.u32 %v3271, 7
    %v3273 = vsub.s32 %v3270, %v3272
    %v3274 = vrot.slane %v3266, %v3273
    %v3276 = vunpack.c.l.s4 1983009808
    %v3277 = vunpack.c.0.s8 %v3276
    %v3278 = vlaneseq
    %v3279 = vshrl.u32 %v3278, 7
    %v3280 = vsub.s32 %v3277, %v3279
    %v3281 = vrot.slane %v3267, %v3280
    %v3282 = vcombine.low %v3274, %v3281
    %v3283 = vcombine.low %v2103, %v2104
    %v3285 = vunpack.c.l.s4 1983009808
    %v3286 = vunpack.c.0.s8 %v3285
    %v3287 = vlaneseq
    %v3288 = vshrl.u32 %v3287, 7
    %v3289 = vsub.s32 %v3286, %v3288
    %v3290 = vrot.slane %v3283, %v3289
    %v3291 = vsel %vm2414, %v3129, 0
    %v3293 = vsel %vm2414, %v3146, 0
    %v3295 = vsel %vm2414, %v3163, 0
    %v3297 = vsel %vm2414, %v3180, 0
    %v3299 = vsel %vm2414, %v3197, 0
    %v3301 = vsel %vm2414, %v3214, 0
    %v3303 = vsel %vm2414, %v3231, 0
    %v3305 = vsel %vm2414, %v3248, 0
    %v3307 = vsel %vm2414, %v3265, 0
    %v3309 = vsel %vm2414, %v3282, 0
    %v3311 = vsel %vm2414, %v3290, 0
    %3313 = vmatprep.subr.mxu0 0.0
    %3314 = vmatpush1.msra.mxu0 0.0
    %3315 = vmatprep.subr.mxu0 0.0
    %3316 = vmatpush1.msra.mxu0 0.0
    %3317 = vmatprep.subr.mxu0 0.0
    %3318 = vmatpush1.msra.mxu0 0.0
    %3319 = vmatprep.subr.mxu0 0.0
    %3320 = vmatpush1.msra.mxu0 0.0
    %3321 = vmatprep.subr.mxu0 0.0
    %3322 = vmatpush1.msra.mxu0 0.0
    %3323 = vmatprep.subr.mxu0 0.0
    %3324 = vmatpush1.msra.mxu0 0.0
    %3325 = vmatprep.subr.mxu0 0.0
    %3326 = vmatpush1.msra.mxu0 0.0
    %3327 = vmatprep.subr.mxu0 0.0
    %3328 = vmatpush1.msra.mxu0 0.0
    %3329 = vmatprep.subr.mxu0 0.0
    %3330 = vmatpush1.msra.mxu0 0.0
    %3331 = vmatprep.subr.mxu0 0.0
    %3332 = vmatpush1.msra.mxu0 0.0
    %3333 = vmatprep.subr.mxu0 0.0
    %3334 = vmatpush1.msra.mxu0 0.0
    %3335 = vmatprep.subr.mxu0 0.0
    %3336 = vmatpush1.msra.mxu0 0.0
    %3337 = vmatprep.subr.mxu0 0.0
    %3338 = vmatpush1.msra.mxu0 %v3112
    %3339 = vmatprep.subr.mxu0 0.0
    %3340 = vmatpush1.msra.mxu0 %v3111
    %3341 = vmatprep.subr.mxu0 0.0
    %3342 = vmatpush1.msra.mxu0 %v3110
    %3343 = vmatprep.subr.mxu0 0.0
    %3344 = vmatpush1.msra.mxu0 %v3109
    %3345 = vmatprep.subr.mxu0 0.0
    %3346 = vmatpush2.msra.mxu0 0.0
    %3347 = vmatprep.subr.mxu0 0.0
    %3348 = vmatpush2.msra.mxu0 0.0
    %3349 = vmatprep.subr.mxu0 0.0
    %3350 = vmatpush2.msra.mxu0 0.0
    %3351 = vmatprep.subr.mxu0 0.0
    %3352 = vmatpush2.msra.mxu0 0.0
    %3353 = vmatprep.subr.mxu0 0.0
    %3354 = vmatpush2.msra.mxu0 0.0
    %3355 = vmatprep.subr.mxu0 0.0
    %3356 = vmatpush2.msra.mxu0 0.0
    %3357 = vmatprep.subr.mxu0 0.0
    %3358 = vmatpush2.msra.mxu0 0.0
    %3359 = vmatprep.subr.mxu0 0.0
    %3360 = vmatpush2.msra.mxu0 0.0
    %3361 = vmatprep.subr.mxu0 0.0
    %3362 = vmatpush2.msra.mxu0 0.0
    %3363 = vmatprep.subr.mxu0 0.0
    %3364 = vmatpush2.msra.mxu0 0.0
    %3365 = vmatprep.subr.mxu0 0.0
    %3366 = vmatpush2.msra.mxu0 0.0
    %3367 = vmatprep.subr.mxu0 0.0
    %3368 = vmatpush2.msra.mxu0 0.0
    %3369 = vmatprep.subr.mxu0 0.0
    %3370 = vmatpush2.msra.mxu0 0.0
    %3371 = vmatprep.subr.mxu0 0.0
    %3372 = vmatpush2.msra.mxu0 0.0
    %3373 = vmatprep.subr.mxu0 0.0
    %3374 = vmatpush2.msra.mxu0 0.0
    %3375 = vmatprep.subr.mxu0 0.0
    %3376 = vmatpush2.msra.mxu0 0.0
    %3377 = vmatprep.mubr.f32.mxu0 0.0
    %3378 = vmatmul.mubr.f32.gmra.mxu0 %v3291
    %v3379 = vpop.f32.mrf.mxu0
    %v3380 = vadd.f32 0.0, %v3379
    %v3381 = vpop.f32.mrf.mxu0
    %3382 = vmatprep.mubr.f32.mxu0 0.0
    %3383 = vmatmul.mubr.f32.gmra.mxu0 %v3293
    %v3384 = vpop.f32.mrf.mxu0
    %v3385 = vadd.f32 0.0, %v3384
    %v3386 = vpop.f32.mrf.mxu0
    %3387 = vmatprep.mubr.f32.mxu0 0.0
    %3388 = vmatmul.mubr.f32.gmra.mxu0 %v3295
    %v3389 = vpop.f32.mrf.mxu0
    %v3390 = vadd.f32 0.0, %v3389
    %v3391 = vpop.f32.mrf.mxu0
    %3392 = vmatprep.mubr.f32.mxu0 0.0
    %3393 = vmatmul.mubr.f32.gmra.mxu0 %v3297
    %v3394 = vpop.f32.mrf.mxu0
    %v3395 = vadd.f32 0.0, %v3394
    %v3396 = vpop.f32.mrf.mxu0
    %3397 = vmatprep.mubr.f32.mxu0 0.0
    %3398 = vmatmul.mubr.f32.gmra.mxu0 %v3299
    %v3399 = vpop.f32.mrf.mxu0
    %v3400 = vadd.f32 0.0, %v3399
    %v3401 = vpop.f32.mrf.mxu0
    %3402 = vmatprep.mubr.f32.mxu0 0.0
    %3403 = vmatmul.mubr.f32.gmra.mxu0 %v3301
    %v3404 = vpop.f32.mrf.mxu0
    %v3405 = vadd.f32 0.0, %v3404
    %v3406 = vpop.f32.mrf.mxu0
    %3407 = vmatprep.mubr.f32.mxu0 0.0
    %3408 = vmatmul.mubr.f32.gmra.mxu0 %v3303
    %v3409 = vpop.f32.mrf.mxu0
    %v3410 = vadd.f32 0.0, %v3409
    %v3411 = vpop.f32.mrf.mxu0
    %3412 = vmatprep.mubr.f32.mxu0 0.0
    %3413 = vmatmul.mubr.f32.gmra.mxu0 %v3305
    %v3414 = vpop.f32.mrf.mxu0
    %v3415 = vadd.f32 0.0, %v3414
    %v3416 = vpop.f32.mrf.mxu0
    %3417 = vmatprep.mubr.f32.mxu0 0.0
    %3418 = vmatmul.mubr.f32.gmra.mxu0 %v3307
    %v3419 = vpop.f32.mrf.mxu0
    %v3420 = vadd.f32 0.0, %v3419
    %v3421 = vpop.f32.mrf.mxu0
    %3422 = vmatprep.mubr.f32.mxu0 0.0
    %3423 = vmatmul.mubr.f32.gmra.mxu0 %v3309
    %v3424 = vpop.f32.mrf.mxu0
    %v3425 = vadd.f32 0.0, %v3424
    %v3426 = vpop.f32.mrf.mxu0
    %3427 = vmatprep.mubr.f32.mxu0 0.0
    %3428 = vmatmul.mubr.f32.gmra.mxu0 %v3311
    %v3429 = vpop.f32.mrf.mxu0
    %v3430 = vadd.f32 0.0, %v3429
    %v3431 = vpop.f32.mrf.mxu0
    %3432 = vdwg.mxu0
    %v3444 = vcombine.high %v3380, %v3380
    %v3446 = vunpack.c.l.s4 1983009808
    %v3447 = vunpack.c.0.s8 %v3446
    %v3448 = vlaneseq
    %v3449 = vshrl.u32 %v3448, 7
    %v3450 = vsub.s32 %v3447, %v3449
    %v3451 = vrot.slane %v3380, %v3450
    %v3453 = vunpack.c.l.s4 1983009808
    %v3454 = vunpack.c.0.s8 %v3453
    %v3455 = vlaneseq
    %v3456 = vshrl.u32 %v3455, 7
    %v3457 = vsub.s32 %v3454, %v3456
    %v3458 = vrot.slane %v3444, %v3457
    %v3459 = vcombine.high %v3451, %v3451
    %v3460 = vcombine.high %v3458, %v3458
    %v3461 = vcombine.high %v3385, %v3385
    %v3463 = vunpack.c.l.s4 1983009808
    %v3464 = vunpack.c.0.s8 %v3463
    %v3465 = vlaneseq
    %v3466 = vshrl.u32 %v3465, 7
    %v3467 = vsub.s32 %v3464, %v3466
    %v3468 = vrot.slane %v3385, %v3467
    %v3470 = vunpack.c.l.s4 1983009808
    %v3471 = vunpack.c.0.s8 %v3470
    %v3472 = vlaneseq
    %v3473 = vshrl.u32 %v3472, 7
    %v3474 = vsub.s32 %v3471, %v3473
    %v3475 = vrot.slane %v3461, %v3474
    %v3476 = vcombine.high %v3468, %v3468
    %v3477 = vcombine.high %v3475, %v3475
    %v3478 = vcombine.high %v3390, %v3390
    %v3480 = vunpack.c.l.s4 1983009808
    %v3481 = vunpack.c.0.s8 %v3480
    %v3482 = vlaneseq
    %v3483 = vshrl.u32 %v3482, 7
    %v3484 = vsub.s32 %v3481, %v3483
    %v3485 = vrot.slane %v3390, %v3484
    %v3487 = vunpack.c.l.s4 1983009808
    %v3488 = vunpack.c.0.s8 %v3487
    %v3489 = vlaneseq
    %v3490 = vshrl.u32 %v3489, 7
    %v3491 = vsub.s32 %v3488, %v3490
    %v3492 = vrot.slane %v3478, %v3491
    %v3493 = vcombine.high %v3485, %v3485
    %v3494 = vcombine.high %v3492, %v3492
    %v3495 = vcombine.high %v3395, %v3395
    %v3497 = vunpack.c.l.s4 1983009808
    %v3498 = vunpack.c.0.s8 %v3497
    %v3499 = vlaneseq
    %v3500 = vshrl.u32 %v3499, 7
    %v3501 = vsub.s32 %v3498, %v3500
    %v3502 = vrot.slane %v3395, %v3501
    %v3504 = vunpack.c.l.s4 1983009808
    %v3505 = vunpack.c.0.s8 %v3504
    %v3506 = vlaneseq
    %v3507 = vshrl.u32 %v3506, 7
    %v3508 = vsub.s32 %v3505, %v3507
    %v3509 = vrot.slane %v3495, %v3508
    %v3510 = vcombine.high %v3502, %v3502
    %v3511 = vcombine.high %v3509, %v3509
    %v3512 = vcombine.high %v3400, %v3400
    %v3514 = vunpack.c.l.s4 1983009808
    %v3515 = vunpack.c.0.s8 %v3514
    %v3516 = vlaneseq
    %v3517 = vshrl.u32 %v3516, 7
    %v3518 = vsub.s32 %v3515, %v3517
    %v3519 = vrot.slane %v3400, %v3518
    %v3521 = vunpack.c.l.s4 1983009808
    %v3522 = vunpack.c.0.s8 %v3521
    %v3523 = vlaneseq
    %v3524 = vshrl.u32 %v3523, 7
    %v3525 = vsub.s32 %v3522, %v3524
    %v3526 = vrot.slane %v3512, %v3525
    %v3527 = vcombine.high %v3519, %v3519
    %v3528 = vcombine.high %v3526, %v3526
    %v3529 = vcombine.high %v3405, %v3405
    %v3531 = vunpack.c.l.s4 1983009808
    %v3532 = vunpack.c.0.s8 %v3531
    %v3533 = vlaneseq
    %v3534 = vshrl.u32 %v3533, 7
    %v3535 = vsub.s32 %v3532, %v3534
    %v3536 = vrot.slane %v3405, %v3535
    %v3538 = vunpack.c.l.s4 1983009808
    %v3539 = vunpack.c.0.s8 %v3538
    %v3540 = vlaneseq
    %v3541 = vshrl.u32 %v3540, 7
    %v3542 = vsub.s32 %v3539, %v3541
    %v3543 = vrot.slane %v3529, %v3542
    %v3544 = vcombine.high %v3536, %v3536
    %v3545 = vcombine.high %v3543, %v3543
    %v3546 = vcombine.high %v3410, %v3410
    %v3548 = vunpack.c.l.s4 1983009808
    %v3549 = vunpack.c.0.s8 %v3548
    %v3550 = vlaneseq
    %v3551 = vshrl.u32 %v3550, 7
    %v3552 = vsub.s32 %v3549, %v3551
    %v3553 = vrot.slane %v3410, %v3552
    %v3555 = vunpack.c.l.s4 1983009808
    %v3556 = vunpack.c.0.s8 %v3555
    %v3557 = vlaneseq
    %v3558 = vshrl.u32 %v3557, 7
    %v3559 = vsub.s32 %v3556, %v3558
    %v3560 = vrot.slane %v3546, %v3559
    %v3561 = vcombine.high %v3553, %v3553
    %v3562 = vcombine.high %v3560, %v3560
    %v3563 = vcombine.high %v3415, %v3415
    %v3565 = vunpack.c.l.s4 1983009808
    %v3566 = vunpack.c.0.s8 %v3565
    %v3567 = vlaneseq
    %v3568 = vshrl.u32 %v3567, 7
    %v3569 = vsub.s32 %v3566, %v3568
    %v3570 = vrot.slane %v3415, %v3569
    %v3572 = vunpack.c.l.s4 1983009808
    %v3573 = vunpack.c.0.s8 %v3572
    %v3574 = vlaneseq
    %v3575 = vshrl.u32 %v3574, 7
    %v3576 = vsub.s32 %v3573, %v3575
    %v3577 = vrot.slane %v3563, %v3576
    %v3578 = vcombine.high %v3570, %v3570
    %v3579 = vcombine.high %v3577, %v3577
    %v3580 = vcombine.high %v3420, %v3420
    %v3582 = vunpack.c.l.s4 1983009808
    %v3583 = vunpack.c.0.s8 %v3582
    %v3584 = vlaneseq
    %v3585 = vshrl.u32 %v3584, 7
    %v3586 = vsub.s32 %v3583, %v3585
    %v3587 = vrot.slane %v3420, %v3586
    %v3589 = vunpack.c.l.s4 1983009808
    %v3590 = vunpack.c.0.s8 %v3589
    %v3591 = vlaneseq
    %v3592 = vshrl.u32 %v3591, 7
    %v3593 = vsub.s32 %v3590, %v3592
    %v3594 = vrot.slane %v3580, %v3593
    %v3595 = vcombine.high %v3587, %v3587
    %v3596 = vcombine.high %v3594, %v3594
    %v3597 = vcombine.high %v3425, %v3425
    %v3599 = vunpack.c.l.s4 1983009808
    %v3600 = vunpack.c.0.s8 %v3599
    %v3601 = vlaneseq
    %v3602 = vshrl.u32 %v3601, 7
    %v3603 = vsub.s32 %v3600, %v3602
    %v3604 = vrot.slane %v3425, %v3603
    %v3606 = vunpack.c.l.s4 1983009808
    %v3607 = vunpack.c.0.s8 %v3606
    %v3608 = vlaneseq
    %v3609 = vshrl.u32 %v3608, 7
    %v3610 = vsub.s32 %v3607, %v3609
    %v3611 = vrot.slane %v3597, %v3610
    %v3612 = vcombine.high %v3604, %v3604
    %v3613 = vcombine.high %v3611, %v3611
    %v3615 = vunpack.c.l.s4 1983009808
    %v3616 = vunpack.c.0.s8 %v3615
    %v3617 = vlaneseq
    %v3618 = vshrl.u32 %v3617, 7
    %v3619 = vsub.s32 %v3616, %v3618
    %v3620 = vrot.slane %v3430, %v3619
    %v3621 = vcombine.high %v3620, %v3620
    %v3664 = vadd.f32 %v2895, %v3451
    %v3665 = vadd.f32 %v2903, %v3459
    %v3666 = vadd.f32 %v2902, %v3458
    %v3667 = vadd.f32 %v2904, %v3460
    %v3668 = vadd.f32 %v2912, %v3468
    %v3669 = vadd.f32 %v2920, %v3476
    %v3670 = vadd.f32 %v2919, %v3475
    %v3671 = vadd.f32 %v2921, %v3477
    %v3672 = vadd.f32 %v2929, %v3485
    %v3673 = vadd.f32 %v2937, %v3493
    %v3674 = vadd.f32 %v2936, %v3492
    %v3675 = vadd.f32 %v2938, %v3494
    %v3676 = vadd.f32 %v2946, %v3502
    %v3677 = vadd.f32 %v2954, %v3510
    %v3678 = vadd.f32 %v2953, %v3509
    %v3679 = vadd.f32 %v2955, %v3511
    %v3680 = vadd.f32 %v2963, %v3519
    %v3681 = vadd.f32 %v2971, %v3527
    %v3682 = vadd.f32 %v2970, %v3526
    %v3683 = vadd.f32 %v2972, %v3528
    %v3684 = vadd.f32 %v2980, %v3536
    %v3685 = vadd.f32 %v2988, %v3544
    %v3686 = vadd.f32 %v2987, %v3543
    %v3687 = vadd.f32 %v2989, %v3545
    %v3688 = vadd.f32 %v2997, %v3553
    %v3689 = vadd.f32 %v3005, %v3561
    %v3690 = vadd.f32 %v3004, %v3560
    %v3691 = vadd.f32 %v3006, %v3562
    %v3692 = vadd.f32 %v3014, %v3570
    %v3693 = vadd.f32 %v3022, %v3578
    %v3694 = vadd.f32 %v3021, %v3577
    %v3695 = vadd.f32 %v3023, %v3579
    %v3696 = vadd.f32 %v3031, %v3587
    %v3697 = vadd.f32 %v3039, %v3595
    %v3698 = vadd.f32 %v3038, %v3594
    %v3699 = vadd.f32 %v3040, %v3596
    %v3700 = vadd.f32 %v3048, %v3604
    %v3701 = vadd.f32 %v3056, %v3612
    %v3702 = vadd.f32 %v3055, %v3611
    %v3703 = vadd.f32 %v3057, %v3613
    %v3704 = vadd.f32 %v3064, %v3620
    %v3705 = vadd.f32 %v3065, %v3621
    %v3706 = vld [vmem:[#allocation10] sm:$0x1]
    %v3708 = vlaneseq
    %v3709 = vshrl.u32 %v3708, 7
    %v3710 = vsub.s32 0, %v3709
    %v3711 = vrot.slane %v3706, %v3710
    %v3712 = vcombine.high %v3711, %v3711
    %v3714 = vunpack.c.l.s4 1983009808
    %v3715 = vunpack.c.0.s8 %v3714
    %v3716 = vlaneseq
    %v3717 = vshrl.u32 %v3716, 7
    %v3718 = vsub.s32 %v3715, %v3717
    %v3719 = vrot.slane %v3711, %v3718
    %v3721 = vunpack.c.l.s4 1983009808
    %v3722 = vunpack.c.0.s8 %v3721
    %v3723 = vlaneseq
    %v3724 = vshrl.u32 %v3723, 7
    %v3725 = vsub.s32 %v3722, %v3724
    %v3726 = vrot.slane %v3712, %v3725
    %v3727 = vcombine.high %v3719, %v3719
    %v3728 = vcombine.high %v3726, %v3726
    %v3733 = vadd.f32 %v3664, %v3719
    %v3734 = vadd.f32 %v3665, %v3727
    %v3735 = vadd.f32 %v3666, %v3726
    %v3736 = vadd.f32 %v3667, %v3728
    %v3737 = vadd.f32 %v3668, %v3719
    %v3738 = vadd.f32 %v3669, %v3727
    %v3739 = vadd.f32 %v3670, %v3726
    %v3740 = vadd.f32 %v3671, %v3728
    %v3741 = vadd.f32 %v3672, %v3719
    %v3742 = vadd.f32 %v3673, %v3727
    %v3743 = vadd.f32 %v3674, %v3726
    %v3744 = vadd.f32 %v3675, %v3728
    %v3745 = vadd.f32 %v3676, %v3719
    %v3746 = vadd.f32 %v3677, %v3727
    %v3747 = vadd.f32 %v3678, %v3726
    %v3748 = vadd.f32 %v3679, %v3728
    %v3749 = vadd.f32 %v3680, %v3719
    %v3750 = vadd.f32 %v3681, %v3727
    %v3751 = vadd.f32 %v3682, %v3726
    %v3752 = vadd.f32 %v3683, %v3728
    %v3753 = vadd.f32 %v3684, %v3719
    %v3754 = vadd.f32 %v3685, %v3719
    %v3755 = vadd.f32 %v3686, %v3727
    %v3756 = vadd.f32 %v3687, %v3726
    %v3757 = vadd.f32 %v3688, %v3728
    %v3758 = vadd.f32 %v3689, %v3719
    %v3759 = vadd.f32 %v3690, %v3727
    %v3760 = vadd.f32 %v3691, %v3726
    %v3761 = vadd.f32 %v3692, %v3728
    %v3762 = vadd.f32 %v3693, %v3719
    %v3763 = vadd.f32 %v3694, %v3727
    %v3764 = vadd.f32 %v3695, %v3726
    %v3765 = vadd.f32 %v3696, %v3728
    %v3766 = vadd.f32 %v3697, %v3719
    %v3767 = vadd.f32 %v3698, %v3727
    %v3768 = vadd.f32 %v3699, %v3726
    %v3769 = vadd.f32 %v3700, %v3728
    %v3770 = vadd.f32 %v3701, %v3719
    %v3771 = vadd.f32 %v3702, %v3727
    %v3772 = vadd.f32 %v3703, %v3726
    %v3773 = vadd.f32 %v3704, %v3728
    %v3774 = vadd.f32 %v3705, %v3719
    %v3775 = vmax.f32 %v3733, 0.0
    %v3776 = vmax.f32 %v3734, 0.0
    %v3777 = vmax.f32 %v3735, 0.0
    %v3778 = vmax.f32 %v3736, 0.0
    %v3779 = vmax.f32 %v3737, 0.0
    %v3780 = vmax.f32 %v3738, 0.0
    %v3781 = vmax.f32 %v3739, 0.0
    %v3782 = vmax.f32 %v3740, 0.0
    %v3783 = vmax.f32 %v3741, 0.0
    %v3784 = vmax.f32 %v3742, 0.0
    %v3785 = vmax.f32 %v3743, 0.0
    %v3786 = vmax.f32 %v3744, 0.0
    %v3787 = vmax.f32 %v3745, 0.0
    %v3788 = vmax.f32 %v3746, 0.0
    %v3789 = vmax.f32 %v3747, 0.0
    %v3790 = vmax.f32 %v3748, 0.0
    %v3791 = vmax.f32 %v3749, 0.0
    %v3792 = vmax.f32 %v3750, 0.0
    %v3793 = vmax.f32 %v3751, 0.0
    %v3794 = vmax.f32 %v3752, 0.0
    %v3795 = vmax.f32 %v3753, 0.0
    %v3796 = vmax.f32 %v3754, 0.0
    %v3797 = vmax.f32 %v3755, 0.0
    %v3798 = vmax.f32 %v3756, 0.0
    %v3799 = vmax.f32 %v3757, 0.0
    %v3800 = vmax.f32 %v3758, 0.0
    %v3801 = vmax.f32 %v3759, 0.0
    %v3802 = vmax.f32 %v3760, 0.0
    %v3803 = vmax.f32 %v3761, 0.0
    %v3804 = vmax.f32 %v3762, 0.0
    %v3805 = vmax.f32 %v3763, 0.0
    %v3806 = vmax.f32 %v3764, 0.0
    %v3807 = vmax.f32 %v3765, 0.0
    %v3808 = vmax.f32 %v3766, 0.0
    %v3809 = vmax.f32 %v3767, 0.0
    %v3810 = vmax.f32 %v3768, 0.0
    %v3811 = vmax.f32 %v3769, 0.0
    %v3812 = vmax.f32 %v3770, 0.0
    %v3813 = vmax.f32 %v3771, 0.0
    %v3814 = vmax.f32 %v3772, 0.0
    %v3815 = vmax.f32 %v3773, 0.0
    %v3816 = vmax.f32 %v3774, 0.0
    %vm3817 = vcmask 517120
    %v3818 = vsel %vm3817, %v3775, -inf
    %v3819 = vrot.slane %v3818, 4
    %v3820 = vmax.f32 %v3818, %v3819
    %v3821 = vrot.slane %v3820, 2
    %v3822 = vmax.f32 %v3820, %v3821
    %v3823 = vrot.slane %v3822, 1
    %v3824 = vmax.f32 %v3822, %v3823
    %v3825 = vsel %vm3817, %v3776, -inf
    %v3826 = vrot.slane %v3825, 4
    %v3827 = vmax.f32 %v3825, %v3826
    %v3828 = vrot.slane %v3827, 2
    %v3829 = vmax.f32 %v3827, %v3828
    %v3830 = vrot.slane %v3829, 1
    %v3831 = vmax.f32 %v3829, %v3830
    %v3832 = vsel %vm3817, %v3777, -inf
    %v3833 = vrot.slane %v3832, 4
    %v3834 = vmax.f32 %v3832, %v3833
    %v3835 = vrot.slane %v3834, 2
    %v3836 = vmax.f32 %v3834, %v3835
    %v3837 = vrot.slane %v3836, 1
    %v3838 = vmax.f32 %v3836, %v3837
    %v3839 = vsel %vm3817, %v3778, -inf
    %v3840 = vrot.slane %v3839, 4
    %v3841 = vmax.f32 %v3839, %v3840
    %v3842 = vrot.slane %v3841, 2
    %v3843 = vmax.f32 %v3841, %v3842
    %v3844 = vrot.slane %v3843, 1
    %v3845 = vmax.f32 %v3843, %v3844
    %v3846 = vsel %vm3817, %v3779, -inf
    %v3847 = vrot.slane %v3846, 4
    %v3848 = vmax.f32 %v3846, %v3847
    %v3849 = vrot.slane %v3848, 2
    %v3850 = vmax.f32 %v3848, %v3849
    %v3851 = vrot.slane %v3850, 1
    %v3852 = vmax.f32 %v3850, %v3851
    %v3853 = vsel %vm3817, %v3780, -inf
    %v3854 = vrot.slane %v3853, 4
    %v3855 = vmax.f32 %v3853, %v3854
    %v3856 = vrot.slane %v3855, 2
    %v3857 = vmax.f32 %v3855, %v3856
    %v3858 = vrot.slane %v3857, 1
    %v3859 = vmax.f32 %v3857, %v3858
    %v3860 = vsel %vm3817, %v3781, -inf
    %v3861 = vrot.slane %v3860, 4
    %v3862 = vmax.f32 %v3860, %v3861
    %v3863 = vrot.slane %v3862, 2
    %v3864 = vmax.f32 %v3862, %v3863
    %v3865 = vrot.slane %v3864, 1
    %v3866 = vmax.f32 %v3864, %v3865
    %v3867 = vsel %vm3817, %v3782, -inf
    %v3868 = vrot.slane %v3867, 4
    %v3869 = vmax.f32 %v3867, %v3868
    %v3870 = vrot.slane %v3869, 2
    %v3871 = vmax.f32 %v3869, %v3870
    %v3872 = vrot.slane %v3871, 1
    %v3873 = vmax.f32 %v3871, %v3872
    %v3874 = vsel %vm3817, %v3783, -inf
    %v3875 = vrot.slane %v3874, 4
    %v3876 = vmax.f32 %v3874, %v3875
    %v3877 = vrot.slane %v3876, 2
    %v3878 = vmax.f32 %v3876, %v3877
    %v3879 = vrot.slane %v3878, 1
    %v3880 = vmax.f32 %v3878, %v3879
    %v3881 = vsel %vm3817, %v3784, -inf
    %v3882 = vrot.slane %v3881, 4
    %v3883 = vmax.f32 %v3881, %v3882
    %v3884 = vrot.slane %v3883, 2
    %v3885 = vmax.f32 %v3883, %v3884
    %v3886 = vrot.slane %v3885, 1
    %v3887 = vmax.f32 %v3885, %v3886
    %v3888 = vsel %vm3817, %v3785, -inf
    %v3889 = vrot.slane %v3888, 4
    %v3890 = vmax.f32 %v3888, %v3889
    %v3891 = vrot.slane %v3890, 2
    %v3892 = vmax.f32 %v3890, %v3891
    %v3893 = vrot.slane %v3892, 1
    %v3894 = vmax.f32 %v3892, %v3893
    %v3895 = vsel %vm3817, %v3786, -inf
    %v3896 = vrot.slane %v3895, 4
    %v3897 = vmax.f32 %v3895, %v3896
    %v3898 = vrot.slane %v3897, 2
    %v3899 = vmax.f32 %v3897, %v3898
    %v3900 = vrot.slane %v3899, 1
    %v3901 = vmax.f32 %v3899, %v3900
    %v3902 = vsel %vm3817, %v3787, -inf
    %v3903 = vrot.slane %v3902, 4
    %v3904 = vmax.f32 %v3902, %v3903
    %v3905 = vrot.slane %v3904, 2
    %v3906 = vmax.f32 %v3904, %v3905
    %v3907 = vrot.slane %v3906, 1
    %v3908 = vmax.f32 %v3906, %v3907
    %v3909 = vsel %vm3817, %v3788, -inf
    %v3910 = vrot.slane %v3909, 4
    %v3911 = vmax.f32 %v3909, %v3910
    %v3912 = vrot.slane %v3911, 2
    %v3913 = vmax.f32 %v3911, %v3912
    %v3914 = vrot.slane %v3913, 1
    %v3915 = vmax.f32 %v3913, %v3914
    %v3916 = vsel %vm3817, %v3789, -inf
    %v3917 = vrot.slane %v3916, 4
    %v3918 = vmax.f32 %v3916, %v3917
    %v3919 = vrot.slane %v3918, 2
    %v3920 = vmax.f32 %v3918, %v3919
    %v3921 = vrot.slane %v3920, 1
    %v3922 = vmax.f32 %v3920, %v3921
    %v3923 = vsel %vm3817, %v3790, -inf
    %v3924 = vrot.slane %v3923, 4
    %v3925 = vmax.f32 %v3923, %v3924
    %v3926 = vrot.slane %v3925, 2
    %v3927 = vmax.f32 %v3925, %v3926
    %v3928 = vrot.slane %v3927, 1
    %v3929 = vmax.f32 %v3927, %v3928
    %v3930 = vsel %vm3817, %v3791, -inf
    %v3931 = vrot.slane %v3930, 4
    %v3932 = vmax.f32 %v3930, %v3931
    %v3933 = vrot.slane %v3932, 2
    %v3934 = vmax.f32 %v3932, %v3933
    %v3935 = vrot.slane %v3934, 1
    %v3936 = vmax.f32 %v3934, %v3935
    %v3937 = vsel %vm3817, %v3792, -inf
    %v3938 = vrot.slane %v3937, 4
    %v3939 = vmax.f32 %v3937, %v3938
    %v3940 = vrot.slane %v3939, 2
    %v3941 = vmax.f32 %v3939, %v3940
    %v3942 = vrot.slane %v3941, 1
    %v3943 = vmax.f32 %v3941, %v3942
    %v3944 = vsel %vm3817, %v3793, -inf
    %v3945 = vrot.slane %v3944, 4
    %v3946 = vmax.f32 %v3944, %v3945
    %v3947 = vrot.slane %v3946, 2
    %v3948 = vmax.f32 %v3946, %v3947
    %v3949 = vrot.slane %v3948, 1
    %v3950 = vmax.f32 %v3948, %v3949
    %v3951 = vsel %vm3817, %v3794, -inf
    %v3952 = vrot.slane %v3951, 4
    %v3953 = vmax.f32 %v3951, %v3952
    %v3954 = vrot.slane %v3953, 2
    %v3955 = vmax.f32 %v3953, %v3954
    %v3956 = vrot.slane %v3955, 1
    %v3957 = vmax.f32 %v3955, %v3956
    %v3958 = vsel %vm3817, %v3795, -inf
    %v3959 = vrot.slane %v3958, 4
    %v3960 = vmax.f32 %v3958, %v3959
    %v3961 = vrot.slane %v3960, 2
    %v3962 = vmax.f32 %v3960, %v3961
    %v3963 = vrot.slane %v3962, 1
    %v3964 = vmax.f32 %v3962, %v3963
    %v3965 = vsel %vm3817, %v3796, -inf
    %v3966 = vrot.slane %v3965, 4
    %v3967 = vmax.f32 %v3965, %v3966
    %v3968 = vrot.slane %v3967, 2
    %v3969 = vmax.f32 %v3967, %v3968
    %v3970 = vrot.slane %v3969, 1
    %v3971 = vmax.f32 %v3969, %v3970
    %v3972 = vsel %vm3817, %v3797, -inf
    %v3973 = vrot.slane %v3972, 4
    %v3974 = vmax.f32 %v3972, %v3973
    %v3975 = vrot.slane %v3974, 2
    %v3976 = vmax.f32 %v3974, %v3975
    %v3977 = vrot.slane %v3976, 1
    %v3978 = vmax.f32 %v3976, %v3977
    %v3979 = vsel %vm3817, %v3798, -inf
    %v3980 = vrot.slane %v3979, 4
    %v3981 = vmax.f32 %v3979, %v3980
    %v3982 = vrot.slane %v3981, 2
    %v3983 = vmax.f32 %v3981, %v3982
    %v3984 = vrot.slane %v3983, 1
    %v3985 = vmax.f32 %v3983, %v3984
    %v3986 = vsel %vm3817, %v3799, -inf
    %v3987 = vrot.slane %v3986, 4
    %v3988 = vmax.f32 %v3986, %v3987
    %v3989 = vrot.slane %v3988, 2
    %v3990 = vmax.f32 %v3988, %v3989
    %v3991 = vrot.slane %v3990, 1
    %v3992 = vmax.f32 %v3990, %v3991
    %v3993 = vsel %vm3817, %v3800, -inf
    %v3994 = vrot.slane %v3993, 4
    %v3995 = vmax.f32 %v3993, %v3994
    %v3996 = vrot.slane %v3995, 2
    %v3997 = vmax.f32 %v3995, %v3996
    %v3998 = vrot.slane %v3997, 1
    %v3999 = vmax.f32 %v3997, %v3998
    %v4000 = vsel %vm3817, %v3801, -inf
    %v4001 = vrot.slane %v4000, 4
    %v4002 = vmax.f32 %v4000, %v4001
    %v4003 = vrot.slane %v4002, 2
    %v4004 = vmax.f32 %v4002, %v4003
    %v4005 = vrot.slane %v4004, 1
    %v4006 = vmax.f32 %v4004, %v4005
    %v4007 = vsel %vm3817, %v3802, -inf
    %v4008 = vrot.slane %v4007, 4
    %v4009 = vmax.f32 %v4007, %v4008
    %v4010 = vrot.slane %v4009, 2
    %v4011 = vmax.f32 %v4009, %v4010
    %v4012 = vrot.slane %v4011, 1
    %v4013 = vmax.f32 %v4011, %v4012
    %v4014 = vsel %vm3817, %v3803, -inf
    %v4015 = vrot.slane %v4014, 4
    %v4016 = vmax.f32 %v4014, %v4015
    %v4017 = vrot.slane %v4016, 2
    %v4018 = vmax.f32 %v4016, %v4017
    %v4019 = vrot.slane %v4018, 1
    %v4020 = vmax.f32 %v4018, %v4019
    %v4021 = vsel %vm3817, %v3804, -inf
    %v4022 = vrot.slane %v4021, 4
    %v4023 = vmax.f32 %v4021, %v4022
    %v4024 = vrot.slane %v4023, 2
    %v4025 = vmax.f32 %v4023, %v4024
    %v4026 = vrot.slane %v4025, 1
    %v4027 = vmax.f32 %v4025, %v4026
    %v4028 = vsel %vm3817, %v3805, -inf
    %v4029 = vrot.slane %v4028, 4
    %v4030 = vmax.f32 %v4028, %v4029
    %v4031 = vrot.slane %v4030, 2
    %v4032 = vmax.f32 %v4030, %v4031
    %v4033 = vrot.slane %v4032, 1
    %v4034 = vmax.f32 %v4032, %v4033
    %v4035 = vsel %vm3817, %v3806, -inf
    %v4036 = vrot.slane %v4035, 4
    %v4037 = vmax.f32 %v4035, %v4036
    %v4038 = vrot.slane %v4037, 2
    %v4039 = vmax.f32 %v4037, %v4038
    %v4040 = vrot.slane %v4039, 1
    %v4041 = vmax.f32 %v4039, %v4040
    %v4042 = vsel %vm3817, %v3807, -inf
    %v4043 = vrot.slane %v4042, 4
    %v4044 = vmax.f32 %v4042, %v4043
    %v4045 = vrot.slane %v4044, 2
    %v4046 = vmax.f32 %v4044, %v4045
    %v4047 = vrot.slane %v4046, 1
    %v4048 = vmax.f32 %v4046, %v4047
    %v4049 = vsel %vm3817, %v3808, -inf
    %v4050 = vrot.slane %v4049, 4
    %v4051 = vmax.f32 %v4049, %v4050
    %v4052 = vrot.slane %v4051, 2
    %v4053 = vmax.f32 %v4051, %v4052
    %v4054 = vrot.slane %v4053, 1
    %v4055 = vmax.f32 %v4053, %v4054
    %v4056 = vsel %vm3817, %v3809, -inf
    %v4057 = vrot.slane %v4056, 4
    %v4058 = vmax.f32 %v4056, %v4057
    %v4059 = vrot.slane %v4058, 2
    %v4060 = vmax.f32 %v4058, %v4059
    %v4061 = vrot.slane %v4060, 1
    %v4062 = vmax.f32 %v4060, %v4061
    %v4063 = vsel %vm3817, %v3810, -inf
    %v4064 = vrot.slane %v4063, 4
    %v4065 = vmax.f32 %v4063, %v4064
    %v4066 = vrot.slane %v4065, 2
    %v4067 = vmax.f32 %v4065, %v4066
    %v4068 = vrot.slane %v4067, 1
    %v4069 = vmax.f32 %v4067, %v4068
    %v4070 = vsel %vm3817, %v3811, -inf
    %v4071 = vrot.slane %v4070, 4
    %v4072 = vmax.f32 %v4070, %v4071
    %v4073 = vrot.slane %v4072, 2
    %v4074 = vmax.f32 %v4072, %v4073
    %v4075 = vrot.slane %v4074, 1
    %v4076 = vmax.f32 %v4074, %v4075
    %v4077 = vsel %vm3817, %v3812, -inf
    %v4078 = vrot.slane %v4077, 4
    %v4079 = vmax.f32 %v4077, %v4078
    %v4080 = vrot.slane %v4079, 2
    %v4081 = vmax.f32 %v4079, %v4080
    %v4082 = vrot.slane %v4081, 1
    %v4083 = vmax.f32 %v4081, %v4082
    %v4084 = vsel %vm3817, %v3813, -inf
    %v4085 = vrot.slane %v4084, 4
    %v4086 = vmax.f32 %v4084, %v4085
    %v4087 = vrot.slane %v4086, 2
    %v4088 = vmax.f32 %v4086, %v4087
    %v4089 = vrot.slane %v4088, 1
    %v4090 = vmax.f32 %v4088, %v4089
    %v4091 = vsel %vm3817, %v3814, -inf
    %v4092 = vrot.slane %v4091, 4
    %v4093 = vmax.f32 %v4091, %v4092
    %v4094 = vrot.slane %v4093, 2
    %v4095 = vmax.f32 %v4093, %v4094
    %v4096 = vrot.slane %v4095, 1
    %v4097 = vmax.f32 %v4095, %v4096
    %v4098 = vsel %vm3817, %v3815, -inf
    %v4099 = vrot.slane %v4098, 4
    %v4100 = vmax.f32 %v4098, %v4099
    %v4101 = vrot.slane %v4100, 2
    %v4102 = vmax.f32 %v4100, %v4101
    %v4103 = vrot.slane %v4102, 1
    %v4104 = vmax.f32 %v4102, %v4103
    %v4105 = vsel %vm3817, %v3816, -inf
    %v4106 = vrot.slane %v4105, 4
    %v4107 = vmax.f32 %v4105, %v4106
    %v4108 = vrot.slane %v4107, 2
    %v4109 = vmax.f32 %v4107, %v4108
    %v4110 = vrot.slane %v4109, 1
    %v4111 = vmax.f32 %v4109, %v4110
    %v4154 = vsel %vm1818, %v3831, %v3824
    %v4155 = vsel %vm1820, %v3838, %v4154
    %v4156 = vsel %vm1822, %v3845, %v4155
    %v4157 = vsel %vm1824, %v3852, %v4156
    %v4158 = vsel %vm1826, %v3859, %v4157
    %v4159 = vsel %vm1828, %v3866, %v4158
    %v4160 = vsel %vm1830, %v3880, %v3873
    %v4161 = vsel %vm1818, %v3887, %v4160
    %v4162 = vsel %vm1820, %v3894, %v4161
    %v4163 = vsel %vm1822, %v3901, %v4162
    %v4164 = vsel %vm1824, %v3908, %v4163
    %v4165 = vsel %vm1826, %v3915, %v4164
    %v4166 = vsel %vm1828, %v3922, %v4165
    %v4167 = vsel %vm1830, %v3936, %v3929
    %v4168 = vsel %vm1818, %v3943, %v4167
    %v4169 = vsel %vm1820, %v3950, %v4168
    %v4170 = vsel %vm1822, %v3957, %v4169
    %v4171 = vsel %vm1824, %v3964, %v4170
    %v4172 = vsel %vm1818, %v3978, %v3971
    %v4173 = vsel %vm1820, %v3985, %v4172
    %v4174 = vsel %vm1822, %v3992, %v4173
    %v4175 = vsel %vm1824, %v3999, %v4174
    %v4176 = vsel %vm1826, %v4006, %v4175
    %v4177 = vsel %vm1828, %v4013, %v4176
    %v4178 = vsel %vm1830, %v4027, %v4020
    %v4179 = vsel %vm1818, %v4034, %v4178
    %v4180 = vsel %vm1820, %v4041, %v4179
    %v4181 = vsel %vm1822, %v4048, %v4180
    %v4182 = vsel %vm1824, %v4055, %v4181
    %v4183 = vsel %vm1826, %v4062, %v4182
    %v4184 = vsel %vm1828, %v4069, %v4183
    %v4185 = vsel %vm1830, %v4083, %v4076
    %v4186 = vsel %vm1818, %v4090, %v4185
    %v4187 = vsel %vm1820, %v4097, %v4186
    %v4188 = vsel %vm1822, %v4104, %v4187
    %v4189 = vsel %vm1824, %v4111, %v4188
    %v4194 = vsel %vm192, 0.0, %v4159
    %v4195 = vsel %vm192, 0.0, %v4177
    %v4196 = vsel %vm545, %v4171, 0.0
    %v4197 = vsel %vm545, %v4189, 0.0
    %v4198 = vld [vmem:[#allocation12] sm:$0xff]
    %v4199 = vld [vmem:[#allocation12 + $0x8] sm:$0xff]
    %v4200 = vld [vmem:[#allocation12 + $0x10] sm:$0xff]
    %v4201 = vld [vmem:[#allocation12 + $0x18] sm:$0xff]
    %v4202 = vld [vmem:[#allocation12 + $0x20] sm:$0xff]
    %v4203 = vld [vmem:[#allocation12 + $0x28] sm:$0xff]
    %v4204 = vld [vmem:[#allocation12 + $0x30] sm:$0xff]
    %v4205 = vld [vmem:[#allocation12 + $0x38] sm:$0xff]
    %s4206 = scalar_lea.vmem [#allocation12], 64
    %v4207 = vld [vmem:[%s4206] sm:$0xff]
    %v4208 = vld [vmem:[%s4206 + $0x8] sm:$0xff]
    %v4209 = vld [vmem:[%s4206 + $0x10] sm:$0xff]
    %v4210 = vld [vmem:[%s4206 + $0x18] sm:$0xff]
    %v4211 = vld [vmem:[%s4206 + $0x20] sm:$0xff]
    %v4212 = vld [vmem:[%s4206 + $0x28] sm:$0xff]
    %v4213 = vld [vmem:[%s4206 + $0x30] sm:$0xff]
    %v4214 = vld [vmem:[%s4206 + $0x38] sm:$0xff]
    %v4219 = vcombine.high %v4194, %v4194
    %v4221 = vunpack.c.l.s4 1966171168
    %v4222 = vunpack.c.0.s8 %v4221
    %v4223 = vlaneseq
    %v4224 = vshrl.u32 %v4223, 7
    %v4225 = vsub.s32 %v4222, %v4224
    %v4226 = vrot.slane %v4194, %v4225
    %v4228 = vunpack.c.l.s4 1966171168
    %v4229 = vunpack.c.0.s8 %v4228
    %v4230 = vlaneseq
    %v4231 = vshrl.u32 %v4230, 7
    %v4232 = vsub.s32 %v4229, %v4231
    %v4233 = vrot.slane %v4219, %v4232
    %v4234 = vcombine.high %v4226, %v4226
    %v4235 = vcombine.high %v4233, %v4233
    %v4237 = vunpack.c.l.s4 1966171168
    %v4238 = vunpack.c.0.s8 %v4237
    %v4239 = vlaneseq
    %v4240 = vshrl.u32 %v4239, 7
    %v4241 = vsub.s32 %v4238, %v4240
    %v4242 = vrot.slane %v4226, %v4241
    %v4244 = vunpack.c.l.s4 1966171168
    %v4245 = vunpack.c.0.s8 %v4244
    %v4246 = vlaneseq
    %v4247 = vshrl.u32 %v4246, 7
    %v4248 = vsub.s32 %v4245, %v4247
    %v4249 = vrot.slane %v4233, %v4248
    %v4251 = vunpack.c.l.s4 1966171168
    %v4252 = vunpack.c.0.s8 %v4251
    %v4253 = vlaneseq
    %v4254 = vshrl.u32 %v4253, 7
    %v4255 = vsub.s32 %v4252, %v4254
    %v4256 = vrot.slane %v4234, %v4255
    %v4258 = vunpack.c.l.s4 1966171168
    %v4259 = vunpack.c.0.s8 %v4258
    %v4260 = vlaneseq
    %v4261 = vshrl.u32 %v4260, 7
    %v4262 = vsub.s32 %v4259, %v4261
    %v4263 = vrot.slane %v4235, %v4262
    %v4264 = vcombine.high %v4242, %v4242
    %v4265 = vcombine.high %v4249, %v4249
    %v4266 = vcombine.high %v4256, %v4256
    %v4267 = vcombine.high %v4263, %v4263
    %v4268 = vcombine.high %v4166, %v4166
    %v4270 = vunpack.c.l.s4 1966171168
    %v4271 = vunpack.c.0.s8 %v4270
    %v4272 = vlaneseq
    %v4273 = vshrl.u32 %v4272, 7
    %v4274 = vsub.s32 %v4271, %v4273
    %v4275 = vrot.slane %v4166, %v4274
    %v4277 = vunpack.c.l.s4 1966171168
    %v4278 = vunpack.c.0.s8 %v4277
    %v4279 = vlaneseq
    %v4280 = vshrl.u32 %v4279, 7
    %v4281 = vsub.s32 %v4278, %v4280
    %v4282 = vrot.slane %v4268, %v4281
    %v4283 = vcombine.high %v4275, %v4275
    %v4284 = vcombine.high %v4282, %v4282
    %v4286 = vunpack.c.l.s4 1966171168
    %v4287 = vunpack.c.0.s8 %v4286
    %v4288 = vlaneseq
    %v4289 = vshrl.u32 %v4288, 7
    %v4290 = vsub.s32 %v4287, %v4289
    %v4291 = vrot.slane %v4275, %v4290
    %v4293 = vunpack.c.l.s4 1966171168
    %v4294 = vunpack.c.0.s8 %v4293
    %v4295 = vlaneseq
    %v4296 = vshrl.u32 %v4295, 7
    %v4297 = vsub.s32 %v4294, %v4296
    %v4298 = vrot.slane %v4282, %v4297
    %v4300 = vunpack.c.l.s4 1966171168
    %v4301 = vunpack.c.0.s8 %v4300
    %v4302 = vlaneseq
    %v4303 = vshrl.u32 %v4302, 7
    %v4304 = vsub.s32 %v4301, %v4303
    %v4305 = vrot.slane %v4283, %v4304
    %v4307 = vunpack.c.l.s4 1966171168
    %v4308 = vunpack.c.0.s8 %v4307
    %v4309 = vlaneseq
    %v4310 = vshrl.u32 %v4309, 7
    %v4311 = vsub.s32 %v4308, %v4310
    %v4312 = vrot.slane %v4284, %v4311
    %v4313 = vcombine.high %v4291, %v4291
    %v4314 = vcombine.high %v4298, %v4298
    %v4315 = vcombine.high %v4305, %v4305
    %v4316 = vcombine.high %v4312, %v4312
    %v4317 = vcombine.high %v4196, %v4196
    %v4319 = vunpack.c.l.s4 1966171168
    %v4320 = vunpack.c.0.s8 %v4319
    %v4321 = vlaneseq
    %v4322 = vshrl.u32 %v4321, 7
    %v4323 = vsub.s32 %v4320, %v4322
    %v4324 = vrot.slane %v4196, %v4323
    %v4326 = vunpack.c.l.s4 1966171168
    %v4327 = vunpack.c.0.s8 %v4326
    %v4328 = vlaneseq
    %v4329 = vshrl.u32 %v4328, 7
    %v4330 = vsub.s32 %v4327, %v4329
    %v4331 = vrot.slane %v4317, %v4330
    %v4332 = vcombine.high %v4324, %v4324
    %v4333 = vcombine.high %v4331, %v4331
    %v4335 = vunpack.c.l.s4 1966171168
    %v4336 = vunpack.c.0.s8 %v4335
    %v4337 = vlaneseq
    %v4338 = vshrl.u32 %v4337, 7
    %v4339 = vsub.s32 %v4336, %v4338
    %v4340 = vrot.slane %v4324, %v4339
    %v4342 = vunpack.c.l.s4 1966171168
    %v4343 = vunpack.c.0.s8 %v4342
    %v4344 = vlaneseq
    %v4345 = vshrl.u32 %v4344, 7
    %v4346 = vsub.s32 %v4343, %v4345
    %v4347 = vrot.slane %v4331, %v4346
    %v4349 = vunpack.c.l.s4 1966171168
    %v4350 = vunpack.c.0.s8 %v4349
    %v4351 = vlaneseq
    %v4352 = vshrl.u32 %v4351, 7
    %v4353 = vsub.s32 %v4350, %v4352
    %v4354 = vrot.slane %v4332, %v4353
    %v4356 = vunpack.c.l.s4 1966171168
    %v4357 = vunpack.c.0.s8 %v4356
    %v4358 = vlaneseq
    %v4359 = vshrl.u32 %v4358, 7
    %v4360 = vsub.s32 %v4357, %v4359
    %v4361 = vrot.slane %v4333, %v4360
    %v4362 = vcombine.high %v4340, %v4340
    %v4363 = vcombine.high %v4354, %v4354
    %v4364 = vcombine.high %v4195, %v4195
    %v4366 = vunpack.c.l.s4 1966171168
    %v4367 = vunpack.c.0.s8 %v4366
    %v4368 = vlaneseq
    %v4369 = vshrl.u32 %v4368, 7
    %v4370 = vsub.s32 %v4367, %v4369
    %v4371 = vrot.slane %v4195, %v4370
    %v4373 = vunpack.c.l.s4 1966171168
    %v4374 = vunpack.c.0.s8 %v4373
    %v4375 = vlaneseq
    %v4376 = vshrl.u32 %v4375, 7
    %v4377 = vsub.s32 %v4374, %v4376
    %v4378 = vrot.slane %v4364, %v4377
    %v4379 = vcombine.high %v4371, %v4371
    %v4380 = vcombine.high %v4378, %v4378
    %v4382 = vunpack.c.l.s4 1966171168
    %v4383 = vunpack.c.0.s8 %v4382
    %v4384 = vlaneseq
    %v4385 = vshrl.u32 %v4384, 7
    %v4386 = vsub.s32 %v4383, %v4385
    %v4387 = vrot.slane %v4371, %v4386
    %v4389 = vunpack.c.l.s4 1966171168
    %v4390 = vunpack.c.0.s8 %v4389
    %v4391 = vlaneseq
    %v4392 = vshrl.u32 %v4391, 7
    %v4393 = vsub.s32 %v4390, %v4392
    %v4394 = vrot.slane %v4378, %v4393
    %v4396 = vunpack.c.l.s4 1966171168
    %v4397 = vunpack.c.0.s8 %v4396
    %v4398 = vlaneseq
    %v4399 = vshrl.u32 %v4398, 7
    %v4400 = vsub.s32 %v4397, %v4399
    %v4401 = vrot.slane %v4379, %v4400
    %v4403 = vunpack.c.l.s4 1966171168
    %v4404 = vunpack.c.0.s8 %v4403
    %v4405 = vlaneseq
    %v4406 = vshrl.u32 %v4405, 7
    %v4407 = vsub.s32 %v4404, %v4406
    %v4408 = vrot.slane %v4380, %v4407
    %v4409 = vcombine.high %v4387, %v4387
    %v4410 = vcombine.high %v4394, %v4394
    %v4411 = vcombine.high %v4401, %v4401
    %v4412 = vcombine.high %v4408, %v4408
    %v4413 = vcombine.high %v4184, %v4184
    %v4415 = vunpack.c.l.s4 1966171168
    %v4416 = vunpack.c.0.s8 %v4415
    %v4417 = vlaneseq
    %v4418 = vshrl.u32 %v4417, 7
    %v4419 = vsub.s32 %v4416, %v4418
    %v4420 = vrot.slane %v4184, %v4419
    %v4422 = vunpack.c.l.s4 1966171168
    %v4423 = vunpack.c.0.s8 %v4422
    %v4424 = vlaneseq
    %v4425 = vshrl.u32 %v4424, 7
    %v4426 = vsub.s32 %v4423, %v4425
    %v4427 = vrot.slane %v4413, %v4426
    %v4428 = vcombine.high %v4420, %v4420
    %v4429 = vcombine.high %v4427, %v4427
    %v4431 = vunpack.c.l.s4 1966171168
    %v4432 = vunpack.c.0.s8 %v4431
    %v4433 = vlaneseq
    %v4434 = vshrl.u32 %v4433, 7
    %v4435 = vsub.s32 %v4432, %v4434
    %v4436 = vrot.slane %v4420, %v4435
    %v4438 = vunpack.c.l.s4 1966171168
    %v4439 = vunpack.c.0.s8 %v4438
    %v4440 = vlaneseq
    %v4441 = vshrl.u32 %v4440, 7
    %v4442 = vsub.s32 %v4439, %v4441
    %v4443 = vrot.slane %v4427, %v4442
    %v4445 = vunpack.c.l.s4 1966171168
    %v4446 = vunpack.c.0.s8 %v4445
    %v4447 = vlaneseq
    %v4448 = vshrl.u32 %v4447, 7
    %v4449 = vsub.s32 %v4446, %v4448
    %v4450 = vrot.slane %v4428, %v4449
    %v4452 = vunpack.c.l.s4 1966171168
    %v4453 = vunpack.c.0.s8 %v4452
    %v4454 = vlaneseq
    %v4455 = vshrl.u32 %v4454, 7
    %v4456 = vsub.s32 %v4453, %v4455
    %v4457 = vrot.slane %v4429, %v4456
    %v4458 = vcombine.high %v4436, %v4436
    %v4459 = vcombine.high %v4443, %v4443
    %v4460 = vcombine.high %v4450, %v4450
    %v4461 = vcombine.high %v4457, %v4457
    %v4462 = vcombine.high %v4197, %v4197
    %v4464 = vunpack.c.l.s4 1966171168
    %v4465 = vunpack.c.0.s8 %v4464
    %v4466 = vlaneseq
    %v4467 = vshrl.u32 %v4466, 7
    %v4468 = vsub.s32 %v4465, %v4467
    %v4469 = vrot.slane %v4197, %v4468
    %v4471 = vunpack.c.l.s4 1966171168
    %v4472 = vunpack.c.0.s8 %v4471
    %v4473 = vlaneseq
    %v4474 = vshrl.u32 %v4473, 7
    %v4475 = vsub.s32 %v4472, %v4474
    %v4476 = vrot.slane %v4462, %v4475
    %v4477 = vcombine.high %v4469, %v4469
    %v4478 = vcombine.high %v4476, %v4476
    %v4480 = vunpack.c.l.s4 1966171168
    %v4481 = vunpack.c.0.s8 %v4480
    %v4482 = vlaneseq
    %v4483 = vshrl.u32 %v4482, 7
    %v4484 = vsub.s32 %v4481, %v4483
    %v4485 = vrot.slane %v4469, %v4484
    %v4487 = vunpack.c.l.s4 1966171168
    %v4488 = vunpack.c.0.s8 %v4487
    %v4489 = vlaneseq
    %v4490 = vshrl.u32 %v4489, 7
    %v4491 = vsub.s32 %v4488, %v4490
    %v4492 = vrot.slane %v4476, %v4491
    %v4494 = vunpack.c.l.s4 1966171168
    %v4495 = vunpack.c.0.s8 %v4494
    %v4496 = vlaneseq
    %v4497 = vshrl.u32 %v4496, 7
    %v4498 = vsub.s32 %v4495, %v4497
    %v4499 = vrot.slane %v4477, %v4498
    %v4501 = vunpack.c.l.s4 1966171168
    %v4502 = vunpack.c.0.s8 %v4501
    %v4503 = vlaneseq
    %v4504 = vshrl.u32 %v4503, 7
    %v4505 = vsub.s32 %v4502, %v4504
    %v4506 = vrot.slane %v4478, %v4505
    %v4507 = vcombine.high %v4485, %v4485
    %v4508 = vcombine.high %v4499, %v4499
    %v4509 = vcombine.low %v4256, %v4264
    %v4510 = vcombine.low %v4266, %v4249
    %v4511 = vcombine.low %v4263, %v4265
    %v4512 = vcombine.low %v4267, %v4291
    %v4514 = vunpack.c.l.s4 1966171168
    %v4515 = vunpack.c.0.s8 %v4514
    %v4516 = vlaneseq
    %v4517 = vshrl.u32 %v4516, 7
    %v4518 = vsub.s32 %v4515, %v4517
    %v4519 = vrot.slane %v4509, %v4518
    %v4521 = vunpack.c.l.s4 1966171168
    %v4522 = vunpack.c.0.s8 %v4521
    %v4523 = vlaneseq
    %v4524 = vshrl.u32 %v4523, 7
    %v4525 = vsub.s32 %v4522, %v4524
    %v4526 = vrot.slane %v4510, %v4525
    %v4528 = vunpack.c.l.s4 1966171168
    %v4529 = vunpack.c.0.s8 %v4528
    %v4530 = vlaneseq
    %v4531 = vshrl.u32 %v4530, 7
    %v4532 = vsub.s32 %v4529, %v4531
    %v4533 = vrot.slane %v4511, %v4532
    %v4535 = vunpack.c.l.s4 1966171168
    %v4536 = vunpack.c.0.s8 %v4535
    %v4537 = vlaneseq
    %v4538 = vshrl.u32 %v4537, 7
    %v4539 = vsub.s32 %v4536, %v4538
    %v4540 = vrot.slane %v4512, %v4539
    %v4541 = vcombine.low %v4519, %v4526
    %v4542 = vcombine.low %v4533, %v4540
    %v4544 = vunpack.c.l.s4 1966171168
    %v4545 = vunpack.c.0.s8 %v4544
    %v4546 = vlaneseq
    %v4547 = vshrl.u32 %v4546, 7
    %v4548 = vsub.s32 %v4545, %v4547
    %v4549 = vrot.slane %v4541, %v4548
    %v4551 = vunpack.c.l.s4 1966171168
    %v4552 = vunpack.c.0.s8 %v4551
    %v4553 = vlaneseq
    %v4554 = vshrl.u32 %v4553, 7
    %v4555 = vsub.s32 %v4552, %v4554
    %v4556 = vrot.slane %v4542, %v4555
    %v4557 = vcombine.low %v4549, %v4556
    %v4558 = vcombine.low %v4305, %v4313
    %v4559 = vcombine.low %v4315, %v4298
    %v4560 = vcombine.low %v4312, %v4314
    %v4561 = vcombine.low %v4316, %v4340
    %v4563 = vunpack.c.l.s4 1966171168
    %v4564 = vunpack.c.0.s8 %v4563
    %v4565 = vlaneseq
    %v4566 = vshrl.u32 %v4565, 7
    %v4567 = vsub.s32 %v4564, %v4566
    %v4568 = vrot.slane %v4558, %v4567
    %v4570 = vunpack.c.l.s4 1966171168
    %v4571 = vunpack.c.0.s8 %v4570
    %v4572 = vlaneseq
    %v4573 = vshrl.u32 %v4572, 7
    %v4574 = vsub.s32 %v4571, %v4573
    %v4575 = vrot.slane %v4559, %v4574
    %v4577 = vunpack.c.l.s4 1966171168
    %v4578 = vunpack.c.0.s8 %v4577
    %v4579 = vlaneseq
    %v4580 = vshrl.u32 %v4579, 7
    %v4581 = vsub.s32 %v4578, %v4580
    %v4582 = vrot.slane %v4560, %v4581
    %v4584 = vunpack.c.l.s4 1966171168
    %v4585 = vunpack.c.0.s8 %v4584
    %v4586 = vlaneseq
    %v4587 = vshrl.u32 %v4586, 7
    %v4588 = vsub.s32 %v4585, %v4587
    %v4589 = vrot.slane %v4561, %v4588
    %v4590 = vcombine.low %v4568, %v4575
    %v4591 = vcombine.low %v4582, %v4589
    %v4593 = vunpack.c.l.s4 1966171168
    %v4594 = vunpack.c.0.s8 %v4593
    %v4595 = vlaneseq
    %v4596 = vshrl.u32 %v4595, 7
    %v4597 = vsub.s32 %v4594, %v4596
    %v4598 = vrot.slane %v4590, %v4597
    %v4600 = vunpack.c.l.s4 1966171168
    %v4601 = vunpack.c.0.s8 %v4600
    %v4602 = vlaneseq
    %v4603 = vshrl.u32 %v4602, 7
    %v4604 = vsub.s32 %v4601, %v4603
    %v4605 = vrot.slane %v4591, %v4604
    %v4606 = vcombine.low %v4598, %v4605
    %v4607 = vcombine.low %v4354, %v4362
    %v4608 = vcombine.low %v4363, %v4347
    %v4609 = vcombine.low %v4361, %v4401
    %v4610 = vcombine.low %v4409, %v4411
    %v4612 = vunpack.c.l.s4 1966171168
    %v4613 = vunpack.c.0.s8 %v4612
    %v4614 = vlaneseq
    %v4615 = vshrl.u32 %v4614, 7
    %v4616 = vsub.s32 %v4613, %v4615
    %v4617 = vrot.slane %v4607, %v4616
    %v4619 = vunpack.c.l.s4 1966171168
    %v4620 = vunpack.c.0.s8 %v4619
    %v4621 = vlaneseq
    %v4622 = vshrl.u32 %v4621, 7
    %v4623 = vsub.s32 %v4620, %v4622
    %v4624 = vrot.slane %v4608, %v4623
    %v4626 = vunpack.c.l.s4 1966171168
    %v4627 = vunpack.c.0.s8 %v4626
    %v4628 = vlaneseq
    %v4629 = vshrl.u32 %v4628, 7
    %v4630 = vsub.s32 %v4627, %v4629
    %v4631 = vrot.slane %v4609, %v4630
    %v4633 = vunpack.c.l.s4 1966171168
    %v4634 = vunpack.c.0.s8 %v4633
    %v4635 = vlaneseq
    %v4636 = vshrl.u32 %v4635, 7
    %v4637 = vsub.s32 %v4634, %v4636
    %v4638 = vrot.slane %v4610, %v4637
    %v4639 = vcombine.low %v4617, %v4624
    %v4640 = vcombine.low %v4631, %v4638
    %v4642 = vunpack.c.l.s4 1966171168
    %v4643 = vunpack.c.0.s8 %v4642
    %v4644 = vlaneseq
    %v4645 = vshrl.u32 %v4644, 7
    %v4646 = vsub.s32 %v4643, %v4645
    %v4647 = vrot.slane %v4639, %v4646
    %v4649 = vunpack.c.l.s4 1966171168
    %v4650 = vunpack.c.0.s8 %v4649
    %v4651 = vlaneseq
    %v4652 = vshrl.u32 %v4651, 7
    %v4653 = vsub.s32 %v4650, %v4652
    %v4654 = vrot.slane %v4640, %v4653
    %v4655 = vcombine.low %v4647, %v4654
    %v4656 = vcombine.low %v4394, %v4408
    %v4657 = vcombine.low %v4410, %v4412
    %v4658 = vcombine.low %v4436, %v4450
    %v4659 = vcombine.low %v4458, %v4460
    %v4661 = vunpack.c.l.s4 1966171168
    %v4662 = vunpack.c.0.s8 %v4661
    %v4663 = vlaneseq
    %v4664 = vshrl.u32 %v4663, 7
    %v4665 = vsub.s32 %v4662, %v4664
    %v4666 = vrot.slane %v4656, %v4665
    %v4668 = vunpack.c.l.s4 1966171168
    %v4669 = vunpack.c.0.s8 %v4668
    %v4670 = vlaneseq
    %v4671 = vshrl.u32 %v4670, 7
    %v4672 = vsub.s32 %v4669, %v4671
    %v4673 = vrot.slane %v4657, %v4672
    %v4675 = vunpack.c.l.s4 1966171168
    %v4676 = vunpack.c.0.s8 %v4675
    %v4677 = vlaneseq
    %v4678 = vshrl.u32 %v4677, 7
    %v4679 = vsub.s32 %v4676, %v4678
    %v4680 = vrot.slane %v4658, %v4679
    %v4682 = vunpack.c.l.s4 1966171168
    %v4683 = vunpack.c.0.s8 %v4682
    %v4684 = vlaneseq
    %v4685 = vshrl.u32 %v4684, 7
    %v4686 = vsub.s32 %v4683, %v4685
    %v4687 = vrot.slane %v4659, %v4686
    %v4688 = vcombine.low %v4666, %v4673
    %v4689 = vcombine.low %v4680, %v4687
    %v4691 = vunpack.c.l.s4 1966171168
    %v4692 = vunpack.c.0.s8 %v4691
    %v4693 = vlaneseq
    %v4694 = vshrl.u32 %v4693, 7
    %v4695 = vsub.s32 %v4692, %v4694
    %v4696 = vrot.slane %v4688, %v4695
    %v4698 = vunpack.c.l.s4 1966171168
    %v4699 = vunpack.c.0.s8 %v4698
    %v4700 = vlaneseq
    %v4701 = vshrl.u32 %v4700, 7
    %v4702 = vsub.s32 %v4699, %v4701
    %v4703 = vrot.slane %v4689, %v4702
    %v4704 = vcombine.low %v4696, %v4703
    %v4705 = vcombine.low %v4443, %v4457
    %v4706 = vcombine.low %v4459, %v4461
    %v4707 = vcombine.low %v4485, %v4499
    %v4708 = vcombine.low %v4507, %v4508
    %v4710 = vunpack.c.l.s4 1966171168
    %v4711 = vunpack.c.0.s8 %v4710
    %v4712 = vlaneseq
    %v4713 = vshrl.u32 %v4712, 7
    %v4714 = vsub.s32 %v4711, %v4713
    %v4715 = vrot.slane %v4705, %v4714
    %v4717 = vunpack.c.l.s4 1966171168
    %v4718 = vunpack.c.0.s8 %v4717
    %v4719 = vlaneseq
    %v4720 = vshrl.u32 %v4719, 7
    %v4721 = vsub.s32 %v4718, %v4720
    %v4722 = vrot.slane %v4706, %v4721
    %v4724 = vunpack.c.l.s4 1966171168
    %v4725 = vunpack.c.0.s8 %v4724
    %v4726 = vlaneseq
    %v4727 = vshrl.u32 %v4726, 7
    %v4728 = vsub.s32 %v4725, %v4727
    %v4729 = vrot.slane %v4707, %v4728
    %v4731 = vunpack.c.l.s4 1966171168
    %v4732 = vunpack.c.0.s8 %v4731
    %v4733 = vlaneseq
    %v4734 = vshrl.u32 %v4733, 7
    %v4735 = vsub.s32 %v4732, %v4734
    %v4736 = vrot.slane %v4708, %v4735
    %v4737 = vcombine.low %v4715, %v4722
    %v4738 = vcombine.low %v4729, %v4736
    %v4740 = vunpack.c.l.s4 1966171168
    %v4741 = vunpack.c.0.s8 %v4740
    %v4742 = vlaneseq
    %v4743 = vshrl.u32 %v4742, 7
    %v4744 = vsub.s32 %v4741, %v4743
    %v4745 = vrot.slane %v4737, %v4744
    %v4747 = vunpack.c.l.s4 1966171168
    %v4748 = vunpack.c.0.s8 %v4747
    %v4749 = vlaneseq
    %v4750 = vshrl.u32 %v4749, 7
    %v4751 = vsub.s32 %v4748, %v4750
    %v4752 = vrot.slane %v4738, %v4751
    %v4753 = vcombine.low %v4745, %v4752
    %v4754 = vcombine.low %v4492, %v4506
    %v4756 = vunpack.c.l.s4 1966171168
    %v4757 = vunpack.c.0.s8 %v4756
    %v4758 = vlaneseq
    %v4759 = vshrl.u32 %v4758, 7
    %v4760 = vsub.s32 %v4757, %v4759
    %v4761 = vrot.slane %v4754, %v4760
    %v4763 = vunpack.c.l.s4 1966171168
    %v4764 = vunpack.c.0.s8 %v4763
    %v4765 = vlaneseq
    %v4766 = vshrl.u32 %v4765, 7
    %v4767 = vsub.s32 %v4764, %v4766
    %v4768 = vrot.slane %v4761, %v4767
    %vm4769 = vcmask 523264
    %v4770 = vsel %vm4769, %v4557, 0
    %v4772 = vsel %vm4769, %v4606, 0
    %v4774 = vsel %vm4769, %v4655, 0
    %v4776 = vsel %vm4769, %v4704, 0
    %v4778 = vsel %vm4769, %v4753, 0
    %v4780 = vsel %vm4769, %v4768, 0
    %4782 = vmatprep.subr.mxu0 0.0
    %4783 = vmatpush1.msra.mxu0 0.0
    %4784 = vmatprep.subr.mxu0 0.0
    %4785 = vmatpush1.msra.mxu0 0.0
    %4786 = vmatprep.subr.mxu0 0.0
    %4787 = vmatpush1.msra.mxu0 0.0
    %4788 = vmatprep.subr.mxu0 0.0
    %4789 = vmatpush1.msra.mxu0 0.0
    %4790 = vmatprep.subr.mxu0 0.0
    %4791 = vmatpush1.msra.mxu0 0.0
    %4792 = vmatprep.subr.mxu0 0.0
    %4793 = vmatpush1.msra.mxu0 0.0
    %4794 = vmatprep.subr.mxu0 0.0
    %4795 = vmatpush1.msra.mxu0 0.0
    %4796 = vmatprep.subr.mxu0 0.0
    %4797 = vmatpush1.msra.mxu0 0.0
    %4798 = vmatprep.subr.mxu0 0.0
    %4799 = vmatpush1.msra.mxu0 %v4214
    %4800 = vmatprep.subr.mxu0 0.0
    %4801 = vmatpush1.msra.mxu0 %v4213
    %4802 = vmatprep.subr.mxu0 0.0
    %4803 = vmatpush1.msra.mxu0 %v4212
    %4804 = vmatprep.subr.mxu0 0.0
    %4805 = vmatpush1.msra.mxu0 %v4211
    %4806 = vmatprep.subr.mxu0 0.0
    %4807 = vmatpush1.msra.mxu0 %v4210
    %4808 = vmatprep.subr.mxu0 0.0
    %4809 = vmatpush1.msra.mxu0 %v4209
    %4810 = vmatprep.subr.mxu0 0.0
    %4811 = vmatpush1.msra.mxu0 %v4208
    %4812 = vmatprep.subr.mxu0 0.0
    %4813 = vmatpush1.msra.mxu0 %v4207
    %4814 = vmatprep.subr.mxu0 0.0
    %4815 = vmatpush2.msra.mxu0 0.0
    %4816 = vmatprep.subr.mxu0 0.0
    %4817 = vmatpush2.msra.mxu0 0.0
    %4818 = vmatprep.subr.mxu0 0.0
    %4819 = vmatpush2.msra.mxu0 0.0
    %4820 = vmatprep.subr.mxu0 0.0
    %4821 = vmatpush2.msra.mxu0 0.0
    %4822 = vmatprep.subr.mxu0 0.0
    %4823 = vmatpush2.msra.mxu0 0.0
    %4824 = vmatprep.subr.mxu0 0.0
    %4825 = vmatpush2.msra.mxu0 0.0
    %4826 = vmatprep.subr.mxu0 0.0
    %4827 = vmatpush2.msra.mxu0 0.0
    %4828 = vmatprep.subr.mxu0 0.0
    %4829 = vmatpush2.msra.mxu0 0.0
    %4830 = vmatprep.subr.mxu0 0.0
    %4831 = vmatpush2.msra.mxu0 0.0
    %4832 = vmatprep.subr.mxu0 0.0
    %4833 = vmatpush2.msra.mxu0 0.0
    %4834 = vmatprep.subr.mxu0 0.0
    %4835 = vmatpush2.msra.mxu0 0.0
    %4836 = vmatprep.subr.mxu0 0.0
    %4837 = vmatpush2.msra.mxu0 0.0
    %4838 = vmatprep.subr.mxu0 0.0
    %4839 = vmatpush2.msra.mxu0 0.0
    %4840 = vmatprep.subr.mxu0 0.0
    %4841 = vmatpush2.msra.mxu0 0.0
    %4842 = vmatprep.subr.mxu0 0.0
    %4843 = vmatpush2.msra.mxu0 0.0
    %4844 = vmatprep.subr.mxu0 0.0
    %4845 = vmatpush2.msra.mxu0 0.0
    %4846 = vmatprep.mubr.f32.mxu0 0.0
    %4847 = vmatmul.mubr.f32.gmra.mxu0 %v4770
    %v4848 = vpop.f32.mrf.mxu0
    %v4849 = vadd.f32 0.0, %v4848
    %v4850 = vpop.f32.mrf.mxu0
    %4851 = vmatprep.mubr.f32.mxu0 0.0
    %4852 = vmatmul.mubr.f32.gmra.mxu0 %v4772
    %v4853 = vpop.f32.mrf.mxu0
    %v4854 = vadd.f32 0.0, %v4853
    %v4855 = vpop.f32.mrf.mxu0
    %4856 = vmatprep.mubr.f32.mxu0 0.0
    %4857 = vmatmul.mubr.f32.gmra.mxu0 %v4774
    %v4858 = vpop.f32.mrf.mxu0
    %v4859 = vadd.f32 0.0, %v4858
    %v4860 = vpop.f32.mrf.mxu0
    %4861 = vmatprep.mubr.f32.mxu0 0.0
    %4862 = vmatmul.mubr.f32.gmra.mxu0 %v4776
    %v4863 = vpop.f32.mrf.mxu0
    %v4864 = vadd.f32 0.0, %v4863
    %v4865 = vpop.f32.mrf.mxu0
    %4866 = vmatprep.mubr.f32.mxu0 0.0
    %4867 = vmatmul.mubr.f32.gmra.mxu0 %v4778
    %v4868 = vpop.f32.mrf.mxu0
    %v4869 = vadd.f32 0.0, %v4868
    %v4870 = vpop.f32.mrf.mxu0
    %4871 = vmatprep.mubr.f32.mxu0 0.0
    %4872 = vmatmul.mubr.f32.gmra.mxu0 %v4780
    %v4873 = vpop.f32.mrf.mxu0
    %v4874 = vadd.f32 0.0, %v4873
    %v4875 = vpop.f32.mrf.mxu0
    %4876 = vdwg.mxu0
    %v4877 = vcombine.low %v4242, %v4256
    %v4878 = vcombine.low %v4264, %v4266
    %v4879 = vcombine.low %v4249, %v4263
    %v4880 = vcombine.low %v4265, %v4267
    %v4882 = vunpack.c.l.s4 1966171168
    %v4883 = vunpack.c.0.s8 %v4882
    %v4884 = vlaneseq
    %v4885 = vshrl.u32 %v4884, 7
    %v4886 = vsub.s32 %v4883, %v4885
    %v4887 = vrot.slane %v4877, %v4886
    %v4889 = vunpack.c.l.s4 1966171168
    %v4890 = vunpack.c.0.s8 %v4889
    %v4891 = vlaneseq
    %v4892 = vshrl.u32 %v4891, 7
    %v4893 = vsub.s32 %v4890, %v4892
    %v4894 = vrot.slane %v4878, %v4893
    %v4896 = vunpack.c.l.s4 1966171168
    %v4897 = vunpack.c.0.s8 %v4896
    %v4898 = vlaneseq
    %v4899 = vshrl.u32 %v4898, 7
    %v4900 = vsub.s32 %v4897, %v4899
    %v4901 = vrot.slane %v4879, %v4900
    %v4903 = vunpack.c.l.s4 1966171168
    %v4904 = vunpack.c.0.s8 %v4903
    %v4905 = vlaneseq
    %v4906 = vshrl.u32 %v4905, 7
    %v4907 = vsub.s32 %v4904, %v4906
    %v4908 = vrot.slane %v4880, %v4907
    %v4909 = vcombine.low %v4887, %v4894
    %v4910 = vcombine.low %v4901, %v4908
    %v4912 = vunpack.c.l.s4 1966171168
    %v4913 = vunpack.c.0.s8 %v4912
    %v4914 = vlaneseq
    %v4915 = vshrl.u32 %v4914, 7
    %v4916 = vsub.s32 %v4913, %v4915
    %v4917 = vrot.slane %v4909, %v4916
    %v4919 = vunpack.c.l.s4 1966171168
    %v4920 = vunpack.c.0.s8 %v4919
    %v4921 = vlaneseq
    %v4922 = vshrl.u32 %v4921, 7
    %v4923 = vsub.s32 %v4920, %v4922
    %v4924 = vrot.slane %v4910, %v4923
    %v4925 = vcombine.low %v4917, %v4924
    %v4926 = vcombine.low %v4291, %v4305
    %v4927 = vcombine.low %v4313, %v4315
    %v4928 = vcombine.low %v4298, %v4312
    %v4929 = vcombine.low %v4314, %v4316
    %v4931 = vunpack.c.l.s4 1966171168
    %v4932 = vunpack.c.0.s8 %v4931
    %v4933 = vlaneseq
    %v4934 = vshrl.u32 %v4933, 7
    %v4935 = vsub.s32 %v4932, %v4934
    %v4936 = vrot.slane %v4926, %v4935
    %v4938 = vunpack.c.l.s4 1966171168
    %v4939 = vunpack.c.0.s8 %v4938
    %v4940 = vlaneseq
    %v4941 = vshrl.u32 %v4940, 7
    %v4942 = vsub.s32 %v4939, %v4941
    %v4943 = vrot.slane %v4927, %v4942
    %v4945 = vunpack.c.l.s4 1966171168
    %v4946 = vunpack.c.0.s8 %v4945
    %v4947 = vlaneseq
    %v4948 = vshrl.u32 %v4947, 7
    %v4949 = vsub.s32 %v4946, %v4948
    %v4950 = vrot.slane %v4928, %v4949
    %v4952 = vunpack.c.l.s4 1966171168
    %v4953 = vunpack.c.0.s8 %v4952
    %v4954 = vlaneseq
    %v4955 = vshrl.u32 %v4954, 7
    %v4956 = vsub.s32 %v4953, %v4955
    %v4957 = vrot.slane %v4929, %v4956
    %v4958 = vcombine.low %v4936, %v4943
    %v4959 = vcombine.low %v4950, %v4957
    %v4961 = vunpack.c.l.s4 1966171168
    %v4962 = vunpack.c.0.s8 %v4961
    %v4963 = vlaneseq
    %v4964 = vshrl.u32 %v4963, 7
    %v4965 = vsub.s32 %v4962, %v4964
    %v4966 = vrot.slane %v4958, %v4965
    %v4968 = vunpack.c.l.s4 1966171168
    %v4969 = vunpack.c.0.s8 %v4968
    %v4970 = vlaneseq
    %v4971 = vshrl.u32 %v4970, 7
    %v4972 = vsub.s32 %v4969, %v4971
    %v4973 = vrot.slane %v4959, %v4972
    %v4974 = vcombine.low %v4966, %v4973
    %v4975 = vcombine.low %v4340, %v4354
    %v4976 = vcombine.low %v4362, %v4363
    %v4977 = vcombine.low %v4347, %v4387
    %v4978 = vcombine.low %v4401, %v4409
    %v4980 = vunpack.c.l.s4 1966171168
    %v4981 = vunpack.c.0.s8 %v4980
    %v4982 = vlaneseq
    %v4983 = vshrl.u32 %v4982, 7
    %v4984 = vsub.s32 %v4981, %v4983
    %v4985 = vrot.slane %v4975, %v4984
    %v4987 = vunpack.c.l.s4 1966171168
    %v4988 = vunpack.c.0.s8 %v4987
    %v4989 = vlaneseq
    %v4990 = vshrl.u32 %v4989, 7
    %v4991 = vsub.s32 %v4988, %v4990
    %v4992 = vrot.slane %v4976, %v4991
    %v4994 = vunpack.c.l.s4 1966171168
    %v4995 = vunpack.c.0.s8 %v4994
    %v4996 = vlaneseq
    %v4997 = vshrl.u32 %v4996, 7
    %v4998 = vsub.s32 %v4995, %v4997
    %v4999 = vrot.slane %v4977, %v4998
    %v5001 = vunpack.c.l.s4 1966171168
    %v5002 = vunpack.c.0.s8 %v5001
    %v5003 = vlaneseq
    %v5004 = vshrl.u32 %v5003, 7
    %v5005 = vsub.s32 %v5002, %v5004
    %v5006 = vrot.slane %v4978, %v5005
    %v5007 = vcombine.low %v4985, %v4992
    %v5008 = vcombine.low %v4999, %v5006
    %v5010 = vunpack.c.l.s4 1966171168
    %v5011 = vunpack.c.0.s8 %v5010
    %v5012 = vlaneseq
    %v5013 = vshrl.u32 %v5012, 7
    %v5014 = vsub.s32 %v5011, %v5013
    %v5015 = vrot.slane %v5007, %v5014
    %v5017 = vunpack.c.l.s4 1966171168
    %v5018 = vunpack.c.0.s8 %v5017
    %v5019 = vlaneseq
    %v5020 = vshrl.u32 %v5019, 7
    %v5021 = vsub.s32 %v5018, %v5020
    %v5022 = vrot.slane %v5008, %v5021
    %v5023 = vcombine.low %v5015, %v5022
    %v5024 = vcombine.low %v4411, %v4394
    %v5025 = vcombine.low %v4408, %v4410
    %v5026 = vcombine.low %v4412, %v4436
    %v5027 = vcombine.low %v4450, %v4458
    %v5029 = vunpack.c.l.s4 1966171168
    %v5030 = vunpack.c.0.s8 %v5029
    %v5031 = vlaneseq
    %v5032 = vshrl.u32 %v5031, 7
    %v5033 = vsub.s32 %v5030, %v5032
    %v5034 = vrot.slane %v5024, %v5033
    %v5036 = vunpack.c.l.s4 1966171168
    %v5037 = vunpack.c.0.s8 %v5036
    %v5038 = vlaneseq
    %v5039 = vshrl.u32 %v5038, 7
    %v5040 = vsub.s32 %v5037, %v5039
    %v5041 = vrot.slane %v5025, %v5040
    %v5043 = vunpack.c.l.s4 1966171168
    %v5044 = vunpack.c.0.s8 %v5043
    %v5045 = vlaneseq
    %v5046 = vshrl.u32 %v5045, 7
    %v5047 = vsub.s32 %v5044, %v5046
    %v5048 = vrot.slane %v5026, %v5047
    %v5050 = vunpack.c.l.s4 1966171168
    %v5051 = vunpack.c.0.s8 %v5050
    %v5052 = vlaneseq
    %v5053 = vshrl.u32 %v5052, 7
    %v5054 = vsub.s32 %v5051, %v5053
    %v5055 = vrot.slane %v5027, %v5054
    %v5056 = vcombine.low %v5034, %v5041
    %v5057 = vcombine.low %v5048, %v5055
    %v5059 = vunpack.c.l.s4 1966171168
    %v5060 = vunpack.c.0.s8 %v5059
    %v5061 = vlaneseq
    %v5062 = vshrl.u32 %v5061, 7
    %v5063 = vsub.s32 %v5060, %v5062
    %v5064 = vrot.slane %v5056, %v5063
    %v5066 = vunpack.c.l.s4 1966171168
    %v5067 = vunpack.c.0.s8 %v5066
    %v5068 = vlaneseq
    %v5069 = vshrl.u32 %v5068, 7
    %v5070 = vsub.s32 %v5067, %v5069
    %v5071 = vrot.slane %v5057, %v5070
    %v5072 = vcombine.low %v5064, %v5071
    %v5073 = vcombine.low %v4460, %v4443
    %v5074 = vcombine.low %v4457, %v4459
    %v5075 = vcombine.low %v4461, %v4485
    %v5076 = vcombine.low %v4499, %v4507
    %v5078 = vunpack.c.l.s4 1966171168
    %v5079 = vunpack.c.0.s8 %v5078
    %v5080 = vlaneseq
    %v5081 = vshrl.u32 %v5080, 7
    %v5082 = vsub.s32 %v5079, %v5081
    %v5083 = vrot.slane %v5073, %v5082
    %v5085 = vunpack.c.l.s4 1966171168
    %v5086 = vunpack.c.0.s8 %v5085
    %v5087 = vlaneseq
    %v5088 = vshrl.u32 %v5087, 7
    %v5089 = vsub.s32 %v5086, %v5088
    %v5090 = vrot.slane %v5074, %v5089
    %v5092 = vunpack.c.l.s4 1966171168
    %v5093 = vunpack.c.0.s8 %v5092
    %v5094 = vlaneseq
    %v5095 = vshrl.u32 %v5094, 7
    %v5096 = vsub.s32 %v5093, %v5095
    %v5097 = vrot.slane %v5075, %v5096
    %v5099 = vunpack.c.l.s4 1966171168
    %v5100 = vunpack.c.0.s8 %v5099
    %v5101 = vlaneseq
    %v5102 = vshrl.u32 %v5101, 7
    %v5103 = vsub.s32 %v5100, %v5102
    %v5104 = vrot.slane %v5076, %v5103
    %v5105 = vcombine.low %v5083, %v5090
    %v5106 = vcombine.low %v5097, %v5104
    %v5108 = vunpack.c.l.s4 1966171168
    %v5109 = vunpack.c.0.s8 %v5108
    %v5110 = vlaneseq
    %v5111 = vshrl.u32 %v5110, 7
    %v5112 = vsub.s32 %v5109, %v5111
    %v5113 = vrot.slane %v5105, %v5112
    %v5115 = vunpack.c.l.s4 1966171168
    %v5116 = vunpack.c.0.s8 %v5115
    %v5117 = vlaneseq
    %v5118 = vshrl.u32 %v5117, 7
    %v5119 = vsub.s32 %v5116, %v5118
    %v5120 = vrot.slane %v5106, %v5119
    %v5121 = vcombine.low %v5113, %v5120
    %v5122 = vcombine.low %v4508, %v4492
    %v5124 = vunpack.c.l.s4 1966171168
    %v5125 = vunpack.c.0.s8 %v5124
    %v5126 = vlaneseq
    %v5127 = vshrl.u32 %v5126, 7
    %v5128 = vsub.s32 %v5125, %v5127
    %v5129 = vrot.slane %v5122, %v5128
    %v5131 = vunpack.c.l.s4 1966171168
    %v5132 = vunpack.c.0.s8 %v5131
    %v5133 = vlaneseq
    %v5134 = vshrl.u32 %v5133, 7
    %v5135 = vsub.s32 %v5132, %v5134
    %v5136 = vrot.slane %v5129, %v5135
    %v5137 = vsel %vm4769, %v4925, 0
    %v5139 = vsel %vm4769, %v4974, 0
    %v5141 = vsel %vm4769, %v5023, 0
    %v5143 = vsel %vm4769, %v5072, 0
    %v5145 = vsel %vm4769, %v5121, 0
    %v5147 = vsel %vm4769, %v5136, 0
    %5149 = vmatprep.subr.mxu0 0.0
    %5150 = vmatpush1.msra.mxu0 0.0
    %5151 = vmatprep.subr.mxu0 0.0
    %5152 = vmatpush1.msra.mxu0 0.0
    %5153 = vmatprep.subr.mxu0 0.0
    %5154 = vmatpush1.msra.mxu0 0.0
    %5155 = vmatprep.subr.mxu0 0.0
    %5156 = vmatpush1.msra.mxu0 0.0
    %5157 = vmatprep.subr.mxu0 0.0
    %5158 = vmatpush1.msra.mxu0 0.0
    %5159 = vmatprep.subr.mxu0 0.0
    %5160 = vmatpush1.msra.mxu0 0.0
    %5161 = vmatprep.subr.mxu0 0.0
    %5162 = vmatpush1.msra.mxu0 0.0
    %5163 = vmatprep.subr.mxu0 0.0
    %5164 = vmatpush1.msra.mxu0 0.0
    %5165 = vmatprep.subr.mxu0 0.0
    %5166 = vmatpush1.msra.mxu0 %v4205
    %5167 = vmatprep.subr.mxu0 0.0
    %5168 = vmatpush1.msra.mxu0 %v4204
    %5169 = vmatprep.subr.mxu0 0.0
    %5170 = vmatpush1.msra.mxu0 %v4203
    %5171 = vmatprep.subr.mxu0 0.0
    %5172 = vmatpush1.msra.mxu0 %v4202
    %5173 = vmatprep.subr.mxu0 0.0
    %5174 = vmatpush1.msra.mxu0 %v4201
    %5175 = vmatprep.subr.mxu0 0.0
    %5176 = vmatpush1.msra.mxu0 %v4200
    %5177 = vmatprep.subr.mxu0 0.0
    %5178 = vmatpush1.msra.mxu0 %v4199
    %5179 = vmatprep.subr.mxu0 0.0
    %5180 = vmatpush1.msra.mxu0 %v4198
    %5181 = vmatprep.subr.mxu0 0.0
    %5182 = vmatpush2.msra.mxu0 0.0
    %5183 = vmatprep.subr.mxu0 0.0
    %5184 = vmatpush2.msra.mxu0 0.0
    %5185 = vmatprep.subr.mxu0 0.0
    %5186 = vmatpush2.msra.mxu0 0.0
    %5187 = vmatprep.subr.mxu0 0.0
    %5188 = vmatpush2.msra.mxu0 0.0
    %5189 = vmatprep.subr.mxu0 0.0
    %5190 = vmatpush2.msra.mxu0 0.0
    %5191 = vmatprep.subr.mxu0 0.0
    %5192 = vmatpush2.msra.mxu0 0.0
    %5193 = vmatprep.subr.mxu0 0.0
    %5194 = vmatpush2.msra.mxu0 0.0
    %5195 = vmatprep.subr.mxu0 0.0
    %5196 = vmatpush2.msra.mxu0 0.0
    %5197 = vmatprep.subr.mxu0 0.0
    %5198 = vmatpush2.msra.mxu0 0.0
    %5199 = vmatprep.subr.mxu0 0.0
    %5200 = vmatpush2.msra.mxu0 0.0
    %5201 = vmatprep.subr.mxu0 0.0
    %5202 = vmatpush2.msra.mxu0 0.0
    %5203 = vmatprep.subr.mxu0 0.0
    %5204 = vmatpush2.msra.mxu0 0.0
    %5205 = vmatprep.subr.mxu0 0.0
    %5206 = vmatpush2.msra.mxu0 0.0
    %5207 = vmatprep.subr.mxu0 0.0
    %5208 = vmatpush2.msra.mxu0 0.0
    %5209 = vmatprep.subr.mxu0 0.0
    %5210 = vmatpush2.msra.mxu0 0.0
    %5211 = vmatprep.subr.mxu0 0.0
    %5212 = vmatpush2.msra.mxu0 0.0
    %5213 = vmatprep.mubr.f32.mxu0 0.0
    %5214 = vmatmul.mubr.f32.gmra.mxu0 %v5137
    %v5215 = vpop.f32.mrf.mxu0
    %v5216 = vadd.f32 %v4849, %v5215
    %v5217 = vpop.f32.mrf.mxu0
    %5218 = vmatprep.mubr.f32.mxu0 0.0
    %5219 = vmatmul.mubr.f32.gmra.mxu0 %v5139
    %v5220 = vpop.f32.mrf.mxu0
    %v5221 = vadd.f32 %v4854, %v5220
    %v5222 = vpop.f32.mrf.mxu0
    %5223 = vmatprep.mubr.f32.mxu0 0.0
    %5224 = vmatmul.mubr.f32.gmra.mxu0 %v5141
    %v5225 = vpop.f32.mrf.mxu0
    %v5226 = vadd.f32 %v4859, %v5225
    %v5227 = vpop.f32.mrf.mxu0
    %5228 = vmatprep.mubr.f32.mxu0 0.0
    %5229 = vmatmul.mubr.f32.gmra.mxu0 %v5143
    %v5230 = vpop.f32.mrf.mxu0
    %v5231 = vadd.f32 %v4864, %v5230
    %v5232 = vpop.f32.mrf.mxu0
    %5233 = vmatprep.mubr.f32.mxu0 0.0
    %5234 = vmatmul.mubr.f32.gmra.mxu0 %v5145
    %v5235 = vpop.f32.mrf.mxu0
    %v5236 = vadd.f32 %v4869, %v5235
    %v5237 = vpop.f32.mrf.mxu0
    %5238 = vmatprep.mubr.f32.mxu0 0.0
    %5239 = vmatmul.mubr.f32.gmra.mxu0 %v5147
    %v5240 = vpop.f32.mrf.mxu0
    %v5241 = vadd.f32 %v4874, %v5240
    %v5242 = vpop.f32.mrf.mxu0
    %5243 = vdwg.mxu0
    %v5250 = vcombine.high %v5216, %v5216
    %v5252 = vunpack.c.l.s4 1966171168
    %v5253 = vunpack.c.0.s8 %v5252
    %v5254 = vlaneseq
    %v5255 = vshrl.u32 %v5254, 7
    %v5256 = vsub.s32 %v5253, %v5255
    %v5257 = vrot.slane %v5216, %v5256
    %v5259 = vunpack.c.l.s4 1966171168
    %v5260 = vunpack.c.0.s8 %v5259
    %v5261 = vlaneseq
    %v5262 = vshrl.u32 %v5261, 7
    %v5263 = vsub.s32 %v5260, %v5262
    %v5264 = vrot.slane %v5250, %v5263
    %v5265 = vcombine.high %v5257, %v5257
    %v5266 = vcombine.high %v5264, %v5264
    %v5268 = vunpack.c.l.s4 1966171168
    %v5269 = vunpack.c.0.s8 %v5268
    %v5270 = vlaneseq
    %v5271 = vshrl.u32 %v5270, 7
    %v5272 = vsub.s32 %v5269, %v5271
    %v5273 = vrot.slane %v5257, %v5272
    %v5275 = vunpack.c.l.s4 1966171168
    %v5276 = vunpack.c.0.s8 %v5275
    %v5277 = vlaneseq
    %v5278 = vshrl.u32 %v5277, 7
    %v5279 = vsub.s32 %v5276, %v5278
    %v5280 = vrot.slane %v5264, %v5279
    %v5282 = vunpack.c.l.s4 1966171168
    %v5283 = vunpack.c.0.s8 %v5282
    %v5284 = vlaneseq
    %v5285 = vshrl.u32 %v5284, 7
    %v5286 = vsub.s32 %v5283, %v5285
    %v5287 = vrot.slane %v5265, %v5286
    %v5289 = vunpack.c.l.s4 1966171168
    %v5290 = vunpack.c.0.s8 %v5289
    %v5291 = vlaneseq
    %v5292 = vshrl.u32 %v5291, 7
    %v5293 = vsub.s32 %v5290, %v5292
    %v5294 = vrot.slane %v5266, %v5293
    %v5295 = vcombine.high %v5273, %v5273
    %v5296 = vcombine.high %v5280, %v5280
    %v5297 = vcombine.high %v5287, %v5287
    %v5298 = vcombine.high %v5294, %v5294
    %v5299 = vcombine.high %v5221, %v5221
    %v5301 = vunpack.c.l.s4 1966171168
    %v5302 = vunpack.c.0.s8 %v5301
    %v5303 = vlaneseq
    %v5304 = vshrl.u32 %v5303, 7
    %v5305 = vsub.s32 %v5302, %v5304
    %v5306 = vrot.slane %v5221, %v5305
    %v5308 = vunpack.c.l.s4 1966171168
    %v5309 = vunpack.c.0.s8 %v5308
    %v5310 = vlaneseq
    %v5311 = vshrl.u32 %v5310, 7
    %v5312 = vsub.s32 %v5309, %v5311
    %v5313 = vrot.slane %v5299, %v5312
    %v5314 = vcombine.high %v5306, %v5306
    %v5315 = vcombine.high %v5313, %v5313
    %v5317 = vunpack.c.l.s4 1966171168
    %v5318 = vunpack.c.0.s8 %v5317
    %v5319 = vlaneseq
    %v5320 = vshrl.u32 %v5319, 7
    %v5321 = vsub.s32 %v5318, %v5320
    %v5322 = vrot.slane %v5306, %v5321
    %v5324 = vunpack.c.l.s4 1966171168
    %v5325 = vunpack.c.0.s8 %v5324
    %v5326 = vlaneseq
    %v5327 = vshrl.u32 %v5326, 7
    %v5328 = vsub.s32 %v5325, %v5327
    %v5329 = vrot.slane %v5313, %v5328
    %v5331 = vunpack.c.l.s4 1966171168
    %v5332 = vunpack.c.0.s8 %v5331
    %v5333 = vlaneseq
    %v5334 = vshrl.u32 %v5333, 7
    %v5335 = vsub.s32 %v5332, %v5334
    %v5336 = vrot.slane %v5314, %v5335
    %v5338 = vunpack.c.l.s4 1966171168
    %v5339 = vunpack.c.0.s8 %v5338
    %v5340 = vlaneseq
    %v5341 = vshrl.u32 %v5340, 7
    %v5342 = vsub.s32 %v5339, %v5341
    %v5343 = vrot.slane %v5315, %v5342
    %v5344 = vcombine.high %v5322, %v5322
    %v5345 = vcombine.high %v5329, %v5329
    %v5346 = vcombine.high %v5336, %v5336
    %v5347 = vcombine.high %v5343, %v5343
    %v5348 = vcombine.high %v5226, %v5226
    %v5350 = vunpack.c.l.s4 1966171168
    %v5351 = vunpack.c.0.s8 %v5350
    %v5352 = vlaneseq
    %v5353 = vshrl.u32 %v5352, 7
    %v5354 = vsub.s32 %v5351, %v5353
    %v5355 = vrot.slane %v5226, %v5354
    %v5357 = vunpack.c.l.s4 1966171168
    %v5358 = vunpack.c.0.s8 %v5357
    %v5359 = vlaneseq
    %v5360 = vshrl.u32 %v5359, 7
    %v5361 = vsub.s32 %v5358, %v5360
    %v5362 = vrot.slane %v5348, %v5361
    %v5363 = vcombine.high %v5355, %v5355
    %v5364 = vcombine.high %v5362, %v5362
    %v5366 = vunpack.c.l.s4 1966171168
    %v5367 = vunpack.c.0.s8 %v5366
    %v5368 = vlaneseq
    %v5369 = vshrl.u32 %v5368, 7
    %v5370 = vsub.s32 %v5367, %v5369
    %v5371 = vrot.slane %v5355, %v5370
    %v5373 = vunpack.c.l.s4 1966171168
    %v5374 = vunpack.c.0.s8 %v5373
    %v5375 = vlaneseq
    %v5376 = vshrl.u32 %v5375, 7
    %v5377 = vsub.s32 %v5374, %v5376
    %v5378 = vrot.slane %v5362, %v5377
    %v5380 = vunpack.c.l.s4 1966171168
    %v5381 = vunpack.c.0.s8 %v5380
    %v5382 = vlaneseq
    %v5383 = vshrl.u32 %v5382, 7
    %v5384 = vsub.s32 %v5381, %v5383
    %v5385 = vrot.slane %v5363, %v5384
    %v5387 = vunpack.c.l.s4 1966171168
    %v5388 = vunpack.c.0.s8 %v5387
    %v5389 = vlaneseq
    %v5390 = vshrl.u32 %v5389, 7
    %v5391 = vsub.s32 %v5388, %v5390
    %v5392 = vrot.slane %v5364, %v5391
    %v5393 = vcombine.high %v5371, %v5371
    %v5394 = vcombine.high %v5378, %v5378
    %v5395 = vcombine.high %v5385, %v5385
    %v5396 = vcombine.high %v5392, %v5392
    %v5397 = vcombine.high %v5231, %v5231
    %v5399 = vunpack.c.l.s4 1966171168
    %v5400 = vunpack.c.0.s8 %v5399
    %v5401 = vlaneseq
    %v5402 = vshrl.u32 %v5401, 7
    %v5403 = vsub.s32 %v5400, %v5402
    %v5404 = vrot.slane %v5231, %v5403
    %v5406 = vunpack.c.l.s4 1966171168
    %v5407 = vunpack.c.0.s8 %v5406
    %v5408 = vlaneseq
    %v5409 = vshrl.u32 %v5408, 7
    %v5410 = vsub.s32 %v5407, %v5409
    %v5411 = vrot.slane %v5397, %v5410
    %v5412 = vcombine.high %v5404, %v5404
    %v5413 = vcombine.high %v5411, %v5411
    %v5415 = vunpack.c.l.s4 1966171168
    %v5416 = vunpack.c.0.s8 %v5415
    %v5417 = vlaneseq
    %v5418 = vshrl.u32 %v5417, 7
    %v5419 = vsub.s32 %v5416, %v5418
    %v5420 = vrot.slane %v5404, %v5419
    %v5422 = vunpack.c.l.s4 1966171168
    %v5423 = vunpack.c.0.s8 %v5422
    %v5424 = vlaneseq
    %v5425 = vshrl.u32 %v5424, 7
    %v5426 = vsub.s32 %v5423, %v5425
    %v5427 = vrot.slane %v5411, %v5426
    %v5429 = vunpack.c.l.s4 1966171168
    %v5430 = vunpack.c.0.s8 %v5429
    %v5431 = vlaneseq
    %v5432 = vshrl.u32 %v5431, 7
    %v5433 = vsub.s32 %v5430, %v5432
    %v5434 = vrot.slane %v5412, %v5433
    %v5436 = vunpack.c.l.s4 1966171168
    %v5437 = vunpack.c.0.s8 %v5436
    %v5438 = vlaneseq
    %v5439 = vshrl.u32 %v5438, 7
    %v5440 = vsub.s32 %v5437, %v5439
    %v5441 = vrot.slane %v5413, %v5440
    %v5442 = vcombine.high %v5420, %v5420
    %v5443 = vcombine.high %v5427, %v5427
    %v5444 = vcombine.high %v5434, %v5434
    %v5445 = vcombine.high %v5441, %v5441
    %v5446 = vcombine.high %v5236, %v5236
    %v5448 = vunpack.c.l.s4 1966171168
    %v5449 = vunpack.c.0.s8 %v5448
    %v5450 = vlaneseq
    %v5451 = vshrl.u32 %v5450, 7
    %v5452 = vsub.s32 %v5449, %v5451
    %v5453 = vrot.slane %v5236, %v5452
    %v5455 = vunpack.c.l.s4 1966171168
    %v5456 = vunpack.c.0.s8 %v5455
    %v5457 = vlaneseq
    %v5458 = vshrl.u32 %v5457, 7
    %v5459 = vsub.s32 %v5456, %v5458
    %v5460 = vrot.slane %v5446, %v5459
    %v5461 = vcombine.high %v5453, %v5453
    %v5462 = vcombine.high %v5460, %v5460
    %v5464 = vunpack.c.l.s4 1966171168
    %v5465 = vunpack.c.0.s8 %v5464
    %v5466 = vlaneseq
    %v5467 = vshrl.u32 %v5466, 7
    %v5468 = vsub.s32 %v5465, %v5467
    %v5469 = vrot.slane %v5453, %v5468
    %v5471 = vunpack.c.l.s4 1966171168
    %v5472 = vunpack.c.0.s8 %v5471
    %v5473 = vlaneseq
    %v5474 = vshrl.u32 %v5473, 7
    %v5475 = vsub.s32 %v5472, %v5474
    %v5476 = vrot.slane %v5460, %v5475
    %v5478 = vunpack.c.l.s4 1966171168
    %v5479 = vunpack.c.0.s8 %v5478
    %v5480 = vlaneseq
    %v5481 = vshrl.u32 %v5480, 7
    %v5482 = vsub.s32 %v5479, %v5481
    %v5483 = vrot.slane %v5461, %v5482
    %v5485 = vunpack.c.l.s4 1966171168
    %v5486 = vunpack.c.0.s8 %v5485
    %v5487 = vlaneseq
    %v5488 = vshrl.u32 %v5487, 7
    %v5489 = vsub.s32 %v5486, %v5488
    %v5490 = vrot.slane %v5462, %v5489
    %v5491 = vcombine.high %v5469, %v5469
    %v5492 = vcombine.high %v5476, %v5476
    %v5493 = vcombine.high %v5483, %v5483
    %v5494 = vcombine.high %v5490, %v5490
    %v5496 = vunpack.c.l.s4 1966171168
    %v5497 = vunpack.c.0.s8 %v5496
    %v5498 = vlaneseq
    %v5499 = vshrl.u32 %v5498, 7
    %v5500 = vsub.s32 %v5497, %v5499
    %v5501 = vrot.slane %v5241, %v5500
    %v5502 = vcombine.high %v5501, %v5501
    %v5504 = vunpack.c.l.s4 1966171168
    %v5505 = vunpack.c.0.s8 %v5504
    %v5506 = vlaneseq
    %v5507 = vshrl.u32 %v5506, 7
    %v5508 = vsub.s32 %v5505, %v5507
    %v5509 = vrot.slane %v5501, %v5508
    %v5511 = vunpack.c.l.s4 1966171168
    %v5512 = vunpack.c.0.s8 %v5511
    %v5513 = vlaneseq
    %v5514 = vshrl.u32 %v5513, 7
    %v5515 = vsub.s32 %v5512, %v5514
    %v5516 = vrot.slane %v5502, %v5515
    %s5559 = scalar_lea.vmem [#allocation12], 128
    %v5560 = vld [vmem:[%s5559] sm:$0xff]
    %v5561 = vld [vmem:[%s5559 + $0x8] sm:$0xff]
    %v5562 = vld [vmem:[%s5559 + $0x10] sm:$0xff]
    %v5563 = vld [vmem:[%s5559 + $0x18] sm:$0xff]
    %v5564 = vld [vmem:[%s5559 + $0x20] sm:$0xff]
    %v5565 = vld [vmem:[%s5559 + $0x28] sm:$0xff]
    %v5566 = vld [vmem:[%s5559 + $0x30] sm:$0xff]
    %v5567 = vld [vmem:[%s5559 + $0x38] sm:$0xff]
    %v5568 = vcombine.high %v4347, %v4347
    %v5569 = vcombine.high %v4492, %v4492
    %v5570 = vcombine.low %v4894, %v4901
    %v5571 = vcombine.low %v4908, %v4936
    %v5573 = vunpack.c.l.s4 1966171168
    %v5574 = vunpack.c.0.s8 %v5573
    %v5575 = vlaneseq
    %v5576 = vshrl.u32 %v5575, 7
    %v5577 = vsub.s32 %v5574, %v5576
    %v5578 = vrot.slane %v5570, %v5577
    %v5580 = vunpack.c.l.s4 1966171168
    %v5581 = vunpack.c.0.s8 %v5580
    %v5582 = vlaneseq
    %v5583 = vshrl.u32 %v5582, 7
    %v5584 = vsub.s32 %v5581, %v5583
    %v5585 = vrot.slane %v5571, %v5584
    %v5586 = vcombine.low %v5578, %v5585
    %v5587 = vcombine.low %v4943, %v4950
    %v5588 = vcombine.low %v4957, %v4985
    %v5590 = vunpack.c.l.s4 1966171168
    %v5591 = vunpack.c.0.s8 %v5590
    %v5592 = vlaneseq
    %v5593 = vshrl.u32 %v5592, 7
    %v5594 = vsub.s32 %v5591, %v5593
    %v5595 = vrot.slane %v5587, %v5594
    %v5597 = vunpack.c.l.s4 1966171168
    %v5598 = vunpack.c.0.s8 %v5597
    %v5599 = vlaneseq
    %v5600 = vshrl.u32 %v5599, 7
    %v5601 = vsub.s32 %v5598, %v5600
    %v5602 = vrot.slane %v5588, %v5601
    %v5603 = vcombine.low %v5595, %v5602
    %v5604 = vcombine.low %v4347, %v4361
    %v5605 = vcombine.low %v5568, %v4409
    %v5607 = vunpack.c.l.s4 1966171168
    %v5608 = vunpack.c.0.s8 %v5607
    %v5609 = vlaneseq
    %v5610 = vshrl.u32 %v5609, 7
    %v5611 = vsub.s32 %v5608, %v5610
    %v5612 = vrot.slane %v5604, %v5611
    %v5614 = vunpack.c.l.s4 1966171168
    %v5615 = vunpack.c.0.s8 %v5614
    %v5616 = vlaneseq
    %v5617 = vshrl.u32 %v5616, 7
    %v5618 = vsub.s32 %v5615, %v5617
    %v5619 = vrot.slane %v5605, %v5618
    %v5620 = vcombine.low %v4992, %v5612
    %v5621 = vcombine.low %v5619, %v5034
    %v5623 = vunpack.c.l.s4 1966171168
    %v5624 = vunpack.c.0.s8 %v5623
    %v5625 = vlaneseq
    %v5626 = vshrl.u32 %v5625, 7
    %v5627 = vsub.s32 %v5624, %v5626
    %v5628 = vrot.slane %v5620, %v5627
    %v5630 = vunpack.c.l.s4 1966171168
    %v5631 = vunpack.c.0.s8 %v5630
    %v5632 = vlaneseq
    %v5633 = vshrl.u32 %v5632, 7
    %v5634 = vsub.s32 %v5631, %v5633
    %v5635 = vrot.slane %v5621, %v5634
    %v5636 = vcombine.low %v5628, %v5635
    %v5637 = vcombine.low %v5041, %v5048
    %v5638 = vcombine.low %v5055, %v5083
    %v5640 = vunpack.c.l.s4 1966171168
    %v5641 = vunpack.c.0.s8 %v5640
    %v5642 = vlaneseq
    %v5643 = vshrl.u32 %v5642, 7
    %v5644 = vsub.s32 %v5641, %v5643
    %v5645 = vrot.slane %v5637, %v5644
    %v5647 = vunpack.c.l.s4 1966171168
    %v5648 = vunpack.c.0.s8 %v5647
    %v5649 = vlaneseq
    %v5650 = vshrl.u32 %v5649, 7
    %v5651 = vsub.s32 %v5648, %v5650
    %v5652 = vrot.slane %v5638, %v5651
    %v5653 = vcombine.low %v5645, %v5652
    %v5654 = vcombine.low %v5090, %v5097
    %v5655 = vcombine.low %v5104, %v5129
    %v5657 = vunpack.c.l.s4 1966171168
    %v5658 = vunpack.c.0.s8 %v5657
    %v5659 = vlaneseq
    %v5660 = vshrl.u32 %v5659, 7
    %v5661 = vsub.s32 %v5658, %v5660
    %v5662 = vrot.slane %v5654, %v5661
    %v5664 = vunpack.c.l.s4 1966171168
    %v5665 = vunpack.c.0.s8 %v5664
    %v5666 = vlaneseq
    %v5667 = vshrl.u32 %v5666, 7
    %v5668 = vsub.s32 %v5665, %v5667
    %v5669 = vrot.slane %v5655, %v5668
    %v5670 = vcombine.low %v5662, %v5669
    %v5671 = vcombine.low %v4506, %v5569
    %v5673 = vunpack.c.l.s4 1966171168
    %v5674 = vunpack.c.0.s8 %v5673
    %v5675 = vlaneseq
    %v5676 = vshrl.u32 %v5675, 7
    %v5677 = vsub.s32 %v5674, %v5676
    %v5678 = vrot.slane %v5671, %v5677
    %v5680 = vunpack.c.l.s4 1966171168
    %v5681 = vunpack.c.0.s8 %v5680
    %v5682 = vlaneseq
    %v5683 = vshrl.u32 %v5682, 7
    %v5684 = vsub.s32 %v5681, %v5683
    %v5685 = vrot.slane %v5678, %v5684
    %v5686 = vsel %vm4769, %v5586, 0
    %v5688 = vsel %vm4769, %v5603, 0
    %v5690 = vsel %vm4769, %v5636, 0
    %v5692 = vsel %vm4769, %v5653, 0
    %v5694 = vsel %vm4769, %v5670, 0
    %v5696 = vsel %vm4769, %v5685, 0
    %5698 = vmatprep.subr.mxu0 0.0
    %5699 = vmatpush1.msra.mxu0 0.0
    %5700 = vmatprep.subr.mxu0 0.0
    %5701 = vmatpush1.msra.mxu0 0.0
    %5702 = vmatprep.subr.mxu0 0.0
    %5703 = vmatpush1.msra.mxu0 0.0
    %5704 = vmatprep.subr.mxu0 0.0
    %5705 = vmatpush1.msra.mxu0 0.0
    %5706 = vmatprep.subr.mxu0 0.0
    %5707 = vmatpush1.msra.mxu0 0.0
    %5708 = vmatprep.subr.mxu0 0.0
    %5709 = vmatpush1.msra.mxu0 0.0
    %5710 = vmatprep.subr.mxu0 0.0
    %5711 = vmatpush1.msra.mxu0 0.0
    %5712 = vmatprep.subr.mxu0 0.0
    %5713 = vmatpush1.msra.mxu0 0.0
    %5714 = vmatprep.subr.mxu0 0.0
    %5715 = vmatpush1.msra.mxu0 %v5567
    %5716 = vmatprep.subr.mxu0 0.0
    %5717 = vmatpush1.msra.mxu0 %v5566
    %5718 = vmatprep.subr.mxu0 0.0
    %5719 = vmatpush1.msra.mxu0 %v5565
    %5720 = vmatprep.subr.mxu0 0.0
    %5721 = vmatpush1.msra.mxu0 %v5564
    %5722 = vmatprep.subr.mxu0 0.0
    %5723 = vmatpush1.msra.mxu0 %v5563
    %5724 = vmatprep.subr.mxu0 0.0
    %5725 = vmatpush1.msra.mxu0 %v5562
    %5726 = vmatprep.subr.mxu0 0.0
    %5727 = vmatpush1.msra.mxu0 %v5561
    %5728 = vmatprep.subr.mxu0 0.0
    %5729 = vmatpush1.msra.mxu0 %v5560
    %5730 = vmatprep.subr.mxu0 0.0
    %5731 = vmatpush2.msra.mxu0 0.0
    %5732 = vmatprep.subr.mxu0 0.0
    %5733 = vmatpush2.msra.mxu0 0.0
    %5734 = vmatprep.subr.mxu0 0.0
    %5735 = vmatpush2.msra.mxu0 0.0
    %5736 = vmatprep.subr.mxu0 0.0
    %5737 = vmatpush2.msra.mxu0 0.0
    %5738 = vmatprep.subr.mxu0 0.0
    %5739 = vmatpush2.msra.mxu0 0.0
    %5740 = vmatprep.subr.mxu0 0.0
    %5741 = vmatpush2.msra.mxu0 0.0
    %5742 = vmatprep.subr.mxu0 0.0
    %5743 = vmatpush2.msra.mxu0 0.0
    %5744 = vmatprep.subr.mxu0 0.0
    %5745 = vmatpush2.msra.mxu0 0.0
    %5746 = vmatprep.subr.mxu0 0.0
    %5747 = vmatpush2.msra.mxu0 0.0
    %5748 = vmatprep.subr.mxu0 0.0
    %5749 = vmatpush2.msra.mxu0 0.0
    %5750 = vmatprep.subr.mxu0 0.0
    %5751 = vmatpush2.msra.mxu0 0.0
    %5752 = vmatprep.subr.mxu0 0.0
    %5753 = vmatpush2.msra.mxu0 0.0
    %5754 = vmatprep.subr.mxu0 0.0
    %5755 = vmatpush2.msra.mxu0 0.0
    %5756 = vmatprep.subr.mxu0 0.0
    %5757 = vmatpush2.msra.mxu0 0.0
    %5758 = vmatprep.subr.mxu0 0.0
    %5759 = vmatpush2.msra.mxu0 0.0
    %5760 = vmatprep.subr.mxu0 0.0
    %5761 = vmatpush2.msra.mxu0 0.0
    %5762 = vmatprep.mubr.f32.mxu0 0.0
    %5763 = vmatmul.mubr.f32.gmra.mxu0 %v5686
    %v5764 = vpop.f32.mrf.mxu0
    %v5765 = vadd.f32 0.0, %v5764
    %v5766 = vpop.f32.mrf.mxu0
    %5767 = vmatprep.mubr.f32.mxu0 0.0
    %5768 = vmatmul.mubr.f32.gmra.mxu0 %v5688
    %v5769 = vpop.f32.mrf.mxu0
    %v5770 = vadd.f32 0.0, %v5769
    %v5771 = vpop.f32.mrf.mxu0
    %5772 = vmatprep.mubr.f32.mxu0 0.0
    %5773 = vmatmul.mubr.f32.gmra.mxu0 %v5690
    %v5774 = vpop.f32.mrf.mxu0
    %v5775 = vadd.f32 0.0, %v5774
    %v5776 = vpop.f32.mrf.mxu0
    %5777 = vmatprep.mubr.f32.mxu0 0.0
    %5778 = vmatmul.mubr.f32.gmra.mxu0 %v5692
    %v5779 = vpop.f32.mrf.mxu0
    %v5780 = vadd.f32 0.0, %v5779
    %v5781 = vpop.f32.mrf.mxu0
    %5782 = vmatprep.mubr.f32.mxu0 0.0
    %5783 = vmatmul.mubr.f32.gmra.mxu0 %v5694
    %v5784 = vpop.f32.mrf.mxu0
    %v5785 = vadd.f32 0.0, %v5784
    %v5786 = vpop.f32.mrf.mxu0
    %5787 = vmatprep.mubr.f32.mxu0 0.0
    %5788 = vmatmul.mubr.f32.gmra.mxu0 %v5696
    %v5789 = vpop.f32.mrf.mxu0
    %v5790 = vadd.f32 0.0, %v5789
    %v5791 = vpop.f32.mrf.mxu0
    %5792 = vdwg.mxu0
    %v5799 = vcombine.high %v5765, %v5765
    %v5801 = vunpack.c.l.s4 1966171168
    %v5802 = vunpack.c.0.s8 %v5801
    %v5803 = vlaneseq
    %v5804 = vshrl.u32 %v5803, 7
    %v5805 = vsub.s32 %v5802, %v5804
    %v5806 = vrot.slane %v5765, %v5805
    %v5808 = vunpack.c.l.s4 1966171168
    %v5809 = vunpack.c.0.s8 %v5808
    %v5810 = vlaneseq
    %v5811 = vshrl.u32 %v5810, 7
    %v5812 = vsub.s32 %v5809, %v5811
    %v5813 = vrot.slane %v5799, %v5812
    %v5814 = vcombine.high %v5806, %v5806
    %v5815 = vcombine.high %v5813, %v5813
    %v5817 = vunpack.c.l.s4 1966171168
    %v5818 = vunpack.c.0.s8 %v5817
    %v5819 = vlaneseq
    %v5820 = vshrl.u32 %v5819, 7
    %v5821 = vsub.s32 %v5818, %v5820
    %v5822 = vrot.slane %v5806, %v5821
    %v5824 = vunpack.c.l.s4 1966171168
    %v5825 = vunpack.c.0.s8 %v5824
    %v5826 = vlaneseq
    %v5827 = vshrl.u32 %v5826, 7
    %v5828 = vsub.s32 %v5825, %v5827
    %v5829 = vrot.slane %v5813, %v5828
    %v5831 = vunpack.c.l.s4 1966171168
    %v5832 = vunpack.c.0.s8 %v5831
    %v5833 = vlaneseq
    %v5834 = vshrl.u32 %v5833, 7
    %v5835 = vsub.s32 %v5832, %v5834
    %v5836 = vrot.slane %v5814, %v5835
    %v5838 = vunpack.c.l.s4 1966171168
    %v5839 = vunpack.c.0.s8 %v5838
    %v5840 = vlaneseq
    %v5841 = vshrl.u32 %v5840, 7
    %v5842 = vsub.s32 %v5839, %v5841
    %v5843 = vrot.slane %v5815, %v5842
    %v5844 = vcombine.high %v5822, %v5822
    %v5845 = vcombine.high %v5829, %v5829
    %v5846 = vcombine.high %v5836, %v5836
    %v5847 = vcombine.high %v5843, %v5843
    %v5848 = vcombine.high %v5770, %v5770
    %v5850 = vunpack.c.l.s4 1966171168
    %v5851 = vunpack.c.0.s8 %v5850
    %v5852 = vlaneseq
    %v5853 = vshrl.u32 %v5852, 7
    %v5854 = vsub.s32 %v5851, %v5853
    %v5855 = vrot.slane %v5770, %v5854
    %v5857 = vunpack.c.l.s4 1966171168
    %v5858 = vunpack.c.0.s8 %v5857
    %v5859 = vlaneseq
    %v5860 = vshrl.u32 %v5859, 7
    %v5861 = vsub.s32 %v5858, %v5860
    %v5862 = vrot.slane %v5848, %v5861
    %v5863 = vcombine.high %v5855, %v5855
    %v5864 = vcombine.high %v5862, %v5862
    %v5866 = vunpack.c.l.s4 1966171168
    %v5867 = vunpack.c.0.s8 %v5866
    %v5868 = vlaneseq
    %v5869 = vshrl.u32 %v5868, 7
    %v5870 = vsub.s32 %v5867, %v5869
    %v5871 = vrot.slane %v5855, %v5870
    %v5873 = vunpack.c.l.s4 1966171168
    %v5874 = vunpack.c.0.s8 %v5873
    %v5875 = vlaneseq
    %v5876 = vshrl.u32 %v5875, 7
    %v5877 = vsub.s32 %v5874, %v5876
    %v5878 = vrot.slane %v5862, %v5877
    %v5880 = vunpack.c.l.s4 1966171168
    %v5881 = vunpack.c.0.s8 %v5880
    %v5882 = vlaneseq
    %v5883 = vshrl.u32 %v5882, 7
    %v5884 = vsub.s32 %v5881, %v5883
    %v5885 = vrot.slane %v5863, %v5884
    %v5887 = vunpack.c.l.s4 1966171168
    %v5888 = vunpack.c.0.s8 %v5887
    %v5889 = vlaneseq
    %v5890 = vshrl.u32 %v5889, 7
    %v5891 = vsub.s32 %v5888, %v5890
    %v5892 = vrot.slane %v5864, %v5891
    %v5893 = vcombine.high %v5871, %v5871
    %v5894 = vcombine.high %v5878, %v5878
    %v5895 = vcombine.high %v5885, %v5885
    %v5896 = vcombine.high %v5892, %v5892
    %v5897 = vcombine.high %v5775, %v5775
    %v5899 = vunpack.c.l.s4 1966171168
    %v5900 = vunpack.c.0.s8 %v5899
    %v5901 = vlaneseq
    %v5902 = vshrl.u32 %v5901, 7
    %v5903 = vsub.s32 %v5900, %v5902
    %v5904 = vrot.slane %v5775, %v5903
    %v5906 = vunpack.c.l.s4 1966171168
    %v5907 = vunpack.c.0.s8 %v5906
    %v5908 = vlaneseq
    %v5909 = vshrl.u32 %v5908, 7
    %v5910 = vsub.s32 %v5907, %v5909
    %v5911 = vrot.slane %v5897, %v5910
    %v5912 = vcombine.high %v5904, %v5904
    %v5913 = vcombine.high %v5911, %v5911
    %v5915 = vunpack.c.l.s4 1966171168
    %v5916 = vunpack.c.0.s8 %v5915
    %v5917 = vlaneseq
    %v5918 = vshrl.u32 %v5917, 7
    %v5919 = vsub.s32 %v5916, %v5918
    %v5920 = vrot.slane %v5904, %v5919
    %v5922 = vunpack.c.l.s4 1966171168
    %v5923 = vunpack.c.0.s8 %v5922
    %v5924 = vlaneseq
    %v5925 = vshrl.u32 %v5924, 7
    %v5926 = vsub.s32 %v5923, %v5925
    %v5927 = vrot.slane %v5911, %v5926
    %v5929 = vunpack.c.l.s4 1966171168
    %v5930 = vunpack.c.0.s8 %v5929
    %v5931 = vlaneseq
    %v5932 = vshrl.u32 %v5931, 7
    %v5933 = vsub.s32 %v5930, %v5932
    %v5934 = vrot.slane %v5912, %v5933
    %v5936 = vunpack.c.l.s4 1966171168
    %v5937 = vunpack.c.0.s8 %v5936
    %v5938 = vlaneseq
    %v5939 = vshrl.u32 %v5938, 7
    %v5940 = vsub.s32 %v5937, %v5939
    %v5941 = vrot.slane %v5913, %v5940
    %v5942 = vcombine.high %v5920, %v5920
    %v5943 = vcombine.high %v5927, %v5927
    %v5944 = vcombine.high %v5934, %v5934
    %v5945 = vcombine.high %v5941, %v5941
    %v5946 = vcombine.high %v5780, %v5780
    %v5948 = vunpack.c.l.s4 1966171168
    %v5949 = vunpack.c.0.s8 %v5948
    %v5950 = vlaneseq
    %v5951 = vshrl.u32 %v5950, 7
    %v5952 = vsub.s32 %v5949, %v5951
    %v5953 = vrot.slane %v5780, %v5952
    %v5955 = vunpack.c.l.s4 1966171168
    %v5956 = vunpack.c.0.s8 %v5955
    %v5957 = vlaneseq
    %v5958 = vshrl.u32 %v5957, 7
    %v5959 = vsub.s32 %v5956, %v5958
    %v5960 = vrot.slane %v5946, %v5959
    %v5961 = vcombine.high %v5953, %v5953
    %v5962 = vcombine.high %v5960, %v5960
    %v5964 = vunpack.c.l.s4 1966171168
    %v5965 = vunpack.c.0.s8 %v5964
    %v5966 = vlaneseq
    %v5967 = vshrl.u32 %v5966, 7
    %v5968 = vsub.s32 %v5965, %v5967
    %v5969 = vrot.slane %v5953, %v5968
    %v5971 = vunpack.c.l.s4 1966171168
    %v5972 = vunpack.c.0.s8 %v5971
    %v5973 = vlaneseq
    %v5974 = vshrl.u32 %v5973, 7
    %v5975 = vsub.s32 %v5972, %v5974
    %v5976 = vrot.slane %v5960, %v5975
    %v5978 = vunpack.c.l.s4 1966171168
    %v5979 = vunpack.c.0.s8 %v5978
    %v5980 = vlaneseq
    %v5981 = vshrl.u32 %v5980, 7
    %v5982 = vsub.s32 %v5979, %v5981
    %v5983 = vrot.slane %v5961, %v5982
    %v5985 = vunpack.c.l.s4 1966171168
    %v5986 = vunpack.c.0.s8 %v5985
    %v5987 = vlaneseq
    %v5988 = vshrl.u32 %v5987, 7
    %v5989 = vsub.s32 %v5986, %v5988
    %v5990 = vrot.slane %v5962, %v5989
    %v5991 = vcombine.high %v5969, %v5969
    %v5992 = vcombine.high %v5976, %v5976
    %v5993 = vcombine.high %v5983, %v5983
    %v5994 = vcombine.high %v5990, %v5990
    %v5995 = vcombine.high %v5785, %v5785
    %v5997 = vunpack.c.l.s4 1966171168
    %v5998 = vunpack.c.0.s8 %v5997
    %v5999 = vlaneseq
    %v6000 = vshrl.u32 %v5999, 7
    %v6001 = vsub.s32 %v5998, %v6000
    %v6002 = vrot.slane %v5785, %v6001
    %v6004 = vunpack.c.l.s4 1966171168
    %v6005 = vunpack.c.0.s8 %v6004
    %v6006 = vlaneseq
    %v6007 = vshrl.u32 %v6006, 7
    %v6008 = vsub.s32 %v6005, %v6007
    %v6009 = vrot.slane %v5995, %v6008
    %v6010 = vcombine.high %v6002, %v6002
    %v6011 = vcombine.high %v6009, %v6009
    %v6013 = vunpack.c.l.s4 1966171168
    %v6014 = vunpack.c.0.s8 %v6013
    %v6015 = vlaneseq
    %v6016 = vshrl.u32 %v6015, 7
    %v6017 = vsub.s32 %v6014, %v6016
    %v6018 = vrot.slane %v6002, %v6017
    %v6020 = vunpack.c.l.s4 1966171168
    %v6021 = vunpack.c.0.s8 %v6020
    %v6022 = vlaneseq
    %v6023 = vshrl.u32 %v6022, 7
    %v6024 = vsub.s32 %v6021, %v6023
    %v6025 = vrot.slane %v6009, %v6024
    %v6027 = vunpack.c.l.s4 1966171168
    %v6028 = vunpack.c.0.s8 %v6027
    %v6029 = vlaneseq
    %v6030 = vshrl.u32 %v6029, 7
    %v6031 = vsub.s32 %v6028, %v6030
    %v6032 = vrot.slane %v6010, %v6031
    %v6034 = vunpack.c.l.s4 1966171168
    %v6035 = vunpack.c.0.s8 %v6034
    %v6036 = vlaneseq
    %v6037 = vshrl.u32 %v6036, 7
    %v6038 = vsub.s32 %v6035, %v6037
    %v6039 = vrot.slane %v6011, %v6038
    %v6040 = vcombine.high %v6018, %v6018
    %v6041 = vcombine.high %v6025, %v6025
    %v6042 = vcombine.high %v6032, %v6032
    %v6043 = vcombine.high %v6039, %v6039
    %v6045 = vunpack.c.l.s4 1966171168
    %v6046 = vunpack.c.0.s8 %v6045
    %v6047 = vlaneseq
    %v6048 = vshrl.u32 %v6047, 7
    %v6049 = vsub.s32 %v6046, %v6048
    %v6050 = vrot.slane %v5790, %v6049
    %v6051 = vcombine.high %v6050, %v6050
    %v6053 = vunpack.c.l.s4 1966171168
    %v6054 = vunpack.c.0.s8 %v6053
    %v6055 = vlaneseq
    %v6056 = vshrl.u32 %v6055, 7
    %v6057 = vsub.s32 %v6054, %v6056
    %v6058 = vrot.slane %v6050, %v6057
    %v6060 = vunpack.c.l.s4 1966171168
    %v6061 = vunpack.c.0.s8 %v6060
    %v6062 = vlaneseq
    %v6063 = vshrl.u32 %v6062, 7
    %v6064 = vsub.s32 %v6061, %v6063
    %v6065 = vrot.slane %v6051, %v6064
    %v6108 = vadd.f32 %v5273, %v5822
    %v6109 = vadd.f32 %v5287, %v5836
    %v6110 = vadd.f32 %v5295, %v5844
    %v6111 = vadd.f32 %v5297, %v5846
    %v6112 = vadd.f32 %v5280, %v5829
    %v6113 = vadd.f32 %v5294, %v5843
    %v6114 = vadd.f32 %v5296, %v5845
    %v6115 = vadd.f32 %v5298, %v5847
    %v6116 = vadd.f32 %v5322, %v5871
    %v6117 = vadd.f32 %v5336, %v5885
    %v6118 = vadd.f32 %v5344, %v5893
    %v6119 = vadd.f32 %v5346, %v5895
    %v6120 = vadd.f32 %v5329, %v5878
    %v6121 = vadd.f32 %v5343, %v5892
    %v6122 = vadd.f32 %v5345, %v5894
    %v6123 = vadd.f32 %v5347, %v5896
    %v6124 = vadd.f32 %v5371, %v5920
    %v6125 = vadd.f32 %v5385, %v5934
    %v6126 = vadd.f32 %v5393, %v5942
    %v6127 = vadd.f32 %v5395, %v5944
    %v6128 = vadd.f32 %v5378, %v5927
    %v6129 = vadd.f32 %v5392, %v5941
    %v6130 = vadd.f32 %v5394, %v5943
    %v6131 = vadd.f32 %v5396, %v5945
    %v6132 = vadd.f32 %v5420, %v5969
    %v6133 = vadd.f32 %v5434, %v5983
    %v6134 = vadd.f32 %v5442, %v5991
    %v6135 = vadd.f32 %v5444, %v5993
    %v6136 = vadd.f32 %v5427, %v5976
    %v6137 = vadd.f32 %v5441, %v5990
    %v6138 = vadd.f32 %v5443, %v5992
    %v6139 = vadd.f32 %v5445, %v5994
    %v6140 = vadd.f32 %v5469, %v6018
    %v6141 = vadd.f32 %v5483, %v6032
    %v6142 = vadd.f32 %v5491, %v6040
    %v6143 = vadd.f32 %v5493, %v6042
    %v6144 = vadd.f32 %v5476, %v6025
    %v6145 = vadd.f32 %v5490, %v6039
    %v6146 = vadd.f32 %v5492, %v6041
    %v6147 = vadd.f32 %v5494, %v6043
    %v6148 = vadd.f32 %v5509, %v6058
    %v6149 = vadd.f32 %v5516, %v6065
    %v6150 = vld [vmem:[#allocation13] sm:$0x1]
    %v6152 = vlaneseq
    %v6153 = vshrl.u32 %v6152, 7
    %v6154 = vsub.s32 0, %v6153
    %v6155 = vrot.slane %v6150, %v6154
    %v6156 = vcombine.high %v6155, %v6155
    %v6158 = vunpack.c.l.s4 1966171168
    %v6159 = vunpack.c.0.s8 %v6158
    %v6160 = vlaneseq
    %v6161 = vshrl.u32 %v6160, 7
    %v6162 = vsub.s32 %v6159, %v6161
    %v6163 = vrot.slane %v6155, %v6162
    %v6165 = vunpack.c.l.s4 1966171168
    %v6166 = vunpack.c.0.s8 %v6165
    %v6167 = vlaneseq
    %v6168 = vshrl.u32 %v6167, 7
    %v6169 = vsub.s32 %v6166, %v6168
    %v6170 = vrot.slane %v6156, %v6169
    %v6171 = vcombine.high %v6163, %v6163
    %v6172 = vcombine.high %v6170, %v6170
    %v6174 = vunpack.c.l.s4 1966171168
    %v6175 = vunpack.c.0.s8 %v6174
    %v6176 = vlaneseq
    %v6177 = vshrl.u32 %v6176, 7
    %v6178 = vsub.s32 %v6175, %v6177
    %v6179 = vrot.slane %v6163, %v6178
    %v6181 = vunpack.c.l.s4 1966171168
    %v6182 = vunpack.c.0.s8 %v6181
    %v6183 = vlaneseq
    %v6184 = vshrl.u32 %v6183, 7
    %v6185 = vsub.s32 %v6182, %v6184
    %v6186 = vrot.slane %v6170, %v6185
    %v6188 = vunpack.c.l.s4 1966171168
    %v6189 = vunpack.c.0.s8 %v6188
    %v6190 = vlaneseq
    %v6191 = vshrl.u32 %v6190, 7
    %v6192 = vsub.s32 %v6189, %v6191
    %v6193 = vrot.slane %v6171, %v6192
    %v6195 = vunpack.c.l.s4 1966171168
    %v6196 = vunpack.c.0.s8 %v6195
    %v6197 = vlaneseq
    %v6198 = vshrl.u32 %v6197, 7
    %v6199 = vsub.s32 %v6196, %v6198
    %v6200 = vrot.slane %v6172, %v6199
    %v6201 = vcombine.high %v6179, %v6179
    %v6202 = vcombine.high %v6186, %v6186
    %v6203 = vcombine.high %v6193, %v6193
    %v6204 = vcombine.high %v6200, %v6200
    %v6213 = vadd.f32 %v6108, %v6179
    %v6214 = vadd.f32 %v6109, %v6193
    %v6215 = vadd.f32 %v6110, %v6201
    %v6216 = vadd.f32 %v6111, %v6203
    %v6217 = vadd.f32 %v6112, %v6186
    %v6218 = vadd.f32 %v6113, %v6200
    %v6219 = vadd.f32 %v6114, %v6202
    %v6220 = vadd.f32 %v6115, %v6204
    %v6221 = vadd.f32 %v6116, %v6179
    %v6222 = vadd.f32 %v6117, %v6193
    %v6223 = vadd.f32 %v6118, %v6201
    %v6224 = vadd.f32 %v6119, %v6203
    %v6225 = vadd.f32 %v6120, %v6186
    %v6226 = vadd.f32 %v6121, %v6200
    %v6227 = vadd.f32 %v6122, %v6202
    %v6228 = vadd.f32 %v6123, %v6204
    %v6229 = vadd.f32 %v6124, %v6179
    %v6230 = vadd.f32 %v6125, %v6193
    %v6231 = vadd.f32 %v6126, %v6201
    %v6232 = vadd.f32 %v6127, %v6203
    %v6233 = vadd.f32 %v6128, %v6186
    %v6234 = vadd.f32 %v6129, %v6179
    %v6235 = vadd.f32 %v6130, %v6193
    %v6236 = vadd.f32 %v6131, %v6201
    %v6237 = vadd.f32 %v6132, %v6203
    %v6238 = vadd.f32 %v6133, %v6186
    %v6239 = vadd.f32 %v6134, %v6200
    %v6240 = vadd.f32 %v6135, %v6202
    %v6241 = vadd.f32 %v6136, %v6204
    %v6242 = vadd.f32 %v6137, %v6179
    %v6243 = vadd.f32 %v6138, %v6193
    %v6244 = vadd.f32 %v6139, %v6201
    %v6245 = vadd.f32 %v6140, %v6203
    %v6246 = vadd.f32 %v6141, %v6186
    %v6247 = vadd.f32 %v6142, %v6200
    %v6248 = vadd.f32 %v6143, %v6202
    %v6249 = vadd.f32 %v6144, %v6204
    %v6250 = vadd.f32 %v6145, %v6179
    %v6251 = vadd.f32 %v6146, %v6193
    %v6252 = vadd.f32 %v6147, %v6201
    %v6253 = vadd.f32 %v6148, %v6203
    %v6254 = vadd.f32 %v6149, %v6186
    %v6255 = vmax.f32 %v6213, 0.0
    %v6256 = vmax.f32 %v6214, 0.0
    %v6257 = vmax.f32 %v6215, 0.0
    %v6258 = vmax.f32 %v6216, 0.0
    %v6259 = vmax.f32 %v6217, 0.0
    %v6260 = vmax.f32 %v6218, 0.0
    %v6261 = vmax.f32 %v6219, 0.0
    %v6262 = vmax.f32 %v6220, 0.0
    %v6263 = vmax.f32 %v6221, 0.0
    %v6264 = vmax.f32 %v6222, 0.0
    %v6265 = vmax.f32 %v6223, 0.0
    %v6266 = vmax.f32 %v6224, 0.0
    %v6267 = vmax.f32 %v6225, 0.0
    %v6268 = vmax.f32 %v6226, 0.0
    %v6269 = vmax.f32 %v6227, 0.0
    %v6270 = vmax.f32 %v6228, 0.0
    %v6271 = vmax.f32 %v6229, 0.0
    %v6272 = vmax.f32 %v6230, 0.0
    %v6273 = vmax.f32 %v6231, 0.0
    %v6274 = vmax.f32 %v6232, 0.0
    %v6275 = vmax.f32 %v6233, 0.0
    %v6276 = vmax.f32 %v6234, 0.0
    %v6277 = vmax.f32 %v6235, 0.0
    %v6278 = vmax.f32 %v6236, 0.0
    %v6279 = vmax.f32 %v6237, 0.0
    %v6280 = vmax.f32 %v6238, 0.0
    %v6281 = vmax.f32 %v6239, 0.0
    %v6282 = vmax.f32 %v6240, 0.0
    %v6283 = vmax.f32 %v6241, 0.0
    %v6284 = vmax.f32 %v6242, 0.0
    %v6285 = vmax.f32 %v6243, 0.0
    %v6286 = vmax.f32 %v6244, 0.0
    %v6287 = vmax.f32 %v6245, 0.0
    %v6288 = vmax.f32 %v6246, 0.0
    %v6289 = vmax.f32 %v6247, 0.0
    %v6290 = vmax.f32 %v6248, 0.0
    %v6291 = vmax.f32 %v6249, 0.0
    %v6292 = vmax.f32 %v6250, 0.0
    %v6293 = vmax.f32 %v6251, 0.0
    %v6294 = vmax.f32 %v6252, 0.0
    %v6295 = vmax.f32 %v6253, 0.0
    %v6296 = vmax.f32 %v6254, 0.0
    %s6297 = smul.u32 4, 21
    %s6298 = smul.u32 %s6297, 16
    %s6299 = smul.u32 %s6298, 2
    %s6300 = sshll.u32 %s6299, 4
    %6301 = dma.done [#allocation3], %s6300
    %v6344 = vcombine.low %v6255, %v6256
    %v6345 = vcombine.low %v6257, %v6258
    %v6346 = vcombine.low %v6259, %v6260
    %v6347 = vcombine.low %v6261, %v6262
    %v6349 = vunpack.c.l.s4 1966171168
    %v6350 = vunpack.c.0.s8 %v6349
    %v6351 = vlaneseq
    %v6352 = vshrl.u32 %v6351, 7
    %v6353 = vsub.s32 %v6350, %v6352
    %v6354 = vrot.slane %v6344, %v6353
    %v6356 = vunpack.c.l.s4 1966171168
    %v6357 = vunpack.c.0.s8 %v6356
    %v6358 = vlaneseq
    %v6359 = vshrl.u32 %v6358, 7
    %v6360 = vsub.s32 %v6357, %v6359
    %v6361 = vrot.slane %v6345, %v6360
    %v6363 = vunpack.c.l.s4 1966171168
    %v6364 = vunpack.c.0.s8 %v6363
    %v6365 = vlaneseq
    %v6366 = vshrl.u32 %v6365, 7
    %v6367 = vsub.s32 %v6364, %v6366
    %v6368 = vrot.slane %v6346, %v6367
    %v6370 = vunpack.c.l.s4 1966171168
    %v6371 = vunpack.c.0.s8 %v6370
    %v6372 = vlaneseq
    %v6373 = vshrl.u32 %v6372, 7
    %v6374 = vsub.s32 %v6371, %v6373
    %v6375 = vrot.slane %v6347, %v6374
    %v6376 = vcombine.low %v6354, %v6361
    %v6377 = vcombine.low %v6368, %v6375
    %v6379 = vunpack.c.l.s4 1966171168
    %v6380 = vunpack.c.0.s8 %v6379
    %v6381 = vlaneseq
    %v6382 = vshrl.u32 %v6381, 7
    %v6383 = vsub.s32 %v6380, %v6382
    %v6384 = vrot.slane %v6376, %v6383
    %v6386 = vunpack.c.l.s4 1966171168
    %v6387 = vunpack.c.0.s8 %v6386
    %v6388 = vlaneseq
    %v6389 = vshrl.u32 %v6388, 7
    %v6390 = vsub.s32 %v6387, %v6389
    %v6391 = vrot.slane %v6377, %v6390
    %v6392 = vcombine.low %v6384, %v6391
    %v6393 = vcombine.low %v6263, %v6264
    %v6394 = vcombine.low %v6265, %v6266
    %v6395 = vcombine.low %v6267, %v6268
    %v6396 = vcombine.low %v6269, %v6270
    %v6398 = vunpack.c.l.s4 1966171168
    %v6399 = vunpack.c.0.s8 %v6398
    %v6400 = vlaneseq
    %v6401 = vshrl.u32 %v6400, 7
    %v6402 = vsub.s32 %v6399, %v6401
    %v6403 = vrot.slane %v6393, %v6402
    %v6405 = vunpack.c.l.s4 1966171168
    %v6406 = vunpack.c.0.s8 %v6405
    %v6407 = vlaneseq
    %v6408 = vshrl.u32 %v6407, 7
    %v6409 = vsub.s32 %v6406, %v6408
    %v6410 = vrot.slane %v6394, %v6409
    %v6412 = vunpack.c.l.s4 1966171168
    %v6413 = vunpack.c.0.s8 %v6412
    %v6414 = vlaneseq
    %v6415 = vshrl.u32 %v6414, 7
    %v6416 = vsub.s32 %v6413, %v6415
    %v6417 = vrot.slane %v6395, %v6416
    %v6419 = vunpack.c.l.s4 1966171168
    %v6420 = vunpack.c.0.s8 %v6419
    %v6421 = vlaneseq
    %v6422 = vshrl.u32 %v6421, 7
    %v6423 = vsub.s32 %v6420, %v6422
    %v6424 = vrot.slane %v6396, %v6423
    %v6425 = vcombine.low %v6403, %v6410
    %v6426 = vcombine.low %v6417, %v6424
    %v6428 = vunpack.c.l.s4 1966171168
    %v6429 = vunpack.c.0.s8 %v6428
    %v6430 = vlaneseq
    %v6431 = vshrl.u32 %v6430, 7
    %v6432 = vsub.s32 %v6429, %v6431
    %v6433 = vrot.slane %v6425, %v6432
    %v6435 = vunpack.c.l.s4 1966171168
    %v6436 = vunpack.c.0.s8 %v6435
    %v6437 = vlaneseq
    %v6438 = vshrl.u32 %v6437, 7
    %v6439 = vsub.s32 %v6436, %v6438
    %v6440 = vrot.slane %v6426, %v6439
    %v6441 = vcombine.low %v6433, %v6440
    %v6442 = vcombine.low %v6271, %v6272
    %v6443 = vcombine.low %v6273, %v6274
    %v6445 = vunpack.c.l.s4 1966171168
    %v6446 = vunpack.c.0.s8 %v6445
    %v6447 = vlaneseq
    %v6448 = vshrl.u32 %v6447, 7
    %v6449 = vsub.s32 %v6446, %v6448
    %v6450 = vrot.slane %v6442, %v6449
    %v6452 = vunpack.c.l.s4 1966171168
    %v6453 = vunpack.c.0.s8 %v6452
    %v6454 = vlaneseq
    %v6455 = vshrl.u32 %v6454, 7
    %v6456 = vsub.s32 %v6453, %v6455
    %v6457 = vrot.slane %v6443, %v6456
    %v6459 = vunpack.c.l.s4 1966171168
    %v6460 = vunpack.c.0.s8 %v6459
    %v6461 = vlaneseq
    %v6462 = vshrl.u32 %v6461, 7
    %v6463 = vsub.s32 %v6460, %v6462
    %v6464 = vrot.slane %v6275, %v6463
    %v6465 = vcombine.low %v6450, %v6457
    %v6467 = vunpack.c.l.s4 1966171168
    %v6468 = vunpack.c.0.s8 %v6467
    %v6469 = vlaneseq
    %v6470 = vshrl.u32 %v6469, 7
    %v6471 = vsub.s32 %v6468, %v6470
    %v6472 = vrot.slane %v6465, %v6471
    %v6474 = vunpack.c.l.s4 1966171168
    %v6475 = vunpack.c.0.s8 %v6474
    %v6476 = vlaneseq
    %v6477 = vshrl.u32 %v6476, 7
    %v6478 = vsub.s32 %v6475, %v6477
    %v6479 = vrot.slane %v6464, %v6478
    %v6480 = vcombine.low %v6472, %v6479
    %v6481 = vcombine.low %v6276, %v6277
    %v6482 = vcombine.low %v6278, %v6279
    %v6483 = vcombine.low %v6280, %v6281
    %v6484 = vcombine.low %v6282, %v6283
    %v6486 = vunpack.c.l.s4 1966171168
    %v6487 = vunpack.c.0.s8 %v6486
    %v6488 = vlaneseq
    %v6489 = vshrl.u32 %v6488, 7
    %v6490 = vsub.s32 %v6487, %v6489
    %v6491 = vrot.slane %v6481, %v6490
    %v6493 = vunpack.c.l.s4 1966171168
    %v6494 = vunpack.c.0.s8 %v6493
    %v6495 = vlaneseq
    %v6496 = vshrl.u32 %v6495, 7
    %v6497 = vsub.s32 %v6494, %v6496
    %v6498 = vrot.slane %v6482, %v6497
    %v6500 = vunpack.c.l.s4 1966171168
    %v6501 = vunpack.c.0.s8 %v6500
    %v6502 = vlaneseq
    %v6503 = vshrl.u32 %v6502, 7
    %v6504 = vsub.s32 %v6501, %v6503
    %v6505 = vrot.slane %v6483, %v6504
    %v6507 = vunpack.c.l.s4 1966171168
    %v6508 = vunpack.c.0.s8 %v6507
    %v6509 = vlaneseq
    %v6510 = vshrl.u32 %v6509, 7
    %v6511 = vsub.s32 %v6508, %v6510
    %v6512 = vrot.slane %v6484, %v6511
    %v6513 = vcombine.low %v6491, %v6498
    %v6514 = vcombine.low %v6505, %v6512
    %v6516 = vunpack.c.l.s4 1966171168
    %v6517 = vunpack.c.0.s8 %v6516
    %v6518 = vlaneseq
    %v6519 = vshrl.u32 %v6518, 7
    %v6520 = vsub.s32 %v6517, %v6519
    %v6521 = vrot.slane %v6513, %v6520
    %v6523 = vunpack.c.l.s4 1966171168
    %v6524 = vunpack.c.0.s8 %v6523
    %v6525 = vlaneseq
    %v6526 = vshrl.u32 %v6525, 7
    %v6527 = vsub.s32 %v6524, %v6526
    %v6528 = vrot.slane %v6514, %v6527
    %v6529 = vcombine.low %v6521, %v6528
    %v6530 = vcombine.low %v6284, %v6285
    %v6531 = vcombine.low %v6286, %v6287
    %v6532 = vcombine.low %v6288, %v6289
    %v6533 = vcombine.low %v6290, %v6291
    %v6535 = vunpack.c.l.s4 1966171168
    %v6536 = vunpack.c.0.s8 %v6535
    %v6537 = vlaneseq
    %v6538 = vshrl.u32 %v6537, 7
    %v6539 = vsub.s32 %v6536, %v6538
    %v6540 = vrot.slane %v6530, %v6539
    %v6542 = vunpack.c.l.s4 1966171168
    %v6543 = vunpack.c.0.s8 %v6542
    %v6544 = vlaneseq
    %v6545 = vshrl.u32 %v6544, 7
    %v6546 = vsub.s32 %v6543, %v6545
    %v6547 = vrot.slane %v6531, %v6546
    %v6549 = vunpack.c.l.s4 1966171168
    %v6550 = vunpack.c.0.s8 %v6549
    %v6551 = vlaneseq
    %v6552 = vshrl.u32 %v6551, 7
    %v6553 = vsub.s32 %v6550, %v6552
    %v6554 = vrot.slane %v6532, %v6553
    %v6556 = vunpack.c.l.s4 1966171168
    %v6557 = vunpack.c.0.s8 %v6556
    %v6558 = vlaneseq
    %v6559 = vshrl.u32 %v6558, 7
    %v6560 = vsub.s32 %v6557, %v6559
    %v6561 = vrot.slane %v6533, %v6560
    %v6562 = vcombine.low %v6540, %v6547
    %v6563 = vcombine.low %v6554, %v6561
    %v6565 = vunpack.c.l.s4 1966171168
    %v6566 = vunpack.c.0.s8 %v6565
    %v6567 = vlaneseq
    %v6568 = vshrl.u32 %v6567, 7
    %v6569 = vsub.s32 %v6566, %v6568
    %v6570 = vrot.slane %v6562, %v6569
    %v6572 = vunpack.c.l.s4 1966171168
    %v6573 = vunpack.c.0.s8 %v6572
    %v6574 = vlaneseq
    %v6575 = vshrl.u32 %v6574, 7
    %v6576 = vsub.s32 %v6573, %v6575
    %v6577 = vrot.slane %v6563, %v6576
    %v6578 = vcombine.low %v6570, %v6577
    %v6579 = vcombine.low %v6292, %v6293
    %v6580 = vcombine.low %v6294, %v6295
    %v6582 = vunpack.c.l.s4 1966171168
    %v6583 = vunpack.c.0.s8 %v6582
    %v6584 = vlaneseq
    %v6585 = vshrl.u32 %v6584, 7
    %v6586 = vsub.s32 %v6583, %v6585
    %v6587 = vrot.slane %v6579, %v6586
    %v6589 = vunpack.c.l.s4 1966171168
    %v6590 = vunpack.c.0.s8 %v6589
    %v6591 = vlaneseq
    %v6592 = vshrl.u32 %v6591, 7
    %v6593 = vsub.s32 %v6590, %v6592
    %v6594 = vrot.slane %v6580, %v6593
    %v6596 = vunpack.c.l.s4 1966171168
    %v6597 = vunpack.c.0.s8 %v6596
    %v6598 = vlaneseq
    %v6599 = vshrl.u32 %v6598, 7
    %v6600 = vsub.s32 %v6597, %v6599
    %v6601 = vrot.slane %v6296, %v6600
    %v6602 = vcombine.low %v6587, %v6594
    %v6604 = vunpack.c.l.s4 1966171168
    %v6605 = vunpack.c.0.s8 %v6604
    %v6606 = vlaneseq
    %v6607 = vshrl.u32 %v6606, 7
    %v6608 = vsub.s32 %v6605, %v6607
    %v6609 = vrot.slane %v6602, %v6608
    %v6611 = vunpack.c.l.s4 1966171168
    %v6612 = vunpack.c.0.s8 %v6611
    %v6613 = vlaneseq
    %v6614 = vshrl.u32 %v6613, 7
    %v6615 = vsub.s32 %v6612, %v6614
    %v6616 = vrot.slane %v6601, %v6615
    %v6617 = vcombine.low %v6609, %v6616
    %v6624 = vpack.c.bf16 %v6441, %v6392
    %v6625 = vpack.c.bf16 %v6480, %v6480
    %v6626 = vpack.c.bf16 %v6578, %v6529
    %v6627 = vpack.c.bf16 %v6617, %v6617
    %v6628 = vld [vmem:[#allocation2] sm:$0xff]
    %v6629 = vld [vmem:[#allocation2 + $0x8] sm:$0xff]
    %v6630 = vld [vmem:[#allocation2 + $0x10] sm:$0xff]
    %v6631 = vld [vmem:[#allocation2 + $0x18] sm:$0xff]
    %v6632 = vld [vmem:[#allocation2 + $0x20] sm:$0xff]
    %v6633 = vld [vmem:[#allocation2 + $0x28] sm:$0xff]
    %v6634 = vld [vmem:[#allocation2 + $0x30] sm:$0xff]
    %v6635 = vld [vmem:[#allocation2 + $0x38] sm:$0xff]
    %v6636 = vld [vmem:[#allocation2 + $0x40] sm:$0xff]
    %v6637 = vld [vmem:[#allocation2 + $0x48] sm:$0xff]
    %v6638 = vld [vmem:[#allocation2 + $0x50] sm:$0xff]
    %v6639 = vld [vmem:[#allocation2 + $0x58] sm:$0xff]
    %v6640 = vld [vmem:[#allocation2 + $0x60] sm:$0xff]
    %v6641 = vld [vmem:[#allocation2 + $0x68] sm:$0xff]
    %v6642 = vld [vmem:[#allocation2 + $0x70] sm:$0xff]
    %v6643 = vld [vmem:[#allocation2 + $0x78] sm:$0xff]
    %s6644 = scalar_lea.vmem [#allocation2], 128
    %v6645 = vld [vmem:[%s6644] sm:$0xff]
    %v6646 = vld [vmem:[%s6644 + $0x8] sm:$0xff]
    %v6647 = vld [vmem:[%s6644 + $0x10] sm:$0xff]
    %v6648 = vld [vmem:[%s6644 + $0x18] sm:$0xff]
    %v6649 = vld [vmem:[%s6644 + $0x20] sm:$0xff]
    %v6650 = vld [vmem:[%s6644 + $0x28] sm:$0xff]
    %v6651 = vld [vmem:[%s6644 + $0x30] sm:$0xff]
    %v6652 = vld [vmem:[%s6644 + $0x38] sm:$0xff]
    %v6653 = vld [vmem:[%s6644 + $0x40] sm:$0xff]
    %v6654 = vld [vmem:[%s6644 + $0x48] sm:$0xff]
    %v6655 = vld [vmem:[%s6644 + $0x50] sm:$0xff]
    %v6656 = vld [vmem:[%s6644 + $0x58] sm:$0xff]
    %v6657 = vld [vmem:[%s6644 + $0x60] sm:$0xff]
    %v6658 = vld [vmem:[%s6644 + $0x68] sm:$0xff]
    %v6659 = vld [vmem:[%s6644 + $0x70] sm:$0xff]
    %v6660 = vld [vmem:[%s6644 + $0x78] sm:$0xff]
    %v6663 = vunpack.c.l.b16 %v6624
    %v6664 = vunpack.c.l.b16 %v6626
    %v6665 = vrot.slane %v6663, 1
    %v6666 = vsel %vm1830, %v6664, %v6665
    %v6667 = vpack.c.b16 %v6666, %v6666
    %v6685 = vunpack.c.l.b16 %v6645
    %v6686 = vunpack.c.h.b16 %v6645
    %v6687 = vunpack.c.l.b16 %v6646
    %v6688 = vunpack.c.h.b16 %v6646
    %v6689 = vunpack.c.l.b16 %v6647
    %v6690 = vunpack.c.h.b16 %v6647
    %v6691 = vunpack.c.l.b16 %v6648
    %v6692 = vunpack.c.h.b16 %v6648
    %v6693 = vunpack.c.l.b16 %v6649
    %v6694 = vunpack.c.h.b16 %v6649
    %v6695 = vunpack.c.l.b16 %v6650
    %v6696 = vunpack.c.h.b16 %v6650
    %v6697 = vunpack.c.l.b16 %v6651
    %v6698 = vunpack.c.h.b16 %v6651
    %v6699 = vunpack.c.l.b16 %v6652
    %v6700 = vunpack.c.h.b16 %v6652
    %v6701 = vunpack.c.l.b16 %v6653
    %v6702 = vunpack.c.h.b16 %v6653
    %v6703 = vunpack.c.l.b16 %v6654
    %v6704 = vunpack.c.h.b16 %v6654
    %v6705 = vunpack.c.l.b16 %v6655
    %v6706 = vunpack.c.h.b16 %v6655
    %v6707 = vunpack.c.l.b16 %v6656
    %v6708 = vunpack.c.h.b16 %v6656
    %v6709 = vunpack.c.l.b16 %v6657
    %v6710 = vunpack.c.h.b16 %v6657
    %v6711 = vunpack.c.l.b16 %v6658
    %v6712 = vunpack.c.h.b16 %v6658
    %v6713 = vunpack.c.l.b16 %v6659
    %v6714 = vunpack.c.h.b16 %v6659
    %v6715 = vunpack.c.l.b16 %v6660
    %v6716 = vunpack.c.h.b16 %v6660
    %v6717 = vpack.c.b16 %v6687, %v6685
    %v6718 = vpack.c.b16 %v6688, %v6686
    %v6719 = vpack.c.b16 %v6691, %v6689
    %v6720 = vpack.c.b16 %v6692, %v6690
    %v6721 = vpack.c.b16 %v6695, %v6693
    %v6722 = vpack.c.b16 %v6696, %v6694
    %v6723 = vpack.c.b16 %v6699, %v6697
    %v6724 = vpack.c.b16 %v6700, %v6698
    %v6725 = vpack.c.b16 %v6703, %v6701
    %v6726 = vpack.c.b16 %v6704, %v6702
    %v6727 = vpack.c.b16 %v6707, %v6705
    %v6728 = vpack.c.b16 %v6708, %v6706
    %v6729 = vpack.c.b16 %v6711, %v6709
    %v6730 = vpack.c.b16 %v6712, %v6710
    %v6731 = vpack.c.b16 %v6715, %v6713
    %v6732 = vpack.c.b16 %v6716, %v6714
    %6749 = vmatprep.subr.bf16.mxu0 %v6732
    %6750 = vmatpush1.bf16.msra.mxu0 %v6731
    %6751 = vmatprep.subr.bf16.mxu0 %v6730
    %6752 = vmatpush1.bf16.msra.mxu0 %v6729
    %6753 = vmatprep.subr.bf16.mxu0 %v6728
    %6754 = vmatpush1.bf16.msra.mxu0 %v6727
    %6755 = vmatprep.subr.bf16.mxu0 %v6726
    %6756 = vmatpush1.bf16.msra.mxu0 %v6725
    %6757 = vmatprep.subr.bf16.mxu0 %v6724
    %6758 = vmatpush1.bf16.msra.mxu0 %v6723
    %6759 = vmatprep.subr.bf16.mxu0 %v6722
    %6760 = vmatpush1.bf16.msra.mxu0 %v6721
    %6761 = vmatprep.subr.bf16.mxu0 %v6720
    %6762 = vmatpush1.bf16.msra.mxu0 %v6719
    %6763 = vmatprep.subr.bf16.mxu0 %v6718
    %6764 = vmatpush1.bf16.msra.mxu0 %v6717
    %6765 = vmatprep.subr.bf16.mxu0 0
    %6766 = vmatpush2.bf16.msra.mxu0 0
    %6767 = vmatprep.subr.bf16.mxu0 0
    %6768 = vmatpush2.bf16.msra.mxu0 0
    %6769 = vmatprep.subr.bf16.mxu0 0
    %6770 = vmatpush2.bf16.msra.mxu0 0
    %6771 = vmatprep.subr.bf16.mxu0 0
    %6772 = vmatpush2.bf16.msra.mxu0 0
    %6773 = vmatprep.subr.bf16.mxu0 0
    %6774 = vmatpush2.bf16.msra.mxu0 0
    %6775 = vmatprep.subr.bf16.mxu0 0
    %6776 = vmatpush2.bf16.msra.mxu0 0
    %6777 = vmatprep.subr.bf16.mxu0 0
    %6778 = vmatpush2.bf16.msra.mxu0 0
    %6779 = vmatprep.subr.bf16.mxu0 0
    %6780 = vmatpush2.bf16.msra.mxu0 0
    %6781 = vmatprep.mubr.bf16.mxu0 0
    %6782 = vmatmul.mubr.bf16.gmra.mxu0 %v6667
    %v6783 = vpop.f32.mrf.mxu0
    %v6784 = vadd.f32 0.0, %v6783
    %v6785 = vpop.f32.mrf.mxu0
    %v6786 = vadd.f32 0.0, %v6785
    %v6787 = vpop.f32.mrf.mxu0
    %v6788 = vpop.f32.mrf.mxu0
    %6789 = vdwg.mxu0
    %v6790 = vrot.slane %v6664, 7
    %v6791 = vsel %vm1830, %v6790, %v6663
    %v6792 = vpack.c.b16 %v6791, %v6791
    %v6810 = vunpack.c.l.b16 %v6628
    %v6811 = vunpack.c.h.b16 %v6628
    %v6812 = vunpack.c.l.b16 %v6629
    %v6813 = vunpack.c.h.b16 %v6629
    %v6814 = vunpack.c.l.b16 %v6630
    %v6815 = vunpack.c.h.b16 %v6630
    %v6816 = vunpack.c.l.b16 %v6631
    %v6817 = vunpack.c.h.b16 %v6631
    %v6818 = vunpack.c.l.b16 %v6632
    %v6819 = vunpack.c.h.b16 %v6632
    %v6820 = vunpack.c.l.b16 %v6633
    %v6821 = vunpack.c.h.b16 %v6633
    %v6822 = vunpack.c.l.b16 %v6634
    %v6823 = vunpack.c.h.b16 %v6634
    %v6824 = vunpack.c.l.b16 %v6635
    %v6825 = vunpack.c.h.b16 %v6635
    %v6826 = vunpack.c.l.b16 %v6636
    %v6827 = vunpack.c.h.b16 %v6636
    %v6828 = vunpack.c.l.b16 %v6637
    %v6829 = vunpack.c.h.b16 %v6637
    %v6830 = vunpack.c.l.b16 %v6638
    %v6831 = vunpack.c.h.b16 %v6638
    %v6832 = vunpack.c.l.b16 %v6639
    %v6833 = vunpack.c.h.b16 %v6639
    %v6834 = vunpack.c.l.b16 %v6640
    %v6835 = vunpack.c.h.b16 %v6640
    %v6836 = vunpack.c.l.b16 %v6641
    %v6837 = vunpack.c.h.b16 %v6641
    %v6838 = vunpack.c.l.b16 %v6642
    %v6839 = vunpack.c.h.b16 %v6642
    %v6840 = vunpack.c.l.b16 %v6643
    %v6841 = vunpack.c.h.b16 %v6643
    %v6842 = vpack.c.b16 %v6812, %v6810
    %v6843 = vpack.c.b16 %v6813, %v6811
    %v6844 = vpack.c.b16 %v6816, %v6814
    %v6845 = vpack.c.b16 %v6817, %v6815
    %v6846 = vpack.c.b16 %v6820, %v6818
    %v6847 = vpack.c.b16 %v6821, %v6819
    %v6848 = vpack.c.b16 %v6824, %v6822
    %v6849 = vpack.c.b16 %v6825, %v6823
    %v6850 = vpack.c.b16 %v6828, %v6826
    %v6851 = vpack.c.b16 %v6829, %v6827
    %v6852 = vpack.c.b16 %v6832, %v6830
    %v6853 = vpack.c.b16 %v6833, %v6831
    %v6854 = vpack.c.b16 %v6836, %v6834
    %v6855 = vpack.c.b16 %v6837, %v6835
    %v6856 = vpack.c.b16 %v6840, %v6838
    %v6857 = vpack.c.b16 %v6841, %v6839
    %6874 = vmatprep.subr.bf16.mxu0 %v6857
    %6875 = vmatpush1.bf16.msra.mxu0 %v6856
    %6876 = vmatprep.subr.bf16.mxu0 %v6855
    %6877 = vmatpush1.bf16.msra.mxu0 %v6854
    %6878 = vmatprep.subr.bf16.mxu0 %v6853
    %6879 = vmatpush1.bf16.msra.mxu0 %v6852
    %6880 = vmatprep.subr.bf16.mxu0 %v6851
    %6881 = vmatpush1.bf16.msra.mxu0 %v6850
    %6882 = vmatprep.subr.bf16.mxu0 %v6849
    %6883 = vmatpush1.bf16.msra.mxu0 %v6848
    %6884 = vmatprep.subr.bf16.mxu0 %v6847
    %6885 = vmatpush1.bf16.msra.mxu0 %v6846
    %6886 = vmatprep.subr.bf16.mxu0 %v6845
    %6887 = vmatpush1.bf16.msra.mxu0 %v6844
    %6888 = vmatprep.subr.bf16.mxu0 %v6843
    %6889 = vmatpush1.bf16.msra.mxu0 %v6842
    %6890 = vmatprep.subr.bf16.mxu0 0
    %6891 = vmatpush2.bf16.msra.mxu0 0
    %6892 = vmatprep.subr.bf16.mxu0 0
    %6893 = vmatpush2.bf16.msra.mxu0 0
    %6894 = vmatprep.subr.bf16.mxu0 0
    %6895 = vmatpush2.bf16.msra.mxu0 0
    %6896 = vmatprep.subr.bf16.mxu0 0
    %6897 = vmatpush2.bf16.msra.mxu0 0
    %6898 = vmatprep.subr.bf16.mxu0 0
    %6899 = vmatpush2.bf16.msra.mxu0 0
    %6900 = vmatprep.subr.bf16.mxu0 0
    %6901 = vmatpush2.bf16.msra.mxu0 0
    %6902 = vmatprep.subr.bf16.mxu0 0
    %6903 = vmatpush2.bf16.msra.mxu0 0
    %6904 = vmatprep.subr.bf16.mxu0 0
    %6905 = vmatpush2.bf16.msra.mxu0 0
    %6906 = vmatprep.mubr.bf16.mxu0 0
    %6907 = vmatmul.mubr.bf16.gmra.mxu0 %v6792
    %v6908 = vpop.f32.mrf.mxu0
    %v6909 = vadd.f32 %v6784, %v6908
    %v6910 = vpop.f32.mrf.mxu0
    %v6911 = vadd.f32 %v6786, %v6910
    %v6912 = vpop.f32.mrf.mxu0
    %v6913 = vpop.f32.mrf.mxu0
    %6914 = vdwg.mxu0
    %s6915 = scalar_lea.vmem [#allocation2], 256
    %v6916 = vld [vmem:[%s6915] sm:$0xff]
    %v6917 = vld [vmem:[%s6915 + $0x8] sm:$0xff]
    %v6918 = vld [vmem:[%s6915 + $0x10] sm:$0xff]
    %v6919 = vld [vmem:[%s6915 + $0x18] sm:$0xff]
    %v6920 = vld [vmem:[%s6915 + $0x20] sm:$0xff]
    %v6921 = vld [vmem:[%s6915 + $0x28] sm:$0xff]
    %v6922 = vld [vmem:[%s6915 + $0x30] sm:$0xff]
    %v6923 = vld [vmem:[%s6915 + $0x38] sm:$0xff]
    %v6924 = vld [vmem:[%s6915 + $0x40] sm:$0xff]
    %v6925 = vld [vmem:[%s6915 + $0x48] sm:$0xff]
    %v6926 = vld [vmem:[%s6915 + $0x50] sm:$0xff]
    %v6927 = vld [vmem:[%s6915 + $0x58] sm:$0xff]
    %v6928 = vld [vmem:[%s6915 + $0x60] sm:$0xff]
    %v6929 = vld [vmem:[%s6915 + $0x68] sm:$0xff]
    %v6930 = vld [vmem:[%s6915 + $0x70] sm:$0xff]
    %v6931 = vld [vmem:[%s6915 + $0x78] sm:$0xff]
    %v6932 = vrot.slane %v6663, 2
    %v6933 = vrot.slane %v6664, 1
    %v6934 = vsel %vm1830, %v6933, %v6932
    %v6935 = vpack.c.b16 %v6934, %v6934
    %v6953 = vunpack.c.l.b16 %v6916
    %v6954 = vunpack.c.h.b16 %v6916
    %v6955 = vunpack.c.l.b16 %v6917
    %v6956 = vunpack.c.h.b16 %v6917
    %v6957 = vunpack.c.l.b16 %v6918
    %v6958 = vunpack.c.h.b16 %v6918
    %v6959 = vunpack.c.l.b16 %v6919
    %v6960 = vunpack.c.h.b16 %v6919
    %v6961 = vunpack.c.l.b16 %v6920
    %v6962 = vunpack.c.h.b16 %v6920
    %v6963 = vunpack.c.l.b16 %v6921
    %v6964 = vunpack.c.h.b16 %v6921
    %v6965 = vunpack.c.l.b16 %v6922
    %v6966 = vunpack.c.h.b16 %v6922
    %v6967 = vunpack.c.l.b16 %v6923
    %v6968 = vunpack.c.h.b16 %v6923
    %v6969 = vunpack.c.l.b16 %v6924
    %v6970 = vunpack.c.h.b16 %v6924
    %v6971 = vunpack.c.l.b16 %v6925
    %v6972 = vunpack.c.h.b16 %v6925
    %v6973 = vunpack.c.l.b16 %v6926
    %v6974 = vunpack.c.h.b16 %v6926
    %v6975 = vunpack.c.l.b16 %v6927
    %v6976 = vunpack.c.h.b16 %v6927
    %v6977 = vunpack.c.l.b16 %v6928
    %v6978 = vunpack.c.h.b16 %v6928
    %v6979 = vunpack.c.l.b16 %v6929
    %v6980 = vunpack.c.h.b16 %v6929
    %v6981 = vunpack.c.l.b16 %v6930
    %v6982 = vunpack.c.h.b16 %v6930
    %v6983 = vunpack.c.l.b16 %v6931
    %v6984 = vunpack.c.h.b16 %v6931
    %v6985 = vpack.c.b16 %v6955, %v6953
    %v6986 = vpack.c.b16 %v6956, %v6954
    %v6987 = vpack.c.b16 %v6959, %v6957
    %v6988 = vpack.c.b16 %v6960, %v6958
    %v6989 = vpack.c.b16 %v6963, %v6961
    %v6990 = vpack.c.b16 %v6964, %v6962
    %v6991 = vpack.c.b16 %v6967, %v6965
    %v6992 = vpack.c.b16 %v6968, %v6966
    %v6993 = vpack.c.b16 %v6971, %v6969
    %v6994 = vpack.c.b16 %v6972, %v6970
    %v6995 = vpack.c.b16 %v6975, %v6973
    %v6996 = vpack.c.b16 %v6976, %v6974
    %v6997 = vpack.c.b16 %v6979, %v6977
    %v6998 = vpack.c.b16 %v6980, %v6978
    %v6999 = vpack.c.b16 %v6983, %v6981
    %v7000 = vpack.c.b16 %v6984, %v6982
    %7017 = vmatprep.subr.bf16.mxu0 %v7000
    %7018 = vmatpush1.bf16.msra.mxu0 %v6999
    %7019 = vmatprep.subr.bf16.mxu0 %v6998
    %7020 = vmatpush1.bf16.msra.mxu0 %v6997
    %7021 = vmatprep.subr.bf16.mxu0 %v6996
    %7022 = vmatpush1.bf16.msra.mxu0 %v6995
    %7023 = vmatprep.subr.bf16.mxu0 %v6994
    %7024 = vmatpush1.bf16.msra.mxu0 %v6993
    %7025 = vmatprep.subr.bf16.mxu0 %v6992
    %7026 = vmatpush1.bf16.msra.mxu0 %v6991
    %7027 = vmatprep.subr.bf16.mxu0 %v6990
    %7028 = vmatpush1.bf16.msra.mxu0 %v6989
    %7029 = vmatprep.subr.bf16.mxu0 %v6988
    %7030 = vmatpush1.bf16.msra.mxu0 %v6987
    %7031 = vmatprep.subr.bf16.mxu0 %v6986
    %7032 = vmatpush1.bf16.msra.mxu0 %v6985
    %7033 = vmatprep.subr.bf16.mxu0 0
    %7034 = vmatpush2.bf16.msra.mxu0 0
    %7035 = vmatprep.subr.bf16.mxu0 0
    %7036 = vmatpush2.bf16.msra.mxu0 0
    %7037 = vmatprep.subr.bf16.mxu0 0
    %7038 = vmatpush2.bf16.msra.mxu0 0
    %7039 = vmatprep.subr.bf16.mxu0 0
    %7040 = vmatpush2.bf16.msra.mxu0 0
    %7041 = vmatprep.subr.bf16.mxu0 0
    %7042 = vmatpush2.bf16.msra.mxu0 0
    %7043 = vmatprep.subr.bf16.mxu0 0
    %7044 = vmatpush2.bf16.msra.mxu0 0
    %7045 = vmatprep.subr.bf16.mxu0 0
    %7046 = vmatpush2.bf16.msra.mxu0 0
    %7047 = vmatprep.subr.bf16.mxu0 0
    %7048 = vmatpush2.bf16.msra.mxu0 0
    %7049 = vmatprep.mubr.bf16.mxu0 0
    %7050 = vmatmul.mubr.bf16.gmra.mxu0 %v6935
    %v7051 = vpop.f32.mrf.mxu0
    %v7052 = vadd.f32 0.0, %v7051
    %v7053 = vpop.f32.mrf.mxu0
    %v7054 = vadd.f32 0.0, %v7053
    %v7055 = vpop.f32.mrf.mxu0
    %v7056 = vpop.f32.mrf.mxu0
    %7057 = vdwg.mxu0
    %v7058 = vadd.f32 %v6909, %v7052
    %v7059 = vadd.f32 %v6911, %v7054
    %s7060 = scalar_lea.vmem [#allocation2], 384
    %v7061 = vld [vmem:[%s7060] sm:$0xff]
    %v7062 = vld [vmem:[%s7060 + $0x8] sm:$0xff]
    %v7063 = vld [vmem:[%s7060 + $0x10] sm:$0xff]
    %v7064 = vld [vmem:[%s7060 + $0x18] sm:$0xff]
    %v7065 = vld [vmem:[%s7060 + $0x20] sm:$0xff]
    %v7066 = vld [vmem:[%s7060 + $0x28] sm:$0xff]
    %v7067 = vld [vmem:[%s7060 + $0x30] sm:$0xff]
    %v7068 = vld [vmem:[%s7060 + $0x38] sm:$0xff]
    %v7069 = vld [vmem:[%s7060 + $0x40] sm:$0xff]
    %v7070 = vld [vmem:[%s7060 + $0x48] sm:$0xff]
    %v7071 = vld [vmem:[%s7060 + $0x50] sm:$0xff]
    %v7072 = vld [vmem:[%s7060 + $0x58] sm:$0xff]
    %v7073 = vld [vmem:[%s7060 + $0x60] sm:$0xff]
    %v7074 = vld [vmem:[%s7060 + $0x68] sm:$0xff]
    %v7075 = vld [vmem:[%s7060 + $0x70] sm:$0xff]
    %v7076 = vld [vmem:[%s7060 + $0x78] sm:$0xff]
    %v7077 = vrot.slane %v6663, 3
    %v7078 = vrot.slane %v6664, 2
    %v7079 = vsel %vm1830, %v7078, %v7077
    %v7080 = vpack.c.b16 %v7079, %v7079
    %v7098 = vunpack.c.l.b16 %v7061
    %v7099 = vunpack.c.h.b16 %v7061
    %v7100 = vunpack.c.l.b16 %v7062
    %v7101 = vunpack.c.h.b16 %v7062
    %v7102 = vunpack.c.l.b16 %v7063
    %v7103 = vunpack.c.h.b16 %v7063
    %v7104 = vunpack.c.l.b16 %v7064
    %v7105 = vunpack.c.h.b16 %v7064
    %v7106 = vunpack.c.l.b16 %v7065
    %v7107 = vunpack.c.h.b16 %v7065
    %v7108 = vunpack.c.l.b16 %v7066
    %v7109 = vunpack.c.h.b16 %v7066
    %v7110 = vunpack.c.l.b16 %v7067
    %v7111 = vunpack.c.h.b16 %v7067
    %v7112 = vunpack.c.l.b16 %v7068
    %v7113 = vunpack.c.h.b16 %v7068
    %v7114 = vunpack.c.l.b16 %v7069
    %v7115 = vunpack.c.h.b16 %v7069
    %v7116 = vunpack.c.l.b16 %v7070
    %v7117 = vunpack.c.h.b16 %v7070
    %v7118 = vunpack.c.l.b16 %v7071
    %v7119 = vunpack.c.h.b16 %v7071
    %v7120 = vunpack.c.l.b16 %v7072
    %v7121 = vunpack.c.h.b16 %v7072
    %v7122 = vunpack.c.l.b16 %v7073
    %v7123 = vunpack.c.h.b16 %v7073
    %v7124 = vunpack.c.l.b16 %v7074
    %v7125 = vunpack.c.h.b16 %v7074
    %v7126 = vunpack.c.l.b16 %v7075
    %v7127 = vunpack.c.h.b16 %v7075
    %v7128 = vunpack.c.l.b16 %v7076
    %v7129 = vunpack.c.h.b16 %v7076
    %v7130 = vpack.c.b16 %v7100, %v7098
    %v7131 = vpack.c.b16 %v7101, %v7099
    %v7132 = vpack.c.b16 %v7104, %v7102
    %v7133 = vpack.c.b16 %v7105, %v7103
    %v7134 = vpack.c.b16 %v7108, %v7106
    %v7135 = vpack.c.b16 %v7109, %v7107
    %v7136 = vpack.c.b16 %v7112, %v7110
    %v7137 = vpack.c.b16 %v7113, %v7111
    %v7138 = vpack.c.b16 %v7116, %v7114
    %v7139 = vpack.c.b16 %v7117, %v7115
    %v7140 = vpack.c.b16 %v7120, %v7118
    %v7141 = vpack.c.b16 %v7121, %v7119
    %v7142 = vpack.c.b16 %v7124, %v7122
    %v7143 = vpack.c.b16 %v7125, %v7123
    %v7144 = vpack.c.b16 %v7128, %v7126
    %v7145 = vpack.c.b16 %v7129, %v7127
    %7162 = vmatprep.subr.bf16.mxu0 %v7145
    %7163 = vmatpush1.bf16.msra.mxu0 %v7144
    %7164 = vmatprep.subr.bf16.mxu0 %v7143
    %7165 = vmatpush1.bf16.msra.mxu0 %v7142
    %7166 = vmatprep.subr.bf16.mxu0 %v7141
    %7167 = vmatpush1.bf16.msra.mxu0 %v7140
    %7168 = vmatprep.subr.bf16.mxu0 %v7139
    %7169 = vmatpush1.bf16.msra.mxu0 %v7138
    %7170 = vmatprep.subr.bf16.mxu0 %v7137
    %7171 = vmatpush1.bf16.msra.mxu0 %v7136
    %7172 = vmatprep.subr.bf16.mxu0 %v7135
    %7173 = vmatpush1.bf16.msra.mxu0 %v7134
    %7174 = vmatprep.subr.bf16.mxu0 %v7133
    %7175 = vmatpush1.bf16.msra.mxu0 %v7132
    %7176 = vmatprep.subr.bf16.mxu0 %v7131
    %7177 = vmatpush1.bf16.msra.mxu0 %v7130
    %7178 = vmatprep.subr.bf16.mxu0 0
    %7179 = vmatpush2.bf16.msra.mxu0 0
    %7180 = vmatprep.subr.bf16.mxu0 0
    %7181 = vmatpush2.bf16.msra.mxu0 0
    %7182 = vmatprep.subr.bf16.mxu0 0
    %7183 = vmatpush2.bf16.msra.mxu0 0
    %7184 = vmatprep.subr.bf16.mxu0 0
    %7185 = vmatpush2.bf16.msra.mxu0 0
    %7186 = vmatprep.subr.bf16.mxu0 0
    %7187 = vmatpush2.bf16.msra.mxu0 0
    %7188 = vmatprep.subr.bf16.mxu0 0
    %7189 = vmatpush2.bf16.msra.mxu0 0
    %7190 = vmatprep.subr.bf16.mxu0 0
    %7191 = vmatpush2.bf16.msra.mxu0 0
    %7192 = vmatprep.subr.bf16.mxu0 0
    %7193 = vmatpush2.bf16.msra.mxu0 0
    %7194 = vmatprep.mubr.bf16.mxu0 0
    %7195 = vmatmul.mubr.bf16.gmra.mxu0 %v7080
    %v7196 = vpop.f32.mrf.mxu0
    %v7197 = vadd.f32 0.0, %v7196
    %v7198 = vpop.f32.mrf.mxu0
    %v7199 = vadd.f32 0.0, %v7198
    %v7200 = vpop.f32.mrf.mxu0
    %v7201 = vpop.f32.mrf.mxu0
    %7202 = vdwg.mxu0
    %v7203 = vadd.f32 %v7058, %v7197
    %v7204 = vadd.f32 %v7059, %v7199
    %s7205 = scalar_lea.vmem [#allocation2], 512
    %v7206 = vld [vmem:[%s7205] sm:$0xff]
    %v7207 = vld [vmem:[%s7205 + $0x8] sm:$0xff]
    %v7208 = vld [vmem:[%s7205 + $0x10] sm:$0xff]
    %v7209 = vld [vmem:[%s7205 + $0x18] sm:$0xff]
    %v7210 = vld [vmem:[%s7205 + $0x20] sm:$0xff]
    %v7211 = vld [vmem:[%s7205 + $0x28] sm:$0xff]
    %v7212 = vld [vmem:[%s7205 + $0x30] sm:$0xff]
    %v7213 = vld [vmem:[%s7205 + $0x38] sm:$0xff]
    %v7214 = vld [vmem:[%s7205 + $0x40] sm:$0xff]
    %v7215 = vld [vmem:[%s7205 + $0x48] sm:$0xff]
    %v7216 = vld [vmem:[%s7205 + $0x50] sm:$0xff]
    %v7217 = vld [vmem:[%s7205 + $0x58] sm:$0xff]
    %v7218 = vld [vmem:[%s7205 + $0x60] sm:$0xff]
    %v7219 = vld [vmem:[%s7205 + $0x68] sm:$0xff]
    %v7220 = vld [vmem:[%s7205 + $0x70] sm:$0xff]
    %v7221 = vld [vmem:[%s7205 + $0x78] sm:$0xff]
    %v7222 = vrot.slane %v6663, 4
    %v7223 = vrot.slane %v6664, 3
    %v7224 = vsel %vm1830, %v7223, %v7222
    %v7225 = vpack.c.b16 %v7224, %v7224
    %v7243 = vunpack.c.l.b16 %v7206
    %v7244 = vunpack.c.h.b16 %v7206
    %v7245 = vunpack.c.l.b16 %v7207
    %v7246 = vunpack.c.h.b16 %v7207
    %v7247 = vunpack.c.l.b16 %v7208
    %v7248 = vunpack.c.h.b16 %v7208
    %v7249 = vunpack.c.l.b16 %v7209
    %v7250 = vunpack.c.h.b16 %v7209
    %v7251 = vunpack.c.l.b16 %v7210
    %v7252 = vunpack.c.h.b16 %v7210
    %v7253 = vunpack.c.l.b16 %v7211
    %v7254 = vunpack.c.h.b16 %v7211
    %v7255 = vunpack.c.l.b16 %v7212
    %v7256 = vunpack.c.h.b16 %v7212
    %v7257 = vunpack.c.l.b16 %v7213
    %v7258 = vunpack.c.h.b16 %v7213
    %v7259 = vunpack.c.l.b16 %v7214
    %v7260 = vunpack.c.h.b16 %v7214
    %v7261 = vunpack.c.l.b16 %v7215
    %v7262 = vunpack.c.h.b16 %v7215
    %v7263 = vunpack.c.l.b16 %v7216
    %v7264 = vunpack.c.h.b16 %v7216
    %v7265 = vunpack.c.l.b16 %v7217
    %v7266 = vunpack.c.h.b16 %v7217
    %v7267 = vunpack.c.l.b16 %v7218
    %v7268 = vunpack.c.h.b16 %v7218
    %v7269 = vunpack.c.l.b16 %v7219
    %v7270 = vunpack.c.h.b16 %v7219
    %v7271 = vunpack.c.l.b16 %v7220
    %v7272 = vunpack.c.h.b16 %v7220
    %v7273 = vunpack.c.l.b16 %v7221
    %v7274 = vunpack.c.h.b16 %v7221
    %v7275 = vpack.c.b16 %v7245, %v7243
    %v7276 = vpack.c.b16 %v7246, %v7244
    %v7277 = vpack.c.b16 %v7249, %v7247
    %v7278 = vpack.c.b16 %v7250, %v7248
    %v7279 = vpack.c.b16 %v7253, %v7251
    %v7280 = vpack.c.b16 %v7254, %v7252
    %v7281 = vpack.c.b16 %v7257, %v7255
    %v7282 = vpack.c.b16 %v7258, %v7256
    %v7283 = vpack.c.b16 %v7261, %v7259
    %v7284 = vpack.c.b16 %v7262, %v7260
    %v7285 = vpack.c.b16 %v7265, %v7263
    %v7286 = vpack.c.b16 %v7266, %v7264
    %v7287 = vpack.c.b16 %v7269, %v7267
    %v7288 = vpack.c.b16 %v7270, %v7268
    %v7289 = vpack.c.b16 %v7273, %v7271
    %v7290 = vpack.c.b16 %v7274, %v7272
    %7307 = vmatprep.subr.bf16.mxu0 %v7290
    %7308 = vmatpush1.bf16.msra.mxu0 %v7289
    %7309 = vmatprep.subr.bf16.mxu0 %v7288
    %7310 = vmatpush1.bf16.msra.mxu0 %v7287
    %7311 = vmatprep.subr.bf16.mxu0 %v7286
    %7312 = vmatpush1.bf16.msra.mxu0 %v7285
    %7313 = vmatprep.subr.bf16.mxu0 %v7284
    %7314 = vmatpush1.bf16.msra.mxu0 %v7283
    %7315 = vmatprep.subr.bf16.mxu0 %v7282
    %7316 = vmatpush1.bf16.msra.mxu0 %v7281
    %7317 = vmatprep.subr.bf16.mxu0 %v7280
    %7318 = vmatpush1.bf16.msra.mxu0 %v7279
    %7319 = vmatprep.subr.bf16.mxu0 %v7278
    %7320 = vmatpush1.bf16.msra.mxu0 %v7277
    %7321 = vmatprep.subr.bf16.mxu0 %v7276
    %7322 = vmatpush1.bf16.msra.mxu0 %v7275
    %7323 = vmatprep.subr.bf16.mxu0 0
    %7324 = vmatpush2.bf16.msra.mxu0 0
    %7325 = vmatprep.subr.bf16.mxu0 0
    %7326 = vmatpush2.bf16.msra.mxu0 0
    %7327 = vmatprep.subr.bf16.mxu0 0
    %7328 = vmatpush2.bf16.msra.mxu0 0
    %7329 = vmatprep.subr.bf16.mxu0 0
    %7330 = vmatpush2.bf16.msra.mxu0 0
    %7331 = vmatprep.subr.bf16.mxu0 0
    %7332 = vmatpush2.bf16.msra.mxu0 0
    %7333 = vmatprep.subr.bf16.mxu0 0
    %7334 = vmatpush2.bf16.msra.mxu0 0
    %7335 = vmatprep.subr.bf16.mxu0 0
    %7336 = vmatpush2.bf16.msra.mxu0 0
    %7337 = vmatprep.subr.bf16.mxu0 0
    %7338 = vmatpush2.bf16.msra.mxu0 0
    %7339 = vmatprep.mubr.bf16.mxu0 0
    %7340 = vmatmul.mubr.bf16.gmra.mxu0 %v7225
    %v7341 = vpop.f32.mrf.mxu0
    %v7342 = vadd.f32 0.0, %v7341
    %v7343 = vpop.f32.mrf.mxu0
    %v7344 = vadd.f32 0.0, %v7343
    %v7345 = vpop.f32.mrf.mxu0
    %v7346 = vpop.f32.mrf.mxu0
    %7347 = vdwg.mxu0
    %v7348 = vadd.f32 %v7203, %v7342
    %v7349 = vadd.f32 %v7204, %v7344
    %s7350 = scalar_lea.vmem [#allocation2], 640
    %v7351 = vld [vmem:[%s7350] sm:$0xff]
    %v7352 = vld [vmem:[%s7350 + $0x8] sm:$0xff]
    %v7353 = vld [vmem:[%s7350 + $0x10] sm:$0xff]
    %v7354 = vld [vmem:[%s7350 + $0x18] sm:$0xff]
    %v7355 = vld [vmem:[%s7350 + $0x20] sm:$0xff]
    %v7356 = vld [vmem:[%s7350 + $0x28] sm:$0xff]
    %v7357 = vld [vmem:[%s7350 + $0x30] sm:$0xff]
    %v7358 = vld [vmem:[%s7350 + $0x38] sm:$0xff]
    %v7359 = vld [vmem:[%s7350 + $0x40] sm:$0xff]
    %v7360 = vld [vmem:[%s7350 + $0x48] sm:$0xff]
    %v7361 = vld [vmem:[%s7350 + $0x50] sm:$0xff]
    %v7362 = vld [vmem:[%s7350 + $0x58] sm:$0xff]
    %v7363 = vld [vmem:[%s7350 + $0x60] sm:$0xff]
    %v7364 = vld [vmem:[%s7350 + $0x68] sm:$0xff]
    %v7365 = vld [vmem:[%s7350 + $0x70] sm:$0xff]
    %v7366 = vld [vmem:[%s7350 + $0x78] sm:$0xff]
    %v7367 = vrot.slane %v6663, 5
    %v7368 = vrot.slane %v6664, 4
    %v7369 = vsel %vm1830, %v7368, %v7367
    %v7370 = vpack.c.b16 %v7369, %v7369
    %v7388 = vunpack.c.l.b16 %v7351
    %v7389 = vunpack.c.h.b16 %v7351
    %v7390 = vunpack.c.l.b16 %v7352
    %v7391 = vunpack.c.h.b16 %v7352
    %v7392 = vunpack.c.l.b16 %v7353
    %v7393 = vunpack.c.h.b16 %v7353
    %v7394 = vunpack.c.l.b16 %v7354
    %v7395 = vunpack.c.h.b16 %v7354
    %v7396 = vunpack.c.l.b16 %v7355
    %v7397 = vunpack.c.h.b16 %v7355
    %v7398 = vunpack.c.l.b16 %v7356
    %v7399 = vunpack.c.h.b16 %v7356
    %v7400 = vunpack.c.l.b16 %v7357
    %v7401 = vunpack.c.h.b16 %v7357
    %v7402 = vunpack.c.l.b16 %v7358
    %v7403 = vunpack.c.h.b16 %v7358
    %v7404 = vunpack.c.l.b16 %v7359
    %v7405 = vunpack.c.h.b16 %v7359
    %v7406 = vunpack.c.l.b16 %v7360
    %v7407 = vunpack.c.h.b16 %v7360
    %v7408 = vunpack.c.l.b16 %v7361
    %v7409 = vunpack.c.h.b16 %v7361
    %v7410 = vunpack.c.l.b16 %v7362
    %v7411 = vunpack.c.h.b16 %v7362
    %v7412 = vunpack.c.l.b16 %v7363
    %v7413 = vunpack.c.h.b16 %v7363
    %v7414 = vunpack.c.l.b16 %v7364
    %v7415 = vunpack.c.h.b16 %v7364
    %v7416 = vunpack.c.l.b16 %v7365
    %v7417 = vunpack.c.h.b16 %v7365
    %v7418 = vunpack.c.l.b16 %v7366
    %v7419 = vunpack.c.h.b16 %v7366
    %v7420 = vpack.c.b16 %v7390, %v7388
    %v7421 = vpack.c.b16 %v7391, %v7389
    %v7422 = vpack.c.b16 %v7394, %v7392
    %v7423 = vpack.c.b16 %v7395, %v7393
    %v7424 = vpack.c.b16 %v7398, %v7396
    %v7425 = vpack.c.b16 %v7399, %v7397
    %v7426 = vpack.c.b16 %v7402, %v7400
    %v7427 = vpack.c.b16 %v7403, %v7401
    %v7428 = vpack.c.b16 %v7406, %v7404
    %v7429 = vpack.c.b16 %v7407, %v7405
    %v7430 = vpack.c.b16 %v7410, %v7408
    %v7431 = vpack.c.b16 %v7411, %v7409
    %v7432 = vpack.c.b16 %v7414, %v7412
    %v7433 = vpack.c.b16 %v7415, %v7413
    %v7434 = vpack.c.b16 %v7418, %v7416
    %v7435 = vpack.c.b16 %v7419, %v7417
    %7452 = vmatprep.subr.bf16.mxu0 %v7435
    %7453 = vmatpush1.bf16.msra.mxu0 %v7434
    %7454 = vmatprep.subr.bf16.mxu0 %v7433
    %7455 = vmatpush1.bf16.msra.mxu0 %v7432
    %7456 = vmatprep.subr.bf16.mxu0 %v7431
    %7457 = vmatpush1.bf16.msra.mxu0 %v7430
    %7458 = vmatprep.subr.bf16.mxu0 %v7429
    %7459 = vmatpush1.bf16.msra.mxu0 %v7428
    %7460 = vmatprep.subr.bf16.mxu0 %v7427
    %7461 = vmatpush1.bf16.msra.mxu0 %v7426
    %7462 = vmatprep.subr.bf16.mxu0 %v7425
    %7463 = vmatpush1.bf16.msra.mxu0 %v7424
    %7464 = vmatprep.subr.bf16.mxu0 %v7423
    %7465 = vmatpush1.bf16.msra.mxu0 %v7422
    %7466 = vmatprep.subr.bf16.mxu0 %v7421
    %7467 = vmatpush1.bf16.msra.mxu0 %v7420
    %7468 = vmatprep.subr.bf16.mxu0 0
    %7469 = vmatpush2.bf16.msra.mxu0 0
    %7470 = vmatprep.subr.bf16.mxu0 0
    %7471 = vmatpush2.bf16.msra.mxu0 0
    %7472 = vmatprep.subr.bf16.mxu0 0
    %7473 = vmatpush2.bf16.msra.mxu0 0
    %7474 = vmatprep.subr.bf16.mxu0 0
    %7475 = vmatpush2.bf16.msra.mxu0 0
    %7476 = vmatprep.subr.bf16.mxu0 0
    %7477 = vmatpush2.bf16.msra.mxu0 0
    %7478 = vmatprep.subr.bf16.mxu0 0
    %7479 = vmatpush2.bf16.msra.mxu0 0
    %7480 = vmatprep.subr.bf16.mxu0 0
    %7481 = vmatpush2.bf16.msra.mxu0 0
    %7482 = vmatprep.subr.bf16.mxu0 0
    %7483 = vmatpush2.bf16.msra.mxu0 0
    %7484 = vmatprep.mubr.bf16.mxu0 0
    %7485 = vmatmul.mubr.bf16.gmra.mxu0 %v7370
    %v7486 = vpop.f32.mrf.mxu0
    %v7487 = vadd.f32 0.0, %v7486
    %v7488 = vpop.f32.mrf.mxu0
    %v7489 = vadd.f32 0.0, %v7488
    %v7490 = vpop.f32.mrf.mxu0
    %v7491 = vpop.f32.mrf.mxu0
    %7492 = vdwg.mxu0
    %v7493 = vadd.f32 %v7348, %v7487
    %v7494 = vadd.f32 %v7349, %v7489
    %s7495 = scalar_lea.vmem [#allocation2], 768
    %v7496 = vld [vmem:[%s7495] sm:$0xff]
    %v7497 = vld [vmem:[%s7495 + $0x8] sm:$0xff]
    %v7498 = vld [vmem:[%s7495 + $0x10] sm:$0xff]
    %v7499 = vld [vmem:[%s7495 + $0x18] sm:$0xff]
    %v7500 = vld [vmem:[%s7495 + $0x20] sm:$0xff]
    %v7501 = vld [vmem:[%s7495 + $0x28] sm:$0xff]
    %v7502 = vld [vmem:[%s7495 + $0x30] sm:$0xff]
    %v7503 = vld [vmem:[%s7495 + $0x38] sm:$0xff]
    %v7504 = vld [vmem:[%s7495 + $0x40] sm:$0xff]
    %v7505 = vld [vmem:[%s7495 + $0x48] sm:$0xff]
    %v7506 = vld [vmem:[%s7495 + $0x50] sm:$0xff]
    %v7507 = vld [vmem:[%s7495 + $0x58] sm:$0xff]
    %v7508 = vld [vmem:[%s7495 + $0x60] sm:$0xff]
    %v7509 = vld [vmem:[%s7495 + $0x68] sm:$0xff]
    %v7510 = vld [vmem:[%s7495 + $0x70] sm:$0xff]
    %v7511 = vld [vmem:[%s7495 + $0x78] sm:$0xff]
    %v7512 = vrot.slane %v6663, 6
    %v7513 = vrot.slane %v6664, 5
    %v7514 = vsel %vm1830, %v7513, %v7512
    %v7515 = vpack.c.b16 %v7514, %v7514
    %v7533 = vunpack.c.l.b16 %v7496
    %v7534 = vunpack.c.h.b16 %v7496
    %v7535 = vunpack.c.l.b16 %v7497
    %v7536 = vunpack.c.h.b16 %v7497
    %v7537 = vunpack.c.l.b16 %v7498
    %v7538 = vunpack.c.h.b16 %v7498
    %v7539 = vunpack.c.l.b16 %v7499
    %v7540 = vunpack.c.h.b16 %v7499
    %v7541 = vunpack.c.l.b16 %v7500
    %v7542 = vunpack.c.h.b16 %v7500
    %v7543 = vunpack.c.l.b16 %v7501
    %v7544 = vunpack.c.h.b16 %v7501
    %v7545 = vunpack.c.l.b16 %v7502
    %v7546 = vunpack.c.h.b16 %v7502
    %v7547 = vunpack.c.l.b16 %v7503
    %v7548 = vunpack.c.h.b16 %v7503
    %v7549 = vunpack.c.l.b16 %v7504
    %v7550 = vunpack.c.h.b16 %v7504
    %v7551 = vunpack.c.l.b16 %v7505
    %v7552 = vunpack.c.h.b16 %v7505
    %v7553 = vunpack.c.l.b16 %v7506
    %v7554 = vunpack.c.h.b16 %v7506
    %v7555 = vunpack.c.l.b16 %v7507
    %v7556 = vunpack.c.h.b16 %v7507
    %v7557 = vunpack.c.l.b16 %v7508
    %v7558 = vunpack.c.h.b16 %v7508
    %v7559 = vunpack.c.l.b16 %v7509
    %v7560 = vunpack.c.h.b16 %v7509
    %v7561 = vunpack.c.l.b16 %v7510
    %v7562 = vunpack.c.h.b16 %v7510
    %v7563 = vunpack.c.l.b16 %v7511
    %v7564 = vunpack.c.h.b16 %v7511
    %v7565 = vpack.c.b16 %v7535, %v7533
    %v7566 = vpack.c.b16 %v7536, %v7534
    %v7567 = vpack.c.b16 %v7539, %v7537
    %v7568 = vpack.c.b16 %v7540, %v7538
    %v7569 = vpack.c.b16 %v7543, %v7541
    %v7570 = vpack.c.b16 %v7544, %v7542
    %v7571 = vpack.c.b16 %v7547, %v7545
    %v7572 = vpack.c.b16 %v7548, %v7546
    %v7573 = vpack.c.b16 %v7551, %v7549
    %v7574 = vpack.c.b16 %v7552, %v7550
    %v7575 = vpack.c.b16 %v7555, %v7553
    %v7576 = vpack.c.b16 %v7556, %v7554
    %v7577 = vpack.c.b16 %v7559, %v7557
    %v7578 = vpack.c.b16 %v7560, %v7558
    %v7579 = vpack.c.b16 %v7563, %v7561
    %v7580 = vpack.c.b16 %v7564, %v7562
    %7597 = vmatprep.subr.bf16.mxu0 %v7580
    %7598 = vmatpush1.bf16.msra.mxu0 %v7579
    %7599 = vmatprep.subr.bf16.mxu0 %v7578
    %7600 = vmatpush1.bf16.msra.mxu0 %v7577
    %7601 = vmatprep.subr.bf16.mxu0 %v7576
    %7602 = vmatpush1.bf16.msra.mxu0 %v7575
    %7603 = vmatprep.subr.bf16.mxu0 %v7574
    %7604 = vmatpush1.bf16.msra.mxu0 %v7573
    %7605 = vmatprep.subr.bf16.mxu0 %v7572
    %7606 = vmatpush1.bf16.msra.mxu0 %v7571
    %7607 = vmatprep.subr.bf16.mxu0 %v7570
    %7608 = vmatpush1.bf16.msra.mxu0 %v7569
    %7609 = vmatprep.subr.bf16.mxu0 %v7568
    %7610 = vmatpush1.bf16.msra.mxu0 %v7567
    %7611 = vmatprep.subr.bf16.mxu0 %v7566
    %7612 = vmatpush1.bf16.msra.mxu0 %v7565
    %7613 = vmatprep.subr.bf16.mxu0 0
    %7614 = vmatpush2.bf16.msra.mxu0 0
    %7615 = vmatprep.subr.bf16.mxu0 0
    %7616 = vmatpush2.bf16.msra.mxu0 0
    %7617 = vmatprep.subr.bf16.mxu0 0
    %7618 = vmatpush2.bf16.msra.mxu0 0
    %7619 = vmatprep.subr.bf16.mxu0 0
    %7620 = vmatpush2.bf16.msra.mxu0 0
    %7621 = vmatprep.subr.bf16.mxu0 0
    %7622 = vmatpush2.bf16.msra.mxu0 0
    %7623 = vmatprep.subr.bf16.mxu0 0
    %7624 = vmatpush2.bf16.msra.mxu0 0
    %7625 = vmatprep.subr.bf16.mxu0 0
    %7626 = vmatpush2.bf16.msra.mxu0 0
    %7627 = vmatprep.subr.bf16.mxu0 0
    %7628 = vmatpush2.bf16.msra.mxu0 0
    %7629 = vmatprep.mubr.bf16.mxu0 0
    %7630 = vmatmul.mubr.bf16.gmra.mxu0 %v7515
    %v7631 = vpop.f32.mrf.mxu0
    %v7632 = vadd.f32 0.0, %v7631
    %v7633 = vpop.f32.mrf.mxu0
    %v7634 = vadd.f32 0.0, %v7633
    %v7635 = vpop.f32.mrf.mxu0
    %v7636 = vpop.f32.mrf.mxu0
    %7637 = vdwg.mxu0
    %v7638 = vadd.f32 %v7493, %v7632
    %v7639 = vadd.f32 %v7494, %v7634
    %s7640 = scalar_lea.vmem [#allocation2], 896
    %v7641 = vld [vmem:[%s7640] sm:$0xff]
    %v7642 = vld [vmem:[%s7640 + $0x8] sm:$0xff]
    %v7643 = vld [vmem:[%s7640 + $0x10] sm:$0xff]
    %v7644 = vld [vmem:[%s7640 + $0x18] sm:$0xff]
    %v7645 = vld [vmem:[%s7640 + $0x20] sm:$0xff]
    %v7646 = vld [vmem:[%s7640 + $0x28] sm:$0xff]
    %v7647 = vld [vmem:[%s7640 + $0x30] sm:$0xff]
    %v7648 = vld [vmem:[%s7640 + $0x38] sm:$0xff]
    %v7649 = vld [vmem:[%s7640 + $0x40] sm:$0xff]
    %v7650 = vld [vmem:[%s7640 + $0x48] sm:$0xff]
    %v7651 = vld [vmem:[%s7640 + $0x50] sm:$0xff]
    %v7652 = vld [vmem:[%s7640 + $0x58] sm:$0xff]
    %v7653 = vld [vmem:[%s7640 + $0x60] sm:$0xff]
    %v7654 = vld [vmem:[%s7640 + $0x68] sm:$0xff]
    %v7655 = vld [vmem:[%s7640 + $0x70] sm:$0xff]
    %v7656 = vld [vmem:[%s7640 + $0x78] sm:$0xff]
    %v7657 = vrot.slane %v6663, 7
    %v7658 = vrot.slane %v6664, 6
    %v7659 = vsel %vm1830, %v7658, %v7657
    %v7660 = vpack.c.b16 %v7659, %v7659
    %v7678 = vunpack.c.l.b16 %v7641
    %v7679 = vunpack.c.h.b16 %v7641
    %v7680 = vunpack.c.l.b16 %v7642
    %v7681 = vunpack.c.h.b16 %v7642
    %v7682 = vunpack.c.l.b16 %v7643
    %v7683 = vunpack.c.h.b16 %v7643
    %v7684 = vunpack.c.l.b16 %v7644
    %v7685 = vunpack.c.h.b16 %v7644
    %v7686 = vunpack.c.l.b16 %v7645
    %v7687 = vunpack.c.h.b16 %v7645
    %v7688 = vunpack.c.l.b16 %v7646
    %v7689 = vunpack.c.h.b16 %v7646
    %v7690 = vunpack.c.l.b16 %v7647
    %v7691 = vunpack.c.h.b16 %v7647
    %v7692 = vunpack.c.l.b16 %v7648
    %v7693 = vunpack.c.h.b16 %v7648
    %v7694 = vunpack.c.l.b16 %v7649
    %v7695 = vunpack.c.h.b16 %v7649
    %v7696 = vunpack.c.l.b16 %v7650
    %v7697 = vunpack.c.h.b16 %v7650
    %v7698 = vunpack.c.l.b16 %v7651
    %v7699 = vunpack.c.h.b16 %v7651
    %v7700 = vunpack.c.l.b16 %v7652
    %v7701 = vunpack.c.h.b16 %v7652
    %v7702 = vunpack.c.l.b16 %v7653
    %v7703 = vunpack.c.h.b16 %v7653
    %v7704 = vunpack.c.l.b16 %v7654
    %v7705 = vunpack.c.h.b16 %v7654
    %v7706 = vunpack.c.l.b16 %v7655
    %v7707 = vunpack.c.h.b16 %v7655
    %v7708 = vunpack.c.l.b16 %v7656
    %v7709 = vunpack.c.h.b16 %v7656
    %v7710 = vpack.c.b16 %v7680, %v7678
    %v7711 = vpack.c.b16 %v7681, %v7679
    %v7712 = vpack.c.b16 %v7684, %v7682
    %v7713 = vpack.c.b16 %v7685, %v7683
    %v7714 = vpack.c.b16 %v7688, %v7686
    %v7715 = vpack.c.b16 %v7689, %v7687
    %v7716 = vpack.c.b16 %v7692, %v7690
    %v7717 = vpack.c.b16 %v7693, %v7691
    %v7718 = vpack.c.b16 %v7696, %v7694
    %v7719 = vpack.c.b16 %v7697, %v7695
    %v7720 = vpack.c.b16 %v7700, %v7698
    %v7721 = vpack.c.b16 %v7701, %v7699
    %v7722 = vpack.c.b16 %v7704, %v7702
    %v7723 = vpack.c.b16 %v7705, %v7703
    %v7724 = vpack.c.b16 %v7708, %v7706
    %v7725 = vpack.c.b16 %v7709, %v7707
    %7742 = vmatprep.subr.bf16.mxu0 %v7725
    %7743 = vmatpush1.bf16.msra.mxu0 %v7724
    %7744 = vmatprep.subr.bf16.mxu0 %v7723
    %7745 = vmatpush1.bf16.msra.mxu0 %v7722
    %7746 = vmatprep.subr.bf16.mxu0 %v7721
    %7747 = vmatpush1.bf16.msra.mxu0 %v7720
    %7748 = vmatprep.subr.bf16.mxu0 %v7719
    %7749 = vmatpush1.bf16.msra.mxu0 %v7718
    %7750 = vmatprep.subr.bf16.mxu0 %v7717
    %7751 = vmatpush1.bf16.msra.mxu0 %v7716
    %7752 = vmatprep.subr.bf16.mxu0 %v7715
    %7753 = vmatpush1.bf16.msra.mxu0 %v7714
    %7754 = vmatprep.subr.bf16.mxu0 %v7713
    %7755 = vmatpush1.bf16.msra.mxu0 %v7712
    %7756 = vmatprep.subr.bf16.mxu0 %v7711
    %7757 = vmatpush1.bf16.msra.mxu0 %v7710
    %7758 = vmatprep.subr.bf16.mxu0 0
    %7759 = vmatpush2.bf16.msra.mxu0 0
    %7760 = vmatprep.subr.bf16.mxu0 0
    %7761 = vmatpush2.bf16.msra.mxu0 0
    %7762 = vmatprep.subr.bf16.mxu0 0
    %7763 = vmatpush2.bf16.msra.mxu0 0
    %7764 = vmatprep.subr.bf16.mxu0 0
    %7765 = vmatpush2.bf16.msra.mxu0 0
    %7766 = vmatprep.subr.bf16.mxu0 0
    %7767 = vmatpush2.bf16.msra.mxu0 0
    %7768 = vmatprep.subr.bf16.mxu0 0
    %7769 = vmatpush2.bf16.msra.mxu0 0
    %7770 = vmatprep.subr.bf16.mxu0 0
    %7771 = vmatpush2.bf16.msra.mxu0 0
    %7772 = vmatprep.subr.bf16.mxu0 0
    %7773 = vmatpush2.bf16.msra.mxu0 0
    %7774 = vmatprep.mubr.bf16.mxu0 0
    %7775 = vmatmul.mubr.bf16.gmra.mxu0 %v7660
    %v7776 = vpop.f32.mrf.mxu0
    %v7777 = vadd.f32 0.0, %v7776
    %v7778 = vpop.f32.mrf.mxu0
    %v7779 = vadd.f32 0.0, %v7778
    %v7780 = vpop.f32.mrf.mxu0
    %v7781 = vpop.f32.mrf.mxu0
    %7782 = vdwg.mxu0
    %v7783 = vadd.f32 %v7638, %v7777
    %v7784 = vadd.f32 %v7639, %v7779
    %s7785 = scalar_lea.vmem [#allocation2], 1024
    %v7786 = vld [vmem:[%s7785] sm:$0xff]
    %v7787 = vld [vmem:[%s7785 + $0x8] sm:$0xff]
    %v7788 = vld [vmem:[%s7785 + $0x10] sm:$0xff]
    %v7789 = vld [vmem:[%s7785 + $0x18] sm:$0xff]
    %v7790 = vld [vmem:[%s7785 + $0x20] sm:$0xff]
    %v7791 = vld [vmem:[%s7785 + $0x28] sm:$0xff]
    %v7792 = vld [vmem:[%s7785 + $0x30] sm:$0xff]
    %v7793 = vld [vmem:[%s7785 + $0x38] sm:$0xff]
    %v7794 = vld [vmem:[%s7785 + $0x40] sm:$0xff]
    %v7795 = vld [vmem:[%s7785 + $0x48] sm:$0xff]
    %v7796 = vld [vmem:[%s7785 + $0x50] sm:$0xff]
    %v7797 = vld [vmem:[%s7785 + $0x58] sm:$0xff]
    %v7798 = vld [vmem:[%s7785 + $0x60] sm:$0xff]
    %v7799 = vld [vmem:[%s7785 + $0x68] sm:$0xff]
    %v7800 = vld [vmem:[%s7785 + $0x70] sm:$0xff]
    %v7801 = vld [vmem:[%s7785 + $0x78] sm:$0xff]
    %v7802 = vunpack.c.h.b16 %v6624
    %v7803 = vunpack.c.h.b16 %v6626
    %v7804 = vrot.slane %v7803, 7
    %v7805 = vsel %vm1830, %v7804, %v7802
    %v7806 = vpack.c.b16 %v7805, %v7805
    %v7824 = vunpack.c.l.b16 %v7786
    %v7825 = vunpack.c.h.b16 %v7786
    %v7826 = vunpack.c.l.b16 %v7787
    %v7827 = vunpack.c.h.b16 %v7787
    %v7828 = vunpack.c.l.b16 %v7788
    %v7829 = vunpack.c.h.b16 %v7788
    %v7830 = vunpack.c.l.b16 %v7789
    %v7831 = vunpack.c.h.b16 %v7789
    %v7832 = vunpack.c.l.b16 %v7790
    %v7833 = vunpack.c.h.b16 %v7790
    %v7834 = vunpack.c.l.b16 %v7791
    %v7835 = vunpack.c.h.b16 %v7791
    %v7836 = vunpack.c.l.b16 %v7792
    %v7837 = vunpack.c.h.b16 %v7792
    %v7838 = vunpack.c.l.b16 %v7793
    %v7839 = vunpack.c.h.b16 %v7793
    %v7840 = vunpack.c.l.b16 %v7794
    %v7841 = vunpack.c.h.b16 %v7794
    %v7842 = vunpack.c.l.b16 %v7795
    %v7843 = vunpack.c.h.b16 %v7795
    %v7844 = vunpack.c.l.b16 %v7796
    %v7845 = vunpack.c.h.b16 %v7796
    %v7846 = vunpack.c.l.b16 %v7797
    %v7847 = vunpack.c.h.b16 %v7797
    %v7848 = vunpack.c.l.b16 %v7798
    %v7849 = vunpack.c.h.b16 %v7798
    %v7850 = vunpack.c.l.b16 %v7799
    %v7851 = vunpack.c.h.b16 %v7799
    %v7852 = vunpack.c.l.b16 %v7800
    %v7853 = vunpack.c.h.b16 %v7800
    %v7854 = vunpack.c.l.b16 %v7801
    %v7855 = vunpack.c.h.b16 %v7801
    %v7856 = vpack.c.b16 %v7826, %v7824
    %v7857 = vpack.c.b16 %v7827, %v7825
    %v7858 = vpack.c.b16 %v7830, %v7828
    %v7859 = vpack.c.b16 %v7831, %v7829
    %v7860 = vpack.c.b16 %v7834, %v7832
    %v7861 = vpack.c.b16 %v7835, %v7833
    %v7862 = vpack.c.b16 %v7838, %v7836
    %v7863 = vpack.c.b16 %v7839, %v7837
    %v7864 = vpack.c.b16 %v7842, %v7840
    %v7865 = vpack.c.b16 %v7843, %v7841
    %v7866 = vpack.c.b16 %v7846, %v7844
    %v7867 = vpack.c.b16 %v7847, %v7845
    %v7868 = vpack.c.b16 %v7850, %v7848
    %v7869 = vpack.c.b16 %v7851, %v7849
    %v7870 = vpack.c.b16 %v7854, %v7852
    %v7871 = vpack.c.b16 %v7855, %v7853
    %7888 = vmatprep.subr.bf16.mxu0 %v7871
    %7889 = vmatpush1.bf16.msra.mxu0 %v7870
    %7890 = vmatprep.subr.bf16.mxu0 %v7869
    %7891 = vmatpush1.bf16.msra.mxu0 %v7868
    %7892 = vmatprep.subr.bf16.mxu0 %v7867
    %7893 = vmatpush1.bf16.msra.mxu0 %v7866
    %7894 = vmatprep.subr.bf16.mxu0 %v7865
    %7895 = vmatpush1.bf16.msra.mxu0 %v7864
    %7896 = vmatprep.subr.bf16.mxu0 %v7863
    %7897 = vmatpush1.bf16.msra.mxu0 %v7862
    %7898 = vmatprep.subr.bf16.mxu0 %v7861
    %7899 = vmatpush1.bf16.msra.mxu0 %v7860
    %7900 = vmatprep.subr.bf16.mxu0 %v7859
    %7901 = vmatpush1.bf16.msra.mxu0 %v7858
    %7902 = vmatprep.subr.bf16.mxu0 %v7857
    %7903 = vmatpush1.bf16.msra.mxu0 %v7856
    %7904 = vmatprep.subr.bf16.mxu0 0
    %7905 = vmatpush2.bf16.msra.mxu0 0
    %7906 = vmatprep.subr.bf16.mxu0 0
    %7907 = vmatpush2.bf16.msra.mxu0 0
    %7908 = vmatprep.subr.bf16.mxu0 0
    %7909 = vmatpush2.bf16.msra.mxu0 0
    %7910 = vmatprep.subr.bf16.mxu0 0
    %7911 = vmatpush2.bf16.msra.mxu0 0
    %7912 = vmatprep.subr.bf16.mxu0 0
    %7913 = vmatpush2.bf16.msra.mxu0 0
    %7914 = vmatprep.subr.bf16.mxu0 0
    %7915 = vmatpush2.bf16.msra.mxu0 0
    %7916 = vmatprep.subr.bf16.mxu0 0
    %7917 = vmatpush2.bf16.msra.mxu0 0
    %7918 = vmatprep.subr.bf16.mxu0 0
    %7919 = vmatpush2.bf16.msra.mxu0 0
    %7920 = vmatprep.mubr.bf16.mxu0 0
    %7921 = vmatmul.mubr.bf16.gmra.mxu0 %v7806
    %v7922 = vpop.f32.mrf.mxu0
    %v7923 = vadd.f32 0.0, %v7922
    %v7924 = vpop.f32.mrf.mxu0
    %v7925 = vadd.f32 0.0, %v7924
    %v7926 = vpop.f32.mrf.mxu0
    %v7927 = vpop.f32.mrf.mxu0
    %7928 = vdwg.mxu0
    %v7929 = vadd.f32 %v7783, %v7923
    %v7930 = vadd.f32 %v7784, %v7925
    %s7931 = scalar_lea.vmem [#allocation2], 1152
    %v7932 = vld [vmem:[%s7931] sm:$0xff]
    %v7933 = vld [vmem:[%s7931 + $0x8] sm:$0xff]
    %v7934 = vld [vmem:[%s7931 + $0x10] sm:$0xff]
    %v7935 = vld [vmem:[%s7931 + $0x18] sm:$0xff]
    %v7936 = vld [vmem:[%s7931 + $0x20] sm:$0xff]
    %v7937 = vld [vmem:[%s7931 + $0x28] sm:$0xff]
    %v7938 = vld [vmem:[%s7931 + $0x30] sm:$0xff]
    %v7939 = vld [vmem:[%s7931 + $0x38] sm:$0xff]
    %v7940 = vld [vmem:[%s7931 + $0x40] sm:$0xff]
    %v7941 = vld [vmem:[%s7931 + $0x48] sm:$0xff]
    %v7942 = vld [vmem:[%s7931 + $0x50] sm:$0xff]
    %v7943 = vld [vmem:[%s7931 + $0x58] sm:$0xff]
    %v7944 = vld [vmem:[%s7931 + $0x60] sm:$0xff]
    %v7945 = vld [vmem:[%s7931 + $0x68] sm:$0xff]
    %v7946 = vld [vmem:[%s7931 + $0x70] sm:$0xff]
    %v7947 = vld [vmem:[%s7931 + $0x78] sm:$0xff]
    %v7948 = vrot.slane %v7802, 1
    %v7949 = vsel %vm1830, %v7803, %v7948
    %v7950 = vpack.c.b16 %v7949, %v7949
    %v7968 = vunpack.c.l.b16 %v7932
    %v7969 = vunpack.c.h.b16 %v7932
    %v7970 = vunpack.c.l.b16 %v7933
    %v7971 = vunpack.c.h.b16 %v7933
    %v7972 = vunpack.c.l.b16 %v7934
    %v7973 = vunpack.c.h.b16 %v7934
    %v7974 = vunpack.c.l.b16 %v7935
    %v7975 = vunpack.c.h.b16 %v7935
    %v7976 = vunpack.c.l.b16 %v7936
    %v7977 = vunpack.c.h.b16 %v7936
    %v7978 = vunpack.c.l.b16 %v7937
    %v7979 = vunpack.c.h.b16 %v7937
    %v7980 = vunpack.c.l.b16 %v7938
    %v7981 = vunpack.c.h.b16 %v7938
    %v7982 = vunpack.c.l.b16 %v7939
    %v7983 = vunpack.c.h.b16 %v7939
    %v7984 = vunpack.c.l.b16 %v7940
    %v7985 = vunpack.c.h.b16 %v7940
    %v7986 = vunpack.c.l.b16 %v7941
    %v7987 = vunpack.c.h.b16 %v7941
    %v7988 = vunpack.c.l.b16 %v7942
    %v7989 = vunpack.c.h.b16 %v7942
    %v7990 = vunpack.c.l.b16 %v7943
    %v7991 = vunpack.c.h.b16 %v7943
    %v7992 = vunpack.c.l.b16 %v7944
    %v7993 = vunpack.c.h.b16 %v7944
    %v7994 = vunpack.c.l.b16 %v7945
    %v7995 = vunpack.c.h.b16 %v7945
    %v7996 = vunpack.c.l.b16 %v7946
    %v7997 = vunpack.c.h.b16 %v7946
    %v7998 = vunpack.c.l.b16 %v7947
    %v7999 = vunpack.c.h.b16 %v7947
    %v8000 = vpack.c.b16 %v7970, %v7968
    %v8001 = vpack.c.b16 %v7971, %v7969
    %v8002 = vpack.c.b16 %v7974, %v7972
    %v8003 = vpack.c.b16 %v7975, %v7973
    %v8004 = vpack.c.b16 %v7978, %v7976
    %v8005 = vpack.c.b16 %v7979, %v7977
    %v8006 = vpack.c.b16 %v7982, %v7980
    %v8007 = vpack.c.b16 %v7983, %v7981
    %v8008 = vpack.c.b16 %v7986, %v7984
    %v8009 = vpack.c.b16 %v7987, %v7985
    %v8010 = vpack.c.b16 %v7990, %v7988
    %v8011 = vpack.c.b16 %v7991, %v7989
    %v8012 = vpack.c.b16 %v7994, %v7992
    %v8013 = vpack.c.b16 %v7995, %v7993
    %v8014 = vpack.c.b16 %v7998, %v7996
    %v8015 = vpack.c.b16 %v7999, %v7997
    %8032 = vmatprep.subr.bf16.mxu0 %v8015
    %8033 = vmatpush1.bf16.msra.mxu0 %v8014
    %8034 = vmatprep.subr.bf16.mxu0 %v8013
    %8035 = vmatpush1.bf16.msra.mxu0 %v8012
    %8036 = vmatprep.subr.bf16.mxu0 %v8011
    %8037 = vmatpush1.bf16.msra.mxu0 %v8010
    %8038 = vmatprep.subr.bf16.mxu0 %v8009
    %8039 = vmatpush1.bf16.msra.mxu0 %v8008
    %8040 = vmatprep.subr.bf16.mxu0 %v8007
    %8041 = vmatpush1.bf16.msra.mxu0 %v8006
    %8042 = vmatprep.subr.bf16.mxu0 %v8005
    %8043 = vmatpush1.bf16.msra.mxu0 %v8004
    %8044 = vmatprep.subr.bf16.mxu0 %v8003
    %8045 = vmatpush1.bf16.msra.mxu0 %v8002
    %8046 = vmatprep.subr.bf16.mxu0 %v8001
    %8047 = vmatpush1.bf16.msra.mxu0 %v8000
    %8048 = vmatprep.subr.bf16.mxu0 0
    %8049 = vmatpush2.bf16.msra.mxu0 0
    %8050 = vmatprep.subr.bf16.mxu0 0
    %8051 = vmatpush2.bf16.msra.mxu0 0
    %8052 = vmatprep.subr.bf16.mxu0 0
    %8053 = vmatpush2.bf16.msra.mxu0 0
    %8054 = vmatprep.subr.bf16.mxu0 0
    %8055 = vmatpush2.bf16.msra.mxu0 0
    %8056 = vmatprep.subr.bf16.mxu0 0
    %8057 = vmatpush2.bf16.msra.mxu0 0
    %8058 = vmatprep.subr.bf16.mxu0 0
    %8059 = vmatpush2.bf16.msra.mxu0 0
    %8060 = vmatprep.subr.bf16.mxu0 0
    %8061 = vmatpush2.bf16.msra.mxu0 0
    %8062 = vmatprep.subr.bf16.mxu0 0
    %8063 = vmatpush2.bf16.msra.mxu0 0
    %8064 = vmatprep.mubr.bf16.mxu0 0
    %8065 = vmatmul.mubr.bf16.gmra.mxu0 %v7950
    %v8066 = vpop.f32.mrf.mxu0
    %v8067 = vadd.f32 0.0, %v8066
    %v8068 = vpop.f32.mrf.mxu0
    %v8069 = vadd.f32 0.0, %v8068
    %v8070 = vpop.f32.mrf.mxu0
    %v8071 = vpop.f32.mrf.mxu0
    %8072 = vdwg.mxu0
    %v8073 = vadd.f32 %v7929, %v8067
    %v8074 = vadd.f32 %v7930, %v8069
    %s8075 = scalar_lea.vmem [#allocation2], 1280
    %v8076 = vld [vmem:[%s8075] sm:$0xff]
    %v8077 = vld [vmem:[%s8075 + $0x8] sm:$0xff]
    %v8078 = vld [vmem:[%s8075 + $0x10] sm:$0xff]
    %v8079 = vld [vmem:[%s8075 + $0x18] sm:$0xff]
    %v8080 = vld [vmem:[%s8075 + $0x20] sm:$0xff]
    %v8081 = vld [vmem:[%s8075 + $0x28] sm:$0xff]
    %v8082 = vld [vmem:[%s8075 + $0x30] sm:$0xff]
    %v8083 = vld [vmem:[%s8075 + $0x38] sm:$0xff]
    %v8084 = vld [vmem:[%s8075 + $0x40] sm:$0xff]
    %v8085 = vld [vmem:[%s8075 + $0x48] sm:$0xff]
    %v8086 = vld [vmem:[%s8075 + $0x50] sm:$0xff]
    %v8087 = vld [vmem:[%s8075 + $0x58] sm:$0xff]
    %v8088 = vld [vmem:[%s8075 + $0x60] sm:$0xff]
    %v8089 = vld [vmem:[%s8075 + $0x68] sm:$0xff]
    %v8090 = vld [vmem:[%s8075 + $0x70] sm:$0xff]
    %v8091 = vld [vmem:[%s8075 + $0x78] sm:$0xff]
    %v8092 = vrot.slane %v7802, 2
    %v8093 = vrot.slane %v7803, 1
    %v8094 = vsel %vm1830, %v8093, %v8092
    %v8095 = vpack.c.b16 %v8094, %v8094
    %v8113 = vunpack.c.l.b16 %v8076
    %v8114 = vunpack.c.h.b16 %v8076
    %v8115 = vunpack.c.l.b16 %v8077
    %v8116 = vunpack.c.h.b16 %v8077
    %v8117 = vunpack.c.l.b16 %v8078
    %v8118 = vunpack.c.h.b16 %v8078
    %v8119 = vunpack.c.l.b16 %v8079
    %v8120 = vunpack.c.h.b16 %v8079
    %v8121 = vunpack.c.l.b16 %v8080
    %v8122 = vunpack.c.h.b16 %v8080
    %v8123 = vunpack.c.l.b16 %v8081
    %v8124 = vunpack.c.h.b16 %v8081
    %v8125 = vunpack.c.l.b16 %v8082
    %v8126 = vunpack.c.h.b16 %v8082
    %v8127 = vunpack.c.l.b16 %v8083
    %v8128 = vunpack.c.h.b16 %v8083
    %v8129 = vunpack.c.l.b16 %v8084
    %v8130 = vunpack.c.h.b16 %v8084
    %v8131 = vunpack.c.l.b16 %v8085
    %v8132 = vunpack.c.h.b16 %v8085
    %v8133 = vunpack.c.l.b16 %v8086
    %v8134 = vunpack.c.h.b16 %v8086
    %v8135 = vunpack.c.l.b16 %v8087
    %v8136 = vunpack.c.h.b16 %v8087
    %v8137 = vunpack.c.l.b16 %v8088
    %v8138 = vunpack.c.h.b16 %v8088
    %v8139 = vunpack.c.l.b16 %v8089
    %v8140 = vunpack.c.h.b16 %v8089
    %v8141 = vunpack.c.l.b16 %v8090
    %v8142 = vunpack.c.h.b16 %v8090
    %v8143 = vunpack.c.l.b16 %v8091
    %v8144 = vunpack.c.h.b16 %v8091
    %v8145 = vpack.c.b16 %v8115, %v8113
    %v8146 = vpack.c.b16 %v8116, %v8114
    %v8147 = vpack.c.b16 %v8119, %v8117
    %v8148 = vpack.c.b16 %v8120, %v8118
    %v8149 = vpack.c.b16 %v8123, %v8121
    %v8150 = vpack.c.b16 %v8124, %v8122
    %v8151 = vpack.c.b16 %v8127, %v8125
    %v8152 = vpack.c.b16 %v8128, %v8126
    %v8153 = vpack.c.b16 %v8131, %v8129
    %v8154 = vpack.c.b16 %v8132, %v8130
    %v8155 = vpack.c.b16 %v8135, %v8133
    %v8156 = vpack.c.b16 %v8136, %v8134
    %v8157 = vpack.c.b16 %v8139, %v8137
    %v8158 = vpack.c.b16 %v8140, %v8138
    %v8159 = vpack.c.b16 %v8143, %v8141
    %v8160 = vpack.c.b16 %v8144, %v8142
    %8177 = vmatprep.subr.bf16.mxu0 %v8160
    %8178 = vmatpush1.bf16.msra.mxu0 %v8159
    %8179 = vmatprep.subr.bf16.mxu0 %v8158
    %8180 = vmatpush1.bf16.msra.mxu0 %v8157
    %8181 = vmatprep.subr.bf16.mxu0 %v8156
    %8182 = vmatpush1.bf16.msra.mxu0 %v8155
    %8183 = vmatprep.subr.bf16.mxu0 %v8154
    %8184 = vmatpush1.bf16.msra.mxu0 %v8153
    %8185 = vmatprep.subr.bf16.mxu0 %v8152
    %8186 = vmatpush1.bf16.msra.mxu0 %v8151
    %8187 = vmatprep.subr.bf16.mxu0 %v8150
    %8188 = vmatpush1.bf16.msra.mxu0 %v8149
    %8189 = vmatprep.subr.bf16.mxu0 %v8148
    %8190 = vmatpush1.bf16.msra.mxu0 %v8147
    %8191 = vmatprep.subr.bf16.mxu0 %v8146
    %8192 = vmatpush1.bf16.msra.mxu0 %v8145
    %8193 = vmatprep.subr.bf16.mxu0 0
    %8194 = vmatpush2.bf16.msra.mxu0 0
    %8195 = vmatprep.subr.bf16.mxu0 0
    %8196 = vmatpush2.bf16.msra.mxu0 0
    %8197 = vmatprep.subr.bf16.mxu0 0
    %8198 = vmatpush2.bf16.msra.mxu0 0
    %8199 = vmatprep.subr.bf16.mxu0 0
    %8200 = vmatpush2.bf16.msra.mxu0 0
    %8201 = vmatprep.subr.bf16.mxu0 0
    %8202 = vmatpush2.bf16.msra.mxu0 0
    %8203 = vmatprep.subr.bf16.mxu0 0
    %8204 = vmatpush2.bf16.msra.mxu0 0
    %8205 = vmatprep.subr.bf16.mxu0 0
    %8206 = vmatpush2.bf16.msra.mxu0 0
    %8207 = vmatprep.subr.bf16.mxu0 0
    %8208 = vmatpush2.bf16.msra.mxu0 0
    %8209 = vmatprep.mubr.bf16.mxu0 0
    %8210 = vmatmul.mubr.bf16.gmra.mxu0 %v8095
    %v8211 = vpop.f32.mrf.mxu0
    %v8212 = vadd.f32 0.0, %v8211
    %v8213 = vpop.f32.mrf.mxu0
    %v8214 = vadd.f32 0.0, %v8213
    %v8215 = vpop.f32.mrf.mxu0
    %v8216 = vpop.f32.mrf.mxu0
    %8217 = vdwg.mxu0
    %v8218 = vadd.f32 %v8073, %v8212
    %v8219 = vadd.f32 %v8074, %v8214
    %s8220 = scalar_lea.vmem [#allocation2], 1408
    %v8221 = vld [vmem:[%s8220] sm:$0xff]
    %v8222 = vld [vmem:[%s8220 + $0x8] sm:$0xff]
    %v8223 = vld [vmem:[%s8220 + $0x10] sm:$0xff]
    %v8224 = vld [vmem:[%s8220 + $0x18] sm:$0xff]
    %v8225 = vld [vmem:[%s8220 + $0x20] sm:$0xff]
    %v8226 = vld [vmem:[%s8220 + $0x28] sm:$0xff]
    %v8227 = vld [vmem:[%s8220 + $0x30] sm:$0xff]
    %v8228 = vld [vmem:[%s8220 + $0x38] sm:$0xff]
    %v8229 = vld [vmem:[%s8220 + $0x40] sm:$0xff]
    %v8230 = vld [vmem:[%s8220 + $0x48] sm:$0xff]
    %v8231 = vld [vmem:[%s8220 + $0x50] sm:$0xff]
    %v8232 = vld [vmem:[%s8220 + $0x58] sm:$0xff]
    %v8233 = vld [vmem:[%s8220 + $0x60] sm:$0xff]
    %v8234 = vld [vmem:[%s8220 + $0x68] sm:$0xff]
    %v8235 = vld [vmem:[%s8220 + $0x70] sm:$0xff]
    %v8236 = vld [vmem:[%s8220 + $0x78] sm:$0xff]
    %v8237 = vrot.slane %v7802, 3
    %v8238 = vrot.slane %v7803, 2
    %v8239 = vsel %vm1830, %v8238, %v8237
    %v8240 = vpack.c.b16 %v8239, %v8239
    %v8258 = vunpack.c.l.b16 %v8221
    %v8259 = vunpack.c.h.b16 %v8221
    %v8260 = vunpack.c.l.b16 %v8222
    %v8261 = vunpack.c.h.b16 %v8222
    %v8262 = vunpack.c.l.b16 %v8223
    %v8263 = vunpack.c.h.b16 %v8223
    %v8264 = vunpack.c.l.b16 %v8224
    %v8265 = vunpack.c.h.b16 %v8224
    %v8266 = vunpack.c.l.b16 %v8225
    %v8267 = vunpack.c.h.b16 %v8225
    %v8268 = vunpack.c.l.b16 %v8226
    %v8269 = vunpack.c.h.b16 %v8226
    %v8270 = vunpack.c.l.b16 %v8227
    %v8271 = vunpack.c.h.b16 %v8227
    %v8272 = vunpack.c.l.b16 %v8228
    %v8273 = vunpack.c.h.b16 %v8228
    %v8274 = vunpack.c.l.b16 %v8229
    %v8275 = vunpack.c.h.b16 %v8229
    %v8276 = vunpack.c.l.b16 %v8230
    %v8277 = vunpack.c.h.b16 %v8230
    %v8278 = vunpack.c.l.b16 %v8231
    %v8279 = vunpack.c.h.b16 %v8231
    %v8280 = vunpack.c.l.b16 %v8232
    %v8281 = vunpack.c.h.b16 %v8232
    %v8282 = vunpack.c.l.b16 %v8233
    %v8283 = vunpack.c.h.b16 %v8233
    %v8284 = vunpack.c.l.b16 %v8234
    %v8285 = vunpack.c.h.b16 %v8234
    %v8286 = vunpack.c.l.b16 %v8235
    %v8287 = vunpack.c.h.b16 %v8235
    %v8288 = vunpack.c.l.b16 %v8236
    %v8289 = vunpack.c.h.b16 %v8236
    %v8290 = vpack.c.b16 %v8260, %v8258
    %v8291 = vpack.c.b16 %v8261, %v8259
    %v8292 = vpack.c.b16 %v8264, %v8262
    %v8293 = vpack.c.b16 %v8265, %v8263
    %v8294 = vpack.c.b16 %v8268, %v8266
    %v8295 = vpack.c.b16 %v8269, %v8267
    %v8296 = vpack.c.b16 %v8272, %v8270
    %v8297 = vpack.c.b16 %v8273, %v8271
    %v8298 = vpack.c.b16 %v8276, %v8274
    %v8299 = vpack.c.b16 %v8277, %v8275
    %v8300 = vpack.c.b16 %v8280, %v8278
    %v8301 = vpack.c.b16 %v8281, %v8279
    %v8302 = vpack.c.b16 %v8284, %v8282
    %v8303 = vpack.c.b16 %v8285, %v8283
    %v8304 = vpack.c.b16 %v8288, %v8286
    %v8305 = vpack.c.b16 %v8289, %v8287
    %8322 = vmatprep.subr.bf16.mxu0 %v8305
    %8323 = vmatpush1.bf16.msra.mxu0 %v8304
    %8324 = vmatprep.subr.bf16.mxu0 %v8303
    %8325 = vmatpush1.bf16.msra.mxu0 %v8302
    %8326 = vmatprep.subr.bf16.mxu0 %v8301
    %8327 = vmatpush1.bf16.msra.mxu0 %v8300
    %8328 = vmatprep.subr.bf16.mxu0 %v8299
    %8329 = vmatpush1.bf16.msra.mxu0 %v8298
    %8330 = vmatprep.subr.bf16.mxu0 %v8297
    %8331 = vmatpush1.bf16.msra.mxu0 %v8296
    %8332 = vmatprep.subr.bf16.mxu0 %v8295
    %8333 = vmatpush1.bf16.msra.mxu0 %v8294
    %8334 = vmatprep.subr.bf16.mxu0 %v8293
    %8335 = vmatpush1.bf16.msra.mxu0 %v8292
    %8336 = vmatprep.subr.bf16.mxu0 %v8291
    %8337 = vmatpush1.bf16.msra.mxu0 %v8290
    %8338 = vmatprep.subr.bf16.mxu0 0
    %8339 = vmatpush2.bf16.msra.mxu0 0
    %8340 = vmatprep.subr.bf16.mxu0 0
    %8341 = vmatpush2.bf16.msra.mxu0 0
    %8342 = vmatprep.subr.bf16.mxu0 0
    %8343 = vmatpush2.bf16.msra.mxu0 0
    %8344 = vmatprep.subr.bf16.mxu0 0
    %8345 = vmatpush2.bf16.msra.mxu0 0
    %8346 = vmatprep.subr.bf16.mxu0 0
    %8347 = vmatpush2.bf16.msra.mxu0 0
    %8348 = vmatprep.subr.bf16.mxu0 0
    %8349 = vmatpush2.bf16.msra.mxu0 0
    %8350 = vmatprep.subr.bf16.mxu0 0
    %8351 = vmatpush2.bf16.msra.mxu0 0
    %8352 = vmatprep.subr.bf16.mxu0 0
    %8353 = vmatpush2.bf16.msra.mxu0 0
    %8354 = vmatprep.mubr.bf16.mxu0 0
    %8355 = vmatmul.mubr.bf16.gmra.mxu0 %v8240
    %v8356 = vpop.f32.mrf.mxu0
    %v8357 = vadd.f32 0.0, %v8356
    %v8358 = vpop.f32.mrf.mxu0
    %v8359 = vadd.f32 0.0, %v8358
    %v8360 = vpop.f32.mrf.mxu0
    %v8361 = vpop.f32.mrf.mxu0
    %8362 = vdwg.mxu0
    %v8363 = vadd.f32 %v8218, %v8357
    %v8364 = vadd.f32 %v8219, %v8359
    %s8365 = scalar_lea.vmem [#allocation2], 1536
    %v8366 = vld [vmem:[%s8365] sm:$0xff]
    %v8367 = vld [vmem:[%s8365 + $0x8] sm:$0xff]
    %v8368 = vld [vmem:[%s8365 + $0x10] sm:$0xff]
    %v8369 = vld [vmem:[%s8365 + $0x18] sm:$0xff]
    %v8370 = vld [vmem:[%s8365 + $0x20] sm:$0xff]
    %v8371 = vld [vmem:[%s8365 + $0x28] sm:$0xff]
    %v8372 = vld [vmem:[%s8365 + $0x30] sm:$0xff]
    %v8373 = vld [vmem:[%s8365 + $0x38] sm:$0xff]
    %v8374 = vld [vmem:[%s8365 + $0x40] sm:$0xff]
    %v8375 = vld [vmem:[%s8365 + $0x48] sm:$0xff]
    %v8376 = vld [vmem:[%s8365 + $0x50] sm:$0xff]
    %v8377 = vld [vmem:[%s8365 + $0x58] sm:$0xff]
    %v8378 = vld [vmem:[%s8365 + $0x60] sm:$0xff]
    %v8379 = vld [vmem:[%s8365 + $0x68] sm:$0xff]
    %v8380 = vld [vmem:[%s8365 + $0x70] sm:$0xff]
    %v8381 = vld [vmem:[%s8365 + $0x78] sm:$0xff]
    %v8382 = vrot.slane %v7802, 4
    %v8383 = vrot.slane %v7803, 3
    %v8384 = vsel %vm1830, %v8383, %v8382
    %v8385 = vpack.c.b16 %v8384, %v8384
    %v8403 = vunpack.c.l.b16 %v8366
    %v8404 = vunpack.c.h.b16 %v8366
    %v8405 = vunpack.c.l.b16 %v8367
    %v8406 = vunpack.c.h.b16 %v8367
    %v8407 = vunpack.c.l.b16 %v8368
    %v8408 = vunpack.c.h.b16 %v8368
    %v8409 = vunpack.c.l.b16 %v8369
    %v8410 = vunpack.c.h.b16 %v8369
    %v8411 = vunpack.c.l.b16 %v8370
    %v8412 = vunpack.c.h.b16 %v8370
    %v8413 = vunpack.c.l.b16 %v8371
    %v8414 = vunpack.c.h.b16 %v8371
    %v8415 = vunpack.c.l.b16 %v8372
    %v8416 = vunpack.c.h.b16 %v8372
    %v8417 = vunpack.c.l.b16 %v8373
    %v8418 = vunpack.c.h.b16 %v8373
    %v8419 = vunpack.c.l.b16 %v8374
    %v8420 = vunpack.c.h.b16 %v8374
    %v8421 = vunpack.c.l.b16 %v8375
    %v8422 = vunpack.c.h.b16 %v8375
    %v8423 = vunpack.c.l.b16 %v8376
    %v8424 = vunpack.c.h.b16 %v8376
    %v8425 = vunpack.c.l.b16 %v8377
    %v8426 = vunpack.c.h.b16 %v8377
    %v8427 = vunpack.c.l.b16 %v8378
    %v8428 = vunpack.c.h.b16 %v8378
    %v8429 = vunpack.c.l.b16 %v8379
    %v8430 = vunpack.c.h.b16 %v8379
    %v8431 = vunpack.c.l.b16 %v8380
    %v8432 = vunpack.c.h.b16 %v8380
    %v8433 = vunpack.c.l.b16 %v8381
    %v8434 = vunpack.c.h.b16 %v8381
    %v8435 = vpack.c.b16 %v8405, %v8403
    %v8436 = vpack.c.b16 %v8406, %v8404
    %v8437 = vpack.c.b16 %v8409, %v8407
    %v8438 = vpack.c.b16 %v8410, %v8408
    %v8439 = vpack.c.b16 %v8413, %v8411
    %v8440 = vpack.c.b16 %v8414, %v8412
    %v8441 = vpack.c.b16 %v8417, %v8415
    %v8442 = vpack.c.b16 %v8418, %v8416
    %v8443 = vpack.c.b16 %v8421, %v8419
    %v8444 = vpack.c.b16 %v8422, %v8420
    %v8445 = vpack.c.b16 %v8425, %v8423
    %v8446 = vpack.c.b16 %v8426, %v8424
    %v8447 = vpack.c.b16 %v8429, %v8427
    %v8448 = vpack.c.b16 %v8430, %v8428
    %v8449 = vpack.c.b16 %v8433, %v8431
    %v8450 = vpack.c.b16 %v8434, %v8432
    %8467 = vmatprep.subr.bf16.mxu0 %v8450
    %8468 = vmatpush1.bf16.msra.mxu0 %v8449
    %8469 = vmatprep.subr.bf16.mxu0 %v8448
    %8470 = vmatpush1.bf16.msra.mxu0 %v8447
    %8471 = vmatprep.subr.bf16.mxu0 %v8446
    %8472 = vmatpush1.bf16.msra.mxu0 %v8445
    %8473 = vmatprep.subr.bf16.mxu0 %v8444
    %8474 = vmatpush1.bf16.msra.mxu0 %v8443
    %8475 = vmatprep.subr.bf16.mxu0 %v8442
    %8476 = vmatpush1.bf16.msra.mxu0 %v8441
    %8477 = vmatprep.subr.bf16.mxu0 %v8440
    %8478 = vmatpush1.bf16.msra.mxu0 %v8439
    %8479 = vmatprep.subr.bf16.mxu0 %v8438
    %8480 = vmatpush1.bf16.msra.mxu0 %v8437
    %8481 = vmatprep.subr.bf16.mxu0 %v8436
    %8482 = vmatpush1.bf16.msra.mxu0 %v8435
    %8483 = vmatprep.subr.bf16.mxu0 0
    %8484 = vmatpush2.bf16.msra.mxu0 0
    %8485 = vmatprep.subr.bf16.mxu0 0
    %8486 = vmatpush2.bf16.msra.mxu0 0
    %8487 = vmatprep.subr.bf16.mxu0 0
    %8488 = vmatpush2.bf16.msra.mxu0 0
    %8489 = vmatprep.subr.bf16.mxu0 0
    %8490 = vmatpush2.bf16.msra.mxu0 0
    %8491 = vmatprep.subr.bf16.mxu0 0
    %8492 = vmatpush2.bf16.msra.mxu0 0
    %8493 = vmatprep.subr.bf16.mxu0 0
    %8494 = vmatpush2.bf16.msra.mxu0 0
    %8495 = vmatprep.subr.bf16.mxu0 0
    %8496 = vmatpush2.bf16.msra.mxu0 0
    %8497 = vmatprep.subr.bf16.mxu0 0
    %8498 = vmatpush2.bf16.msra.mxu0 0
    %8499 = vmatprep.mubr.bf16.mxu0 0
    %8500 = vmatmul.mubr.bf16.gmra.mxu0 %v8385
    %v8501 = vpop.f32.mrf.mxu0
    %v8502 = vadd.f32 0.0, %v8501
    %v8503 = vpop.f32.mrf.mxu0
    %v8504 = vadd.f32 0.0, %v8503
    %v8505 = vpop.f32.mrf.mxu0
    %v8506 = vpop.f32.mrf.mxu0
    %8507 = vdwg.mxu0
    %v8508 = vadd.f32 %v8363, %v8502
    %v8509 = vadd.f32 %v8364, %v8504
    %s8510 = scalar_lea.vmem [#allocation2], 1664
    %v8511 = vld [vmem:[%s8510] sm:$0xff]
    %v8512 = vld [vmem:[%s8510 + $0x8] sm:$0xff]
    %v8513 = vld [vmem:[%s8510 + $0x10] sm:$0xff]
    %v8514 = vld [vmem:[%s8510 + $0x18] sm:$0xff]
    %v8515 = vld [vmem:[%s8510 + $0x20] sm:$0xff]
    %v8516 = vld [vmem:[%s8510 + $0x28] sm:$0xff]
    %v8517 = vld [vmem:[%s8510 + $0x30] sm:$0xff]
    %v8518 = vld [vmem:[%s8510 + $0x38] sm:$0xff]
    %v8519 = vld [vmem:[%s8510 + $0x40] sm:$0xff]
    %v8520 = vld [vmem:[%s8510 + $0x48] sm:$0xff]
    %v8521 = vld [vmem:[%s8510 + $0x50] sm:$0xff]
    %v8522 = vld [vmem:[%s8510 + $0x58] sm:$0xff]
    %v8523 = vld [vmem:[%s8510 + $0x60] sm:$0xff]
    %v8524 = vld [vmem:[%s8510 + $0x68] sm:$0xff]
    %v8525 = vld [vmem:[%s8510 + $0x70] sm:$0xff]
    %v8526 = vld [vmem:[%s8510 + $0x78] sm:$0xff]
    %v8527 = vrot.slane %v7802, 5
    %v8528 = vrot.slane %v7803, 4
    %v8529 = vsel %vm1830, %v8528, %v8527
    %v8530 = vpack.c.b16 %v8529, %v8529
    %v8548 = vunpack.c.l.b16 %v8511
    %v8549 = vunpack.c.h.b16 %v8511
    %v8550 = vunpack.c.l.b16 %v8512
    %v8551 = vunpack.c.h.b16 %v8512
    %v8552 = vunpack.c.l.b16 %v8513
    %v8553 = vunpack.c.h.b16 %v8513
    %v8554 = vunpack.c.l.b16 %v8514
    %v8555 = vunpack.c.h.b16 %v8514
    %v8556 = vunpack.c.l.b16 %v8515
    %v8557 = vunpack.c.h.b16 %v8515
    %v8558 = vunpack.c.l.b16 %v8516
    %v8559 = vunpack.c.h.b16 %v8516
    %v8560 = vunpack.c.l.b16 %v8517
    %v8561 = vunpack.c.h.b16 %v8517
    %v8562 = vunpack.c.l.b16 %v8518
    %v8563 = vunpack.c.h.b16 %v8518
    %v8564 = vunpack.c.l.b16 %v8519
    %v8565 = vunpack.c.h.b16 %v8519
    %v8566 = vunpack.c.l.b16 %v8520
    %v8567 = vunpack.c.h.b16 %v8520
    %v8568 = vunpack.c.l.b16 %v8521
    %v8569 = vunpack.c.h.b16 %v8521
    %v8570 = vunpack.c.l.b16 %v8522
    %v8571 = vunpack.c.h.b16 %v8522
    %v8572 = vunpack.c.l.b16 %v8523
    %v8573 = vunpack.c.h.b16 %v8523
    %v8574 = vunpack.c.l.b16 %v8524
    %v8575 = vunpack.c.h.b16 %v8524
    %v8576 = vunpack.c.l.b16 %v8525
    %v8577 = vunpack.c.h.b16 %v8525
    %v8578 = vunpack.c.l.b16 %v8526
    %v8579 = vunpack.c.h.b16 %v8526
    %v8580 = vpack.c.b16 %v8550, %v8548
    %v8581 = vpack.c.b16 %v8551, %v8549
    %v8582 = vpack.c.b16 %v8554, %v8552
    %v8583 = vpack.c.b16 %v8555, %v8553
    %v8584 = vpack.c.b16 %v8558, %v8556
    %v8585 = vpack.c.b16 %v8559, %v8557
    %v8586 = vpack.c.b16 %v8562, %v8560
    %v8587 = vpack.c.b16 %v8563, %v8561
    %v8588 = vpack.c.b16 %v8566, %v8564
    %v8589 = vpack.c.b16 %v8567, %v8565
    %v8590 = vpack.c.b16 %v8570, %v8568
    %v8591 = vpack.c.b16 %v8571, %v8569
    %v8592 = vpack.c.b16 %v8574, %v8572
    %v8593 = vpack.c.b16 %v8575, %v8573
    %v8594 = vpack.c.b16 %v8578, %v8576
    %v8595 = vpack.c.b16 %v8579, %v8577
    %8612 = vmatprep.subr.bf16.mxu0 %v8595
    %8613 = vmatpush1.bf16.msra.mxu0 %v8594
    %8614 = vmatprep.subr.bf16.mxu0 %v8593
    %8615 = vmatpush1.bf16.msra.mxu0 %v8592
    %8616 = vmatprep.subr.bf16.mxu0 %v8591
    %8617 = vmatpush1.bf16.msra.mxu0 %v8590
    %8618 = vmatprep.subr.bf16.mxu0 %v8589
    %8619 = vmatpush1.bf16.msra.mxu0 %v8588
    %8620 = vmatprep.subr.bf16.mxu0 %v8587
    %8621 = vmatpush1.bf16.msra.mxu0 %v8586
    %8622 = vmatprep.subr.bf16.mxu0 %v8585
    %8623 = vmatpush1.bf16.msra.mxu0 %v8584
    %8624 = vmatprep.subr.bf16.mxu0 %v8583
    %8625 = vmatpush1.bf16.msra.mxu0 %v8582
    %8626 = vmatprep.subr.bf16.mxu0 %v8581
    %8627 = vmatpush1.bf16.msra.mxu0 %v8580
    %8628 = vmatprep.subr.bf16.mxu0 0
    %8629 = vmatpush2.bf16.msra.mxu0 0
    %8630 = vmatprep.subr.bf16.mxu0 0
    %8631 = vmatpush2.bf16.msra.mxu0 0
    %8632 = vmatprep.subr.bf16.mxu0 0
    %8633 = vmatpush2.bf16.msra.mxu0 0
    %8634 = vmatprep.subr.bf16.mxu0 0
    %8635 = vmatpush2.bf16.msra.mxu0 0
    %8636 = vmatprep.subr.bf16.mxu0 0
    %8637 = vmatpush2.bf16.msra.mxu0 0
    %8638 = vmatprep.subr.bf16.mxu0 0
    %8639 = vmatpush2.bf16.msra.mxu0 0
    %8640 = vmatprep.subr.bf16.mxu0 0
    %8641 = vmatpush2.bf16.msra.mxu0 0
    %8642 = vmatprep.subr.bf16.mxu0 0
    %8643 = vmatpush2.bf16.msra.mxu0 0
    %8644 = vmatprep.mubr.bf16.mxu0 0
    %8645 = vmatmul.mubr.bf16.gmra.mxu0 %v8530
    %v8646 = vpop.f32.mrf.mxu0
    %v8647 = vadd.f32 0.0, %v8646
    %v8648 = vpop.f32.mrf.mxu0
    %v8649 = vadd.f32 0.0, %v8648
    %v8650 = vpop.f32.mrf.mxu0
    %v8651 = vpop.f32.mrf.mxu0
    %8652 = vdwg.mxu0
    %v8653 = vadd.f32 %v8508, %v8647
    %v8654 = vadd.f32 %v8509, %v8649
    %s8655 = scalar_lea.vmem [#allocation2], 1792
    %v8656 = vld [vmem:[%s8655] sm:$0xff]
    %v8657 = vld [vmem:[%s8655 + $0x8] sm:$0xff]
    %v8658 = vld [vmem:[%s8655 + $0x10] sm:$0xff]
    %v8659 = vld [vmem:[%s8655 + $0x18] sm:$0xff]
    %v8660 = vld [vmem:[%s8655 + $0x20] sm:$0xff]
    %v8661 = vld [vmem:[%s8655 + $0x28] sm:$0xff]
    %v8662 = vld [vmem:[%s8655 + $0x30] sm:$0xff]
    %v8663 = vld [vmem:[%s8655 + $0x38] sm:$0xff]
    %v8664 = vld [vmem:[%s8655 + $0x40] sm:$0xff]
    %v8665 = vld [vmem:[%s8655 + $0x48] sm:$0xff]
    %v8666 = vld [vmem:[%s8655 + $0x50] sm:$0xff]
    %v8667 = vld [vmem:[%s8655 + $0x58] sm:$0xff]
    %v8668 = vld [vmem:[%s8655 + $0x60] sm:$0xff]
    %v8669 = vld [vmem:[%s8655 + $0x68] sm:$0xff]
    %v8670 = vld [vmem:[%s8655 + $0x70] sm:$0xff]
    %v8671 = vld [vmem:[%s8655 + $0x78] sm:$0xff]
    %v8672 = vrot.slane %v7802, 6
    %v8673 = vrot.slane %v7803, 5
    %v8674 = vsel %vm1830, %v8673, %v8672
    %v8675 = vpack.c.b16 %v8674, %v8674
    %v8693 = vunpack.c.l.b16 %v8656
    %v8694 = vunpack.c.h.b16 %v8656
    %v8695 = vunpack.c.l.b16 %v8657
    %v8696 = vunpack.c.h.b16 %v8657
    %v8697 = vunpack.c.l.b16 %v8658
    %v8698 = vunpack.c.h.b16 %v8658
    %v8699 = vunpack.c.l.b16 %v8659
    %v8700 = vunpack.c.h.b16 %v8659
    %v8701 = vunpack.c.l.b16 %v8660
    %v8702 = vunpack.c.h.b16 %v8660
    %v8703 = vunpack.c.l.b16 %v8661
    %v8704 = vunpack.c.h.b16 %v8661
    %v8705 = vunpack.c.l.b16 %v8662
    %v8706 = vunpack.c.h.b16 %v8662
    %v8707 = vunpack.c.l.b16 %v8663
    %v8708 = vunpack.c.h.b16 %v8663
    %v8709 = vunpack.c.l.b16 %v8664
    %v8710 = vunpack.c.h.b16 %v8664
    %v8711 = vunpack.c.l.b16 %v8665
    %v8712 = vunpack.c.h.b16 %v8665
    %v8713 = vunpack.c.l.b16 %v8666
    %v8714 = vunpack.c.h.b16 %v8666
    %v8715 = vunpack.c.l.b16 %v8667
    %v8716 = vunpack.c.h.b16 %v8667
    %v8717 = vunpack.c.l.b16 %v8668
    %v8718 = vunpack.c.h.b16 %v8668
    %v8719 = vunpack.c.l.b16 %v8669
    %v8720 = vunpack.c.h.b16 %v8669
    %v8721 = vunpack.c.l.b16 %v8670
    %v8722 = vunpack.c.h.b16 %v8670
    %v8723 = vunpack.c.l.b16 %v8671
    %v8724 = vunpack.c.h.b16 %v8671
    %v8725 = vpack.c.b16 %v8695, %v8693
    %v8726 = vpack.c.b16 %v8696, %v8694
    %v8727 = vpack.c.b16 %v8699, %v8697
    %v8728 = vpack.c.b16 %v8700, %v8698
    %v8729 = vpack.c.b16 %v8703, %v8701
    %v8730 = vpack.c.b16 %v8704, %v8702
    %v8731 = vpack.c.b16 %v8707, %v8705
    %v8732 = vpack.c.b16 %v8708, %v8706
    %v8733 = vpack.c.b16 %v8711, %v8709
    %v8734 = vpack.c.b16 %v8712, %v8710
    %v8735 = vpack.c.b16 %v8715, %v8713
    %v8736 = vpack.c.b16 %v8716, %v8714
    %v8737 = vpack.c.b16 %v8719, %v8717
    %v8738 = vpack.c.b16 %v8720, %v8718
    %v8739 = vpack.c.b16 %v8723, %v8721
    %v8740 = vpack.c.b16 %v8724, %v8722
    %8757 = vmatprep.subr.bf16.mxu0 %v8740
    %8758 = vmatpush1.bf16.msra.mxu0 %v8739
    %8759 = vmatprep.subr.bf16.mxu0 %v8738
    %8760 = vmatpush1.bf16.msra.mxu0 %v8737
    %8761 = vmatprep.subr.bf16.mxu0 %v8736
    %8762 = vmatpush1.bf16.msra.mxu0 %v8735
    %8763 = vmatprep.subr.bf16.mxu0 %v8734
    %8764 = vmatpush1.bf16.msra.mxu0 %v8733
    %8765 = vmatprep.subr.bf16.mxu0 %v8732
    %8766 = vmatpush1.bf16.msra.mxu0 %v8731
    %8767 = vmatprep.subr.bf16.mxu0 %v8730
    %8768 = vmatpush1.bf16.msra.mxu0 %v8729
    %8769 = vmatprep.subr.bf16.mxu0 %v8728
    %8770 = vmatpush1.bf16.msra.mxu0 %v8727
    %8771 = vmatprep.subr.bf16.mxu0 %v8726
    %8772 = vmatpush1.bf16.msra.mxu0 %v8725
    %8773 = vmatprep.subr.bf16.mxu0 0
    %8774 = vmatpush2.bf16.msra.mxu0 0
    %8775 = vmatprep.subr.bf16.mxu0 0
    %8776 = vmatpush2.bf16.msra.mxu0 0
    %8777 = vmatprep.subr.bf16.mxu0 0
    %8778 = vmatpush2.bf16.msra.mxu0 0
    %8779 = vmatprep.subr.bf16.mxu0 0
    %8780 = vmatpush2.bf16.msra.mxu0 0
    %8781 = vmatprep.subr.bf16.mxu0 0
    %8782 = vmatpush2.bf16.msra.mxu0 0
    %8783 = vmatprep.subr.bf16.mxu0 0
    %8784 = vmatpush2.bf16.msra.mxu0 0
    %8785 = vmatprep.subr.bf16.mxu0 0
    %8786 = vmatpush2.bf16.msra.mxu0 0
    %8787 = vmatprep.subr.bf16.mxu0 0
    %8788 = vmatpush2.bf16.msra.mxu0 0
    %8789 = vmatprep.mubr.bf16.mxu0 0
    %8790 = vmatmul.mubr.bf16.gmra.mxu0 %v8675
    %v8791 = vpop.f32.mrf.mxu0
    %v8792 = vadd.f32 0.0, %v8791
    %v8793 = vpop.f32.mrf.mxu0
    %v8794 = vadd.f32 0.0, %v8793
    %v8795 = vpop.f32.mrf.mxu0
    %v8796 = vpop.f32.mrf.mxu0
    %8797 = vdwg.mxu0
    %v8798 = vadd.f32 %v8653, %v8792
    %v8799 = vadd.f32 %v8654, %v8794
    %s8800 = scalar_lea.vmem [#allocation2], 1920
    %v8801 = vld [vmem:[%s8800] sm:$0xff]
    %v8802 = vld [vmem:[%s8800 + $0x8] sm:$0xff]
    %v8803 = vld [vmem:[%s8800 + $0x10] sm:$0xff]
    %v8804 = vld [vmem:[%s8800 + $0x18] sm:$0xff]
    %v8805 = vld [vmem:[%s8800 + $0x20] sm:$0xff]
    %v8806 = vld [vmem:[%s8800 + $0x28] sm:$0xff]
    %v8807 = vld [vmem:[%s8800 + $0x30] sm:$0xff]
    %v8808 = vld [vmem:[%s8800 + $0x38] sm:$0xff]
    %v8809 = vld [vmem:[%s8800 + $0x40] sm:$0xff]
    %v8810 = vld [vmem:[%s8800 + $0x48] sm:$0xff]
    %v8811 = vld [vmem:[%s8800 + $0x50] sm:$0xff]
    %v8812 = vld [vmem:[%s8800 + $0x58] sm:$0xff]
    %v8813 = vld [vmem:[%s8800 + $0x60] sm:$0xff]
    %v8814 = vld [vmem:[%s8800 + $0x68] sm:$0xff]
    %v8815 = vld [vmem:[%s8800 + $0x70] sm:$0xff]
    %v8816 = vld [vmem:[%s8800 + $0x78] sm:$0xff]
    %v8817 = vrot.slane %v7802, 7
    %v8818 = vrot.slane %v7803, 6
    %v8819 = vsel %vm1830, %v8818, %v8817
    %v8820 = vpack.c.b16 %v8819, %v8819
    %v8838 = vunpack.c.l.b16 %v8801
    %v8839 = vunpack.c.h.b16 %v8801
    %v8840 = vunpack.c.l.b16 %v8802
    %v8841 = vunpack.c.h.b16 %v8802
    %v8842 = vunpack.c.l.b16 %v8803
    %v8843 = vunpack.c.h.b16 %v8803
    %v8844 = vunpack.c.l.b16 %v8804
    %v8845 = vunpack.c.h.b16 %v8804
    %v8846 = vunpack.c.l.b16 %v8805
    %v8847 = vunpack.c.h.b16 %v8805
    %v8848 = vunpack.c.l.b16 %v8806
    %v8849 = vunpack.c.h.b16 %v8806
    %v8850 = vunpack.c.l.b16 %v8807
    %v8851 = vunpack.c.h.b16 %v8807
    %v8852 = vunpack.c.l.b16 %v8808
    %v8853 = vunpack.c.h.b16 %v8808
    %v8854 = vunpack.c.l.b16 %v8809
    %v8855 = vunpack.c.h.b16 %v8809
    %v8856 = vunpack.c.l.b16 %v8810
    %v8857 = vunpack.c.h.b16 %v8810
    %v8858 = vunpack.c.l.b16 %v8811
    %v8859 = vunpack.c.h.b16 %v8811
    %v8860 = vunpack.c.l.b16 %v8812
    %v8861 = vunpack.c.h.b16 %v8812
    %v8862 = vunpack.c.l.b16 %v8813
    %v8863 = vunpack.c.h.b16 %v8813
    %v8864 = vunpack.c.l.b16 %v8814
    %v8865 = vunpack.c.h.b16 %v8814
    %v8866 = vunpack.c.l.b16 %v8815
    %v8867 = vunpack.c.h.b16 %v8815
    %v8868 = vunpack.c.l.b16 %v8816
    %v8869 = vunpack.c.h.b16 %v8816
    %v8870 = vpack.c.b16 %v8840, %v8838
    %v8871 = vpack.c.b16 %v8841, %v8839
    %v8872 = vpack.c.b16 %v8844, %v8842
    %v8873 = vpack.c.b16 %v8845, %v8843
    %v8874 = vpack.c.b16 %v8848, %v8846
    %v8875 = vpack.c.b16 %v8849, %v8847
    %v8876 = vpack.c.b16 %v8852, %v8850
    %v8877 = vpack.c.b16 %v8853, %v8851
    %v8878 = vpack.c.b16 %v8856, %v8854
    %v8879 = vpack.c.b16 %v8857, %v8855
    %v8880 = vpack.c.b16 %v8860, %v8858
    %v8881 = vpack.c.b16 %v8861, %v8859
    %v8882 = vpack.c.b16 %v8864, %v8862
    %v8883 = vpack.c.b16 %v8865, %v8863
    %v8884 = vpack.c.b16 %v8868, %v8866
    %v8885 = vpack.c.b16 %v8869, %v8867
    %8902 = vmatprep.subr.bf16.mxu0 %v8885
    %8903 = vmatpush1.bf16.msra.mxu0 %v8884
    %8904 = vmatprep.subr.bf16.mxu0 %v8883
    %8905 = vmatpush1.bf16.msra.mxu0 %v8882
    %8906 = vmatprep.subr.bf16.mxu0 %v8881
    %8907 = vmatpush1.bf16.msra.mxu0 %v8880
    %8908 = vmatprep.subr.bf16.mxu0 %v8879
    %8909 = vmatpush1.bf16.msra.mxu0 %v8878
    %8910 = vmatprep.subr.bf16.mxu0 %v8877
    %8911 = vmatpush1.bf16.msra.mxu0 %v8876
    %8912 = vmatprep.subr.bf16.mxu0 %v8875
    %8913 = vmatpush1.bf16.msra.mxu0 %v8874
    %8914 = vmatprep.subr.bf16.mxu0 %v8873
    %8915 = vmatpush1.bf16.msra.mxu0 %v8872
    %8916 = vmatprep.subr.bf16.mxu0 %v8871
    %8917 = vmatpush1.bf16.msra.mxu0 %v8870
    %8918 = vmatprep.subr.bf16.mxu0 0
    %8919 = vmatpush2.bf16.msra.mxu0 0
    %8920 = vmatprep.subr.bf16.mxu0 0
    %8921 = vmatpush2.bf16.msra.mxu0 0
    %8922 = vmatprep.subr.bf16.mxu0 0
    %8923 = vmatpush2.bf16.msra.mxu0 0
    %8924 = vmatprep.subr.bf16.mxu0 0
    %8925 = vmatpush2.bf16.msra.mxu0 0
    %8926 = vmatprep.subr.bf16.mxu0 0
    %8927 = vmatpush2.bf16.msra.mxu0 0
    %8928 = vmatprep.subr.bf16.mxu0 0
    %8929 = vmatpush2.bf16.msra.mxu0 0
    %8930 = vmatprep.subr.bf16.mxu0 0
    %8931 = vmatpush2.bf16.msra.mxu0 0
    %8932 = vmatprep.subr.bf16.mxu0 0
    %8933 = vmatpush2.bf16.msra.mxu0 0
    %8934 = vmatprep.mubr.bf16.mxu0 0
    %8935 = vmatmul.mubr.bf16.gmra.mxu0 %v8820
    %v8936 = vpop.f32.mrf.mxu0
    %v8937 = vadd.f32 0.0, %v8936
    %v8938 = vpop.f32.mrf.mxu0
    %v8939 = vadd.f32 0.0, %v8938
    %v8940 = vpop.f32.mrf.mxu0
    %v8941 = vpop.f32.mrf.mxu0
    %8942 = vdwg.mxu0
    %v8943 = vadd.f32 %v8798, %v8937
    %v8944 = vadd.f32 %v8799, %v8939
    %s8945 = scalar_lea.vmem [#allocation2], 2048
    %v8946 = vld [vmem:[%s8945] sm:$0xff]
    %v8947 = vld [vmem:[%s8945 + $0x8] sm:$0xff]
    %v8948 = vld [vmem:[%s8945 + $0x10] sm:$0xff]
    %v8949 = vld [vmem:[%s8945 + $0x18] sm:$0xff]
    %v8950 = vld [vmem:[%s8945 + $0x20] sm:$0xff]
    %v8951 = vld [vmem:[%s8945 + $0x28] sm:$0xff]
    %v8952 = vld [vmem:[%s8945 + $0x30] sm:$0xff]
    %v8953 = vld [vmem:[%s8945 + $0x38] sm:$0xff]
    %v8954 = vld [vmem:[%s8945 + $0x40] sm:$0xff]
    %v8955 = vld [vmem:[%s8945 + $0x48] sm:$0xff]
    %v8956 = vld [vmem:[%s8945 + $0x50] sm:$0xff]
    %v8957 = vld [vmem:[%s8945 + $0x58] sm:$0xff]
    %v8958 = vld [vmem:[%s8945 + $0x60] sm:$0xff]
    %v8959 = vld [vmem:[%s8945 + $0x68] sm:$0xff]
    %v8960 = vld [vmem:[%s8945 + $0x70] sm:$0xff]
    %v8961 = vld [vmem:[%s8945 + $0x78] sm:$0xff]
    %v8964 = vunpack.c.l.b16 %v6625
    %v8965 = vunpack.c.l.b16 %v6627
    %v8966 = vrot.slane %v8965, 7
    %v8967 = vsel %vm1830, %v8966, %v8964
    %v8968 = vpack.c.b16 %v8967, %v8967
    %v8986 = vunpack.c.l.b16 %v8946
    %v8987 = vunpack.c.h.b16 %v8946
    %v8988 = vunpack.c.l.b16 %v8947
    %v8989 = vunpack.c.h.b16 %v8947
    %v8990 = vunpack.c.l.b16 %v8948
    %v8991 = vunpack.c.h.b16 %v8948
    %v8992 = vunpack.c.l.b16 %v8949
    %v8993 = vunpack.c.h.b16 %v8949
    %v8994 = vunpack.c.l.b16 %v8950
    %v8995 = vunpack.c.h.b16 %v8950
    %v8996 = vunpack.c.l.b16 %v8951
    %v8997 = vunpack.c.h.b16 %v8951
    %v8998 = vunpack.c.l.b16 %v8952
    %v8999 = vunpack.c.h.b16 %v8952
    %v9000 = vunpack.c.l.b16 %v8953
    %v9001 = vunpack.c.h.b16 %v8953
    %v9002 = vunpack.c.l.b16 %v8954
    %v9003 = vunpack.c.h.b16 %v8954
    %v9004 = vunpack.c.l.b16 %v8955
    %v9005 = vunpack.c.h.b16 %v8955
    %v9006 = vunpack.c.l.b16 %v8956
    %v9007 = vunpack.c.h.b16 %v8956
    %v9008 = vunpack.c.l.b16 %v8957
    %v9009 = vunpack.c.h.b16 %v8957
    %v9010 = vunpack.c.l.b16 %v8958
    %v9011 = vunpack.c.h.b16 %v8958
    %v9012 = vunpack.c.l.b16 %v8959
    %v9013 = vunpack.c.h.b16 %v8959
    %v9014 = vunpack.c.l.b16 %v8960
    %v9015 = vunpack.c.h.b16 %v8960
    %v9016 = vunpack.c.l.b16 %v8961
    %v9017 = vunpack.c.h.b16 %v8961
    %v9018 = vpack.c.b16 %v8988, %v8986
    %v9019 = vpack.c.b16 %v8989, %v8987
    %v9020 = vpack.c.b16 %v8992, %v8990
    %v9021 = vpack.c.b16 %v8993, %v8991
    %v9022 = vpack.c.b16 %v8996, %v8994
    %v9023 = vpack.c.b16 %v8997, %v8995
    %v9024 = vpack.c.b16 %v9000, %v8998
    %v9025 = vpack.c.b16 %v9001, %v8999
    %v9026 = vpack.c.b16 %v9004, %v9002
    %v9027 = vpack.c.b16 %v9005, %v9003
    %v9028 = vpack.c.b16 %v9008, %v9006
    %v9029 = vpack.c.b16 %v9009, %v9007
    %v9030 = vpack.c.b16 %v9012, %v9010
    %v9031 = vpack.c.b16 %v9013, %v9011
    %v9032 = vpack.c.b16 %v9016, %v9014
    %v9033 = vpack.c.b16 %v9017, %v9015
    %9050 = vmatprep.subr.bf16.mxu0 %v9033
    %9051 = vmatpush1.bf16.msra.mxu0 %v9032
    %9052 = vmatprep.subr.bf16.mxu0 %v9031
    %9053 = vmatpush1.bf16.msra.mxu0 %v9030
    %9054 = vmatprep.subr.bf16.mxu0 %v9029
    %9055 = vmatpush1.bf16.msra.mxu0 %v9028
    %9056 = vmatprep.subr.bf16.mxu0 %v9027
    %9057 = vmatpush1.bf16.msra.mxu0 %v9026
    %9058 = vmatprep.subr.bf16.mxu0 %v9025
    %9059 = vmatpush1.bf16.msra.mxu0 %v9024
    %9060 = vmatprep.subr.bf16.mxu0 %v9023
    %9061 = vmatpush1.bf16.msra.mxu0 %v9022
    %9062 = vmatprep.subr.bf16.mxu0 %v9021
    %9063 = vmatpush1.bf16.msra.mxu0 %v9020
    %9064 = vmatprep.subr.bf16.mxu0 %v9019
    %9065 = vmatpush1.bf16.msra.mxu0 %v9018
    %9066 = vmatprep.subr.bf16.mxu0 0
    %9067 = vmatpush2.bf16.msra.mxu0 0
    %9068 = vmatprep.subr.bf16.mxu0 0
    %9069 = vmatpush2.bf16.msra.mxu0 0
    %9070 = vmatprep.subr.bf16.mxu0 0
    %9071 = vmatpush2.bf16.msra.mxu0 0
    %9072 = vmatprep.subr.bf16.mxu0 0
    %9073 = vmatpush2.bf16.msra.mxu0 0
    %9074 = vmatprep.subr.bf16.mxu0 0
    %9075 = vmatpush2.bf16.msra.mxu0 0
    %9076 = vmatprep.subr.bf16.mxu0 0
    %9077 = vmatpush2.bf16.msra.mxu0 0
    %9078 = vmatprep.subr.bf16.mxu0 0
    %9079 = vmatpush2.bf16.msra.mxu0 0
    %9080 = vmatprep.subr.bf16.mxu0 0
    %9081 = vmatpush2.bf16.msra.mxu0 0
    %9082 = vmatprep.mubr.bf16.mxu0 0
    %9083 = vmatmul.mubr.bf16.gmra.mxu0 %v8968
    %v9084 = vpop.f32.mrf.mxu0
    %v9085 = vadd.f32 0.0, %v9084
    %v9086 = vpop.f32.mrf.mxu0
    %v9087 = vadd.f32 0.0, %v9086
    %v9088 = vpop.f32.mrf.mxu0
    %v9089 = vpop.f32.mrf.mxu0
    %9090 = vdwg.mxu0
    %v9091 = vadd.f32 %v8943, %v9085
    %v9092 = vadd.f32 %v8944, %v9087
    %s9093 = scalar_lea.vmem [#allocation2], 2176
    %v9094 = vld [vmem:[%s9093] sm:$0xff]
    %v9095 = vld [vmem:[%s9093 + $0x8] sm:$0xff]
    %v9096 = vld [vmem:[%s9093 + $0x10] sm:$0xff]
    %v9097 = vld [vmem:[%s9093 + $0x18] sm:$0xff]
    %v9098 = vld [vmem:[%s9093 + $0x20] sm:$0xff]
    %v9099 = vld [vmem:[%s9093 + $0x28] sm:$0xff]
    %v9100 = vld [vmem:[%s9093 + $0x30] sm:$0xff]
    %v9101 = vld [vmem:[%s9093 + $0x38] sm:$0xff]
    %v9102 = vld [vmem:[%s9093 + $0x40] sm:$0xff]
    %v9103 = vld [vmem:[%s9093 + $0x48] sm:$0xff]
    %v9104 = vld [vmem:[%s9093 + $0x50] sm:$0xff]
    %v9105 = vld [vmem:[%s9093 + $0x58] sm:$0xff]
    %v9106 = vld [vmem:[%s9093 + $0x60] sm:$0xff]
    %v9107 = vld [vmem:[%s9093 + $0x68] sm:$0xff]
    %v9108 = vld [vmem:[%s9093 + $0x70] sm:$0xff]
    %v9109 = vld [vmem:[%s9093 + $0x78] sm:$0xff]
    %v9110 = vrot.slane %v8964, 1
    %v9111 = vsel %vm1830, %v8965, %v9110
    %v9112 = vpack.c.b16 %v9111, %v9111
    %v9130 = vunpack.c.l.b16 %v9094
    %v9131 = vunpack.c.h.b16 %v9094
    %v9132 = vunpack.c.l.b16 %v9095
    %v9133 = vunpack.c.h.b16 %v9095
    %v9134 = vunpack.c.l.b16 %v9096
    %v9135 = vunpack.c.h.b16 %v9096
    %v9136 = vunpack.c.l.b16 %v9097
    %v9137 = vunpack.c.h.b16 %v9097
    %v9138 = vunpack.c.l.b16 %v9098
    %v9139 = vunpack.c.h.b16 %v9098
    %v9140 = vunpack.c.l.b16 %v9099
    %v9141 = vunpack.c.h.b16 %v9099
    %v9142 = vunpack.c.l.b16 %v9100
    %v9143 = vunpack.c.h.b16 %v9100
    %v9144 = vunpack.c.l.b16 %v9101
    %v9145 = vunpack.c.h.b16 %v9101
    %v9146 = vunpack.c.l.b16 %v9102
    %v9147 = vunpack.c.h.b16 %v9102
    %v9148 = vunpack.c.l.b16 %v9103
    %v9149 = vunpack.c.h.b16 %v9103
    %v9150 = vunpack.c.l.b16 %v9104
    %v9151 = vunpack.c.h.b16 %v9104
    %v9152 = vunpack.c.l.b16 %v9105
    %v9153 = vunpack.c.h.b16 %v9105
    %v9154 = vunpack.c.l.b16 %v9106
    %v9155 = vunpack.c.h.b16 %v9106
    %v9156 = vunpack.c.l.b16 %v9107
    %v9157 = vunpack.c.h.b16 %v9107
    %v9158 = vunpack.c.l.b16 %v9108
    %v9159 = vunpack.c.h.b16 %v9108
    %v9160 = vunpack.c.l.b16 %v9109
    %v9161 = vunpack.c.h.b16 %v9109
    %v9162 = vpack.c.b16 %v9132, %v9130
    %v9163 = vpack.c.b16 %v9133, %v9131
    %v9164 = vpack.c.b16 %v9136, %v9134
    %v9165 = vpack.c.b16 %v9137, %v9135
    %v9166 = vpack.c.b16 %v9140, %v9138
    %v9167 = vpack.c.b16 %v9141, %v9139
    %v9168 = vpack.c.b16 %v9144, %v9142
    %v9169 = vpack.c.b16 %v9145, %v9143
    %v9170 = vpack.c.b16 %v9148, %v9146
    %v9171 = vpack.c.b16 %v9149, %v9147
    %v9172 = vpack.c.b16 %v9152, %v9150
    %v9173 = vpack.c.b16 %v9153, %v9151
    %v9174 = vpack.c.b16 %v9156, %v9154
    %v9175 = vpack.c.b16 %v9157, %v9155
    %v9176 = vpack.c.b16 %v9160, %v9158
    %v9177 = vpack.c.b16 %v9161, %v9159
    %9194 = vmatprep.subr.bf16.mxu0 %v9177
    %9195 = vmatpush1.bf16.msra.mxu0 %v9176
    %9196 = vmatprep.subr.bf16.mxu0 %v9175
    %9197 = vmatpush1.bf16.msra.mxu0 %v9174
    %9198 = vmatprep.subr.bf16.mxu0 %v9173
    %9199 = vmatpush1.bf16.msra.mxu0 %v9172
    %9200 = vmatprep.subr.bf16.mxu0 %v9171
    %9201 = vmatpush1.bf16.msra.mxu0 %v9170
    %9202 = vmatprep.subr.bf16.mxu0 %v9169
    %9203 = vmatpush1.bf16.msra.mxu0 %v9168
    %9204 = vmatprep.subr.bf16.mxu0 %v9167
    %9205 = vmatpush1.bf16.msra.mxu0 %v9166
    %9206 = vmatprep.subr.bf16.mxu0 %v9165
    %9207 = vmatpush1.bf16.msra.mxu0 %v9164
    %9208 = vmatprep.subr.bf16.mxu0 %v9163
    %9209 = vmatpush1.bf16.msra.mxu0 %v9162
    %9210 = vmatprep.subr.bf16.mxu0 0
    %9211 = vmatpush2.bf16.msra.mxu0 0
    %9212 = vmatprep.subr.bf16.mxu0 0
    %9213 = vmatpush2.bf16.msra.mxu0 0
    %9214 = vmatprep.subr.bf16.mxu0 0
    %9215 = vmatpush2.bf16.msra.mxu0 0
    %9216 = vmatprep.subr.bf16.mxu0 0
    %9217 = vmatpush2.bf16.msra.mxu0 0
    %9218 = vmatprep.subr.bf16.mxu0 0
    %9219 = vmatpush2.bf16.msra.mxu0 0
    %9220 = vmatprep.subr.bf16.mxu0 0
    %9221 = vmatpush2.bf16.msra.mxu0 0
    %9222 = vmatprep.subr.bf16.mxu0 0
    %9223 = vmatpush2.bf16.msra.mxu0 0
    %9224 = vmatprep.subr.bf16.mxu0 0
    %9225 = vmatpush2.bf16.msra.mxu0 0
    %9226 = vmatprep.mubr.bf16.mxu0 0
    %9227 = vmatmul.mubr.bf16.gmra.mxu0 %v9112
    %v9228 = vpop.f32.mrf.mxu0
    %v9229 = vadd.f32 0.0, %v9228
    %v9230 = vpop.f32.mrf.mxu0
    %v9231 = vadd.f32 0.0, %v9230
    %v9232 = vpop.f32.mrf.mxu0
    %v9233 = vpop.f32.mrf.mxu0
    %9234 = vdwg.mxu0
    %v9235 = vadd.f32 %v9091, %v9229
    %v9236 = vadd.f32 %v9092, %v9231
    %s9237 = scalar_lea.vmem [#allocation2], 2304
    %v9238 = vld [vmem:[%s9237] sm:$0xff]
    %v9239 = vld [vmem:[%s9237 + $0x8] sm:$0xff]
    %v9240 = vld [vmem:[%s9237 + $0x10] sm:$0xff]
    %v9241 = vld [vmem:[%s9237 + $0x18] sm:$0xff]
    %v9242 = vld [vmem:[%s9237 + $0x20] sm:$0xff]
    %v9243 = vld [vmem:[%s9237 + $0x28] sm:$0xff]
    %v9244 = vld [vmem:[%s9237 + $0x30] sm:$0xff]
    %v9245 = vld [vmem:[%s9237 + $0x38] sm:$0xff]
    %v9246 = vld [vmem:[%s9237 + $0x40] sm:$0xff]
    %v9247 = vld [vmem:[%s9237 + $0x48] sm:$0xff]
    %v9248 = vld [vmem:[%s9237 + $0x50] sm:$0xff]
    %v9249 = vld [vmem:[%s9237 + $0x58] sm:$0xff]
    %v9250 = vld [vmem:[%s9237 + $0x60] sm:$0xff]
    %v9251 = vld [vmem:[%s9237 + $0x68] sm:$0xff]
    %v9252 = vld [vmem:[%s9237 + $0x70] sm:$0xff]
    %v9253 = vld [vmem:[%s9237 + $0x78] sm:$0xff]
    %v9254 = vrot.slane %v8964, 2
    %v9255 = vrot.slane %v8965, 1
    %v9256 = vsel %vm1830, %v9255, %v9254
    %v9257 = vpack.c.b16 %v9256, %v9256
    %v9275 = vunpack.c.l.b16 %v9238
    %v9276 = vunpack.c.h.b16 %v9238
    %v9277 = vunpack.c.l.b16 %v9239
    %v9278 = vunpack.c.h.b16 %v9239
    %v9279 = vunpack.c.l.b16 %v9240
    %v9280 = vunpack.c.h.b16 %v9240
    %v9281 = vunpack.c.l.b16 %v9241
    %v9282 = vunpack.c.h.b16 %v9241
    %v9283 = vunpack.c.l.b16 %v9242
    %v9284 = vunpack.c.h.b16 %v9242
    %v9285 = vunpack.c.l.b16 %v9243
    %v9286 = vunpack.c.h.b16 %v9243
    %v9287 = vunpack.c.l.b16 %v9244
    %v9288 = vunpack.c.h.b16 %v9244
    %v9289 = vunpack.c.l.b16 %v9245
    %v9290 = vunpack.c.h.b16 %v9245
    %v9291 = vunpack.c.l.b16 %v9246
    %v9292 = vunpack.c.h.b16 %v9246
    %v9293 = vunpack.c.l.b16 %v9247
    %v9294 = vunpack.c.h.b16 %v9247
    %v9295 = vunpack.c.l.b16 %v9248
    %v9296 = vunpack.c.h.b16 %v9248
    %v9297 = vunpack.c.l.b16 %v9249
    %v9298 = vunpack.c.h.b16 %v9249
    %v9299 = vunpack.c.l.b16 %v9250
    %v9300 = vunpack.c.h.b16 %v9250
    %v9301 = vunpack.c.l.b16 %v9251
    %v9302 = vunpack.c.h.b16 %v9251
    %v9303 = vunpack.c.l.b16 %v9252
    %v9304 = vunpack.c.h.b16 %v9252
    %v9305 = vunpack.c.l.b16 %v9253
    %v9306 = vunpack.c.h.b16 %v9253
    %v9307 = vpack.c.b16 %v9277, %v9275
    %v9308 = vpack.c.b16 %v9278, %v9276
    %v9309 = vpack.c.b16 %v9281, %v9279
    %v9310 = vpack.c.b16 %v9282, %v9280
    %v9311 = vpack.c.b16 %v9285, %v9283
    %v9312 = vpack.c.b16 %v9286, %v9284
    %v9313 = vpack.c.b16 %v9289, %v9287
    %v9314 = vpack.c.b16 %v9290, %v9288
    %v9315 = vpack.c.b16 %v9293, %v9291
    %v9316 = vpack.c.b16 %v9294, %v9292
    %v9317 = vpack.c.b16 %v9297, %v9295
    %v9318 = vpack.c.b16 %v9298, %v9296
    %v9319 = vpack.c.b16 %v9301, %v9299
    %v9320 = vpack.c.b16 %v9302, %v9300
    %v9321 = vpack.c.b16 %v9305, %v9303
    %v9322 = vpack.c.b16 %v9306, %v9304
    %9339 = vmatprep.subr.bf16.mxu0 %v9322
    %9340 = vmatpush1.bf16.msra.mxu0 %v9321
    %9341 = vmatprep.subr.bf16.mxu0 %v9320
    %9342 = vmatpush1.bf16.msra.mxu0 %v9319
    %9343 = vmatprep.subr.bf16.mxu0 %v9318
    %9344 = vmatpush1.bf16.msra.mxu0 %v9317
    %9345 = vmatprep.subr.bf16.mxu0 %v9316
    %9346 = vmatpush1.bf16.msra.mxu0 %v9315
    %9347 = vmatprep.subr.bf16.mxu0 %v9314
    %9348 = vmatpush1.bf16.msra.mxu0 %v9313
    %9349 = vmatprep.subr.bf16.mxu0 %v9312
    %9350 = vmatpush1.bf16.msra.mxu0 %v9311
    %9351 = vmatprep.subr.bf16.mxu0 %v9310
    %9352 = vmatpush1.bf16.msra.mxu0 %v9309
    %9353 = vmatprep.subr.bf16.mxu0 %v9308
    %9354 = vmatpush1.bf16.msra.mxu0 %v9307
    %9355 = vmatprep.subr.bf16.mxu0 0
    %9356 = vmatpush2.bf16.msra.mxu0 0
    %9357 = vmatprep.subr.bf16.mxu0 0
    %9358 = vmatpush2.bf16.msra.mxu0 0
    %9359 = vmatprep.subr.bf16.mxu0 0
    %9360 = vmatpush2.bf16.msra.mxu0 0
    %9361 = vmatprep.subr.bf16.mxu0 0
    %9362 = vmatpush2.bf16.msra.mxu0 0
    %9363 = vmatprep.subr.bf16.mxu0 0
    %9364 = vmatpush2.bf16.msra.mxu0 0
    %9365 = vmatprep.subr.bf16.mxu0 0
    %9366 = vmatpush2.bf16.msra.mxu0 0
    %9367 = vmatprep.subr.bf16.mxu0 0
    %9368 = vmatpush2.bf16.msra.mxu0 0
    %9369 = vmatprep.subr.bf16.mxu0 0
    %9370 = vmatpush2.bf16.msra.mxu0 0
    %9371 = vmatprep.mubr.bf16.mxu0 0
    %9372 = vmatmul.mubr.bf16.gmra.mxu0 %v9257
    %v9373 = vpop.f32.mrf.mxu0
    %v9374 = vadd.f32 0.0, %v9373
    %v9375 = vpop.f32.mrf.mxu0
    %v9376 = vadd.f32 0.0, %v9375
    %v9377 = vpop.f32.mrf.mxu0
    %v9378 = vpop.f32.mrf.mxu0
    %9379 = vdwg.mxu0
    %v9380 = vadd.f32 %v9235, %v9374
    %v9381 = vadd.f32 %v9236, %v9376
    %s9382 = scalar_lea.vmem [#allocation2], 2432
    %v9383 = vld [vmem:[%s9382] sm:$0xff]
    %v9384 = vld [vmem:[%s9382 + $0x8] sm:$0xff]
    %v9385 = vld [vmem:[%s9382 + $0x10] sm:$0xff]
    %v9386 = vld [vmem:[%s9382 + $0x18] sm:$0xff]
    %v9387 = vld [vmem:[%s9382 + $0x20] sm:$0xff]
    %v9388 = vld [vmem:[%s9382 + $0x28] sm:$0xff]
    %v9389 = vld [vmem:[%s9382 + $0x30] sm:$0xff]
    %v9390 = vld [vmem:[%s9382 + $0x38] sm:$0xff]
    %v9391 = vld [vmem:[%s9382 + $0x40] sm:$0xff]
    %v9392 = vld [vmem:[%s9382 + $0x48] sm:$0xff]
    %v9393 = vld [vmem:[%s9382 + $0x50] sm:$0xff]
    %v9394 = vld [vmem:[%s9382 + $0x58] sm:$0xff]
    %v9395 = vld [vmem:[%s9382 + $0x60] sm:$0xff]
    %v9396 = vld [vmem:[%s9382 + $0x68] sm:$0xff]
    %v9397 = vld [vmem:[%s9382 + $0x70] sm:$0xff]
    %v9398 = vld [vmem:[%s9382 + $0x78] sm:$0xff]
    %v9399 = vrot.slane %v8964, 3
    %v9400 = vrot.slane %v8965, 2
    %v9401 = vsel %vm1830, %v9400, %v9399
    %v9402 = vpack.c.b16 %v9401, %v9401
    %v9420 = vunpack.c.l.b16 %v9383
    %v9421 = vunpack.c.h.b16 %v9383
    %v9422 = vunpack.c.l.b16 %v9384
    %v9423 = vunpack.c.h.b16 %v9384
    %v9424 = vunpack.c.l.b16 %v9385
    %v9425 = vunpack.c.h.b16 %v9385
    %v9426 = vunpack.c.l.b16 %v9386
    %v9427 = vunpack.c.h.b16 %v9386
    %v9428 = vunpack.c.l.b16 %v9387
    %v9429 = vunpack.c.h.b16 %v9387
    %v9430 = vunpack.c.l.b16 %v9388
    %v9431 = vunpack.c.h.b16 %v9388
    %v9432 = vunpack.c.l.b16 %v9389
    %v9433 = vunpack.c.h.b16 %v9389
    %v9434 = vunpack.c.l.b16 %v9390
    %v9435 = vunpack.c.h.b16 %v9390
    %v9436 = vunpack.c.l.b16 %v9391
    %v9437 = vunpack.c.h.b16 %v9391
    %v9438 = vunpack.c.l.b16 %v9392
    %v9439 = vunpack.c.h.b16 %v9392
    %v9440 = vunpack.c.l.b16 %v9393
    %v9441 = vunpack.c.h.b16 %v9393
    %v9442 = vunpack.c.l.b16 %v9394
    %v9443 = vunpack.c.h.b16 %v9394
    %v9444 = vunpack.c.l.b16 %v9395
    %v9445 = vunpack.c.h.b16 %v9395
    %v9446 = vunpack.c.l.b16 %v9396
    %v9447 = vunpack.c.h.b16 %v9396
    %v9448 = vunpack.c.l.b16 %v9397
    %v9449 = vunpack.c.h.b16 %v9397
    %v9450 = vunpack.c.l.b16 %v9398
    %v9451 = vunpack.c.h.b16 %v9398
    %v9452 = vpack.c.b16 %v9422, %v9420
    %v9453 = vpack.c.b16 %v9423, %v9421
    %v9454 = vpack.c.b16 %v9426, %v9424
    %v9455 = vpack.c.b16 %v9427, %v9425
    %v9456 = vpack.c.b16 %v9430, %v9428
    %v9457 = vpack.c.b16 %v9431, %v9429
    %v9458 = vpack.c.b16 %v9434, %v9432
    %v9459 = vpack.c.b16 %v9435, %v9433
    %v9460 = vpack.c.b16 %v9438, %v9436
    %v9461 = vpack.c.b16 %v9439, %v9437
    %v9462 = vpack.c.b16 %v9442, %v9440
    %v9463 = vpack.c.b16 %v9443, %v9441
    %v9464 = vpack.c.b16 %v9446, %v9444
    %v9465 = vpack.c.b16 %v9447, %v9445
    %v9466 = vpack.c.b16 %v9450, %v9448
    %v9467 = vpack.c.b16 %v9451, %v9449
    %9484 = vmatprep.subr.bf16.mxu0 %v9467
    %9485 = vmatpush1.bf16.msra.mxu0 %v9466
    %9486 = vmatprep.subr.bf16.mxu0 %v9465
    %9487 = vmatpush1.bf16.msra.mxu0 %v9464
    %9488 = vmatprep.subr.bf16.mxu0 %v9463
    %9489 = vmatpush1.bf16.msra.mxu0 %v9462
    %9490 = vmatprep.subr.bf16.mxu0 %v9461
    %9491 = vmatpush1.bf16.msra.mxu0 %v9460
    %9492 = vmatprep.subr.bf16.mxu0 %v9459
    %9493 = vmatpush1.bf16.msra.mxu0 %v9458
    %9494 = vmatprep.subr.bf16.mxu0 %v9457
    %9495 = vmatpush1.bf16.msra.mxu0 %v9456
    %9496 = vmatprep.subr.bf16.mxu0 %v9455
    %9497 = vmatpush1.bf16.msra.mxu0 %v9454
    %9498 = vmatprep.subr.bf16.mxu0 %v9453
    %9499 = vmatpush1.bf16.msra.mxu0 %v9452
    %9500 = vmatprep.subr.bf16.mxu0 0
    %9501 = vmatpush2.bf16.msra.mxu0 0
    %9502 = vmatprep.subr.bf16.mxu0 0
    %9503 = vmatpush2.bf16.msra.mxu0 0
    %9504 = vmatprep.subr.bf16.mxu0 0
    %9505 = vmatpush2.bf16.msra.mxu0 0
    %9506 = vmatprep.subr.bf16.mxu0 0
    %9507 = vmatpush2.bf16.msra.mxu0 0
    %9508 = vmatprep.subr.bf16.mxu0 0
    %9509 = vmatpush2.bf16.msra.mxu0 0
    %9510 = vmatprep.subr.bf16.mxu0 0
    %9511 = vmatpush2.bf16.msra.mxu0 0
    %9512 = vmatprep.subr.bf16.mxu0 0
    %9513 = vmatpush2.bf16.msra.mxu0 0
    %9514 = vmatprep.subr.bf16.mxu0 0
    %9515 = vmatpush2.bf16.msra.mxu0 0
    %9516 = vmatprep.mubr.bf16.mxu0 0
    %9517 = vmatmul.mubr.bf16.gmra.mxu0 %v9402
    %v9518 = vpop.f32.mrf.mxu0
    %v9519 = vadd.f32 0.0, %v9518
    %v9520 = vpop.f32.mrf.mxu0
    %v9521 = vadd.f32 0.0, %v9520
    %v9522 = vpop.f32.mrf.mxu0
    %v9523 = vpop.f32.mrf.mxu0
    %9524 = vdwg.mxu0
    %v9525 = vadd.f32 %v9380, %v9519
    %v9526 = vadd.f32 %v9381, %v9521
    %s9527 = scalar_lea.vmem [#allocation2], 2560
    %v9528 = vld [vmem:[%s9527] sm:$0xff]
    %v9529 = vld [vmem:[%s9527 + $0x8] sm:$0xff]
    %v9530 = vld [vmem:[%s9527 + $0x10] sm:$0xff]
    %v9531 = vld [vmem:[%s9527 + $0x18] sm:$0xff]
    %v9532 = vld [vmem:[%s9527 + $0x20] sm:$0xff]
    %v9533 = vld [vmem:[%s9527 + $0x28] sm:$0xff]
    %v9534 = vld [vmem:[%s9527 + $0x30] sm:$0xff]
    %v9535 = vld [vmem:[%s9527 + $0x38] sm:$0xff]
    %v9536 = vld [vmem:[%s9527 + $0x40] sm:$0xff]
    %v9537 = vld [vmem:[%s9527 + $0x48] sm:$0xff]
    %v9538 = vld [vmem:[%s9527 + $0x50] sm:$0xff]
    %v9539 = vld [vmem:[%s9527 + $0x58] sm:$0xff]
    %v9540 = vld [vmem:[%s9527 + $0x60] sm:$0xff]
    %v9541 = vld [vmem:[%s9527 + $0x68] sm:$0xff]
    %v9542 = vld [vmem:[%s9527 + $0x70] sm:$0xff]
    %v9543 = vld [vmem:[%s9527 + $0x78] sm:$0xff]
    %v9544 = vrot.slane %v8964, 4
    %v9545 = vrot.slane %v8965, 3
    %v9546 = vsel %vm1830, %v9545, %v9544
    %v9547 = vpack.c.b16 %v9546, %v9546
    %v9565 = vunpack.c.l.b16 %v9528
    %v9566 = vunpack.c.h.b16 %v9528
    %v9567 = vunpack.c.l.b16 %v9529
    %v9568 = vunpack.c.h.b16 %v9529
    %v9569 = vunpack.c.l.b16 %v9530
    %v9570 = vunpack.c.h.b16 %v9530
    %v9571 = vunpack.c.l.b16 %v9531
    %v9572 = vunpack.c.h.b16 %v9531
    %v9573 = vunpack.c.l.b16 %v9532
    %v9574 = vunpack.c.h.b16 %v9532
    %v9575 = vunpack.c.l.b16 %v9533
    %v9576 = vunpack.c.h.b16 %v9533
    %v9577 = vunpack.c.l.b16 %v9534
    %v9578 = vunpack.c.h.b16 %v9534
    %v9579 = vunpack.c.l.b16 %v9535
    %v9580 = vunpack.c.h.b16 %v9535
    %v9581 = vunpack.c.l.b16 %v9536
    %v9582 = vunpack.c.h.b16 %v9536
    %v9583 = vunpack.c.l.b16 %v9537
    %v9584 = vunpack.c.h.b16 %v9537
    %v9585 = vunpack.c.l.b16 %v9538
    %v9586 = vunpack.c.h.b16 %v9538
    %v9587 = vunpack.c.l.b16 %v9539
    %v9588 = vunpack.c.h.b16 %v9539
    %v9589 = vunpack.c.l.b16 %v9540
    %v9590 = vunpack.c.h.b16 %v9540
    %v9591 = vunpack.c.l.b16 %v9541
    %v9592 = vunpack.c.h.b16 %v9541
    %v9593 = vunpack.c.l.b16 %v9542
    %v9594 = vunpack.c.h.b16 %v9542
    %v9595 = vunpack.c.l.b16 %v9543
    %v9596 = vunpack.c.h.b16 %v9543
    %v9597 = vpack.c.b16 %v9567, %v9565
    %v9598 = vpack.c.b16 %v9568, %v9566
    %v9599 = vpack.c.b16 %v9571, %v9569
    %v9600 = vpack.c.b16 %v9572, %v9570
    %v9601 = vpack.c.b16 %v9575, %v9573
    %v9602 = vpack.c.b16 %v9576, %v9574
    %v9603 = vpack.c.b16 %v9579, %v9577
    %v9604 = vpack.c.b16 %v9580, %v9578
    %v9605 = vpack.c.b16 %v9583, %v9581
    %v9606 = vpack.c.b16 %v9584, %v9582
    %v9607 = vpack.c.b16 %v9587, %v9585
    %v9608 = vpack.c.b16 %v9588, %v9586
    %v9609 = vpack.c.b16 %v9591, %v9589
    %v9610 = vpack.c.b16 %v9592, %v9590
    %v9611 = vpack.c.b16 %v9595, %v9593
    %v9612 = vpack.c.b16 %v9596, %v9594
    %9629 = vmatprep.subr.bf16.mxu0 %v9612
    %9630 = vmatpush1.bf16.msra.mxu0 %v9611
    %9631 = vmatprep.subr.bf16.mxu0 %v9610
    %9632 = vmatpush1.bf16.msra.mxu0 %v9609
    %9633 = vmatprep.subr.bf16.mxu0 %v9608
    %9634 = vmatpush1.bf16.msra.mxu0 %v9607
    %9635 = vmatprep.subr.bf16.mxu0 %v9606
    %9636 = vmatpush1.bf16.msra.mxu0 %v9605
    %9637 = vmatprep.subr.bf16.mxu0 %v9604
    %9638 = vmatpush1.bf16.msra.mxu0 %v9603
    %9639 = vmatprep.subr.bf16.mxu0 %v9602
    %9640 = vmatpush1.bf16.msra.mxu0 %v9601
    %9641 = vmatprep.subr.bf16.mxu0 %v9600
    %9642 = vmatpush1.bf16.msra.mxu0 %v9599
    %9643 = vmatprep.subr.bf16.mxu0 %v9598
    %9644 = vmatpush1.bf16.msra.mxu0 %v9597
    %9645 = vmatprep.subr.bf16.mxu0 0
    %9646 = vmatpush2.bf16.msra.mxu0 0
    %9647 = vmatprep.subr.bf16.mxu0 0
    %9648 = vmatpush2.bf16.msra.mxu0 0
    %9649 = vmatprep.subr.bf16.mxu0 0
    %9650 = vmatpush2.bf16.msra.mxu0 0
    %9651 = vmatprep.subr.bf16.mxu0 0
    %9652 = vmatpush2.bf16.msra.mxu0 0
    %9653 = vmatprep.subr.bf16.mxu0 0
    %9654 = vmatpush2.bf16.msra.mxu0 0
    %9655 = vmatprep.subr.bf16.mxu0 0
    %9656 = vmatpush2.bf16.msra.mxu0 0
    %9657 = vmatprep.subr.bf16.mxu0 0
    %9658 = vmatpush2.bf16.msra.mxu0 0
    %9659 = vmatprep.subr.bf16.mxu0 0
    %9660 = vmatpush2.bf16.msra.mxu0 0
    %9661 = vmatprep.mubr.bf16.mxu0 0
    %9662 = vmatmul.mubr.bf16.gmra.mxu0 %v9547
    %v9663 = vpop.f32.mrf.mxu0
    %v9664 = vadd.f32 0.0, %v9663
    %v9665 = vpop.f32.mrf.mxu0
    %v9666 = vadd.f32 0.0, %v9665
    %v9667 = vpop.f32.mrf.mxu0
    %v9668 = vpop.f32.mrf.mxu0
    %9669 = vdwg.mxu0
    %v9670 = vadd.f32 %v9525, %v9664
    %v9671 = vadd.f32 %v9526, %v9666
    %v9672 = vld [vmem:[#allocation15] sm:$0x3]
    %v9674 = vlaneseq
    %v9675 = vshrl.u32 %v9674, 7
    %v9676 = vsub.s32 0, %v9675
    %v9677 = vrot.slane %v9672, %v9676
    %v9678 = vlaneseq
    %v9679 = vshrl.u32 %v9678, 7
    %v9680 = vsub.s32 1, %v9679
    %v9681 = vrot.slane %v9672, %v9680
    %v9684 = vadd.f32 %v9670, %v9677
    %v9685 = vadd.f32 %v9671, %v9681
    %v9686 = vmax.f32 %v9684, 0.0
    %v9687 = vmax.f32 %v9685, 0.0
    %v9688 = vld [vmem:[#allocation16] sm:$0x3]
    %v9690 = vlaneseq
    %v9691 = vshrl.u32 %v9690, 7
    %v9692 = vsub.s32 0, %v9691
    %v9693 = vrot.slane %v9688, %v9692
    %v9694 = vlaneseq
    %v9695 = vshrl.u32 %v9694, 7
    %v9696 = vsub.s32 1, %v9695
    %v9697 = vrot.slane %v9688, %v9696
    %v9700 = vmul.f32 %v9686, %v9693
    %v9701 = vmul.f32 %v9687, %v9697
    %vm9702 = vcmask 1041408
    %v9703 = vsel %vm9702, %v9700, 0.0
    %v9704 = vsel %vm9702, %v9701, 0.0
    %v9705 = vadd.f32 %v9703, %v9704
    %9706 = vadd.xlane.f32.xlu0 %v9705
    %v9707 = vpop.xlane.xlu0 %9706
    %v9708 = vld [vmem:[#allocation4] sm:$0x1]
    %v9710 = vlaneseq
    %v9711 = vshrl.u32 %v9710, 7
    %v9712 = vsub.s32 0, %v9711
    %v9713 = vrot.slane %v9708, %v9712
    %v9715 = vadd.f32 %v9707, %v9713
    %v9716 = vmax.f32 %v9715, 0.0
    %vm9717 = vcmask 1024
    %9718 = vst.msk [vmem:[%s11] sm:$0x3] %vm9717, %v9716
    // Predicated region
    $region78: #{net_forward.1} parent=1 // pred_check
      _
    $region79: #{net_forward.1} parent=1 // pred_check_branch
      %9720 = sbr.rel (0) target = $region81
    $region80: #{net_forward.1} parent=1 // pred_region
      _
    $region81: #{net_forward.1} parent=1 // pred_fallthru
      _
    // Predicated region
    $region82: #{net_forward.1} parent=1 // pred_check
      _
    $region83: #{net_forward.1} parent=1 // pred_check_branch
      %9722 = sbr.rel (0) target = $region85
    $region84: #{net_forward.1} parent=1 // pred_region
      _
    $region85: #{net_forward.1} parent=1 // pred_fallthru
      _
    %9723 = vsyncpa [#allocation6], 1
    %9724 = vsyncpa [#allocation8], 1
    %9725 = vsyncpa [#allocation11], 1
    %9726 = vsyncpa [#allocation14], 1
    %9727 = vsyncpa [#allocation17], 1
  %9728 = vsyncmov [#allocation3]
  %s9729 = vpop.sfrf %9728
  %p9730 = scmp.eq.s32.totalorder %s9729, 0
  %p9731 = pneg %p9730
  %9733 = shalt.err (%p9731)

</llo_original>
